<compile_context>
chip_gen: v7x
topology: tpu7x:2x2x1
jax: 0.10.0
libtpu: 0.0.40
codegen_flags: <defaults>
</compile_context>

<pallas_src>
import functools

import jax
import jax.numpy as jnp
from jax import lax
from jax.experimental import pallas as pl
from jax.experimental.pallas import tpu as pltpu


def _attn_kernel(xq_ref, xk_ref, wq_ref, wk_ref, wv_ref, wproj_ref, bias_ref,
                 o_ref, q_scr, m_scr, l_scr, acc_scr,
                 *, num_heads: int, head_dim: int, approx_recip: bool):
    """One (batch, q-tile, k-tile) grid step of fused QKV + flash attention + proj.

    Block shapes:
      xq_ref    : (1, tq, C)  bf16   rows of x for this q tile
      xk_ref    : (1, tk, C)  bf16   rows of x for this k tile
      wq/wk/wv  : (H, C, hd)  bf16   per-head projection weights (scale folded into wq)
      wproj_ref : (H, hd, C)  bf16   per-head output-projection weights
      bias_ref  : (1, C)      f32
      o_ref     : (1, tq, C)         written only on the last k step
    Scratch (persist across the k axis):
      q_scr   (H, tq, hd) bf16 ; m_scr/l_scr (H, tq, 1) f32 ; acc_scr (H, tq, hd) f32
    """
    ki = pl.program_id(2)
    nk = pl.num_programs(2)
    C = num_heads * head_dim
    tq = q_scr.shape[1]

    # ---- per-q-tile init: project q (once) and reset online-softmax state ----
    @pl.when(ki == 0)
    def _init():
        xq = xq_ref[0]                                           # (tq, C) bf16
        for h in range(num_heads):
            qh = jnp.dot(xq, wq_ref[h],
                         preferred_element_type=jnp.float32)     # (tq, hd) f32
            q_scr[h] = qh.astype(jnp.bfloat16)
        m_scr[...] = jnp.full(m_scr.shape, -jnp.inf, dtype=jnp.float32)
        l_scr[...] = jnp.zeros(l_scr.shape, dtype=jnp.float32)
        acc_scr[...] = jnp.zeros(acc_scr.shape, dtype=jnp.float32)

    # ---- one k-tile of online-softmax attention, per head (unrolled) ----
    xk = xk_ref[0]                                               # (tk, C) bf16
    for h in range(num_heads):
        kh = jnp.dot(xk, wk_ref[h],
                     preferred_element_type=jnp.float32).astype(jnp.bfloat16)  # (tk, hd)
        vh = jnp.dot(xk, wv_ref[h],
                     preferred_element_type=jnp.float32).astype(jnp.bfloat16)  # (tk, hd)

        # scores: (tq, tk) = q_h @ k_h^T  (contraction on hd, no transpose op)
        s = lax.dot_general(q_scr[h], kh,
                            dimension_numbers=(((1,), (1,)), ((), ())),
                            preferred_element_type=jnp.float32)

        m_prev = m_scr[h]                                        # (tq, 1)
        m_new = jnp.maximum(m_prev, jnp.max(s, axis=-1, keepdims=True))
        alpha = jnp.exp(m_prev - m_new)                          # rescale of old state
        p = jnp.exp(s - m_new)                                   # (tq, tk) f32

        l_scr[h] = alpha * l_scr[h] + jnp.sum(p, axis=-1, keepdims=True)
        acc_scr[h] = alpha * acc_scr[h] + jnp.dot(
            p.astype(jnp.bfloat16), vh, preferred_element_type=jnp.float32)
        m_scr[h] = m_new

    # ---- finalize on last k step: normalize + fused output projection ----
    @pl.when(ki == nk - 1)
    def _finalize():
        out = jnp.zeros((tq, C), jnp.float32)
        for h in range(num_heads):
            if approx_recip:
                inv_l = pl.reciprocal(l_scr[h], approx=True)     # EUP slot
            else:
                inv_l = 1.0 / l_scr[h]
            ctx_h = (acc_scr[h] * inv_l).astype(jnp.bfloat16)    # (tq, hd)
            # head-concat folded into the contraction: sum_h ctx_h @ Wproj_h
            out = out + jnp.dot(ctx_h, wproj_ref[h],
                                preferred_element_type=jnp.float32)  # (tq, C)
        out = out + bias_ref[...]                                # (1, C) broadcast
        o_ref[0] = out.astype(o_ref.dtype)


def attention_pallas(x, w_qkv, w_proj, b_proj, *, num_heads: int,
                     tq: int = 256, tk: int = 256, approx_recip: bool = True):
    """x: (B, N, C); w_qkv: (3C, C); w_proj: (C, C); b_proj: (C,). Returns (B, N, C)."""
    B, N, C = x.shape
    assert C % num_heads == 0, "dim must be divisible by num_heads"
    hd = C // num_heads
    scale = float(hd) ** -0.5

    tq = min(tq, N)
    tk = min(tk, N)
    assert N % tq == 0 and N % tk == 0, "N must be divisible by the q/k tile sizes"

    # ---- wrapper-side weight prep (once, in XLA) ----
    # PyTorch Linear stores W[out, in]; split qkv, fold the softmax scale into
    # Wq, and lay every weight out per head so the kernel never transposes.
    wq, wk, wv = w_qkv[:C], w_qkv[C:2 * C], w_qkv[2 * C:]
    wq_h = jnp.transpose((wq * scale).reshape(num_heads, hd, C), (0, 2, 1)).astype(jnp.bfloat16)
    wk_h = jnp.transpose(wk.reshape(num_heads, hd, C), (0, 2, 1)).astype(jnp.bfloat16)
    wv_h = jnp.transpose(wv.reshape(num_heads, hd, C), (0, 2, 1)).astype(jnp.bfloat16)
    wp_h = jnp.transpose(w_proj).reshape(num_heads, hd, C).astype(jnp.bfloat16)   # (H, hd, C)
    bias = b_proj.reshape(1, C).astype(jnp.float32)
    x_bf = x.astype(jnp.bfloat16)                       # halve activation DMA bytes

    kernel = functools.partial(_attn_kernel, num_heads=num_heads, head_dim=hd,
                               approx_recip=approx_recip)

    grid = (B, N // tq, N // tk)
    inv = lambda b, qi, ki: (0, 0, 0)                   # grid-invariant weights

    return pl.pallas_call(
        kernel,
        out_shape=jax.ShapeDtypeStruct((B, N, C), x.dtype),
        grid_spec=pltpu.PrefetchScalarGridSpec(
            num_scalar_prefetch=0,
            grid=grid,
            in_specs=[
                pl.BlockSpec((1, tq, C), lambda b, qi, ki: (b, qi, 0)),   # x -> q rows
                pl.BlockSpec((1, tk, C), lambda b, qi, ki: (b, ki, 0)),   # x -> k/v rows
                pl.BlockSpec((num_heads, C, hd), inv),                    # Wq (scaled)
                pl.BlockSpec((num_heads, C, hd), inv),                    # Wk
                pl.BlockSpec((num_heads, C, hd), inv),                    # Wv
                pl.BlockSpec((num_heads, hd, C), inv),                    # Wproj per head
                pl.BlockSpec((1, C), lambda b, qi, ki: (0, 0)),           # bias
            ],
            out_specs=pl.BlockSpec((1, tq, C), lambda b, qi, ki: (b, qi, 0)),
            scratch_shapes=[
                pltpu.VMEM((num_heads, tq, hd), jnp.bfloat16),   # cached q (per q-tile)
                pltpu.VMEM((num_heads, tq, 1), jnp.float32),     # running max m
                pltpu.VMEM((num_heads, tq, 1), jnp.float32),     # running sum l
                pltpu.VMEM((num_heads, tq, hd), jnp.float32),    # output accumulator
            ],
        ),
        compiler_params=pltpu.CompilerParams(
            # batch and q-tile axes shard across TensorCores; k axis carries the
            # online-softmax reduction in scratch -> must be "arbitrary".
            dimension_semantics=("parallel", "parallel", "arbitrary"),
            vmem_limit_bytes=48 * 1024 * 1024,   # fits v7x's 64 MiB physical VMEM
        ),
    )(x_bf, x_bf, wq_h, wk_h, wv_h, wp_h, bias)


def attention_reference(x, w_qkv, w_proj, b_proj, *, num_heads: int):
    """Pure-JAX f32 reference mirroring the PyTorch forward exactly."""
    B, N, C = x.shape
    head_dim = C // num_heads
    scale = float(head_dim) ** -0.5

    qkv = x @ w_qkv.T                                            # (B, N, 3C)
    qkv = qkv.reshape(B, N, 3, num_heads, head_dim)
    qkv = jnp.transpose(qkv, (2, 0, 3, 1, 4))                    # (3, B, H, N, hd)
    q, k, v = qkv[0], qkv[1], qkv[2]
    q = q * scale
    attn = q @ jnp.swapaxes(k, -2, -1)                           # (B, H, N, N)
    attn = jax.nn.softmax(attn, axis=-1)
    out = attn @ v                                               # (B, H, N, hd)
    out = jnp.transpose(out, (0, 2, 1, 3)).reshape(B, N, C)
    return out @ w_proj.T + b_proj


if __name__ == "__main__":
    # Small but lane-dense shapes (C multiple of 128; several q/k tiles so the
    # online-softmax / flash path is actually exercised).
    B, N, dim, num_heads = 2, 256, 128, 4

    key = jax.random.PRNGKey(0)
    kx, kqkv, kproj, kb = jax.random.split(key, 4)

    x = jax.random.normal(kx, (B, N, dim), dtype=jnp.float32)
    w_qkv = jax.random.normal(kqkv, (3 * dim, dim), dtype=jnp.float32) * 0.05
    w_proj = jax.random.normal(kproj, (dim, dim), dtype=jnp.float32) * 0.05
    b_proj = jax.random.normal(kb, (dim,), dtype=jnp.float32) * 0.05

    # tq=tk=128 here so the demo runs a (2, 2, 2) grid; production (v6e/v7x)
    # would use the default 256 tiles to fill the 256x256 MXU.
    out = attention_pallas(x, w_qkv, w_proj, b_proj, num_heads=num_heads,
                           tq=128, tk=128)
    out = jax.block_until_ready(out)

    ref = attention_reference(x, w_qkv, w_proj, b_proj, num_heads=num_heads)
    assert out.shape == (B, N, dim)
    # bf16 matmul operands + approx reciprocal -> ~1e-3-level deltas vs f32 ref
    assert jnp.allclose(out, ref, atol=2e-2, rtol=2e-2), "mismatch vs reference"

    print("KERNEL_OK")
</pallas_src>

<mosaic_0001>
module attributes {stable_mosaic.version = 11 : i64} {
  func.func @_attn_kernel(%arg0: i32, %arg1: i32, %arg2: i32, %arg3: memref<1x128x128xbf16, #tpu.memory_space<vmem>>, %arg4: memref<1x128x128xbf16, #tpu.memory_space<vmem>>, %arg5: memref<4x128x32xbf16, #tpu.memory_space<vmem>>, %arg6: memref<4x128x32xbf16, #tpu.memory_space<vmem>>, %arg7: memref<4x128x32xbf16, #tpu.memory_space<vmem>>, %arg8: memref<4x32x128xbf16, #tpu.memory_space<vmem>>, %arg9: memref<1x128xf32, #tpu.memory_space<vmem>>, %arg10: memref<1x128x128xf32, #tpu.memory_space<vmem>>, %arg11: memref<4x128x32xbf16, #tpu.memory_space<vmem>>, %arg12: memref<4x128x1xf32, #tpu.memory_space<vmem>>, %arg13: memref<4x128x1xf32, #tpu.memory_space<vmem>>, %arg14: memref<4x128x32xf32, #tpu.memory_space<vmem>>) attributes {dimension_semantics = [#tpu.dimension_semantics<parallel>, #tpu.dimension_semantics<parallel>, #tpu.dimension_semantics<arbitrary>], iteration_bounds = array<i64: 2, 2, 2>, scalar_prefetch = 0 : i64, scratch_operands = 4 : i64, tpu.core_type = #tpu.core_type<tc>, window_params = [{transform_indices = @transform_0, window_bounds = array<i64: 1, 128, 128>}, {transform_indices = @transform_1, window_bounds = array<i64: 1, 128, 128>}, {pipeline_mode = #tpu.pipeline_mode<synchronous>, transform_indices = @transform_2, window_bounds = array<i64: 4, 128, 32>}, {pipeline_mode = #tpu.pipeline_mode<synchronous>, transform_indices = @transform_3, window_bounds = array<i64: 4, 128, 32>}, {pipeline_mode = #tpu.pipeline_mode<synchronous>, transform_indices = @transform_4, window_bounds = array<i64: 4, 128, 32>}, {pipeline_mode = #tpu.pipeline_mode<synchronous>, transform_indices = @transform_5, window_bounds = array<i64: 4, 32, 128>}, {pipeline_mode = #tpu.pipeline_mode<synchronous>, transform_indices = @transform_6, window_bounds = array<i64: 1, 128>}, {transform_indices = @transform_7, window_bounds = array<i64: 1, 128, 128>}]} {
    %c0_i32 = arith.constant 0 : i32
    %0 = arith.cmpi eq, %arg2, %c0_i32 : i32
    %1 = arith.extui %0 : i1 to i32
    %c0_i32_0 = arith.constant 0 : i32
    %2 = arith.cmpi ne, %1, %c0_i32_0 : i32
    scf.if %2 {
      %c0_132 = arith.constant 0 : index
      %c0_133 = arith.constant 0 : index
      %c0_134 = arith.constant 0 : index
      %180 = vector.load %arg3[%c0_132, %c0_133, %c0_134] : memref<1x128x128xbf16, #tpu.memory_space<vmem>>, vector<1x128x128xbf16>
      %181 = vector.shape_cast %180 : vector<1x128x128xbf16> to vector<128x128xbf16>
      %c0_135 = arith.constant 0 : index
      %c0_136 = arith.constant 0 : index
      %c0_137 = arith.constant 0 : index
      %182 = vector.load %arg5[%c0_135, %c0_136, %c0_137] : memref<4x128x32xbf16, #tpu.memory_space<vmem>>, vector<1x128x32xbf16>
      %183 = vector.shape_cast %182 : vector<1x128x32xbf16> to vector<128x32xbf16>
      %cst_138 = arith.constant dense<0.000000e+00> : vector<128x32xf32>
      %184 = tpu.matmul %181, %183, %cst_138 {dimension_numbers = #tpu.dot_dimension_numbers<[1], [0], [0], [1], [0, 0, 1, 1], [], []>} : vector<128x128xbf16>, vector<128x32xbf16>, vector<128x32xf32> -> vector<128x32xf32>
      %185 = arith.truncf %184 : vector<128x32xf32> to vector<128x32xbf16>
      %c0_139 = arith.constant 0 : index
      %c0_140 = arith.constant 0 : index
      %c0_141 = arith.constant 0 : index
      %186 = vector.load %arg11[%c0_139, %c0_140, %c0_141] : memref<4x128x32xbf16, #tpu.memory_space<vmem>>, vector<1x128x32xbf16>
      %187 = vector.shape_cast %186 : vector<1x128x32xbf16> to vector<128x32xbf16>
      %188 = vector.shape_cast %185 : vector<128x32xbf16> to vector<1x128x32xbf16>
      tpu.vector_store %arg11[%c0_139, %c0_140, %c0_141], %188 {strides = array<i32>} : memref<4x128x32xbf16, #tpu.memory_space<vmem>>, vector<1x128x32xbf16>,
      %c1_142 = arith.constant 1 : index
      %c0_143 = arith.constant 0 : index
      %c0_144 = arith.constant 0 : index
      %189 = vector.load %arg5[%c1_142, %c0_143, %c0_144] : memref<4x128x32xbf16, #tpu.memory_space<vmem>>, vector<1x128x32xbf16>
      %190 = vector.shape_cast %189 : vector<1x128x32xbf16> to vector<128x32xbf16>
      %cst_145 = arith.constant dense<0.000000e+00> : vector<128x32xf32>
      %191 = tpu.matmul %181, %190, %cst_145 {dimension_numbers = #tpu.dot_dimension_numbers<[1], [0], [0], [1], [0, 0, 1, 1], [], []>} : vector<128x128xbf16>, vector<128x32xbf16>, vector<128x32xf32> -> vector<128x32xf32>
      %192 = arith.truncf %191 : vector<128x32xf32> to vector<128x32xbf16>
      %c1_146 = arith.constant 1 : index
      %c0_147 = arith.constant 0 : index
      %c0_148 = arith.constant 0 : index
      %193 = vector.load %arg11[%c1_146, %c0_147, %c0_148] : memref<4x128x32xbf16, #tpu.memory_space<vmem>>, vector<1x128x32xbf16>
      %194 = vector.shape_cast %193 : vector<1x128x32xbf16> to vector<128x32xbf16>
      %195 = vector.shape_cast %192 : vector<128x32xbf16> to vector<1x128x32xbf16>
      tpu.vector_store %arg11[%c1_146, %c0_147, %c0_148], %195 {strides = array<i32>} : memref<4x128x32xbf16, #tpu.memory_space<vmem>>, vector<1x128x32xbf16>,
      %c2_149 = arith.constant 2 : index
      %c0_150 = arith.constant 0 : index
      %c0_151 = arith.constant 0 : index
      %196 = vector.load %arg5[%c2_149, %c0_150, %c0_151] : memref<4x128x32xbf16, #tpu.memory_space<vmem>>, vector<1x128x32xbf16>
      %197 = vector.shape_cast %196 : vector<1x128x32xbf16> to vector<128x32xbf16>
      %cst_152 = arith.constant dense<0.000000e+00> : vector<128x32xf32>
      %198 = tpu.matmul %181, %197, %cst_152 {dimension_numbers = #tpu.dot_dimension_numbers<[1], [0], [0], [1], [0, 0, 1, 1], [], []>} : vector<128x128xbf16>, vector<128x32xbf16>, vector<128x32xf32> -> vector<128x32xf32>
      %199 = arith.truncf %198 : vector<128x32xf32> to vector<128x32xbf16>
      %c2_153 = arith.constant 2 : index
      %c0_154 = arith.constant 0 : index
      %c0_155 = arith.constant 0 : index
      %200 = vector.load %arg11[%c2_153, %c0_154, %c0_155] : memref<4x128x32xbf16, #tpu.memory_space<vmem>>, vector<1x128x32xbf16>
      %201 = vector.shape_cast %200 : vector<1x128x32xbf16> to vector<128x32xbf16>
      %202 = vector.shape_cast %199 : vector<128x32xbf16> to vector<1x128x32xbf16>
      tpu.vector_store %arg11[%c2_153, %c0_154, %c0_155], %202 {strides = array<i32>} : memref<4x128x32xbf16, #tpu.memory_space<vmem>>, vector<1x128x32xbf16>,
      %c3_156 = arith.constant 3 : index
      %c0_157 = arith.constant 0 : index
      %c0_158 = arith.constant 0 : index
      %203 = vector.load %arg5[%c3_156, %c0_157, %c0_158] : memref<4x128x32xbf16, #tpu.memory_space<vmem>>, vector<1x128x32xbf16>
      %204 = vector.shape_cast %203 : vector<1x128x32xbf16> to vector<128x32xbf16>
      %cst_159 = arith.constant dense<0.000000e+00> : vector<128x32xf32>
      %205 = tpu.matmul %181, %204, %cst_159 {dimension_numbers = #tpu.dot_dimension_numbers<[1], [0], [0], [1], [0, 0, 1, 1], [], []>} : vector<128x128xbf16>, vector<128x32xbf16>, vector<128x32xf32> -> vector<128x32xf32>
      %206 = arith.truncf %205 : vector<128x32xf32> to vector<128x32xbf16>
      %c3_160 = arith.constant 3 : index
      %c0_161 = arith.constant 0 : index
      %c0_162 = arith.constant 0 : index
      %207 = vector.load %arg11[%c3_160, %c0_161, %c0_162] : memref<4x128x32xbf16, #tpu.memory_space<vmem>>, vector<1x128x32xbf16>
      %208 = vector.shape_cast %207 : vector<1x128x32xbf16> to vector<128x32xbf16>
      %209 = vector.shape_cast %206 : vector<128x32xbf16> to vector<1x128x32xbf16>
      tpu.vector_store %arg11[%c3_160, %c0_161, %c0_162], %209 {strides = array<i32>} : memref<4x128x32xbf16, #tpu.memory_space<vmem>>, vector<1x128x32xbf16>,
      %cst_163 = arith.constant 0xFF800000 : f32
      %210 = vector.broadcast %cst_163 : f32 to vector<4x128x1xf32>
      %c0_164 = arith.constant 0 : index
      %c0_165 = arith.constant 0 : index
      %c0_166 = arith.constant 0 : index
      %211 = vector.load %arg12[%c0_164, %c0_165, %c0_166] : memref<4x128x1xf32, #tpu.memory_space<vmem>>, vector<4x128x1xf32>
      tpu.vector_store %arg12[%c0_164, %c0_165, %c0_166], %210 {strides = array<i32>} : memref<4x128x1xf32, #tpu.memory_space<vmem>>, vector<4x128x1xf32>,
      %cst_167 = arith.constant 0.000000e+00 : f32
      %212 = vector.broadcast %cst_167 : f32 to vector<4x128x1xf32>
      %c0_168 = arith.constant 0 : index
      %c0_169 = arith.constant 0 : index
      %c0_170 = arith.constant 0 : index
      %213 = vector.load %arg13[%c0_168, %c0_169, %c0_170] : memref<4x128x1xf32, #tpu.memory_space<vmem>>, vector<4x128x1xf32>
      tpu.vector_store %arg13[%c0_168, %c0_169, %c0_170], %212 {strides = array<i32>} : memref<4x128x1xf32, #tpu.memory_space<vmem>>, vector<4x128x1xf32>,
      %cst_171 = arith.constant 0.000000e+00 : f32
      %214 = vector.broadcast %cst_171 : f32 to vector<4x128x32xf32>
      %c0_172 = arith.constant 0 : index
      %c0_173 = arith.constant 0 : index
      %c0_174 = arith.constant 0 : index
      %215 = vector.load %arg14[%c0_172, %c0_173, %c0_174] : memref<4x128x32xf32, #tpu.memory_space<vmem>>, vector<4x128x32xf32>
      tpu.vector_store %arg14[%c0_172, %c0_173, %c0_174], %214 {strides = array<i32>} : memref<4x128x32xf32, #tpu.memory_space<vmem>>, vector<4x128x32xf32>,
    } else {
    }
    %c0 = arith.constant 0 : index
    %c0_1 = arith.constant 0 : index
    %c0_2 = arith.constant 0 : index
    %3 = vector.load %arg4[%c0, %c0_1, %c0_2] : memref<1x128x128xbf16, #tpu.memory_space<vmem>>, vector<1x128x128xbf16>
    %4 = vector.shape_cast %3 : vector<1x128x128xbf16> to vector<128x128xbf16>
    %c0_3 = arith.constant 0 : index
    %c0_4 = arith.constant 0 : index
    %c0_5 = arith.constant 0 : index
    %5 = vector.load %arg6[%c0_3, %c0_4, %c0_5] : memref<4x128x32xbf16, #tpu.memory_space<vmem>>, vector<1x128x32xbf16>
    %6 = vector.shape_cast %5 : vector<1x128x32xbf16> to vector<128x32xbf16>
    %cst = arith.constant dense<0.000000e+00> : vector<128x32xf32>
    %7 = tpu.matmul %4, %6, %cst {dimension_numbers = #tpu.dot_dimension_numbers<[1], [0], [0], [1], [0, 0, 1, 1], [], []>} : vector<128x128xbf16>, vector<128x32xbf16>, vector<128x32xf32> -> vector<128x32xf32>
    %8 = arith.truncf %7 : vector<128x32xf32> to vector<128x32xbf16>
    %c0_6 = arith.constant 0 : index
    %c0_7 = arith.constant 0 : index
    %c0_8 = arith.constant 0 : index
    %9 = vector.load %arg7[%c0_6, %c0_7, %c0_8] : memref<4x128x32xbf16, #tpu.memory_space<vmem>>, vector<1x128x32xbf16>
    %10 = vector.shape_cast %9 : vector<1x128x32xbf16> to vector<128x32xbf16>
    %cst_9 = arith.constant dense<0.000000e+00> : vector<128x32xf32>
    %11 = tpu.matmul %4, %10, %cst_9 {dimension_numbers = #tpu.dot_dimension_numbers<[1], [0], [0], [1], [0, 0, 1, 1], [], []>} : vector<128x128xbf16>, vector<128x32xbf16>, vector<128x32xf32> -> vector<128x32xf32>
    %12 = arith.truncf %11 : vector<128x32xf32> to vector<128x32xbf16>
    %c0_10 = arith.constant 0 : index
    %c0_11 = arith.constant 0 : index
    %c0_12 = arith.constant 0 : index
    %13 = vector.load %arg11[%c0_10, %c0_11, %c0_12] : memref<4x128x32xbf16, #tpu.memory_space<vmem>>, vector<1x128x32xbf16>
    %14 = vector.shape_cast %13 : vector<1x128x32xbf16> to vector<128x32xbf16>
    %cst_13 = arith.constant dense<0.000000e+00> : vector<128x128xf32>
    %15 = tpu.matmul %14, %8, %cst_13 {dimension_numbers = #tpu.dot_dimension_numbers<[1], [1], [0], [0], [0, 0, 1, 0], [], []>} : vector<128x32xbf16>, vector<128x32xbf16>, vector<128x128xf32> -> vector<128x128xf32>
    %c0_14 = arith.constant 0 : index
    %c0_15 = arith.constant 0 : index
    %c0_16 = arith.constant 0 : index
    %16 = vector.load %arg12[%c0_14, %c0_15, %c0_16] : memref<4x128x1xf32, #tpu.memory_space<vmem>>, vector<1x128x1xf32>
    %17 = vector.shape_cast %16 : vector<1x128x1xf32> to vector<128x1xf32>
    %cst_17 = arith.constant dense<0xFF800000> : vector<128xf32>
    %18 = vector.multi_reduction <maximumf>, %15, %cst_17 [1] : vector<128x128xf32> to vector<128xf32>
    %19 = vector.shape_cast %18 : vector<128xf32> to vector<128x1xf32>
    %20 = arith.maximumf %17, %19 : vector<128x1xf32>
    %21 = arith.subf %17, %20 : vector<128x1xf32>
    %22 = math.exp %21 : vector<128x1xf32>
    %23 = vector.broadcast %20 : vector<128x1xf32> to vector<128x128xf32>
    %24 = arith.subf %15, %23 : vector<128x128xf32>
    %25 = math.exp %24 : vector<128x128xf32>
    %c0_18 = arith.constant 0 : index
    %c0_19 = arith.constant 0 : index
    %c0_20 = arith.constant 0 : index
    %26 = vector.load %arg13[%c0_18, %c0_19, %c0_20] : memref<4x128x1xf32, #tpu.memory_space<vmem>>, vector<1x128x1xf32>
    %27 = vector.shape_cast %26 : vector<1x128x1xf32> to vector<128x1xf32>
    %28 = arith.mulf %22, %27 : vector<128x1xf32>
    %cst_21 = arith.constant dense<0.000000e+00> : vector<128xf32>
    %29 = vector.multi_reduction <add>, %25, %cst_21 [1] : vector<128x128xf32> to vector<128xf32>
    %30 = vector.shape_cast %29 : vector<128xf32> to vector<128x1xf32>
    %31 = arith.addf %28, %30 : vector<128x1xf32>
    %c0_22 = arith.constant 0 : index
    %c0_23 = arith.constant 0 : index
    %c0_24 = arith.constant 0 : index
    %32 = vector.load %arg13[%c0_22, %c0_23, %c0_24] : memref<4x128x1xf32, #tpu.memory_space<vmem>>, vector<1x128x1xf32>
    %33 = vector.shape_cast %32 : vector<1x128x1xf32> to vector<128x1xf32>
    %34 = vector.shape_cast %31 : vector<128x1xf32> to vector<1x128x1xf32>
    tpu.vector_store %arg13[%c0_22, %c0_23, %c0_24], %34 {strides = array<i32>} : memref<4x128x1xf32, #tpu.memory_space<vmem>>, vector<1x128x1xf32>,
    %c0_25 = arith.constant 0 : index
    %c0_26 = arith.constant 0 : index
    %c0_27 = arith.constant 0 : index
    %35 = vector.load %arg14[%c0_25, %c0_26, %c0_27] : memref<4x128x32xf32, #tpu.memory_space<vmem>>, vector<1x128x32xf32>
    %36 = vector.shape_cast %35 : vector<1x128x32xf32> to vector<128x32xf32>
    %37 = vector.broadcast %22 : vector<128x1xf32> to vector<128x32xf32>
    %38 = arith.mulf %37, %36 : vector<128x32xf32>
    %39 = arith.truncf %25 : vector<128x128xf32> to vector<128x128xbf16>
    %cst_28 = arith.constant dense<0.000000e+00> : vector<128x32xf32>
    %40 = tpu.matmul %39, %12, %cst_28 {dimension_numbers = #tpu.dot_dimension_numbers<[1], [0], [0], [1], [0, 0, 1, 1], [], []>} : vector<128x128xbf16>, vector<128x32xbf16>, vector<128x32xf32> -> vector<128x32xf32>
    %41 = arith.addf %38, %40 : vector<128x32xf32>
    %c0_29 = arith.constant 0 : index
    %c0_30 = arith.constant 0 : index
    %c0_31 = arith.constant 0 : index
    %42 = vector.load %arg14[%c0_29, %c0_30, %c0_31] : memref<4x128x32xf32, #tpu.memory_space<vmem>>, vector<1x128x32xf32>
    %43 = vector.shape_cast %42 : vector<1x128x32xf32> to vector<128x32xf32>
    %44 = vector.shape_cast %41 : vector<128x32xf32> to vector<1x128x32xf32>
    tpu.vector_store %arg14[%c0_29, %c0_30, %c0_31], %44 {strides = array<i32>} : memref<4x128x32xf32, #tpu.memory_space<vmem>>, vector<1x128x32xf32>,
    %c0_32 = arith.constant 0 : index
    %c0_33 = arith.constant 0 : index
    %c0_34 = arith.constant 0 : index
    %45 = vector.load %arg12[%c0_32, %c0_33, %c0_34] : memref<4x128x1xf32, #tpu.memory_space<vmem>>, vector<1x128x1xf32>
    %46 = vector.shape_cast %45 : vector<1x128x1xf32> to vector<128x1xf32>
    %47 = vector.shape_cast %20 : vector<128x1xf32> to vector<1x128x1xf32>
    tpu.vector_store %arg12[%c0_32, %c0_33, %c0_34], %47 {strides = array<i32>} : memref<4x128x1xf32, #tpu.memory_space<vmem>>, vector<1x128x1xf32>,
    %c1 = arith.constant 1 : index
    %c0_35 = arith.constant 0 : index
    %c0_36 = arith.constant 0 : index
    %48 = vector.load %arg6[%c1, %c0_35, %c0_36] : memref<4x128x32xbf16, #tpu.memory_space<vmem>>, vector<1x128x32xbf16>
    %49 = vector.shape_cast %48 : vector<1x128x32xbf16> to vector<128x32xbf16>
    %cst_37 = arith.constant dense<0.000000e+00> : vector<128x32xf32>
    %50 = tpu.matmul %4, %49, %cst_37 {dimension_numbers = #tpu.dot_dimension_numbers<[1], [0], [0], [1], [0, 0, 1, 1], [], []>} : vector<128x128xbf16>, vector<128x32xbf16>, vector<128x32xf32> -> vector<128x32xf32>
    %51 = arith.truncf %50 : vector<128x32xf32> to vector<128x32xbf16>
    %c1_38 = arith.constant 1 : index
    %c0_39 = arith.constant 0 : index
    %c0_40 = arith.constant 0 : index
    %52 = vector.load %arg7[%c1_38, %c0_39, %c0_40] : memref<4x128x32xbf16, #tpu.memory_space<vmem>>, vector<1x128x32xbf16>
    %53 = vector.shape_cast %52 : vector<1x128x32xbf16> to vector<128x32xbf16>
    %cst_41 = arith.constant dense<0.000000e+00> : vector<128x32xf32>
    %54 = tpu.matmul %4, %53, %cst_41 {dimension_numbers = #tpu.dot_dimension_numbers<[1], [0], [0], [1], [0, 0, 1, 1], [], []>} : vector<128x128xbf16>, vector<128x32xbf16>, vector<128x32xf32> -> vector<128x32xf32>
    %55 = arith.truncf %54 : vector<128x32xf32> to vector<128x32xbf16>
    %c1_42 = arith.constant 1 : index
    %c0_43 = arith.constant 0 : index
    %c0_44 = arith.constant 0 : index
    %56 = vector.load %arg11[%c1_42, %c0_43, %c0_44] : memref<4x128x32xbf16, #tpu.memory_space<vmem>>, vector<1x128x32xbf16>
    %57 = vector.shape_cast %56 : vector<1x128x32xbf16> to vector<128x32xbf16>
    %cst_45 = arith.constant dense<0.000000e+00> : vector<128x128xf32>
    %58 = tpu.matmul %57, %51, %cst_45 {dimension_numbers = #tpu.dot_dimension_numbers<[1], [1], [0], [0], [0, 0, 1, 0], [], []>} : vector<128x32xbf16>, vector<128x32xbf16>, vector<128x128xf32> -> vector<128x128xf32>
    %c1_46 = arith.constant 1 : index
    %c0_47 = arith.constant 0 : index
    %c0_48 = arith.constant 0 : index
    %59 = vector.load %arg12[%c1_46, %c0_47, %c0_48] : memref<4x128x1xf32, #tpu.memory_space<vmem>>, vector<1x128x1xf32>
    %60 = vector.shape_cast %59 : vector<1x128x1xf32> to vector<128x1xf32>
    %cst_49 = arith.constant dense<0xFF800000> : vector<128xf32>
    %61 = vector.multi_reduction <maximumf>, %58, %cst_49 [1] : vector<128x128xf32> to vector<128xf32>
    %62 = vector.shape_cast %61 : vector<128xf32> to vector<128x1xf32>
    %63 = arith.maximumf %60, %62 : vector<128x1xf32>
    %64 = arith.subf %60, %63 : vector<128x1xf32>
    %65 = math.exp %64 : vector<128x1xf32>
    %66 = vector.broadcast %63 : vector<128x1xf32> to vector<128x128xf32>
    %67 = arith.subf %58, %66 : vector<128x128xf32>
    %68 = math.exp %67 : vector<128x128xf32>
    %c1_50 = arith.constant 1 : index
    %c0_51 = arith.constant 0 : index
    %c0_52 = arith.constant 0 : index
    %69 = vector.load %arg13[%c1_50, %c0_51, %c0_52] : memref<4x128x1xf32, #tpu.memory_space<vmem>>, vector<1x128x1xf32>
    %70 = vector.shape_cast %69 : vector<1x128x1xf32> to vector<128x1xf32>
    %71 = arith.mulf %65, %70 : vector<128x1xf32>
    %cst_53 = arith.constant dense<0.000000e+00> : vector<128xf32>
    %72 = vector.multi_reduction <add>, %68, %cst_53 [1] : vector<128x128xf32> to vector<128xf32>
    %73 = vector.shape_cast %72 : vector<128xf32> to vector<128x1xf32>
    %74 = arith.addf %71, %73 : vector<128x1xf32>
    %c1_54 = arith.constant 1 : index
    %c0_55 = arith.constant 0 : index
    %c0_56 = arith.constant 0 : index
    %75 = vector.load %arg13[%c1_54, %c0_55, %c0_56] : memref<4x128x1xf32, #tpu.memory_space<vmem>>, vector<1x128x1xf32>
    %76 = vector.shape_cast %75 : vector<1x128x1xf32> to vector<128x1xf32>
    %77 = vector.shape_cast %74 : vector<128x1xf32> to vector<1x128x1xf32>
    tpu.vector_store %arg13[%c1_54, %c0_55, %c0_56], %77 {strides = array<i32>} : memref<4x128x1xf32, #tpu.memory_space<vmem>>, vector<1x128x1xf32>,
    %c1_57 = arith.constant 1 : index
    %c0_58 = arith.constant 0 : index
    %c0_59 = arith.constant 0 : index
    %78 = vector.load %arg14[%c1_57, %c0_58, %c0_59] : memref<4x128x32xf32, #tpu.memory_space<vmem>>, vector<1x128x32xf32>
    %79 = vector.shape_cast %78 : vector<1x128x32xf32> to vector<128x32xf32>
    %80 = vector.broadcast %65 : vector<128x1xf32> to vector<128x32xf32>
    %81 = arith.mulf %80, %79 : vector<128x32xf32>
    %82 = arith.truncf %68 : vector<128x128xf32> to vector<128x128xbf16>
    %cst_60 = arith.constant dense<0.000000e+00> : vector<128x32xf32>
    %83 = tpu.matmul %82, %55, %cst_60 {dimension_numbers = #tpu.dot_dimension_numbers<[1], [0], [0], [1], [0, 0, 1, 1], [], []>} : vector<128x128xbf16>, vector<128x32xbf16>, vector<128x32xf32> -> vector<128x32xf32>
    %84 = arith.addf %81, %83 : vector<128x32xf32>
    %c1_61 = arith.constant 1 : index
    %c0_62 = arith.constant 0 : index
    %c0_63 = arith.constant 0 : index
    %85 = vector.load %arg14[%c1_61, %c0_62, %c0_63] : memref<4x128x32xf32, #tpu.memory_space<vmem>>, vector<1x128x32xf32>
    %86 = vector.shape_cast %85 : vector<1x128x32xf32> to vector<128x32xf32>
    %87 = vector.shape_cast %84 : vector<128x32xf32> to vector<1x128x32xf32>
    tpu.vector_store %arg14[%c1_61, %c0_62, %c0_63], %87 {strides = array<i32>} : memref<4x128x32xf32, #tpu.memory_space<vmem>>, vector<1x128x32xf32>,
    %c1_64 = arith.constant 1 : index
    %c0_65 = arith.constant 0 : index
    %c0_66 = arith.constant 0 : index
    %88 = vector.load %arg12[%c1_64, %c0_65, %c0_66] : memref<4x128x1xf32, #tpu.memory_space<vmem>>, vector<1x128x1xf32>
    %89 = vector.shape_cast %88 : vector<1x128x1xf32> to vector<128x1xf32>
    %90 = vector.shape_cast %63 : vector<128x1xf32> to vector<1x128x1xf32>
    tpu.vector_store %arg12[%c1_64, %c0_65, %c0_66], %90 {strides = array<i32>} : memref<4x128x1xf32, #tpu.memory_space<vmem>>, vector<1x128x1xf32>,
    %c2 = arith.constant 2 : index
    %c0_67 = arith.constant 0 : index
    %c0_68 = arith.constant 0 : index
    %91 = vector.load %arg6[%c2, %c0_67, %c0_68] : memref<4x128x32xbf16, #tpu.memory_space<vmem>>, vector<1x128x32xbf16>
    %92 = vector.shape_cast %91 : vector<1x128x32xbf16> to vector<128x32xbf16>
    %cst_69 = arith.constant dense<0.000000e+00> : vector<128x32xf32>
    %93 = tpu.matmul %4, %92, %cst_69 {dimension_numbers = #tpu.dot_dimension_numbers<[1], [0], [0], [1], [0, 0, 1, 1], [], []>} : vector<128x128xbf16>, vector<128x32xbf16>, vector<128x32xf32> -> vector<128x32xf32>
    %94 = arith.truncf %93 : vector<128x32xf32> to vector<128x32xbf16>
    %c2_70 = arith.constant 2 : index
    %c0_71 = arith.constant 0 : index
    %c0_72 = arith.constant 0 : index
    %95 = vector.load %arg7[%c2_70, %c0_71, %c0_72] : memref<4x128x32xbf16, #tpu.memory_space<vmem>>, vector<1x128x32xbf16>
    %96 = vector.shape_cast %95 : vector<1x128x32xbf16> to vector<128x32xbf16>
    %cst_73 = arith.constant dense<0.000000e+00> : vector<128x32xf32>
    %97 = tpu.matmul %4, %96, %cst_73 {dimension_numbers = #tpu.dot_dimension_numbers<[1], [0], [0], [1], [0, 0, 1, 1], [], []>} : vector<128x128xbf16>, vector<128x32xbf16>, vector<128x32xf32> -> vector<128x32xf32>
    %98 = arith.truncf %97 : vector<128x32xf32> to vector<128x32xbf16>
    %c2_74 = arith.constant 2 : index
    %c0_75 = arith.constant 0 : index
    %c0_76 = arith.constant 0 : index
    %99 = vector.load %arg11[%c2_74, %c0_75, %c0_76] : memref<4x128x32xbf16, #tpu.memory_space<vmem>>, vector<1x128x32xbf16>
    %100 = vector.shape_cast %99 : vector<1x128x32xbf16> to vector<128x32xbf16>
    %cst_77 = arith.constant dense<0.000000e+00> : vector<128x128xf32>
    %101 = tpu.matmul %100, %94, %cst_77 {dimension_numbers = #tpu.dot_dimension_numbers<[1], [1], [0], [0], [0, 0, 1, 0], [], []>} : vector<128x32xbf16>, vector<128x32xbf16>, vector<128x128xf32> -> vector<128x128xf32>
    %c2_78 = arith.constant 2 : index
    %c0_79 = arith.constant 0 : index
    %c0_80 = arith.constant 0 : index
    %102 = vector.load %arg12[%c2_78, %c0_79, %c0_80] : memref<4x128x1xf32, #tpu.memory_space<vmem>>, vector<1x128x1xf32>
    %103 = vector.shape_cast %102 : vector<1x128x1xf32> to vector<128x1xf32>
    %cst_81 = arith.constant dense<0xFF800000> : vector<128xf32>
    %104 = vector.multi_reduction <maximumf>, %101, %cst_81 [1] : vector<128x128xf32> to vector<128xf32>
    %105 = vector.shape_cast %104 : vector<128xf32> to vector<128x1xf32>
    %106 = arith.maximumf %103, %105 : vector<128x1xf32>
    %107 = arith.subf %103, %106 : vector<128x1xf32>
    %108 = math.exp %107 : vector<128x1xf32>
    %109 = vector.broadcast %106 : vector<128x1xf32> to vector<128x128xf32>
    %110 = arith.subf %101, %109 : vector<128x128xf32>
    %111 = math.exp %110 : vector<128x128xf32>
    %c2_82 = arith.constant 2 : index
    %c0_83 = arith.constant 0 : index
    %c0_84 = arith.constant 0 : index
    %112 = vector.load %arg13[%c2_82, %c0_83, %c0_84] : memref<4x128x1xf32, #tpu.memory_space<vmem>>, vector<1x128x1xf32>
    %113 = vector.shape_cast %112 : vector<1x128x1xf32> to vector<128x1xf32>
    %114 = arith.mulf %108, %113 : vector<128x1xf32>
    %cst_85 = arith.constant dense<0.000000e+00> : vector<128xf32>
    %115 = vector.multi_reduction <add>, %111, %cst_85 [1] : vector<128x128xf32> to vector<128xf32>
    %116 = vector.shape_cast %115 : vector<128xf32> to vector<128x1xf32>
    %117 = arith.addf %114, %116 : vector<128x1xf32>
    %c2_86 = arith.constant 2 : index
    %c0_87 = arith.constant 0 : index
    %c0_88 = arith.constant 0 : index
    %118 = vector.load %arg13[%c2_86, %c0_87, %c0_88] : memref<4x128x1xf32, #tpu.memory_space<vmem>>, vector<1x128x1xf32>
    %119 = vector.shape_cast %118 : vector<1x128x1xf32> to vector<128x1xf32>
    %120 = vector.shape_cast %117 : vector<128x1xf32> to vector<1x128x1xf32>
    tpu.vector_store %arg13[%c2_86, %c0_87, %c0_88], %120 {strides = array<i32>} : memref<4x128x1xf32, #tpu.memory_space<vmem>>, vector<1x128x1xf32>,
    %c2_89 = arith.constant 2 : index
    %c0_90 = arith.constant 0 : index
    %c0_91 = arith.constant 0 : index
    %121 = vector.load %arg14[%c2_89, %c0_90, %c0_91] : memref<4x128x32xf32, #tpu.memory_space<vmem>>, vector<1x128x32xf32>
    %122 = vector.shape_cast %121 : vector<1x128x32xf32> to vector<128x32xf32>
    %123 = vector.broadcast %108 : vector<128x1xf32> to vector<128x32xf32>
    %124 = arith.mulf %123, %122 : vector<128x32xf32>
    %125 = arith.truncf %111 : vector<128x128xf32> to vector<128x128xbf16>
    %cst_92 = arith.constant dense<0.000000e+00> : vector<128x32xf32>
    %126 = tpu.matmul %125, %98, %cst_92 {dimension_numbers = #tpu.dot_dimension_numbers<[1], [0], [0], [1], [0, 0, 1, 1], [], []>} : vector<128x128xbf16>, vector<128x32xbf16>, vector<128x32xf32> -> vector<128x32xf32>
    %127 = arith.addf %124, %126 : vector<128x32xf32>
    %c2_93 = arith.constant 2 : index
    %c0_94 = arith.constant 0 : index
    %c0_95 = arith.constant 0 : index
    %128 = vector.load %arg14[%c2_93, %c0_94, %c0_95] : memref<4x128x32xf32, #tpu.memory_space<vmem>>, vector<1x128x32xf32>
    %129 = vector.shape_cast %128 : vector<1x128x32xf32> to vector<128x32xf32>
    %130 = vector.shape_cast %127 : vector<128x32xf32> to vector<1x128x32xf32>
    tpu.vector_store %arg14[%c2_93, %c0_94, %c0_95], %130 {strides = array<i32>} : memref<4x128x32xf32, #tpu.memory_space<vmem>>, vector<1x128x32xf32>,
    %c2_96 = arith.constant 2 : index
    %c0_97 = arith.constant 0 : index
    %c0_98 = arith.constant 0 : index
    %131 = vector.load %arg12[%c2_96, %c0_97, %c0_98] : memref<4x128x1xf32, #tpu.memory_space<vmem>>, vector<1x128x1xf32>
    %132 = vector.shape_cast %131 : vector<1x128x1xf32> to vector<128x1xf32>
    %133 = vector.shape_cast %106 : vector<128x1xf32> to vector<1x128x1xf32>
    tpu.vector_store %arg12[%c2_96, %c0_97, %c0_98], %133 {strides = array<i32>} : memref<4x128x1xf32, #tpu.memory_space<vmem>>, vector<1x128x1xf32>,
    %c3 = arith.constant 3 : index
    %c0_99 = arith.constant 0 : index
    %c0_100 = arith.constant 0 : index
    %134 = vector.load %arg6[%c3, %c0_99, %c0_100] : memref<4x128x32xbf16, #tpu.memory_space<vmem>>, vector<1x128x32xbf16>
    %135 = vector.shape_cast %134 : vector<1x128x32xbf16> to vector<128x32xbf16>
    %cst_101 = arith.constant dense<0.000000e+00> : vector<128x32xf32>
    %136 = tpu.matmul %4, %135, %cst_101 {dimension_numbers = #tpu.dot_dimension_numbers<[1], [0], [0], [1], [0, 0, 1, 1], [], []>} : vector<128x128xbf16>, vector<128x32xbf16>, vector<128x32xf32> -> vector<128x32xf32>
    %137 = arith.truncf %136 : vector<128x32xf32> to vector<128x32xbf16>
    %c3_102 = arith.constant 3 : index
    %c0_103 = arith.constant 0 : index
    %c0_104 = arith.constant 0 : index
    %138 = vector.load %arg7[%c3_102, %c0_103, %c0_104] : memref<4x128x32xbf16, #tpu.memory_space<vmem>>, vector<1x128x32xbf16>
    %139 = vector.shape_cast %138 : vector<1x128x32xbf16> to vector<128x32xbf16>
    %cst_105 = arith.constant dense<0.000000e+00> : vector<128x32xf32>
    %140 = tpu.matmul %4, %139, %cst_105 {dimension_numbers = #tpu.dot_dimension_numbers<[1], [0], [0], [1], [0, 0, 1, 1], [], []>} : vector<128x128xbf16>, vector<128x32xbf16>, vector<128x32xf32> -> vector<128x32xf32>
    %141 = arith.truncf %140 : vector<128x32xf32> to vector<128x32xbf16>
    %c3_106 = arith.constant 3 : index
    %c0_107 = arith.constant 0 : index
    %c0_108 = arith.constant 0 : index
    %142 = vector.load %arg11[%c3_106, %c0_107, %c0_108] : memref<4x128x32xbf16, #tpu.memory_space<vmem>>, vector<1x128x32xbf16>
    %143 = vector.shape_cast %142 : vector<1x128x32xbf16> to vector<128x32xbf16>
    %cst_109 = arith.constant dense<0.000000e+00> : vector<128x128xf32>
    %144 = tpu.matmul %143, %137, %cst_109 {dimension_numbers = #tpu.dot_dimension_numbers<[1], [1], [0], [0], [0, 0, 1, 0], [], []>} : vector<128x32xbf16>, vector<128x32xbf16>, vector<128x128xf32> -> vector<128x128xf32>
    %c3_110 = arith.constant 3 : index
    %c0_111 = arith.constant 0 : index
    %c0_112 = arith.constant 0 : index
    %145 = vector.load %arg12[%c3_110, %c0_111, %c0_112] : memref<4x128x1xf32, #tpu.memory_space<vmem>>, vector<1x128x1xf32>
    %146 = vector.shape_cast %145 : vector<1x128x1xf32> to vector<128x1xf32>
    %cst_113 = arith.constant dense<0xFF800000> : vector<128xf32>
    %147 = vector.multi_reduction <maximumf>, %144, %cst_113 [1] : vector<128x128xf32> to vector<128xf32>
    %148 = vector.shape_cast %147 : vector<128xf32> to vector<128x1xf32>
    %149 = arith.maximumf %146, %148 : vector<128x1xf32>
    %150 = arith.subf %146, %149 : vector<128x1xf32>
    %151 = math.exp %150 : vector<128x1xf32>
    %152 = vector.broadcast %149 : vector<128x1xf32> to vector<128x128xf32>
    %153 = arith.subf %144, %152 : vector<128x128xf32>
    %154 = math.exp %153 : vector<128x128xf32>
    %c3_114 = arith.constant 3 : index
    %c0_115 = arith.constant 0 : index
    %c0_116 = arith.constant 0 : index
    %155 = vector.load %arg13[%c3_114, %c0_115, %c0_116] : memref<4x128x1xf32, #tpu.memory_space<vmem>>, vector<1x128x1xf32>
    %156 = vector.shape_cast %155 : vector<1x128x1xf32> to vector<128x1xf32>
    %157 = arith.mulf %151, %156 : vector<128x1xf32>
    %cst_117 = arith.constant dense<0.000000e+00> : vector<128xf32>
    %158 = vector.multi_reduction <add>, %154, %cst_117 [1] : vector<128x128xf32> to vector<128xf32>
    %159 = vector.shape_cast %158 : vector<128xf32> to vector<128x1xf32>
    %160 = arith.addf %157, %159 : vector<128x1xf32>
    %c3_118 = arith.constant 3 : index
    %c0_119 = arith.constant 0 : index
    %c0_120 = arith.constant 0 : index
    %161 = vector.load %arg13[%c3_118, %c0_119, %c0_120] : memref<4x128x1xf32, #tpu.memory_space<vmem>>, vector<1x128x1xf32>
    %162 = vector.shape_cast %161 : vector<1x128x1xf32> to vector<128x1xf32>
    %163 = vector.shape_cast %160 : vector<128x1xf32> to vector<1x128x1xf32>
    tpu.vector_store %arg13[%c3_118, %c0_119, %c0_120], %163 {strides = array<i32>} : memref<4x128x1xf32, #tpu.memory_space<vmem>>, vector<1x128x1xf32>,
    %c3_121 = arith.constant 3 : index
    %c0_122 = arith.constant 0 : index
    %c0_123 = arith.constant 0 : index
    %164 = vector.load %arg14[%c3_121, %c0_122, %c0_123] : memref<4x128x32xf32, #tpu.memory_space<vmem>>, vector<1x128x32xf32>
    %165 = vector.shape_cast %164 : vector<1x128x32xf32> to vector<128x32xf32>
    %166 = vector.broadcast %151 : vector<128x1xf32> to vector<128x32xf32>
    %167 = arith.mulf %166, %165 : vector<128x32xf32>
    %168 = arith.truncf %154 : vector<128x128xf32> to vector<128x128xbf16>
    %cst_124 = arith.constant dense<0.000000e+00> : vector<128x32xf32>
    %169 = tpu.matmul %168, %141, %cst_124 {dimension_numbers = #tpu.dot_dimension_numbers<[1], [0], [0], [1], [0, 0, 1, 1], [], []>} : vector<128x128xbf16>, vector<128x32xbf16>, vector<128x32xf32> -> vector<128x32xf32>
    %170 = arith.addf %167, %169 : vector<128x32xf32>
    %c3_125 = arith.constant 3 : index
    %c0_126 = arith.constant 0 : index
    %c0_127 = arith.constant 0 : index
    %171 = vector.load %arg14[%c3_125, %c0_126, %c0_127] : memref<4x128x32xf32, #tpu.memory_space<vmem>>, vector<1x128x32xf32>
    %172 = vector.shape_cast %171 : vector<1x128x32xf32> to vector<128x32xf32>
    %173 = vector.shape_cast %170 : vector<128x32xf32> to vector<1x128x32xf32>
    tpu.vector_store %arg14[%c3_125, %c0_126, %c0_127], %173 {strides = array<i32>} : memref<4x128x32xf32, #tpu.memory_space<vmem>>, vector<1x128x32xf32>,
    %c3_128 = arith.constant 3 : index
    %c0_129 = arith.constant 0 : index
    %c0_130 = arith.constant 0 : index
    %174 = vector.load %arg12[%c3_128, %c0_129, %c0_130] : memref<4x128x1xf32, #tpu.memory_space<vmem>>, vector<1x128x1xf32>
    %175 = vector.shape_cast %174 : vector<1x128x1xf32> to vector<128x1xf32>
    %176 = vector.shape_cast %149 : vector<128x1xf32> to vector<1x128x1xf32>
    tpu.vector_store %arg12[%c3_128, %c0_129, %c0_130], %176 {strides = array<i32>} : memref<4x128x1xf32, #tpu.memory_space<vmem>>, vector<1x128x1xf32>,
    %c1_i32 = arith.constant 1 : i32
    %177 = arith.cmpi eq, %arg2, %c1_i32 : i32
    %178 = arith.extui %177 : i1 to i32
    %c0_i32_131 = arith.constant 0 : i32
    %179 = arith.cmpi ne, %178, %c0_i32_131 : i32
    scf.if %179 {
      %cst_132 = arith.constant 0.000000e+00 : f32
      %180 = vector.broadcast %cst_132 : f32 to vector<128x128xf32>
      %c0_133 = arith.constant 0 : index
      %c0_134 = arith.constant 0 : index
      %c0_135 = arith.constant 0 : index
      %181 = vector.load %arg13[%c0_133, %c0_134, %c0_135] : memref<4x128x1xf32, #tpu.memory_space<vmem>>, vector<1x128x1xf32>
      %182 = vector.shape_cast %181 : vector<1x128x1xf32> to vector<128x1xf32>
      %183 = tpu.reciprocal %182 {approx = true} : vector<128x1xf32> -> vector<128x1xf32>
      %c0_136 = arith.constant 0 : index
      %c0_137 = arith.constant 0 : index
      %c0_138 = arith.constant 0 : index
      %184 = vector.load %arg14[%c0_136, %c0_137, %c0_138] : memref<4x128x32xf32, #tpu.memory_space<vmem>>, vector<1x128x32xf32>
      %185 = vector.shape_cast %184 : vector<1x128x32xf32> to vector<128x32xf32>
      %186 = vector.broadcast %183 : vector<128x1xf32> to vector<128x32xf32>
      %187 = arith.mulf %185, %186 : vector<128x32xf32>
      %188 = arith.truncf %187 : vector<128x32xf32> to vector<128x32xbf16>
      %c0_139 = arith.constant 0 : index
      %c0_140 = arith.constant 0 : index
      %c0_141 = arith.constant 0 : index
      %189 = vector.load %arg8[%c0_139, %c0_140, %c0_141] : memref<4x32x128xbf16, #tpu.memory_space<vmem>>, vector<1x32x128xbf16>
      %190 = vector.shape_cast %189 : vector<1x32x128xbf16> to vector<32x128xbf16>
      %cst_142 = arith.constant dense<0.000000e+00> : vector<128x128xf32>
      %191 = tpu.matmul %188, %190, %cst_142 {dimension_numbers = #tpu.dot_dimension_numbers<[1], [0], [0], [1], [0, 0, 1, 1], [], []>} : vector<128x32xbf16>, vector<32x128xbf16>, vector<128x128xf32> -> vector<128x128xf32>
      %192 = arith.addf %180, %191 : vector<128x128xf32>
      %c1_143 = arith.constant 1 : index
      %c0_144 = arith.constant 0 : index
      %c0_145 = arith.constant 0 : index
      %193 = vector.load %arg13[%c1_143, %c0_144, %c0_145] : memref<4x128x1xf32, #tpu.memory_space<vmem>>, vector<1x128x1xf32>
      %194 = vector.shape_cast %193 : vector<1x128x1xf32> to vector<128x1xf32>
      %195 = tpu.reciprocal %194 {approx = true} : vector<128x1xf32> -> vector<128x1xf32>
      %c1_146 = arith.constant 1 : index
      %c0_147 = arith.constant 0 : index
      %c0_148 = arith.constant 0 : index
      %196 = vector.load %arg14[%c1_146, %c0_147, %c0_148] : memref<4x128x32xf32, #tpu.memory_space<vmem>>, vector<1x128x32xf32>
      %197 = vector.shape_cast %196 : vector<1x128x32xf32> to vector<128x32xf32>
      %198 = vector.broadcast %195 : vector<128x1xf32> to vector<128x32xf32>
      %199 = arith.mulf %197, %198 : vector<128x32xf32>
      %200 = arith.truncf %199 : vector<128x32xf32> to vector<128x32xbf16>
      %c1_149 = arith.constant 1 : index
      %c0_150 = arith.constant 0 : index
      %c0_151 = arith.constant 0 : index
      %201 = vector.load %arg8[%c1_149, %c0_150, %c0_151] : memref<4x32x128xbf16, #tpu.memory_space<vmem>>, vector<1x32x128xbf16>
      %202 = vector.shape_cast %201 : vector<1x32x128xbf16> to vector<32x128xbf16>
      %cst_152 = arith.constant dense<0.000000e+00> : vector<128x128xf32>
      %203 = tpu.matmul %200, %202, %cst_152 {dimension_numbers = #tpu.dot_dimension_numbers<[1], [0], [0], [1], [0, 0, 1, 1], [], []>} : vector<128x32xbf16>, vector<32x128xbf16>, vector<128x128xf32> -> vector<128x128xf32>
      %204 = arith.addf %192, %203 : vector<128x128xf32>
      %c2_153 = arith.constant 2 : index
      %c0_154 = arith.constant 0 : index
      %c0_155 = arith.constant 0 : index
      %205 = vector.load %arg13[%c2_153, %c0_154, %c0_155] : memref<4x128x1xf32, #tpu.memory_space<vmem>>, vector<1x128x1xf32>
      %206 = vector.shape_cast %205 : vector<1x128x1xf32> to vector<128x1xf32>
      %207 = tpu.reciprocal %206 {approx = true} : vector<128x1xf32> -> vector<128x1xf32>
      %c2_156 = arith.constant 2 : index
      %c0_157 = arith.constant 0 : index
      %c0_158 = arith.constant 0 : index
      %208 = vector.load %arg14[%c2_156, %c0_157, %c0_158] : memref<4x128x32xf32, #tpu.memory_space<vmem>>, vector<1x128x32xf32>
      %209 = vector.shape_cast %208 : vector<1x128x32xf32> to vector<128x32xf32>
      %210 = vector.broadcast %207 : vector<128x1xf32> to vector<128x32xf32>
      %211 = arith.mulf %209, %210 : vector<128x32xf32>
      %212 = arith.truncf %211 : vector<128x32xf32> to vector<128x32xbf16>
      %c2_159 = arith.constant 2 : index
      %c0_160 = arith.constant 0 : index
      %c0_161 = arith.constant 0 : index
      %213 = vector.load %arg8[%c2_159, %c0_160, %c0_161] : memref<4x32x128xbf16, #tpu.memory_space<vmem>>, vector<1x32x128xbf16>
      %214 = vector.shape_cast %213 : vector<1x32x128xbf16> to vector<32x128xbf16>
      %cst_162 = arith.constant dense<0.000000e+00> : vector<128x128xf32>
      %215 = tpu.matmul %212, %214, %cst_162 {dimension_numbers = #tpu.dot_dimension_numbers<[1], [0], [0], [1], [0, 0, 1, 1], [], []>} : vector<128x32xbf16>, vector<32x128xbf16>, vector<128x128xf32> -> vector<128x128xf32>
      %216 = arith.addf %204, %215 : vector<128x128xf32>
      %c3_163 = arith.constant 3 : index
      %c0_164 = arith.constant 0 : index
      %c0_165 = arith.constant 0 : index
      %217 = vector.load %arg13[%c3_163, %c0_164, %c0_165] : memref<4x128x1xf32, #tpu.memory_space<vmem>>, vector<1x128x1xf32>
      %218 = vector.shape_cast %217 : vector<1x128x1xf32> to vector<128x1xf32>
      %219 = tpu.reciprocal %218 {approx = true} : vector<128x1xf32> -> vector<128x1xf32>
      %c3_166 = arith.constant 3 : index
      %c0_167 = arith.constant 0 : index
      %c0_168 = arith.constant 0 : index
      %220 = vector.load %arg14[%c3_166, %c0_167, %c0_168] : memref<4x128x32xf32, #tpu.memory_space<vmem>>, vector<1x128x32xf32>
      %221 = vector.shape_cast %220 : vector<1x128x32xf32> to vector<128x32xf32>
      %222 = vector.broadcast %219 : vector<128x1xf32> to vector<128x32xf32>
      %223 = arith.mulf %221, %222 : vector<128x32xf32>
      %224 = arith.truncf %223 : vector<128x32xf32> to vector<128x32xbf16>
      %c3_169 = arith.constant 3 : index
      %c0_170 = arith.constant 0 : index
      %c0_171 = arith.constant 0 : index
      %225 = vector.load %arg8[%c3_169, %c0_170, %c0_171] : memref<4x32x128xbf16, #tpu.memory_space<vmem>>, vector<1x32x128xbf16>
      %226 = vector.shape_cast %225 : vector<1x32x128xbf16> to vector<32x128xbf16>
      %cst_172 = arith.constant dense<0.000000e+00> : vector<128x128xf32>
      %227 = tpu.matmul %224, %226, %cst_172 {dimension_numbers = #tpu.dot_dimension_numbers<[1], [0], [0], [1], [0, 0, 1, 1], [], []>} : vector<128x32xbf16>, vector<32x128xbf16>, vector<128x128xf32> -> vector<128x128xf32>
      %228 = arith.addf %216, %227 : vector<128x128xf32>
      %c0_173 = arith.constant 0 : index
      %c0_174 = arith.constant 0 : index
      %229 = vector.load %arg9[%c0_173, %c0_174] : memref<1x128xf32, #tpu.memory_space<vmem>>, vector<1x128xf32>
      %230 = vector.broadcast %229 : vector<1x128xf32> to vector<128x128xf32>
      %231 = arith.addf %228, %230 : vector<128x128xf32>
      %c0_175 = arith.constant 0 : index
      %c0_176 = arith.constant 0 : index
      %c0_177 = arith.constant 0 : index
      %232 = vector.load %arg10[%c0_175, %c0_176, %c0_177] : memref<1x128x128xf32, #tpu.memory_space<vmem>>, vector<1x128x128xf32>
      %233 = vector.shape_cast %232 : vector<1x128x128xf32> to vector<128x128xf32>
      %234 = vector.shape_cast %231 : vector<128x128xf32> to vector<1x128x128xf32>
      tpu.vector_store %arg10[%c0_175, %c0_176, %c0_177], %234 {strides = array<i32>} : memref<1x128x128xf32, #tpu.memory_space<vmem>>, vector<1x128x128xf32>,
    } else {
    }
    return
  }
  func.func @transform_0(%arg0: i32, %arg1: i32, %arg2: i32) -> (i32, i32, i32) {
    %c0_i32 = arith.constant 0 : i32
    %c0_i32_0 = arith.constant 0 : i32
    return %arg0, %arg1, %c0_i32 : i32, i32, i32
  }
  func.func @transform_1(%arg0: i32, %arg1: i32, %arg2: i32) -> (i32, i32, i32) {
    %c0_i32 = arith.constant 0 : i32
    %c0_i32_0 = arith.constant 0 : i32
    return %arg0, %arg2, %c0_i32 : i32, i32, i32
  }
  func.func @transform_2(%arg0: i32, %arg1: i32, %arg2: i32) -> (i32, i32, i32) {
    %c0_i32 = arith.constant 0 : i32
    %c0_i32_0 = arith.constant 0 : i32
    %c0_i32_1 = arith.constant 0 : i32
    %c0_i32_2 = arith.constant 0 : i32
    return %c0_i32, %c0_i32_0, %c0_i32_1 : i32, i32, i32
  }
  func.func @transform_3(%arg0: i32, %arg1: i32, %arg2: i32) -> (i32, i32, i32) {
    %c0_i32 = arith.constant 0 : i32
    %c0_i32_0 = arith.constant 0 : i32
    %c0_i32_1 = arith.constant 0 : i32
    %c0_i32_2 = arith.constant 0 : i32
    return %c0_i32, %c0_i32_0, %c0_i32_1 : i32, i32, i32
  }
  func.func @transform_4(%arg0: i32, %arg1: i32, %arg2: i32) -> (i32, i32, i32) {
    %c0_i32 = arith.constant 0 : i32
    %c0_i32_0 = arith.constant 0 : i32
    %c0_i32_1 = arith.constant 0 : i32
    %c0_i32_2 = arith.constant 0 : i32
    return %c0_i32, %c0_i32_0, %c0_i32_1 : i32, i32, i32
  }
  func.func @transform_5(%arg0: i32, %arg1: i32, %arg2: i32) -> (i32, i32, i32) {
    %c0_i32 = arith.constant 0 : i32
    %c0_i32_0 = arith.constant 0 : i32
    %c0_i32_1 = arith.constant 0 : i32
    %c0_i32_2 = arith.constant 0 : i32
    return %c0_i32, %c0_i32_0, %c0_i32_1 : i32, i32, i32
  }
  func.func @transform_6(%arg0: i32, %arg1: i32, %arg2: i32) -> (i32, i32) {
    %c0_i32 = arith.constant 0 : i32
    %c0_i32_0 = arith.constant 0 : i32
    %c0_i32_1 = arith.constant 0 : i32
    return %c0_i32, %c0_i32_0 : i32, i32
  }
  func.func @transform_7(%arg0: i32, %arg1: i32, %arg2: i32) -> (i32, i32, i32) {
    %c0_i32 = arith.constant 0 : i32
    %c0_i32_0 = arith.constant 0 : i32
    return %arg0, %arg1, %c0_i32 : i32, i32, i32
  }
}

</mosaic_0001>

<llo_original>
// kernel: tpu_custom_call.1
$region0: #{tpu_custom_call.1}
  #allocation0 [shape = 'u32[]', space=smem, size = 0x4, offset = 0x4, fixed_abs, tag = 'smem constant byte address 0x4 - core index']
  #allocation1 [shape = 'u32[144,128]{1,0:T(1,128)}', space=vmem, size = 0x12000, scoped, tag = 'internal scratch']
  #allocation2 [shape = 'bf16[4,128,32]{2,1,0:T(16,128)(2,1)}', space=vmem, size = 0x20000, scoped, tag = 'scratch operand']
  #allocation3 [shape = 'f32[4,128,1]{2,1,0:T(8,128)}', space=vmem, size = 0x40000, scoped, tag = 'scratch operand']
  #allocation4 [shape = 'f32[4,128,1]{2,1,0:T(8,128)}', space=vmem, size = 0x40000, scoped, tag = 'scratch operand']
  #allocation5 [shape = 'f32[4,128,32]{2,1,0:T(8,128)}', space=vmem, size = 0x40000, scoped, tag = 'scratch operand']
  %s0 = inlined_call_operand.vmem [shape: bf16[2,256,128], index: 0, kind: input, shape index: {}]
  %s1 = inlined_call_operand.vmem [shape: bf16[2,256,128], index: 1, kind: input, shape index: {}]
  %s2 = inlined_call_operand.vmem [shape: bf16[4,128,32], index: 2, kind: input, shape index: {}]
  %s3 = inlined_call_operand.vmem [shape: bf16[4,128,32], index: 3, kind: input, shape index: {}]
  %s4 = inlined_call_operand.vmem [shape: bf16[4,128,32], index: 4, kind: input, shape index: {}]
  %s5 = inlined_call_operand.vmem [shape: bf16[4,32,128], index: 5, kind: input, shape index: {}]
  %s6 = inlined_call_operand.vmem [shape: f32[1,128], index: 6, kind: input, shape index: {}]
  %s7 = inlined_call_operand.hbm [shape: f32[2,256,128], index: 7, kind: output, shape index: {}]
  %s8 = sld [smem:[#allocation0]]
  $region69: #{tpu_custom_call.1} parent=0
    _
  %s10 = ssub.s32 1, %s8
  %s11 = scalar_select 0, %s10, %s8
  $region1: #{tpu_custom_call.1} parent=0
    #allocation6 [shape = 'u8[131072]{0}', space=vmem, size = 0x20000, scoped, tag = 'output window, operand 0']
    #allocation7 [shape = 's32[2]{0}', space=sflag, size = 0x8, scoped, tag = 'scoped memory for tpu_custom_call.1']
    %12 = vsyncpa [#allocation7], 0
    %s13 = scalar_lea.sflag [#allocation7], 1
    %14 = vsyncpa %s13, 0
    loop: start=0, step=1, limit=10
    $region2: #{tpu_custom_call.1} parent=1 // loop_pre_header
      _
    $region3: #{tpu_custom_call.1} parent=1 // loop_header
      %s16 = sphi 0, %s20
      %p17 = scmp.ge.s32.totalorder %s16, 10
      %s23 = sphi 0, %s42
      %s24 = sphi 0, %s38
      %s25 = sphi 0, %s34
      %s26 = sphi 0, %s23
      %s27 = sphi 0, %s24
      %s28 = sphi 0, %s25
      %s29 = sphi 0, %s26
      %s30 = sphi 0, %s27
      %s31 = sphi 0, %s28
      %s47 = sphi 0, %s49
      %s50 = sphi 0, %s47
      %s51 = sphi 0, %s50
      %s67 = sphi 0, %s51
      %s75 = sphi 0, %s77
      %s78 = sphi 0, %s75
      %s79 = sphi 0, %s78
      %s95 = sphi 0, %s79
      %s99 = sphi 0, %s99
      %s101 = sphi 0, %s99
      %s102 = sphi 0, %s101
      %s116 = sphi 0, %s102
      %s120 = sphi 0, %s120
      %s122 = sphi 0, %s120
      %s123 = sphi 0, %s122
      %s137 = sphi 0, %s123
      %s141 = sphi 0, %s141
      %s143 = sphi 0, %s141
      %s144 = sphi 0, %s143
      %s158 = sphi 0, %s144
      %s162 = sphi 0, %s162
      %s164 = sphi 0, %s162
      %s165 = sphi 0, %s164
      %s179 = sphi 0, %s165
      %s183 = sphi 0, %s183
      %s185 = sphi 0, %s183
      %s186 = sphi 0, %s185
      %s200 = sphi 0, %s186
      %s208 = sphi 0, %s210
      %s211 = sphi 0, %s208
      %s212 = sphi 0, %s211
      %s228 = sphi 0, %s212
    $region4: #{tpu_custom_call.1} parent=1 // loop_header_branch
      %19 = sbr.rel (%p17) target = $region8
    $region5: #{tpu_custom_call.1} parent=1 // loop_body
      %s21 = ssub.s32 %s16, 1
      %s22 = ssub.s32 %s16, 2
      %s32 = sadd.s32 1, %s25
      %p33 = scmp.ge.s32.totalorder %s32, 2
      %s34 = scalar_select %p33, 0, %s32
      %s35 = sadd.s32 1, %s24
      %s36 = scalar_select %p33, %s35, %s24
      %p37 = scmp.ge.s32.totalorder %s36, 2
      %s38 = scalar_select %p37, 0, %s36
      %s39 = sadd.s32 1, %s23
      %s40 = scalar_select %p37, %s39, %s23
      %p41 = scmp.ge.s32.totalorder %s40, 2
      %s42 = scalar_select %p41, 0, %s40
      %s43 = ssub.s32 %s23, %s42
      %s44 = ssub.s32 %s24, %s38
      %s45 = sor.u32 %s43, %s44
      %p46 = scmp.eq.s32.totalorder %s45, 0
      %s48 = sadd.s32 %s47, 1
      %s49 = scalar_select %p46, %s47, %s48
      %p52 = pneg %p46
      %p53 = scmp.eq.s32.totalorder %s16, 7
      %p54 = por %p52, %p53
      %p55 = scmp.ne.s32.totalorder %s47, %s50
      %p56 = scmp.eq.s32.totalorder %s16, 0
      %p57 = por %p55, %p56
      %p58 = scmp.ne.s32.totalorder %s47, %s50
      %p59 = scmp.eq.s32.totalorder %s21, 7
      %p60 = por %p58, %p59
      %p61 = scmp.ne.s32.totalorder %s50, %s51
      %p62 = scmp.eq.s32.totalorder %s21, 0
      %p63 = por %p61, %p62
      %p64 = scmp.ne.s32.totalorder %s50, %s51
      %p65 = scmp.eq.s32.totalorder %s22, 7
      %p66 = por %p64, %p65
      %p68 = scmp.ne.s32.totalorder %s51, %s67
      %p69 = scmp.eq.s32.totalorder %s22, 0
      %p70 = por %p68, %p69
      %s71 = ssub.s32 %s23, %s42
      %s72 = ssub.s32 %s25, %s34
      %s73 = sor.u32 %s71, %s72
      %p74 = scmp.eq.s32.totalorder %s73, 0
      %s76 = sadd.s32 %s75, 1
      %s77 = scalar_select %p74, %s75, %s76
      %p80 = pneg %p74
      %p81 = scmp.eq.s32.totalorder %s16, 7
      %p82 = por %p80, %p81
      %p83 = scmp.ne.s32.totalorder %s75, %s78
      %p84 = scmp.eq.s32.totalorder %s16, 0
      %p85 = por %p83, %p84
      %p86 = scmp.ne.s32.totalorder %s75, %s78
      %p87 = scmp.eq.s32.totalorder %s21, 7
      %p88 = por %p86, %p87
      %p89 = scmp.ne.s32.totalorder %s78, %s79
      %p90 = scmp.eq.s32.totalorder %s21, 0
      %p91 = por %p89, %p90
      %p92 = scmp.ne.s32.totalorder %s78, %s79
      %p93 = scmp.eq.s32.totalorder %s22, 7
      %p94 = por %p92, %p93
      %p96 = scmp.ne.s32.totalorder %s79, %s95
      %p97 = scmp.eq.s32.totalorder %s22, 0
      %p98 = por %p96, %p97
      %s100 = sadd.s32 %s99, 1
      %p103 = scmp.eq.s32.totalorder %s16, 7
      %p104 = scmp.ne.s32.totalorder %s99, %s101
      %p105 = scmp.eq.s32.totalorder %s16, 0
      %p106 = por %p104, %p105
      %p107 = scmp.ne.s32.totalorder %s99, %s101
      %p108 = scmp.eq.s32.totalorder %s21, 7
      %p109 = por %p107, %p108
      %p110 = scmp.ne.s32.totalorder %s101, %s102
      %p111 = scmp.eq.s32.totalorder %s21, 0
      %p112 = por %p110, %p111
      %p113 = scmp.ne.s32.totalorder %s101, %s102
      %p114 = scmp.eq.s32.totalorder %s22, 7
      %p115 = por %p113, %p114
      %p117 = scmp.ne.s32.totalorder %s102, %s116
      %p118 = scmp.eq.s32.totalorder %s22, 0
      %p119 = por %p117, %p118
      %s121 = sadd.s32 %s120, 1
      %p124 = scmp.eq.s32.totalorder %s16, 7
      %p125 = scmp.ne.s32.totalorder %s120, %s122
      %p126 = scmp.eq.s32.totalorder %s16, 0
      %p127 = por %p125, %p126
      %p128 = scmp.ne.s32.totalorder %s120, %s122
      %p129 = scmp.eq.s32.totalorder %s21, 7
      %p130 = por %p128, %p129
      %p131 = scmp.ne.s32.totalorder %s122, %s123
      %p132 = scmp.eq.s32.totalorder %s21, 0
      %p133 = por %p131, %p132
      %p134 = scmp.ne.s32.totalorder %s122, %s123
      %p135 = scmp.eq.s32.totalorder %s22, 7
      %p136 = por %p134, %p135
      %p138 = scmp.ne.s32.totalorder %s123, %s137
      %p139 = scmp.eq.s32.totalorder %s22, 0
      %p140 = por %p138, %p139
      %s142 = sadd.s32 %s141, 1
      %p145 = scmp.eq.s32.totalorder %s16, 7
      %p146 = scmp.ne.s32.totalorder %s141, %s143
      %p147 = scmp.eq.s32.totalorder %s16, 0
      %p148 = por %p146, %p147
      %p149 = scmp.ne.s32.totalorder %s141, %s143
      %p150 = scmp.eq.s32.totalorder %s21, 7
      %p151 = por %p149, %p150
      %p152 = scmp.ne.s32.totalorder %s143, %s144
      %p153 = scmp.eq.s32.totalorder %s21, 0
      %p154 = por %p152, %p153
      %p155 = scmp.ne.s32.totalorder %s143, %s144
      %p156 = scmp.eq.s32.totalorder %s22, 7
      %p157 = por %p155, %p156
      %p159 = scmp.ne.s32.totalorder %s144, %s158
      %p160 = scmp.eq.s32.totalorder %s22, 0
      %p161 = por %p159, %p160
      %s163 = sadd.s32 %s162, 1
      %p166 = scmp.eq.s32.totalorder %s16, 7
      %p167 = scmp.ne.s32.totalorder %s162, %s164
      %p168 = scmp.eq.s32.totalorder %s16, 0
      %p169 = por %p167, %p168
      %p170 = scmp.ne.s32.totalorder %s162, %s164
      %p171 = scmp.eq.s32.totalorder %s21, 7
      %p172 = por %p170, %p171
      %p173 = scmp.ne.s32.totalorder %s164, %s165
      %p174 = scmp.eq.s32.totalorder %s21, 0
      %p175 = por %p173, %p174
      %p176 = scmp.ne.s32.totalorder %s164, %s165
      %p177 = scmp.eq.s32.totalorder %s22, 7
      %p178 = por %p176, %p177
      %p180 = scmp.ne.s32.totalorder %s165, %s179
      %p181 = scmp.eq.s32.totalorder %s22, 0
      %p182 = por %p180, %p181
      %s184 = sadd.s32 %s183, 1
      %p187 = scmp.eq.s32.totalorder %s16, 7
      %p188 = scmp.ne.s32.totalorder %s183, %s185
      %p189 = scmp.eq.s32.totalorder %s16, 0
      %p190 = por %p188, %p189
      %p191 = scmp.ne.s32.totalorder %s183, %s185
      %p192 = scmp.eq.s32.totalorder %s21, 7
      %p193 = por %p191, %p192
      %p194 = scmp.ne.s32.totalorder %s185, %s186
      %p195 = scmp.eq.s32.totalorder %s21, 0
      %p196 = por %p194, %p195
      %p197 = scmp.ne.s32.totalorder %s185, %s186
      %p198 = scmp.eq.s32.totalorder %s22, 7
      %p199 = por %p197, %p198
      %p201 = scmp.ne.s32.totalorder %s186, %s200
      %p202 = scmp.eq.s32.totalorder %s22, 0
      %p203 = por %p201, %p202
      %s204 = ssub.s32 %s23, %s42
      %s205 = ssub.s32 %s24, %s38
      %s206 = sor.u32 %s204, %s205
      %p207 = scmp.eq.s32.totalorder %s206, 0
      %s209 = sadd.s32 %s208, 1
      %s210 = scalar_select %p207, %s208, %s209
      %p213 = pneg %p207
      %p214 = scmp.eq.s32.totalorder %s16, 7
      %p215 = por %p213, %p214
      %p216 = scmp.ne.s32.totalorder %s208, %s211
      %p217 = scmp.eq.s32.totalorder %s16, 0
      %p218 = por %p216, %p217
      %p219 = scmp.ne.s32.totalorder %s208, %s211
      %p220 = scmp.eq.s32.totalorder %s21, 7
      %p221 = por %p219, %p220
      %p222 = scmp.ne.s32.totalorder %s211, %s212
      %p223 = scmp.eq.s32.totalorder %s21, 0
      %p224 = por %p222, %p223
      %p225 = scmp.ne.s32.totalorder %s211, %s212
      %p226 = scmp.eq.s32.totalorder %s22, 7
      %p227 = por %p225, %p226
      %p229 = scmp.ne.s32.totalorder %s212, %s228
      %p230 = scmp.eq.s32.totalorder %s22, 0
      %p231 = por %p229, %p230
      %p232 = scmp.le.s32.totalorder 1, %s16
      %p233 = scmp.lt.s32.totalorder %s16, 9
      %p234 = pnand %p232, %p233
      %p235 = pneg %p234
      // Predicated region
      $region9: #{tpu_custom_call.1} parent=5 // pred_check
        _
      $region10: #{tpu_custom_call.1} parent=5 // pred_check_branch
        %237 = sbr.rel (%p234) target = $region12
      $region11: #{tpu_custom_call.1} parent=5 // pred_region
        %s238 = ssub.s32 %s16, 1
        // Predicated region
        $region13: #{tpu_custom_call.1} parent=11 // pred_check
          %p239 = pneg %p112
        $region14: #{tpu_custom_call.1} parent=11 // pred_check_branch
          %241 = sbr.rel (%p239) target = $region16
        $region15: #{tpu_custom_call.1} parent=11 // pred_region
          _
        $region16: #{tpu_custom_call.1} parent=11 // pred_fallthru
          _
        // Predicated region
        $region17: #{tpu_custom_call.1} parent=11 // pred_check
          %p242 = pneg %p133
        $region18: #{tpu_custom_call.1} parent=11 // pred_check_branch
          %244 = sbr.rel (%p242) target = $region20
        $region19: #{tpu_custom_call.1} parent=11 // pred_region
          _
        $region20: #{tpu_custom_call.1} parent=11 // pred_fallthru
          _
        // Predicated region
        $region21: #{tpu_custom_call.1} parent=11 // pred_check
          %p245 = pneg %p154
        $region22: #{tpu_custom_call.1} parent=11 // pred_check_branch
          %247 = sbr.rel (%p245) target = $region24
        $region23: #{tpu_custom_call.1} parent=11 // pred_region
          _
        $region24: #{tpu_custom_call.1} parent=11 // pred_fallthru
          _
        // Predicated region
        $region25: #{tpu_custom_call.1} parent=11 // pred_check
          %p248 = pneg %p175
        $region26: #{tpu_custom_call.1} parent=11 // pred_check_branch
          %250 = sbr.rel (%p248) target = $region28
        $region27: #{tpu_custom_call.1} parent=11 // pred_region
          _
        $region28: #{tpu_custom_call.1} parent=11 // pred_fallthru
          _
        // Predicated region
        $region29: #{tpu_custom_call.1} parent=11 // pred_check
          %p251 = pneg %p196
        $region30: #{tpu_custom_call.1} parent=11 // pred_check_branch
          %253 = sbr.rel (%p251) target = $region32
        $region31: #{tpu_custom_call.1} parent=11 // pred_region
          _
        $region32: #{tpu_custom_call.1} parent=11 // pred_fallthru
          _
      $region12: #{tpu_custom_call.1} parent=5 // pred_fallthru
        _
      %p254 = scmp.lt.s32.totalorder %s16, 8
      // Predicated region
      $region33: #{tpu_custom_call.1} parent=5 // pred_check
        %p255 = pneg %p254
      $region34: #{tpu_custom_call.1} parent=5 // pred_check_branch
        %257 = sbr.rel (%p255) target = $region36
      $region35: #{tpu_custom_call.1} parent=5 // pred_region
        // Predicated region
        $region37: #{tpu_custom_call.1} parent=35 // pred_check
          %p258 = pneg %p57
        $region38: #{tpu_custom_call.1} parent=35 // pred_check_branch
          %260 = sbr.rel (%p258) target = $region40
        $region39: #{tpu_custom_call.1} parent=35 // pred_region
          %s261 = smul.u32 16, %s24
          %p262 = scmp.lt.s32.totalorder %s23, 1
          %s263 = scalar_select %p262, %s23, 1
          %p264 = scmp.lt.s32.totalorder %s261, 31
          %s265 = scalar_select %p264, %s261, 31
          %s266 = smul.addr %s263, 32
          %s267 = sadd.s32 %s265, %s266
          %s268 = smul.addr %s267, 4
          %s269 = scalar_lea.vmem %s0, %s268
          %s270 = smul.u32 16, %s24
        $region40: #{tpu_custom_call.1} parent=35 // pred_fallthru
          _
        // Predicated region
        $region41: #{tpu_custom_call.1} parent=35 // pred_check
          %p271 = pneg %p85
        $region42: #{tpu_custom_call.1} parent=35 // pred_check_branch
          %273 = sbr.rel (%p271) target = $region44
        $region43: #{tpu_custom_call.1} parent=35 // pred_region
          %s274 = smul.u32 16, %s25
          %p275 = scmp.lt.s32.totalorder %s23, 1
          %s276 = scalar_select %p275, %s23, 1
          %p277 = scmp.lt.s32.totalorder %s274, 31
          %s278 = scalar_select %p277, %s274, 31
          %s279 = smul.addr %s276, 32
          %s280 = sadd.s32 %s278, %s279
          %s281 = smul.addr %s280, 4
          %s282 = scalar_lea.vmem %s1, %s281
          %s283 = smul.u32 16, %s25
        $region44: #{tpu_custom_call.1} parent=35 // pred_fallthru
          _
      $region36: #{tpu_custom_call.1} parent=5 // pred_fallthru
        _
      %p284 = scmp.le.s32.totalorder 1, %s16
      %p285 = scmp.lt.s32.totalorder %s16, 9
      %p286 = pnand %p284, %p285
      %p287 = pneg %p286
      // Predicated region
      $region45: #{tpu_custom_call.1} parent=5 // pred_check
        _
      $region46: #{tpu_custom_call.1} parent=5 // pred_check_branch
        %289 = sbr.rel (%p286) target = $region48
      $region47: #{tpu_custom_call.1} parent=5 // pred_region
        %s290 = ssub.s32 %s16, 1
        %s291 = smul.u32 16, %s27
        %p292 = scmp.lt.s32.totalorder %s26, 1
        %s293 = scalar_select %p292, %s26, 1
        %p294 = scmp.lt.s32.totalorder %s291, 31
        %s295 = scalar_select %p294, %s291, 31
        %s296 = smul.addr %s293, 32
        %s297 = sadd.s32 %s295, %s296
        %s298 = smul.addr %s297, 4
        %s299 = scalar_lea.vmem %s0, %s298
        %p300 = pneg %p63
        %p301 = pneg %p60
        %s302 = smul.u32 16, %s28
        %p303 = scmp.lt.s32.totalorder %s26, 1
        %s304 = scalar_select %p303, %s26, 1
        %p305 = scmp.lt.s32.totalorder %s302, 31
        %s306 = scalar_select %p305, %s302, 31
        %s307 = smul.addr %s304, 32
        %s308 = sadd.s32 %s306, %s307
        %s309 = smul.addr %s308, 4
        %s310 = scalar_lea.vmem %s1, %s309
        %p311 = pneg %p91
        %p312 = pneg %p88
        %p313 = pneg %p112
        %p314 = pneg %p109
        %p315 = pneg %p133
        %p316 = pneg %p130
        %p317 = pneg %p154
        %p318 = pneg %p151
        %p319 = pneg %p175
        %p320 = pneg %p172
        %p321 = pneg %p196
        %p322 = pneg %p193
        %p323 = pneg %p224
        %p324 = pneg %p221
        %s325 = sand.u32 %s211, 1
        %s326 = scalar_lea.sflag [#allocation7], %s325
        %s327 = sand.u32 %s211, 1
        %s328 = smul.addr %s327, 128
        %s329 = scalar_lea.vmem [#allocation6], %s328
        %s330 = smul.u32 16, %s27
        %p331 = scmp.lt.s32.totalorder %s26, 1
        %s332 = scalar_select %p331, %s26, 1
        %p333 = scmp.lt.s32.totalorder %s330, 31
        %s334 = scalar_select %p333, %s330, 31
        %s335 = smul.addr %s332, 32
        %s336 = sadd.s32 %s334, %s335
        %s337 = smul.addr %s336, 4
        %s338 = scalar_lea.vmem %s0, %s337
        %s339 = smul.u32 16, %s27
        %s340 = smul.u32 16, %s28
        %p341 = scmp.lt.s32.totalorder %s26, 1
        %s342 = scalar_select %p341, %s26, 1
        %p343 = scmp.lt.s32.totalorder %s340, 31
        %s344 = scalar_select %p343, %s340, 31
        %s345 = smul.addr %s342, 32
        %s346 = sadd.s32 %s344, %s345
        %s347 = smul.addr %s346, 4
        %s348 = scalar_lea.vmem %s1, %s347
        %s349 = smul.u32 16, %s28
        %s350 = smul.u32 16, %s27
        %p352 = scmp.eq.s32.totalorder %s28, 0
        // Predicated region
        $region49: #{tpu_custom_call.1} parent=47 // pred_check
          %p353 = pneg %p352
        $region50: #{tpu_custom_call.1} parent=47 // pred_check_branch
          %355 = sbr.rel (%p353) target = $region52
        $region51: #{tpu_custom_call.1} parent=47 // pred_region
          %v356 = vld [vmem:[%s338] sm:$0xf]
          %v357 = vld [vmem:[%s338 + $0x4] sm:$0xf]
          %v358 = vld [vmem:[%s338 + $0x8] sm:$0xf]
          %v359 = vld [vmem:[%s338 + $0xc] sm:$0xf]
          %v360 = vld [vmem:[%s338 + $0x10] sm:$0xf]
          %v361 = vld [vmem:[%s338 + $0x14] sm:$0xf]
          %v362 = vld [vmem:[%s338 + $0x18] sm:$0xf]
          %v363 = vld [vmem:[%s338 + $0x1c] sm:$0xf]
          %v364 = vld [vmem:[%s338 + $0x20] sm:$0xf]
          %v365 = vld [vmem:[%s338 + $0x24] sm:$0xf]
          %v366 = vld [vmem:[%s338 + $0x28] sm:$0xf]
          %v367 = vld [vmem:[%s338 + $0x2c] sm:$0xf]
          %v368 = vld [vmem:[%s338 + $0x30] sm:$0xf]
          %v369 = vld [vmem:[%s338 + $0x34] sm:$0xf]
          %v370 = vld [vmem:[%s338 + $0x38] sm:$0xf]
          %v371 = vld [vmem:[%s338 + $0x3c] sm:$0xf]
          %v372 = vld [vmem:[%s2] sm:$0xf]
          %v373 = vld [vmem:[%s2 + $0x4] sm:$0xf]
          %v374 = vld [vmem:[%s2 + $0x8] sm:$0xf]
          %v375 = vld [vmem:[%s2 + $0xc] sm:$0xf]
          %v376 = vld [vmem:[%s2 + $0x10] sm:$0xf]
          %v377 = vld [vmem:[%s2 + $0x14] sm:$0xf]
          %v378 = vld [vmem:[%s2 + $0x18] sm:$0xf]
          %v379 = vld [vmem:[%s2 + $0x1c] sm:$0xf]
          %v380 = vld [vmem:[%s2 + $0x20] sm:$0xf]
          %v381 = vld [vmem:[%s2 + $0x24] sm:$0xf]
          %v382 = vld [vmem:[%s2 + $0x28] sm:$0xf]
          %v383 = vld [vmem:[%s2 + $0x2c] sm:$0xf]
          %v384 = vld [vmem:[%s2 + $0x30] sm:$0xf]
          %v385 = vld [vmem:[%s2 + $0x34] sm:$0xf]
          %v386 = vld [vmem:[%s2 + $0x38] sm:$0xf]
          %v387 = vld [vmem:[%s2 + $0x3c] sm:$0xf]
          %v404 = vunpack.c.l.b16 %v356
          %v405 = vunpack.c.l.b16 %v357
          %v406 = vunpack.c.l.b16 %v358
          %v407 = vunpack.c.l.b16 %v359
          %v408 = vunpack.c.l.b16 %v360
          %v409 = vunpack.c.l.b16 %v361
          %v410 = vunpack.c.l.b16 %v362
          %v411 = vunpack.c.l.b16 %v363
          %v412 = vunpack.c.l.b16 %v364
          %v413 = vunpack.c.l.b16 %v365
          %v414 = vunpack.c.l.b16 %v366
          %v415 = vunpack.c.l.b16 %v367
          %v416 = vunpack.c.l.b16 %v368
          %v417 = vunpack.c.l.b16 %v369
          %v418 = vunpack.c.l.b16 %v370
          %v419 = vunpack.c.l.b16 %v371
          %v420 = vpack.c.b16 %v405, %v404
          %v421 = vpack.c.b16 %v407, %v406
          %v422 = vpack.c.b16 %v409, %v408
          %v423 = vpack.c.b16 %v411, %v410
          %v424 = vpack.c.b16 %v413, %v412
          %v425 = vpack.c.b16 %v415, %v414
          %v426 = vpack.c.b16 %v417, %v416
          %v427 = vpack.c.b16 %v419, %v418
          %v452 = vunpack.c.l.b16 %v372
          %v453 = vunpack.c.l.b16 %v373
          %v454 = vunpack.c.l.b16 %v374
          %v455 = vunpack.c.l.b16 %v375
          %v456 = vunpack.c.l.b16 %v376
          %v457 = vunpack.c.l.b16 %v377
          %v458 = vunpack.c.l.b16 %v378
          %v459 = vunpack.c.l.b16 %v379
          %v460 = vunpack.c.l.b16 %v380
          %v461 = vunpack.c.l.b16 %v381
          %v462 = vunpack.c.l.b16 %v382
          %v463 = vunpack.c.l.b16 %v383
          %v464 = vunpack.c.l.b16 %v384
          %v465 = vunpack.c.l.b16 %v385
          %v466 = vunpack.c.l.b16 %v386
          %v467 = vunpack.c.l.b16 %v387
          %v468 = vpack.c.b16 %v453, %v452
          %v469 = vpack.c.b16 %v455, %v454
          %v470 = vpack.c.b16 %v457, %v456
          %v471 = vpack.c.b16 %v459, %v458
          %v472 = vpack.c.b16 %v461, %v460
          %v473 = vpack.c.b16 %v463, %v462
          %v474 = vpack.c.b16 %v465, %v464
          %v475 = vpack.c.b16 %v467, %v466
          %484 = vmatprep.subr.bf16.mxu0 0
          %485 = vmatpush1.bf16.msra.mxu0 %v468
          %486 = vmatprep.subr.bf16.mxu0 0
          %487 = vmatpush1.bf16.msra.mxu0 %v469
          %488 = vmatprep.subr.bf16.mxu0 0
          %489 = vmatpush1.bf16.msra.mxu0 %v470
          %490 = vmatprep.subr.bf16.mxu0 0
          %491 = vmatpush1.bf16.msra.mxu0 %v471
          %492 = vmatprep.subr.bf16.mxu0 0
          %493 = vmatpush1.bf16.msra.mxu0 %v472
          %494 = vmatprep.subr.bf16.mxu0 0
          %495 = vmatpush1.bf16.msra.mxu0 %v473
          %496 = vmatprep.subr.bf16.mxu0 0
          %497 = vmatpush1.bf16.msra.mxu0 %v474
          %498 = vmatprep.subr.bf16.mxu0 0
          %499 = vmatpush1.bf16.msra.mxu0 %v475
          %500 = vmatprep.subr.bf16.mxu0 0
          %501 = vmatpush1.bf16.msra.mxu0 0
          %502 = vmatprep.subr.bf16.mxu0 0
          %503 = vmatpush1.bf16.msra.mxu0 0
          %504 = vmatprep.subr.bf16.mxu0 0
          %505 = vmatpush1.bf16.msra.mxu0 0
          %506 = vmatprep.subr.bf16.mxu0 0
          %507 = vmatpush1.bf16.msra.mxu0 0
          %508 = vmatprep.subr.bf16.mxu0 0
          %509 = vmatpush1.bf16.msra.mxu0 0
          %510 = vmatprep.subr.bf16.mxu0 0
          %511 = vmatpush1.bf16.msra.mxu0 0
          %512 = vmatprep.subr.bf16.mxu0 0
          %513 = vmatpush1.bf16.msra.mxu0 0
          %514 = vmatprep.subr.bf16.mxu0 0
          %515 = vmatpush1.bf16.msra.mxu0 0
          %516 = vmatprep.mubr.bf16.mxu0 0
          %517 = vmatmul.mubr.bf16.gmra.mrb[0].mxu0 %v420
          %v518 = vpop.f32.mrb[0].mxu0
          %v519 = vadd.f32 0.0, %v518
          %v520 = vpop.f32.mrb[0].mxu0
          %v521 = vpop.f32.mrb[0].mxu0
          %v522 = vadd.f32 0.0, %v521
          %v523 = vpop.f32.mrb[0].mxu0
          %524 = vmatprep.mubr.bf16.mxu0 0
          %525 = vmatmul.mubr.bf16.gmra.mrb[0].mxu0 %v421
          %v526 = vpop.f32.mrb[0].mxu0
          %v527 = vadd.f32 0.0, %v526
          %v528 = vpop.f32.mrb[0].mxu0
          %v529 = vpop.f32.mrb[0].mxu0
          %v530 = vadd.f32 0.0, %v529
          %v531 = vpop.f32.mrb[0].mxu0
          %532 = vmatprep.mubr.bf16.mxu0 0
          %533 = vmatmul.mubr.bf16.gmra.mrb[0].mxu0 %v422
          %v534 = vpop.f32.mrb[0].mxu0
          %v535 = vadd.f32 0.0, %v534
          %v536 = vpop.f32.mrb[0].mxu0
          %v537 = vpop.f32.mrb[0].mxu0
          %v538 = vadd.f32 0.0, %v537
          %v539 = vpop.f32.mrb[0].mxu0
          %540 = vmatprep.mubr.bf16.mxu0 0
          %541 = vmatmul.mubr.bf16.gmra.mrb[0].mxu0 %v423
          %v542 = vpop.f32.mrb[0].mxu0
          %v543 = vadd.f32 0.0, %v542
          %v544 = vpop.f32.mrb[0].mxu0
          %v545 = vpop.f32.mrb[0].mxu0
          %v546 = vadd.f32 0.0, %v545
          %v547 = vpop.f32.mrb[0].mxu0
          %548 = vmatprep.mubr.bf16.mxu0 0
          %549 = vmatmul.mubr.bf16.gmra.mrb[0].mxu0 %v424
          %v550 = vpop.f32.mrb[0].mxu0
          %v551 = vadd.f32 0.0, %v550
          %v552 = vpop.f32.mrb[0].mxu0
          %v553 = vpop.f32.mrb[0].mxu0
          %v554 = vadd.f32 0.0, %v553
          %v555 = vpop.f32.mrb[0].mxu0
          %556 = vmatprep.mubr.bf16.mxu0 0
          %557 = vmatmul.mubr.bf16.gmra.mrb[0].mxu0 %v425
          %v558 = vpop.f32.mrb[0].mxu0
          %v559 = vadd.f32 0.0, %v558
          %v560 = vpop.f32.mrb[0].mxu0
          %v561 = vpop.f32.mrb[0].mxu0
          %v562 = vadd.f32 0.0, %v561
          %v563 = vpop.f32.mrb[0].mxu0
          %564 = vmatprep.mubr.bf16.mxu0 0
          %565 = vmatmul.mubr.bf16.gmra.mrb[0].mxu0 %v426
          %v566 = vpop.f32.mrb[0].mxu0
          %v567 = vadd.f32 0.0, %v566
          %v568 = vpop.f32.mrb[0].mxu0
          %v569 = vpop.f32.mrb[0].mxu0
          %v570 = vadd.f32 0.0, %v569
          %v571 = vpop.f32.mrb[0].mxu0
          %572 = vmatprep.mubr.bf16.mxu0 0
          %573 = vmatmul.mubr.bf16.gmra.mrb[0].mxu0 %v427
          %v574 = vpop.f32.mrb[0].mxu0
          %v575 = vadd.f32 0.0, %v574
          %v576 = vpop.f32.mrb[0].mxu0
          %v577 = vpop.f32.mrb[0].mxu0
          %v578 = vadd.f32 0.0, %v577
          %v579 = vpop.f32.mrb[0].mxu0
          %580 = vdwg.mxu0
          %v581 = vpack.c.bf16 %v522, %v519
          %v582 = vpack.c.bf16 %v530, %v527
          %v583 = vpack.c.bf16 %v538, %v535
          %v584 = vpack.c.bf16 %v546, %v543
          %v585 = vpack.c.bf16 %v554, %v551
          %v586 = vpack.c.bf16 %v562, %v559
          %v587 = vpack.c.bf16 %v570, %v567
          %v588 = vpack.c.bf16 %v578, %v575
          %vm589 = vcmask 261120
          %590 = vst.msk [vmem:[#allocation2] sm:$0xff] %vm589, %v581
          %591 = vst.msk [vmem:[#allocation2 + $0x8] sm:$0xff] %vm589, %v582
          %592 = vst.msk [vmem:[#allocation2 + $0x10] sm:$0xff] %vm589, %v583
          %593 = vst.msk [vmem:[#allocation2 + $0x18] sm:$0xff] %vm589, %v584
          %594 = vst.msk [vmem:[#allocation2 + $0x20] sm:$0xff] %vm589, %v585
          %595 = vst.msk [vmem:[#allocation2 + $0x28] sm:$0xff] %vm589, %v586
          %596 = vst.msk [vmem:[#allocation2 + $0x30] sm:$0xff] %vm589, %v587
          %597 = vst.msk [vmem:[#allocation2 + $0x38] sm:$0xff] %vm589, %v588
          %s598 = scalar_lea.vmem %s2, 64
          %v599 = vld [vmem:[%s598] sm:$0xf]
          %v600 = vld [vmem:[%s598 + $0x4] sm:$0xf]
          %v601 = vld [vmem:[%s598 + $0x8] sm:$0xf]
          %v602 = vld [vmem:[%s598 + $0xc] sm:$0xf]
          %v603 = vld [vmem:[%s598 + $0x10] sm:$0xf]
          %v604 = vld [vmem:[%s598 + $0x14] sm:$0xf]
          %v605 = vld [vmem:[%s598 + $0x18] sm:$0xf]
          %v606 = vld [vmem:[%s598 + $0x1c] sm:$0xf]
          %v607 = vld [vmem:[%s598 + $0x20] sm:$0xf]
          %v608 = vld [vmem:[%s598 + $0x24] sm:$0xf]
          %v609 = vld [vmem:[%s598 + $0x28] sm:$0xf]
          %v610 = vld [vmem:[%s598 + $0x2c] sm:$0xf]
          %v611 = vld [vmem:[%s598 + $0x30] sm:$0xf]
          %v612 = vld [vmem:[%s598 + $0x34] sm:$0xf]
          %v613 = vld [vmem:[%s598 + $0x38] sm:$0xf]
          %v614 = vld [vmem:[%s598 + $0x3c] sm:$0xf]
          %v631 = vunpack.c.l.b16 %v599
          %v632 = vunpack.c.l.b16 %v600
          %v633 = vunpack.c.l.b16 %v601
          %v634 = vunpack.c.l.b16 %v602
          %v635 = vunpack.c.l.b16 %v603
          %v636 = vunpack.c.l.b16 %v604
          %v637 = vunpack.c.l.b16 %v605
          %v638 = vunpack.c.l.b16 %v606
          %v639 = vunpack.c.l.b16 %v607
          %v640 = vunpack.c.l.b16 %v608
          %v641 = vunpack.c.l.b16 %v609
          %v642 = vunpack.c.l.b16 %v610
          %v643 = vunpack.c.l.b16 %v611
          %v644 = vunpack.c.l.b16 %v612
          %v645 = vunpack.c.l.b16 %v613
          %v646 = vunpack.c.l.b16 %v614
          %v647 = vpack.c.b16 %v632, %v631
          %v648 = vpack.c.b16 %v634, %v633
          %v649 = vpack.c.b16 %v636, %v635
          %v650 = vpack.c.b16 %v638, %v637
          %v651 = vpack.c.b16 %v640, %v639
          %v652 = vpack.c.b16 %v642, %v641
          %v653 = vpack.c.b16 %v644, %v643
          %v654 = vpack.c.b16 %v646, %v645
          %663 = vmatprep.subr.bf16.mxu0 0
          %664 = vmatpush1.bf16.msra.mxu0 %v647
          %665 = vmatprep.subr.bf16.mxu0 0
          %666 = vmatpush1.bf16.msra.mxu0 %v648
          %667 = vmatprep.subr.bf16.mxu0 0
          %668 = vmatpush1.bf16.msra.mxu0 %v649
          %669 = vmatprep.subr.bf16.mxu0 0
          %670 = vmatpush1.bf16.msra.mxu0 %v650
          %671 = vmatprep.subr.bf16.mxu0 0
          %672 = vmatpush1.bf16.msra.mxu0 %v651
          %673 = vmatprep.subr.bf16.mxu0 0
          %674 = vmatpush1.bf16.msra.mxu0 %v652
          %675 = vmatprep.subr.bf16.mxu0 0
          %676 = vmatpush1.bf16.msra.mxu0 %v653
          %677 = vmatprep.subr.bf16.mxu0 0
          %678 = vmatpush1.bf16.msra.mxu0 %v654
          %679 = vmatprep.subr.bf16.mxu0 0
          %680 = vmatpush1.bf16.msra.mxu0 0
          %681 = vmatprep.subr.bf16.mxu0 0
          %682 = vmatpush1.bf16.msra.mxu0 0
          %683 = vmatprep.subr.bf16.mxu0 0
          %684 = vmatpush1.bf16.msra.mxu0 0
          %685 = vmatprep.subr.bf16.mxu0 0
          %686 = vmatpush1.bf16.msra.mxu0 0
          %687 = vmatprep.subr.bf16.mxu0 0
          %688 = vmatpush1.bf16.msra.mxu0 0
          %689 = vmatprep.subr.bf16.mxu0 0
          %690 = vmatpush1.bf16.msra.mxu0 0
          %691 = vmatprep.subr.bf16.mxu0 0
          %692 = vmatpush1.bf16.msra.mxu0 0
          %693 = vmatprep.subr.bf16.mxu0 0
          %694 = vmatpush1.bf16.msra.mxu0 0
          %695 = vmatprep.mubr.bf16.mxu0 0
          %696 = vmatmul.mubr.bf16.gmra.mrb[0].mxu0 %v420
          %v697 = vpop.f32.mrb[0].mxu0
          %v698 = vadd.f32 0.0, %v697
          %v699 = vpop.f32.mrb[0].mxu0
          %v700 = vpop.f32.mrb[0].mxu0
          %v701 = vadd.f32 0.0, %v700
          %v702 = vpop.f32.mrb[0].mxu0
          %703 = vmatprep.mubr.bf16.mxu0 0
          %704 = vmatmul.mubr.bf16.gmra.mrb[0].mxu0 %v421
          %v705 = vpop.f32.mrb[0].mxu0
          %v706 = vadd.f32 0.0, %v705
          %v707 = vpop.f32.mrb[0].mxu0
          %v708 = vpop.f32.mrb[0].mxu0
          %v709 = vadd.f32 0.0, %v708
          %v710 = vpop.f32.mrb[0].mxu0
          %711 = vmatprep.mubr.bf16.mxu0 0
          %712 = vmatmul.mubr.bf16.gmra.mrb[0].mxu0 %v422
          %v713 = vpop.f32.mrb[0].mxu0
          %v714 = vadd.f32 0.0, %v713
          %v715 = vpop.f32.mrb[0].mxu0
          %v716 = vpop.f32.mrb[0].mxu0
          %v717 = vadd.f32 0.0, %v716
          %v718 = vpop.f32.mrb[0].mxu0
          %719 = vmatprep.mubr.bf16.mxu0 0
          %720 = vmatmul.mubr.bf16.gmra.mrb[0].mxu0 %v423
          %v721 = vpop.f32.mrb[0].mxu0
          %v722 = vadd.f32 0.0, %v721
          %v723 = vpop.f32.mrb[0].mxu0
          %v724 = vpop.f32.mrb[0].mxu0
          %v725 = vadd.f32 0.0, %v724
          %v726 = vpop.f32.mrb[0].mxu0
          %727 = vmatprep.mubr.bf16.mxu0 0
          %728 = vmatmul.mubr.bf16.gmra.mrb[0].mxu0 %v424
          %v729 = vpop.f32.mrb[0].mxu0
          %v730 = vadd.f32 0.0, %v729
          %v731 = vpop.f32.mrb[0].mxu0
          %v732 = vpop.f32.mrb[0].mxu0
          %v733 = vadd.f32 0.0, %v732
          %v734 = vpop.f32.mrb[0].mxu0
          %735 = vmatprep.mubr.bf16.mxu0 0
          %736 = vmatmul.mubr.bf16.gmra.mrb[0].mxu0 %v425
          %v737 = vpop.f32.mrb[0].mxu0
          %v738 = vadd.f32 0.0, %v737
          %v739 = vpop.f32.mrb[0].mxu0
          %v740 = vpop.f32.mrb[0].mxu0
          %v741 = vadd.f32 0.0, %v740
          %v742 = vpop.f32.mrb[0].mxu0
          %743 = vmatprep.mubr.bf16.mxu0 0
          %744 = vmatmul.mubr.bf16.gmra.mrb[0].mxu0 %v426
          %v745 = vpop.f32.mrb[0].mxu0
          %v746 = vadd.f32 0.0, %v745
          %v747 = vpop.f32.mrb[0].mxu0
          %v748 = vpop.f32.mrb[0].mxu0
          %v749 = vadd.f32 0.0, %v748
          %v750 = vpop.f32.mrb[0].mxu0
          %751 = vmatprep.mubr.bf16.mxu0 0
          %752 = vmatmul.mubr.bf16.gmra.mrb[0].mxu0 %v427
          %v753 = vpop.f32.mrb[0].mxu0
          %v754 = vadd.f32 0.0, %v753
          %v755 = vpop.f32.mrb[0].mxu0
          %v756 = vpop.f32.mrb[0].mxu0
          %v757 = vadd.f32 0.0, %v756
          %v758 = vpop.f32.mrb[0].mxu0
          %759 = vdwg.mxu0
          %v760 = vpack.c.bf16 %v701, %v698
          %v761 = vpack.c.bf16 %v709, %v706
          %v762 = vpack.c.bf16 %v717, %v714
          %v763 = vpack.c.bf16 %v725, %v722
          %v764 = vpack.c.bf16 %v733, %v730
          %v765 = vpack.c.bf16 %v741, %v738
          %v766 = vpack.c.bf16 %v749, %v746
          %v767 = vpack.c.bf16 %v757, %v754
          %s768 = scalar_lea.vmem [#allocation2], 64
          %769 = vst.msk [vmem:[%s768] sm:$0xff] %vm589, %v760
          %770 = vst.msk [vmem:[%s768 + $0x8] sm:$0xff] %vm589, %v761
          %771 = vst.msk [vmem:[%s768 + $0x10] sm:$0xff] %vm589, %v762
          %772 = vst.msk [vmem:[%s768 + $0x18] sm:$0xff] %vm589, %v763
          %773 = vst.msk [vmem:[%s768 + $0x20] sm:$0xff] %vm589, %v764
          %774 = vst.msk [vmem:[%s768 + $0x28] sm:$0xff] %vm589, %v765
          %775 = vst.msk [vmem:[%s768 + $0x30] sm:$0xff] %vm589, %v766
          %776 = vst.msk [vmem:[%s768 + $0x38] sm:$0xff] %vm589, %v767
          %s777 = scalar_lea.vmem %s2, 128
          %v778 = vld [vmem:[%s777] sm:$0xf]
          %v779 = vld [vmem:[%s777 + $0x4] sm:$0xf]
          %v780 = vld [vmem:[%s777 + $0x8] sm:$0xf]
          %v781 = vld [vmem:[%s777 + $0xc] sm:$0xf]
          %v782 = vld [vmem:[%s777 + $0x10] sm:$0xf]
          %v783 = vld [vmem:[%s777 + $0x14] sm:$0xf]
          %v784 = vld [vmem:[%s777 + $0x18] sm:$0xf]
          %v785 = vld [vmem:[%s777 + $0x1c] sm:$0xf]
          %v786 = vld [vmem:[%s777 + $0x20] sm:$0xf]
          %v787 = vld [vmem:[%s777 + $0x24] sm:$0xf]
          %v788 = vld [vmem:[%s777 + $0x28] sm:$0xf]
          %v789 = vld [vmem:[%s777 + $0x2c] sm:$0xf]
          %v790 = vld [vmem:[%s777 + $0x30] sm:$0xf]
          %v791 = vld [vmem:[%s777 + $0x34] sm:$0xf]
          %v792 = vld [vmem:[%s777 + $0x38] sm:$0xf]
          %v793 = vld [vmem:[%s777 + $0x3c] sm:$0xf]
          %v810 = vunpack.c.l.b16 %v778
          %v811 = vunpack.c.l.b16 %v779
          %v812 = vunpack.c.l.b16 %v780
          %v813 = vunpack.c.l.b16 %v781
          %v814 = vunpack.c.l.b16 %v782
          %v815 = vunpack.c.l.b16 %v783
          %v816 = vunpack.c.l.b16 %v784
          %v817 = vunpack.c.l.b16 %v785
          %v818 = vunpack.c.l.b16 %v786
          %v819 = vunpack.c.l.b16 %v787
          %v820 = vunpack.c.l.b16 %v788
          %v821 = vunpack.c.l.b16 %v789
          %v822 = vunpack.c.l.b16 %v790
          %v823 = vunpack.c.l.b16 %v791
          %v824 = vunpack.c.l.b16 %v792
          %v825 = vunpack.c.l.b16 %v793
          %v826 = vpack.c.b16 %v811, %v810
          %v827 = vpack.c.b16 %v813, %v812
          %v828 = vpack.c.b16 %v815, %v814
          %v829 = vpack.c.b16 %v817, %v816
          %v830 = vpack.c.b16 %v819, %v818
          %v831 = vpack.c.b16 %v821, %v820
          %v832 = vpack.c.b16 %v823, %v822
          %v833 = vpack.c.b16 %v825, %v824
          %842 = vmatprep.subr.bf16.mxu0 0
          %843 = vmatpush1.bf16.msra.mxu0 %v826
          %844 = vmatprep.subr.bf16.mxu0 0
          %845 = vmatpush1.bf16.msra.mxu0 %v827
          %846 = vmatprep.subr.bf16.mxu0 0
          %847 = vmatpush1.bf16.msra.mxu0 %v828
          %848 = vmatprep.subr.bf16.mxu0 0
          %849 = vmatpush1.bf16.msra.mxu0 %v829
          %850 = vmatprep.subr.bf16.mxu0 0
          %851 = vmatpush1.bf16.msra.mxu0 %v830
          %852 = vmatprep.subr.bf16.mxu0 0
          %853 = vmatpush1.bf16.msra.mxu0 %v831
          %854 = vmatprep.subr.bf16.mxu0 0
          %855 = vmatpush1.bf16.msra.mxu0 %v832
          %856 = vmatprep.subr.bf16.mxu0 0
          %857 = vmatpush1.bf16.msra.mxu0 %v833
          %858 = vmatprep.subr.bf16.mxu0 0
          %859 = vmatpush1.bf16.msra.mxu0 0
          %860 = vmatprep.subr.bf16.mxu0 0
          %861 = vmatpush1.bf16.msra.mxu0 0
          %862 = vmatprep.subr.bf16.mxu0 0
          %863 = vmatpush1.bf16.msra.mxu0 0
          %864 = vmatprep.subr.bf16.mxu0 0
          %865 = vmatpush1.bf16.msra.mxu0 0
          %866 = vmatprep.subr.bf16.mxu0 0
          %867 = vmatpush1.bf16.msra.mxu0 0
          %868 = vmatprep.subr.bf16.mxu0 0
          %869 = vmatpush1.bf16.msra.mxu0 0
          %870 = vmatprep.subr.bf16.mxu0 0
          %871 = vmatpush1.bf16.msra.mxu0 0
          %872 = vmatprep.subr.bf16.mxu0 0
          %873 = vmatpush1.bf16.msra.mxu0 0
          %874 = vmatprep.mubr.bf16.mxu0 0
          %875 = vmatmul.mubr.bf16.gmra.mrb[0].mxu0 %v420
          %v876 = vpop.f32.mrb[0].mxu0
          %v877 = vadd.f32 0.0, %v876
          %v878 = vpop.f32.mrb[0].mxu0
          %v879 = vpop.f32.mrb[0].mxu0
          %v880 = vadd.f32 0.0, %v879
          %v881 = vpop.f32.mrb[0].mxu0
          %882 = vmatprep.mubr.bf16.mxu0 0
          %883 = vmatmul.mubr.bf16.gmra.mrb[0].mxu0 %v421
          %v884 = vpop.f32.mrb[0].mxu0
          %v885 = vadd.f32 0.0, %v884
          %v886 = vpop.f32.mrb[0].mxu0
          %v887 = vpop.f32.mrb[0].mxu0
          %v888 = vadd.f32 0.0, %v887
          %v889 = vpop.f32.mrb[0].mxu0
          %890 = vmatprep.mubr.bf16.mxu0 0
          %891 = vmatmul.mubr.bf16.gmra.mrb[0].mxu0 %v422
          %v892 = vpop.f32.mrb[0].mxu0
          %v893 = vadd.f32 0.0, %v892
          %v894 = vpop.f32.mrb[0].mxu0
          %v895 = vpop.f32.mrb[0].mxu0
          %v896 = vadd.f32 0.0, %v895
          %v897 = vpop.f32.mrb[0].mxu0
          %898 = vmatprep.mubr.bf16.mxu0 0
          %899 = vmatmul.mubr.bf16.gmra.mrb[0].mxu0 %v423
          %v900 = vpop.f32.mrb[0].mxu0
          %v901 = vadd.f32 0.0, %v900
          %v902 = vpop.f32.mrb[0].mxu0
          %v903 = vpop.f32.mrb[0].mxu0
          %v904 = vadd.f32 0.0, %v903
          %v905 = vpop.f32.mrb[0].mxu0
          %906 = vmatprep.mubr.bf16.mxu0 0
          %907 = vmatmul.mubr.bf16.gmra.mrb[0].mxu0 %v424
          %v908 = vpop.f32.mrb[0].mxu0
          %v909 = vadd.f32 0.0, %v908
          %v910 = vpop.f32.mrb[0].mxu0
          %v911 = vpop.f32.mrb[0].mxu0
          %v912 = vadd.f32 0.0, %v911
          %v913 = vpop.f32.mrb[0].mxu0
          %914 = vmatprep.mubr.bf16.mxu0 0
          %915 = vmatmul.mubr.bf16.gmra.mrb[0].mxu0 %v425
          %v916 = vpop.f32.mrb[0].mxu0
          %v917 = vadd.f32 0.0, %v916
          %v918 = vpop.f32.mrb[0].mxu0
          %v919 = vpop.f32.mrb[0].mxu0
          %v920 = vadd.f32 0.0, %v919
          %v921 = vpop.f32.mrb[0].mxu0
          %922 = vmatprep.mubr.bf16.mxu0 0
          %923 = vmatmul.mubr.bf16.gmra.mrb[0].mxu0 %v426
          %v924 = vpop.f32.mrb[0].mxu0
          %v925 = vadd.f32 0.0, %v924
          %v926 = vpop.f32.mrb[0].mxu0
          %v927 = vpop.f32.mrb[0].mxu0
          %v928 = vadd.f32 0.0, %v927
          %v929 = vpop.f32.mrb[0].mxu0
          %930 = vmatprep.mubr.bf16.mxu0 0
          %931 = vmatmul.mubr.bf16.gmra.mrb[0].mxu0 %v427
          %v932 = vpop.f32.mrb[0].mxu0
          %v933 = vadd.f32 0.0, %v932
          %v934 = vpop.f32.mrb[0].mxu0
          %v935 = vpop.f32.mrb[0].mxu0
          %v936 = vadd.f32 0.0, %v935
          %v937 = vpop.f32.mrb[0].mxu0
          %938 = vdwg.mxu0
          %v939 = vpack.c.bf16 %v880, %v877
          %v940 = vpack.c.bf16 %v888, %v885
          %v941 = vpack.c.bf16 %v896, %v893
          %v942 = vpack.c.bf16 %v904, %v901
          %v943 = vpack.c.bf16 %v912, %v909
          %v944 = vpack.c.bf16 %v920, %v917
          %v945 = vpack.c.bf16 %v928, %v925
          %v946 = vpack.c.bf16 %v936, %v933
          %s947 = scalar_lea.vmem [#allocation2], 128
          %948 = vst.msk [vmem:[%s947] sm:$0xff] %vm589, %v939
          %949 = vst.msk [vmem:[%s947 + $0x8] sm:$0xff] %vm589, %v940
          %950 = vst.msk [vmem:[%s947 + $0x10] sm:$0xff] %vm589, %v941
          %951 = vst.msk [vmem:[%s947 + $0x18] sm:$0xff] %vm589, %v942
          %952 = vst.msk [vmem:[%s947 + $0x20] sm:$0xff] %vm589, %v943
          %953 = vst.msk [vmem:[%s947 + $0x28] sm:$0xff] %vm589, %v944
          %954 = vst.msk [vmem:[%s947 + $0x30] sm:$0xff] %vm589, %v945
          %955 = vst.msk [vmem:[%s947 + $0x38] sm:$0xff] %vm589, %v946
          %s956 = scalar_lea.vmem %s2, 192
          %v957 = vld [vmem:[%s956] sm:$0xf]
          %v958 = vld [vmem:[%s956 + $0x4] sm:$0xf]
          %v959 = vld [vmem:[%s956 + $0x8] sm:$0xf]
          %v960 = vld [vmem:[%s956 + $0xc] sm:$0xf]
          %v961 = vld [vmem:[%s956 + $0x10] sm:$0xf]
          %v962 = vld [vmem:[%s956 + $0x14] sm:$0xf]
          %v963 = vld [vmem:[%s956 + $0x18] sm:$0xf]
          %v964 = vld [vmem:[%s956 + $0x1c] sm:$0xf]
          %v965 = vld [vmem:[%s956 + $0x20] sm:$0xf]
          %v966 = vld [vmem:[%s956 + $0x24] sm:$0xf]
          %v967 = vld [vmem:[%s956 + $0x28] sm:$0xf]
          %v968 = vld [vmem:[%s956 + $0x2c] sm:$0xf]
          %v969 = vld [vmem:[%s956 + $0x30] sm:$0xf]
          %v970 = vld [vmem:[%s956 + $0x34] sm:$0xf]
          %v971 = vld [vmem:[%s956 + $0x38] sm:$0xf]
          %v972 = vld [vmem:[%s956 + $0x3c] sm:$0xf]
          %v989 = vunpack.c.l.b16 %v957
          %v990 = vunpack.c.l.b16 %v958
          %v991 = vunpack.c.l.b16 %v959
          %v992 = vunpack.c.l.b16 %v960
          %v993 = vunpack.c.l.b16 %v961
          %v994 = vunpack.c.l.b16 %v962
          %v995 = vunpack.c.l.b16 %v963
          %v996 = vunpack.c.l.b16 %v964
          %v997 = vunpack.c.l.b16 %v965
          %v998 = vunpack.c.l.b16 %v966
          %v999 = vunpack.c.l.b16 %v967
          %v1000 = vunpack.c.l.b16 %v968
          %v1001 = vunpack.c.l.b16 %v969
          %v1002 = vunpack.c.l.b16 %v970
          %v1003 = vunpack.c.l.b16 %v971
          %v1004 = vunpack.c.l.b16 %v972
          %v1005 = vpack.c.b16 %v990, %v989
          %v1006 = vpack.c.b16 %v992, %v991
          %v1007 = vpack.c.b16 %v994, %v993
          %v1008 = vpack.c.b16 %v996, %v995
          %v1009 = vpack.c.b16 %v998, %v997
          %v1010 = vpack.c.b16 %v1000, %v999
          %v1011 = vpack.c.b16 %v1002, %v1001
          %v1012 = vpack.c.b16 %v1004, %v1003
          %1021 = vmatprep.subr.bf16.mxu0 0
          %1022 = vmatpush1.bf16.msra.mxu0 %v1005
          %1023 = vmatprep.subr.bf16.mxu0 0
          %1024 = vmatpush1.bf16.msra.mxu0 %v1006
          %1025 = vmatprep.subr.bf16.mxu0 0
          %1026 = vmatpush1.bf16.msra.mxu0 %v1007
          %1027 = vmatprep.subr.bf16.mxu0 0
          %1028 = vmatpush1.bf16.msra.mxu0 %v1008
          %1029 = vmatprep.subr.bf16.mxu0 0
          %1030 = vmatpush1.bf16.msra.mxu0 %v1009
          %1031 = vmatprep.subr.bf16.mxu0 0
          %1032 = vmatpush1.bf16.msra.mxu0 %v1010
          %1033 = vmatprep.subr.bf16.mxu0 0
          %1034 = vmatpush1.bf16.msra.mxu0 %v1011
          %1035 = vmatprep.subr.bf16.mxu0 0
          %1036 = vmatpush1.bf16.msra.mxu0 %v1012
          %1037 = vmatprep.subr.bf16.mxu0 0
          %1038 = vmatpush1.bf16.msra.mxu0 0
          %1039 = vmatprep.subr.bf16.mxu0 0
          %1040 = vmatpush1.bf16.msra.mxu0 0
          %1041 = vmatprep.subr.bf16.mxu0 0
          %1042 = vmatpush1.bf16.msra.mxu0 0
          %1043 = vmatprep.subr.bf16.mxu0 0
          %1044 = vmatpush1.bf16.msra.mxu0 0
          %1045 = vmatprep.subr.bf16.mxu0 0
          %1046 = vmatpush1.bf16.msra.mxu0 0
          %1047 = vmatprep.subr.bf16.mxu0 0
          %1048 = vmatpush1.bf16.msra.mxu0 0
          %1049 = vmatprep.subr.bf16.mxu0 0
          %1050 = vmatpush1.bf16.msra.mxu0 0
          %1051 = vmatprep.subr.bf16.mxu0 0
          %1052 = vmatpush1.bf16.msra.mxu0 0
          %1053 = vmatprep.mubr.bf16.mxu0 0
          %1054 = vmatmul.mubr.bf16.gmra.mrb[0].mxu0 %v420
          %v1055 = vpop.f32.mrb[0].mxu0
          %v1056 = vadd.f32 0.0, %v1055
          %v1057 = vpop.f32.mrb[0].mxu0
          %v1058 = vpop.f32.mrb[0].mxu0
          %v1059 = vadd.f32 0.0, %v1058
          %v1060 = vpop.f32.mrb[0].mxu0
          %1061 = vmatprep.mubr.bf16.mxu0 0
          %1062 = vmatmul.mubr.bf16.gmra.mrb[0].mxu0 %v421
          %v1063 = vpop.f32.mrb[0].mxu0
          %v1064 = vadd.f32 0.0, %v1063
          %v1065 = vpop.f32.mrb[0].mxu0
          %v1066 = vpop.f32.mrb[0].mxu0
          %v1067 = vadd.f32 0.0, %v1066
          %v1068 = vpop.f32.mrb[0].mxu0
          %1069 = vmatprep.mubr.bf16.mxu0 0
          %1070 = vmatmul.mubr.bf16.gmra.mrb[0].mxu0 %v422
          %v1071 = vpop.f32.mrb[0].mxu0
          %v1072 = vadd.f32 0.0, %v1071
          %v1073 = vpop.f32.mrb[0].mxu0
          %v1074 = vpop.f32.mrb[0].mxu0
          %v1075 = vadd.f32 0.0, %v1074
          %v1076 = vpop.f32.mrb[0].mxu0
          %1077 = vmatprep.mubr.bf16.mxu0 0
          %1078 = vmatmul.mubr.bf16.gmra.mrb[0].mxu0 %v423
          %v1079 = vpop.f32.mrb[0].mxu0
          %v1080 = vadd.f32 0.0, %v1079
          %v1081 = vpop.f32.mrb[0].mxu0
          %v1082 = vpop.f32.mrb[0].mxu0
          %v1083 = vadd.f32 0.0, %v1082
          %v1084 = vpop.f32.mrb[0].mxu0
          %1085 = vmatprep.mubr.bf16.mxu0 0
          %1086 = vmatmul.mubr.bf16.gmra.mrb[0].mxu0 %v424
          %v1087 = vpop.f32.mrb[0].mxu0
          %v1088 = vadd.f32 0.0, %v1087
          %v1089 = vpop.f32.mrb[0].mxu0
          %v1090 = vpop.f32.mrb[0].mxu0
          %v1091 = vadd.f32 0.0, %v1090
          %v1092 = vpop.f32.mrb[0].mxu0
          %1093 = vmatprep.mubr.bf16.mxu0 0
          %1094 = vmatmul.mubr.bf16.gmra.mrb[0].mxu0 %v425
          %v1095 = vpop.f32.mrb[0].mxu0
          %v1096 = vadd.f32 0.0, %v1095
          %v1097 = vpop.f32.mrb[0].mxu0
          %v1098 = vpop.f32.mrb[0].mxu0
          %v1099 = vadd.f32 0.0, %v1098
          %v1100 = vpop.f32.mrb[0].mxu0
          %1101 = vmatprep.mubr.bf16.mxu0 0
          %1102 = vmatmul.mubr.bf16.gmra.mrb[0].mxu0 %v426
          %v1103 = vpop.f32.mrb[0].mxu0
          %v1104 = vadd.f32 0.0, %v1103
          %v1105 = vpop.f32.mrb[0].mxu0
          %v1106 = vpop.f32.mrb[0].mxu0
          %v1107 = vadd.f32 0.0, %v1106
          %v1108 = vpop.f32.mrb[0].mxu0
          %1109 = vmatprep.mubr.bf16.mxu0 0
          %1110 = vmatmul.mubr.bf16.gmra.mrb[0].mxu0 %v427
          %v1111 = vpop.f32.mrb[0].mxu0
          %v1112 = vadd.f32 0.0, %v1111
          %v1113 = vpop.f32.mrb[0].mxu0
          %v1114 = vpop.f32.mrb[0].mxu0
          %v1115 = vadd.f32 0.0, %v1114
          %v1116 = vpop.f32.mrb[0].mxu0
          %1117 = vdwg.mxu0
          %v1118 = vpack.c.bf16 %v1059, %v1056
          %v1119 = vpack.c.bf16 %v1067, %v1064
          %v1120 = vpack.c.bf16 %v1075, %v1072
          %v1121 = vpack.c.bf16 %v1083, %v1080
          %v1122 = vpack.c.bf16 %v1091, %v1088
          %v1123 = vpack.c.bf16 %v1099, %v1096
          %v1124 = vpack.c.bf16 %v1107, %v1104
          %v1125 = vpack.c.bf16 %v1115, %v1112
          %s1126 = scalar_lea.vmem [#allocation2], 192
          %1127 = vst.msk [vmem:[%s1126] sm:$0xff] %vm589, %v1118
          %1128 = vst.msk [vmem:[%s1126 + $0x8] sm:$0xff] %vm589, %v1119
          %1129 = vst.msk [vmem:[%s1126 + $0x10] sm:$0xff] %vm589, %v1120
          %1130 = vst.msk [vmem:[%s1126 + $0x18] sm:$0xff] %vm589, %v1121
          %1131 = vst.msk [vmem:[%s1126 + $0x20] sm:$0xff] %vm589, %v1122
          %1132 = vst.msk [vmem:[%s1126 + $0x28] sm:$0xff] %vm589, %v1123
          %1133 = vst.msk [vmem:[%s1126 + $0x30] sm:$0xff] %vm589, %v1124
          %1134 = vst.msk [vmem:[%s1126 + $0x38] sm:$0xff] %vm589, %v1125
          %vm1135 = vcmask 7168
          %1136 = vst.msk [vmem:[#allocation3] sm:$0xff] %vm1135, -inf
          %1137 = vst.msk [vmem:[#allocation3 + $0x8] sm:$0xff] %vm1135, -inf
          %1138 = vst.msk [vmem:[#allocation3 + $0x10] sm:$0xff] %vm1135, -inf
          %1139 = vst.msk [vmem:[#allocation3 + $0x18] sm:$0xff] %vm1135, -inf
          %1140 = vst.msk [vmem:[#allocation3 + $0x20] sm:$0xff] %vm1135, -inf
          %1141 = vst.msk [vmem:[#allocation3 + $0x28] sm:$0xff] %vm1135, -inf
          %1142 = vst.msk [vmem:[#allocation3 + $0x30] sm:$0xff] %vm1135, -inf
          %1143 = vst.msk [vmem:[#allocation3 + $0x38] sm:$0xff] %vm1135, -inf
          %1144 = vst.msk [vmem:[#allocation3 + $0x40] sm:$0xff] %vm1135, -inf
          %1145 = vst.msk [vmem:[#allocation3 + $0x48] sm:$0xff] %vm1135, -inf
          %1146 = vst.msk [vmem:[#allocation3 + $0x50] sm:$0xff] %vm1135, -inf
          %1147 = vst.msk [vmem:[#allocation3 + $0x58] sm:$0xff] %vm1135, -inf
          %1148 = vst.msk [vmem:[#allocation3 + $0x60] sm:$0xff] %vm1135, -inf
          %1149 = vst.msk [vmem:[#allocation3 + $0x68] sm:$0xff] %vm1135, -inf
          %1150 = vst.msk [vmem:[#allocation3 + $0x70] sm:$0xff] %vm1135, -inf
          %1151 = vst.msk [vmem:[#allocation3 + $0x78] sm:$0xff] %vm1135, -inf
          %1152 = vst.msk [vmem:[#allocation3 + $0x80] sm:$0xff] %vm1135, -inf
          %1153 = vst.msk [vmem:[#allocation3 + $0x88] sm:$0xff] %vm1135, -inf
          %1154 = vst.msk [vmem:[#allocation3 + $0x90] sm:$0xff] %vm1135, -inf
          %1155 = vst.msk [vmem:[#allocation3 + $0x98] sm:$0xff] %vm1135, -inf
          %1156 = vst.msk [vmem:[#allocation3 + $0xa0] sm:$0xff] %vm1135, -inf
          %1157 = vst.msk [vmem:[#allocation3 + $0xa8] sm:$0xff] %vm1135, -inf
          %1158 = vst.msk [vmem:[#allocation3 + $0xb0] sm:$0xff] %vm1135, -inf
          %1159 = vst.msk [vmem:[#allocation3 + $0xb8] sm:$0xff] %vm1135, -inf
          %1160 = vst.msk [vmem:[#allocation3 + $0xc0] sm:$0xff] %vm1135, -inf
          %1161 = vst.msk [vmem:[#allocation3 + $0xc8] sm:$0xff] %vm1135, -inf
          %1162 = vst.msk [vmem:[#allocation3 + $0xd0] sm:$0xff] %vm1135, -inf
          %1163 = vst.msk [vmem:[#allocation3 + $0xd8] sm:$0xff] %vm1135, -inf
          %1164 = vst.msk [vmem:[#allocation3 + $0xe0] sm:$0xff] %vm1135, -inf
          %1165 = vst.msk [vmem:[#allocation3 + $0xe8] sm:$0xff] %vm1135, -inf
          %1166 = vst.msk [vmem:[#allocation3 + $0xf0] sm:$0xff] %vm1135, -inf
          %1167 = vst.msk [vmem:[#allocation3 + $0xf8] sm:$0xff] %vm1135, -inf
          %1168 = vst.msk [vmem:[#allocation3 + $0x100] sm:$0xff] %vm1135, -inf
          %1169 = vst.msk [vmem:[#allocation3 + $0x108] sm:$0xff] %vm1135, -inf
          %1170 = vst.msk [vmem:[#allocation3 + $0x110] sm:$0xff] %vm1135, -inf
          %1171 = vst.msk [vmem:[#allocation3 + $0x118] sm:$0xff] %vm1135, -inf
          %1172 = vst.msk [vmem:[#allocation3 + $0x120] sm:$0xff] %vm1135, -inf
          %1173 = vst.msk [vmem:[#allocation3 + $0x128] sm:$0xff] %vm1135, -inf
          %1174 = vst.msk [vmem:[#allocation3 + $0x130] sm:$0xff] %vm1135, -inf
          %1175 = vst.msk [vmem:[#allocation3 + $0x138] sm:$0xff] %vm1135, -inf
          %1176 = vst.msk [vmem:[#allocation3 + $0x140] sm:$0xff] %vm1135, -inf
          %1177 = vst.msk [vmem:[#allocation3 + $0x148] sm:$0xff] %vm1135, -inf
          %1178 = vst.msk [vmem:[#allocation3 + $0x150] sm:$0xff] %vm1135, -inf
          %1179 = vst.msk [vmem:[#allocation3 + $0x158] sm:$0xff] %vm1135, -inf
          %1180 = vst.msk [vmem:[#allocation3 + $0x160] sm:$0xff] %vm1135, -inf
          %1181 = vst.msk [vmem:[#allocation3 + $0x168] sm:$0xff] %vm1135, -inf
          %1182 = vst.msk [vmem:[#allocation3 + $0x170] sm:$0xff] %vm1135, -inf
          %1183 = vst.msk [vmem:[#allocation3 + $0x178] sm:$0xff] %vm1135, -inf
          %1184 = vst.msk [vmem:[#allocation3 + $0x180] sm:$0xff] %vm1135, -inf
          %1185 = vst.msk [vmem:[#allocation3 + $0x188] sm:$0xff] %vm1135, -inf
          %1186 = vst.msk [vmem:[#allocation3 + $0x190] sm:$0xff] %vm1135, -inf
          %1187 = vst.msk [vmem:[#allocation3 + $0x198] sm:$0xff] %vm1135, -inf
          %1188 = vst.msk [vmem:[#allocation3 + $0x1a0] sm:$0xff] %vm1135, -inf
          %1189 = vst.msk [vmem:[#allocation3 + $0x1a8] sm:$0xff] %vm1135, -inf
          %1190 = vst.msk [vmem:[#allocation3 + $0x1b0] sm:$0xff] %vm1135, -inf
          %1191 = vst.msk [vmem:[#allocation3 + $0x1b8] sm:$0xff] %vm1135, -inf
          %1192 = vst.msk [vmem:[#allocation3 + $0x1c0] sm:$0xff] %vm1135, -inf
          %1193 = vst.msk [vmem:[#allocation3 + $0x1c8] sm:$0xff] %vm1135, -inf
          %1194 = vst.msk [vmem:[#allocation3 + $0x1d0] sm:$0xff] %vm1135, -inf
          %1195 = vst.msk [vmem:[#allocation3 + $0x1d8] sm:$0xff] %vm1135, -inf
          %1196 = vst.msk [vmem:[#allocation3 + $0x1e0] sm:$0xff] %vm1135, -inf
          %1197 = vst.msk [vmem:[#allocation3 + $0x1e8] sm:$0xff] %vm1135, -inf
          %1198 = vst.msk [vmem:[#allocation3 + $0x1f0] sm:$0xff] %vm1135, -inf
          %1199 = vst.msk [vmem:[#allocation3 + $0x1f8] sm:$0xff] %vm1135, -inf
          %1200 = vst.msk [vmem:[#allocation4] sm:$0xff] %vm1135, 0.0
          %1201 = vst.msk [vmem:[#allocation4 + $0x8] sm:$0xff] %vm1135, 0.0
          %1202 = vst.msk [vmem:[#allocation4 + $0x10] sm:$0xff] %vm1135, 0.0
          %1203 = vst.msk [vmem:[#allocation4 + $0x18] sm:$0xff] %vm1135, 0.0
          %1204 = vst.msk [vmem:[#allocation4 + $0x20] sm:$0xff] %vm1135, 0.0
          %1205 = vst.msk [vmem:[#allocation4 + $0x28] sm:$0xff] %vm1135, 0.0
          %1206 = vst.msk [vmem:[#allocation4 + $0x30] sm:$0xff] %vm1135, 0.0
          %1207 = vst.msk [vmem:[#allocation4 + $0x38] sm:$0xff] %vm1135, 0.0
          %1208 = vst.msk [vmem:[#allocation4 + $0x40] sm:$0xff] %vm1135, 0.0
          %1209 = vst.msk [vmem:[#allocation4 + $0x48] sm:$0xff] %vm1135, 0.0
          %1210 = vst.msk [vmem:[#allocation4 + $0x50] sm:$0xff] %vm1135, 0.0
          %1211 = vst.msk [vmem:[#allocation4 + $0x58] sm:$0xff] %vm1135, 0.0
          %1212 = vst.msk [vmem:[#allocation4 + $0x60] sm:$0xff] %vm1135, 0.0
          %1213 = vst.msk [vmem:[#allocation4 + $0x68] sm:$0xff] %vm1135, 0.0
          %1214 = vst.msk [vmem:[#allocation4 + $0x70] sm:$0xff] %vm1135, 0.0
          %1215 = vst.msk [vmem:[#allocation4 + $0x78] sm:$0xff] %vm1135, 0.0
          %1216 = vst.msk [vmem:[#allocation4 + $0x80] sm:$0xff] %vm1135, 0.0
          %1217 = vst.msk [vmem:[#allocation4 + $0x88] sm:$0xff] %vm1135, 0.0
          %1218 = vst.msk [vmem:[#allocation4 + $0x90] sm:$0xff] %vm1135, 0.0
          %1219 = vst.msk [vmem:[#allocation4 + $0x98] sm:$0xff] %vm1135, 0.0
          %1220 = vst.msk [vmem:[#allocation4 + $0xa0] sm:$0xff] %vm1135, 0.0
          %1221 = vst.msk [vmem:[#allocation4 + $0xa8] sm:$0xff] %vm1135, 0.0
          %1222 = vst.msk [vmem:[#allocation4 + $0xb0] sm:$0xff] %vm1135, 0.0
          %1223 = vst.msk [vmem:[#allocation4 + $0xb8] sm:$0xff] %vm1135, 0.0
          %1224 = vst.msk [vmem:[#allocation4 + $0xc0] sm:$0xff] %vm1135, 0.0
          %1225 = vst.msk [vmem:[#allocation4 + $0xc8] sm:$0xff] %vm1135, 0.0
          %1226 = vst.msk [vmem:[#allocation4 + $0xd0] sm:$0xff] %vm1135, 0.0
          %1227 = vst.msk [vmem:[#allocation4 + $0xd8] sm:$0xff] %vm1135, 0.0
          %1228 = vst.msk [vmem:[#allocation4 + $0xe0] sm:$0xff] %vm1135, 0.0
          %1229 = vst.msk [vmem:[#allocation4 + $0xe8] sm:$0xff] %vm1135, 0.0
          %1230 = vst.msk [vmem:[#allocation4 + $0xf0] sm:$0xff] %vm1135, 0.0
          %1231 = vst.msk [vmem:[#allocation4 + $0xf8] sm:$0xff] %vm1135, 0.0
          %1232 = vst.msk [vmem:[#allocation4 + $0x100] sm:$0xff] %vm1135, 0.0
          %1233 = vst.msk [vmem:[#allocation4 + $0x108] sm:$0xff] %vm1135, 0.0
          %1234 = vst.msk [vmem:[#allocation4 + $0x110] sm:$0xff] %vm1135, 0.0
          %1235 = vst.msk [vmem:[#allocation4 + $0x118] sm:$0xff] %vm1135, 0.0
          %1236 = vst.msk [vmem:[#allocation4 + $0x120] sm:$0xff] %vm1135, 0.0
          %1237 = vst.msk [vmem:[#allocation4 + $0x128] sm:$0xff] %vm1135, 0.0
          %1238 = vst.msk [vmem:[#allocation4 + $0x130] sm:$0xff] %vm1135, 0.0
          %1239 = vst.msk [vmem:[#allocation4 + $0x138] sm:$0xff] %vm1135, 0.0
          %1240 = vst.msk [vmem:[#allocation4 + $0x140] sm:$0xff] %vm1135, 0.0
          %1241 = vst.msk [vmem:[#allocation4 + $0x148] sm:$0xff] %vm1135, 0.0
          %1242 = vst.msk [vmem:[#allocation4 + $0x150] sm:$0xff] %vm1135, 0.0
          %1243 = vst.msk [vmem:[#allocation4 + $0x158] sm:$0xff] %vm1135, 0.0
          %1244 = vst.msk [vmem:[#allocation4 + $0x160] sm:$0xff] %vm1135, 0.0
          %1245 = vst.msk [vmem:[#allocation4 + $0x168] sm:$0xff] %vm1135, 0.0
          %1246 = vst.msk [vmem:[#allocation4 + $0x170] sm:$0xff] %vm1135, 0.0
          %1247 = vst.msk [vmem:[#allocation4 + $0x178] sm:$0xff] %vm1135, 0.0
          %1248 = vst.msk [vmem:[#allocation4 + $0x180] sm:$0xff] %vm1135, 0.0
          %1249 = vst.msk [vmem:[#allocation4 + $0x188] sm:$0xff] %vm1135, 0.0
          %1250 = vst.msk [vmem:[#allocation4 + $0x190] sm:$0xff] %vm1135, 0.0
          %1251 = vst.msk [vmem:[#allocation4 + $0x198] sm:$0xff] %vm1135, 0.0
          %1252 = vst.msk [vmem:[#allocation4 + $0x1a0] sm:$0xff] %vm1135, 0.0
          %1253 = vst.msk [vmem:[#allocation4 + $0x1a8] sm:$0xff] %vm1135, 0.0
          %1254 = vst.msk [vmem:[#allocation4 + $0x1b0] sm:$0xff] %vm1135, 0.0
          %1255 = vst.msk [vmem:[#allocation4 + $0x1b8] sm:$0xff] %vm1135, 0.0
          %1256 = vst.msk [vmem:[#allocation4 + $0x1c0] sm:$0xff] %vm1135, 0.0
          %1257 = vst.msk [vmem:[#allocation4 + $0x1c8] sm:$0xff] %vm1135, 0.0
          %1258 = vst.msk [vmem:[#allocation4 + $0x1d0] sm:$0xff] %vm1135, 0.0
          %1259 = vst.msk [vmem:[#allocation4 + $0x1d8] sm:$0xff] %vm1135, 0.0
          %1260 = vst.msk [vmem:[#allocation4 + $0x1e0] sm:$0xff] %vm1135, 0.0
          %1261 = vst.msk [vmem:[#allocation4 + $0x1e8] sm:$0xff] %vm1135, 0.0
          %1262 = vst.msk [vmem:[#allocation4 + $0x1f0] sm:$0xff] %vm1135, 0.0
          %1263 = vst.msk [vmem:[#allocation4 + $0x1f8] sm:$0xff] %vm1135, 0.0
          %1264 = vst.msk [vmem:[#allocation5] sm:$0xff] %vm589, 0.0
          %1265 = vst.msk [vmem:[#allocation5 + $0x8] sm:$0xff] %vm589, 0.0
          %1266 = vst.msk [vmem:[#allocation5 + $0x10] sm:$0xff] %vm589, 0.0
          %1267 = vst.msk [vmem:[#allocation5 + $0x18] sm:$0xff] %vm589, 0.0
          %1268 = vst.msk [vmem:[#allocation5 + $0x20] sm:$0xff] %vm589, 0.0
          %1269 = vst.msk [vmem:[#allocation5 + $0x28] sm:$0xff] %vm589, 0.0
          %1270 = vst.msk [vmem:[#allocation5 + $0x30] sm:$0xff] %vm589, 0.0
          %1271 = vst.msk [vmem:[#allocation5 + $0x38] sm:$0xff] %vm589, 0.0
          %1272 = vst.msk [vmem:[#allocation5 + $0x40] sm:$0xff] %vm589, 0.0
          %1273 = vst.msk [vmem:[#allocation5 + $0x48] sm:$0xff] %vm589, 0.0
          %1274 = vst.msk [vmem:[#allocation5 + $0x50] sm:$0xff] %vm589, 0.0
          %1275 = vst.msk [vmem:[#allocation5 + $0x58] sm:$0xff] %vm589, 0.0
          %1276 = vst.msk [vmem:[#allocation5 + $0x60] sm:$0xff] %vm589, 0.0
          %1277 = vst.msk [vmem:[#allocation5 + $0x68] sm:$0xff] %vm589, 0.0
          %1278 = vst.msk [vmem:[#allocation5 + $0x70] sm:$0xff] %vm589, 0.0
          %1279 = vst.msk [vmem:[#allocation5 + $0x78] sm:$0xff] %vm589, 0.0
          %1280 = vst.msk [vmem:[#allocation5 + $0x80] sm:$0xff] %vm589, 0.0
          %1281 = vst.msk [vmem:[#allocation5 + $0x88] sm:$0xff] %vm589, 0.0
          %1282 = vst.msk [vmem:[#allocation5 + $0x90] sm:$0xff] %vm589, 0.0
          %1283 = vst.msk [vmem:[#allocation5 + $0x98] sm:$0xff] %vm589, 0.0
          %1284 = vst.msk [vmem:[#allocation5 + $0xa0] sm:$0xff] %vm589, 0.0
          %1285 = vst.msk [vmem:[#allocation5 + $0xa8] sm:$0xff] %vm589, 0.0
          %1286 = vst.msk [vmem:[#allocation5 + $0xb0] sm:$0xff] %vm589, 0.0
          %1287 = vst.msk [vmem:[#allocation5 + $0xb8] sm:$0xff] %vm589, 0.0
          %1288 = vst.msk [vmem:[#allocation5 + $0xc0] sm:$0xff] %vm589, 0.0
          %1289 = vst.msk [vmem:[#allocation5 + $0xc8] sm:$0xff] %vm589, 0.0
          %1290 = vst.msk [vmem:[#allocation5 + $0xd0] sm:$0xff] %vm589, 0.0
          %1291 = vst.msk [vmem:[#allocation5 + $0xd8] sm:$0xff] %vm589, 0.0
          %1292 = vst.msk [vmem:[#allocation5 + $0xe0] sm:$0xff] %vm589, 0.0
          %1293 = vst.msk [vmem:[#allocation5 + $0xe8] sm:$0xff] %vm589, 0.0
          %1294 = vst.msk [vmem:[#allocation5 + $0xf0] sm:$0xff] %vm589, 0.0
          %1295 = vst.msk [vmem:[#allocation5 + $0xf8] sm:$0xff] %vm589, 0.0
          %1296 = vst.msk [vmem:[#allocation5 + $0x100] sm:$0xff] %vm589, 0.0
          %1297 = vst.msk [vmem:[#allocation5 + $0x108] sm:$0xff] %vm589, 0.0
          %1298 = vst.msk [vmem:[#allocation5 + $0x110] sm:$0xff] %vm589, 0.0
          %1299 = vst.msk [vmem:[#allocation5 + $0x118] sm:$0xff] %vm589, 0.0
          %1300 = vst.msk [vmem:[#allocation5 + $0x120] sm:$0xff] %vm589, 0.0
          %1301 = vst.msk [vmem:[#allocation5 + $0x128] sm:$0xff] %vm589, 0.0
          %1302 = vst.msk [vmem:[#allocation5 + $0x130] sm:$0xff] %vm589, 0.0
          %1303 = vst.msk [vmem:[#allocation5 + $0x138] sm:$0xff] %vm589, 0.0
          %1304 = vst.msk [vmem:[#allocation5 + $0x140] sm:$0xff] %vm589, 0.0
          %1305 = vst.msk [vmem:[#allocation5 + $0x148] sm:$0xff] %vm589, 0.0
          %1306 = vst.msk [vmem:[#allocation5 + $0x150] sm:$0xff] %vm589, 0.0
          %1307 = vst.msk [vmem:[#allocation5 + $0x158] sm:$0xff] %vm589, 0.0
          %1308 = vst.msk [vmem:[#allocation5 + $0x160] sm:$0xff] %vm589, 0.0
          %1309 = vst.msk [vmem:[#allocation5 + $0x168] sm:$0xff] %vm589, 0.0
          %1310 = vst.msk [vmem:[#allocation5 + $0x170] sm:$0xff] %vm589, 0.0
          %1311 = vst.msk [vmem:[#allocation5 + $0x178] sm:$0xff] %vm589, 0.0
          %1312 = vst.msk [vmem:[#allocation5 + $0x180] sm:$0xff] %vm589, 0.0
          %1313 = vst.msk [vmem:[#allocation5 + $0x188] sm:$0xff] %vm589, 0.0
          %1314 = vst.msk [vmem:[#allocation5 + $0x190] sm:$0xff] %vm589, 0.0
          %1315 = vst.msk [vmem:[#allocation5 + $0x198] sm:$0xff] %vm589, 0.0
          %1316 = vst.msk [vmem:[#allocation5 + $0x1a0] sm:$0xff] %vm589, 0.0
          %1317 = vst.msk [vmem:[#allocation5 + $0x1a8] sm:$0xff] %vm589, 0.0
          %1318 = vst.msk [vmem:[#allocation5 + $0x1b0] sm:$0xff] %vm589, 0.0
          %1319 = vst.msk [vmem:[#allocation5 + $0x1b8] sm:$0xff] %vm589, 0.0
          %1320 = vst.msk [vmem:[#allocation5 + $0x1c0] sm:$0xff] %vm589, 0.0
          %1321 = vst.msk [vmem:[#allocation5 + $0x1c8] sm:$0xff] %vm589, 0.0
          %1322 = vst.msk [vmem:[#allocation5 + $0x1d0] sm:$0xff] %vm589, 0.0
          %1323 = vst.msk [vmem:[#allocation5 + $0x1d8] sm:$0xff] %vm589, 0.0
          %1324 = vst.msk [vmem:[#allocation5 + $0x1e0] sm:$0xff] %vm589, 0.0
          %1325 = vst.msk [vmem:[#allocation5 + $0x1e8] sm:$0xff] %vm589, 0.0
          %1326 = vst.msk [vmem:[#allocation5 + $0x1f0] sm:$0xff] %vm589, 0.0
          %1327 = vst.msk [vmem:[#allocation5 + $0x1f8] sm:$0xff] %vm589, 0.0
        $region52: #{tpu_custom_call.1} parent=47 // pred_fallthru
          _
        %v1328 = vld [vmem:[%s348] sm:$0xf]
        %v1329 = vld [vmem:[%s348 + $0x4] sm:$0xf]
        %v1330 = vld [vmem:[%s348 + $0x8] sm:$0xf]
        %v1331 = vld [vmem:[%s348 + $0xc] sm:$0xf]
        %v1332 = vld [vmem:[%s348 + $0x10] sm:$0xf]
        %v1333 = vld [vmem:[%s348 + $0x14] sm:$0xf]
        %v1334 = vld [vmem:[%s348 + $0x18] sm:$0xf]
        %v1335 = vld [vmem:[%s348 + $0x1c] sm:$0xf]
        %v1336 = vld [vmem:[%s348 + $0x20] sm:$0xf]
        %v1337 = vld [vmem:[%s348 + $0x24] sm:$0xf]
        %v1338 = vld [vmem:[%s348 + $0x28] sm:$0xf]
        %v1339 = vld [vmem:[%s348 + $0x2c] sm:$0xf]
        %v1340 = vld [vmem:[%s348 + $0x30] sm:$0xf]
        %v1341 = vld [vmem:[%s348 + $0x34] sm:$0xf]
        %v1342 = vld [vmem:[%s348 + $0x38] sm:$0xf]
        %v1343 = vld [vmem:[%s348 + $0x3c] sm:$0xf]
        %v1344 = vld [vmem:[%s3] sm:$0xf]
        %v1345 = vld [vmem:[%s3 + $0x4] sm:$0xf]
        %v1346 = vld [vmem:[%s3 + $0x8] sm:$0xf]
        %v1347 = vld [vmem:[%s3 + $0xc] sm:$0xf]
        %v1348 = vld [vmem:[%s3 + $0x10] sm:$0xf]
        %v1349 = vld [vmem:[%s3 + $0x14] sm:$0xf]
        %v1350 = vld [vmem:[%s3 + $0x18] sm:$0xf]
        %v1351 = vld [vmem:[%s3 + $0x1c] sm:$0xf]
        %v1352 = vld [vmem:[%s3 + $0x20] sm:$0xf]
        %v1353 = vld [vmem:[%s3 + $0x24] sm:$0xf]
        %v1354 = vld [vmem:[%s3 + $0x28] sm:$0xf]
        %v1355 = vld [vmem:[%s3 + $0x2c] sm:$0xf]
        %v1356 = vld [vmem:[%s3 + $0x30] sm:$0xf]
        %v1357 = vld [vmem:[%s3 + $0x34] sm:$0xf]
        %v1358 = vld [vmem:[%s3 + $0x38] sm:$0xf]
        %v1359 = vld [vmem:[%s3 + $0x3c] sm:$0xf]
        %v1376 = vunpack.c.l.b16 %v1328
        %v1377 = vunpack.c.l.b16 %v1329
        %v1378 = vunpack.c.l.b16 %v1330
        %v1379 = vunpack.c.l.b16 %v1331
        %v1380 = vunpack.c.l.b16 %v1332
        %v1381 = vunpack.c.l.b16 %v1333
        %v1382 = vunpack.c.l.b16 %v1334
        %v1383 = vunpack.c.l.b16 %v1335
        %v1384 = vunpack.c.l.b16 %v1336
        %v1385 = vunpack.c.l.b16 %v1337
        %v1386 = vunpack.c.l.b16 %v1338
        %v1387 = vunpack.c.l.b16 %v1339
        %v1388 = vunpack.c.l.b16 %v1340
        %v1389 = vunpack.c.l.b16 %v1341
        %v1390 = vunpack.c.l.b16 %v1342
        %v1391 = vunpack.c.l.b16 %v1343
        %v1392 = vpack.c.b16 %v1377, %v1376
        %v1393 = vpack.c.b16 %v1379, %v1378
        %v1394 = vpack.c.b16 %v1381, %v1380
        %v1395 = vpack.c.b16 %v1383, %v1382
        %v1396 = vpack.c.b16 %v1385, %v1384
        %v1397 = vpack.c.b16 %v1387, %v1386
        %v1398 = vpack.c.b16 %v1389, %v1388
        %v1399 = vpack.c.b16 %v1391, %v1390
        %v1424 = vunpack.c.l.b16 %v1344
        %v1425 = vunpack.c.l.b16 %v1345
        %v1426 = vunpack.c.l.b16 %v1346
        %v1427 = vunpack.c.l.b16 %v1347
        %v1428 = vunpack.c.l.b16 %v1348
        %v1429 = vunpack.c.l.b16 %v1349
        %v1430 = vunpack.c.l.b16 %v1350
        %v1431 = vunpack.c.l.b16 %v1351
        %v1432 = vunpack.c.l.b16 %v1352
        %v1433 = vunpack.c.l.b16 %v1353
        %v1434 = vunpack.c.l.b16 %v1354
        %v1435 = vunpack.c.l.b16 %v1355
        %v1436 = vunpack.c.l.b16 %v1356
        %v1437 = vunpack.c.l.b16 %v1357
        %v1438 = vunpack.c.l.b16 %v1358
        %v1439 = vunpack.c.l.b16 %v1359
        %v1440 = vpack.c.b16 %v1425, %v1424
        %v1441 = vpack.c.b16 %v1427, %v1426
        %v1442 = vpack.c.b16 %v1429, %v1428
        %v1443 = vpack.c.b16 %v1431, %v1430
        %v1444 = vpack.c.b16 %v1433, %v1432
        %v1445 = vpack.c.b16 %v1435, %v1434
        %v1446 = vpack.c.b16 %v1437, %v1436
        %v1447 = vpack.c.b16 %v1439, %v1438
        %1456 = vmatprep.subr.bf16.mxu0 0
        %1457 = vmatpush1.bf16.msra.mxu0 %v1440
        %1458 = vmatprep.subr.bf16.mxu0 0
        %1459 = vmatpush1.bf16.msra.mxu0 %v1441
        %1460 = vmatprep.subr.bf16.mxu0 0
        %1461 = vmatpush1.bf16.msra.mxu0 %v1442
        %1462 = vmatprep.subr.bf16.mxu0 0
        %1463 = vmatpush1.bf16.msra.mxu0 %v1443
        %1464 = vmatprep.subr.bf16.mxu0 0
        %1465 = vmatpush1.bf16.msra.mxu0 %v1444
        %1466 = vmatprep.subr.bf16.mxu0 0
        %1467 = vmatpush1.bf16.msra.mxu0 %v1445
        %1468 = vmatprep.subr.bf16.mxu0 0
        %1469 = vmatpush1.bf16.msra.mxu0 %v1446
        %1470 = vmatprep.subr.bf16.mxu0 0
        %1471 = vmatpush1.bf16.msra.mxu0 %v1447
        %1472 = vmatprep.subr.bf16.mxu0 0
        %1473 = vmatpush1.bf16.msra.mxu0 0
        %1474 = vmatprep.subr.bf16.mxu0 0
        %1475 = vmatpush1.bf16.msra.mxu0 0
        %1476 = vmatprep.subr.bf16.mxu0 0
        %1477 = vmatpush1.bf16.msra.mxu0 0
        %1478 = vmatprep.subr.bf16.mxu0 0
        %1479 = vmatpush1.bf16.msra.mxu0 0
        %1480 = vmatprep.subr.bf16.mxu0 0
        %1481 = vmatpush1.bf16.msra.mxu0 0
        %1482 = vmatprep.subr.bf16.mxu0 0
        %1483 = vmatpush1.bf16.msra.mxu0 0
        %1484 = vmatprep.subr.bf16.mxu0 0
        %1485 = vmatpush1.bf16.msra.mxu0 0
        %1486 = vmatprep.subr.bf16.mxu0 0
        %1487 = vmatpush1.bf16.msra.mxu0 0
        %1488 = vmatprep.mubr.bf16.mxu0 0
        %1489 = vmatmul.mubr.bf16.gmra.mrb[0].mxu0 %v1392
        %v1490 = vpop.f32.mrb[0].mxu0
        %v1491 = vadd.f32 0.0, %v1490
        %v1492 = vpop.f32.mrb[0].mxu0
        %v1493 = vpop.f32.mrb[0].mxu0
        %v1494 = vadd.f32 0.0, %v1493
        %v1495 = vpop.f32.mrb[0].mxu0
        %1496 = vmatprep.mubr.bf16.mxu0 0
        %1497 = vmatmul.mubr.bf16.gmra.mrb[0].mxu0 %v1393
        %v1498 = vpop.f32.mrb[0].mxu0
        %v1499 = vadd.f32 0.0, %v1498
        %v1500 = vpop.f32.mrb[0].mxu0
        %v1501 = vpop.f32.mrb[0].mxu0
        %v1502 = vadd.f32 0.0, %v1501
        %v1503 = vpop.f32.mrb[0].mxu0
        %1504 = vmatprep.mubr.bf16.mxu0 0
        %1505 = vmatmul.mubr.bf16.gmra.mrb[0].mxu0 %v1394
        %v1506 = vpop.f32.mrb[0].mxu0
        %v1507 = vadd.f32 0.0, %v1506
        %v1508 = vpop.f32.mrb[0].mxu0
        %v1509 = vpop.f32.mrb[0].mxu0
        %v1510 = vadd.f32 0.0, %v1509
        %v1511 = vpop.f32.mrb[0].mxu0
        %1512 = vmatprep.mubr.bf16.mxu0 0
        %1513 = vmatmul.mubr.bf16.gmra.mrb[0].mxu0 %v1395
        %v1514 = vpop.f32.mrb[0].mxu0
        %v1515 = vadd.f32 0.0, %v1514
        %v1516 = vpop.f32.mrb[0].mxu0
        %v1517 = vpop.f32.mrb[0].mxu0
        %v1518 = vadd.f32 0.0, %v1517
        %v1519 = vpop.f32.mrb[0].mxu0
        %1520 = vmatprep.mubr.bf16.mxu0 0
        %1521 = vmatmul.mubr.bf16.gmra.mrb[0].mxu0 %v1396
        %v1522 = vpop.f32.mrb[0].mxu0
        %v1523 = vadd.f32 0.0, %v1522
        %v1524 = vpop.f32.mrb[0].mxu0
        %v1525 = vpop.f32.mrb[0].mxu0
        %v1526 = vadd.f32 0.0, %v1525
        %v1527 = vpop.f32.mrb[0].mxu0
        %1528 = vmatprep.mubr.bf16.mxu0 0
        %1529 = vmatmul.mubr.bf16.gmra.mrb[0].mxu0 %v1397
        %v1530 = vpop.f32.mrb[0].mxu0
        %v1531 = vadd.f32 0.0, %v1530
        %v1532 = vpop.f32.mrb[0].mxu0
        %v1533 = vpop.f32.mrb[0].mxu0
        %v1534 = vadd.f32 0.0, %v1533
        %v1535 = vpop.f32.mrb[0].mxu0
        %1536 = vmatprep.mubr.bf16.mxu0 0
        %1537 = vmatmul.mubr.bf16.gmra.mrb[0].mxu0 %v1398
        %v1538 = vpop.f32.mrb[0].mxu0
        %v1539 = vadd.f32 0.0, %v1538
        %v1540 = vpop.f32.mrb[0].mxu0
        %v1541 = vpop.f32.mrb[0].mxu0
        %v1542 = vadd.f32 0.0, %v1541
        %v1543 = vpop.f32.mrb[0].mxu0
        %1544 = vmatprep.mubr.bf16.mxu0 0
        %1545 = vmatmul.mubr.bf16.gmra.mrb[0].mxu0 %v1399
        %v1546 = vpop.f32.mrb[0].mxu0
        %v1547 = vadd.f32 0.0, %v1546
        %v1548 = vpop.f32.mrb[0].mxu0
        %v1549 = vpop.f32.mrb[0].mxu0
        %v1550 = vadd.f32 0.0, %v1549
        %v1551 = vpop.f32.mrb[0].mxu0
        %1552 = vdwg.mxu0
        %v1553 = vpack.c.bf16 %v1494, %v1491
        %v1554 = vpack.c.bf16 %v1502, %v1499
        %v1555 = vpack.c.bf16 %v1510, %v1507
        %v1556 = vpack.c.bf16 %v1518, %v1515
        %v1557 = vpack.c.bf16 %v1526, %v1523
        %v1558 = vpack.c.bf16 %v1534, %v1531
        %v1559 = vpack.c.bf16 %v1542, %v1539
        %v1560 = vpack.c.bf16 %v1550, %v1547
        %v1561 = vld [vmem:[%s4] sm:$0xf]
        %v1562 = vld [vmem:[%s4 + $0x4] sm:$0xf]
        %v1563 = vld [vmem:[%s4 + $0x8] sm:$0xf]
        %v1564 = vld [vmem:[%s4 + $0xc] sm:$0xf]
        %v1565 = vld [vmem:[%s4 + $0x10] sm:$0xf]
        %v1566 = vld [vmem:[%s4 + $0x14] sm:$0xf]
        %v1567 = vld [vmem:[%s4 + $0x18] sm:$0xf]
        %v1568 = vld [vmem:[%s4 + $0x1c] sm:$0xf]
        %v1569 = vld [vmem:[%s4 + $0x20] sm:$0xf]
        %v1570 = vld [vmem:[%s4 + $0x24] sm:$0xf]
        %v1571 = vld [vmem:[%s4 + $0x28] sm:$0xf]
        %v1572 = vld [vmem:[%s4 + $0x2c] sm:$0xf]
        %v1573 = vld [vmem:[%s4 + $0x30] sm:$0xf]
        %v1574 = vld [vmem:[%s4 + $0x34] sm:$0xf]
        %v1575 = vld [vmem:[%s4 + $0x38] sm:$0xf]
        %v1576 = vld [vmem:[%s4 + $0x3c] sm:$0xf]
        %v1593 = vunpack.c.l.b16 %v1561
        %v1594 = vunpack.c.l.b16 %v1562
        %v1595 = vunpack.c.l.b16 %v1563
        %v1596 = vunpack.c.l.b16 %v1564
        %v1597 = vunpack.c.l.b16 %v1565
        %v1598 = vunpack.c.l.b16 %v1566
        %v1599 = vunpack.c.l.b16 %v1567
        %v1600 = vunpack.c.l.b16 %v1568
        %v1601 = vunpack.c.l.b16 %v1569
        %v1602 = vunpack.c.l.b16 %v1570
        %v1603 = vunpack.c.l.b16 %v1571
        %v1604 = vunpack.c.l.b16 %v1572
        %v1605 = vunpack.c.l.b16 %v1573
        %v1606 = vunpack.c.l.b16 %v1574
        %v1607 = vunpack.c.l.b16 %v1575
        %v1608 = vunpack.c.l.b16 %v1576
        %v1609 = vpack.c.b16 %v1594, %v1593
        %v1610 = vpack.c.b16 %v1596, %v1595
        %v1611 = vpack.c.b16 %v1598, %v1597
        %v1612 = vpack.c.b16 %v1600, %v1599
        %v1613 = vpack.c.b16 %v1602, %v1601
        %v1614 = vpack.c.b16 %v1604, %v1603
        %v1615 = vpack.c.b16 %v1606, %v1605
        %v1616 = vpack.c.b16 %v1608, %v1607
        %1625 = vmatprep.subr.bf16.mxu0 0
        %1626 = vmatpush1.bf16.msra.mxu0 %v1609
        %1627 = vmatprep.subr.bf16.mxu0 0
        %1628 = vmatpush1.bf16.msra.mxu0 %v1610
        %1629 = vmatprep.subr.bf16.mxu0 0
        %1630 = vmatpush1.bf16.msra.mxu0 %v1611
        %1631 = vmatprep.subr.bf16.mxu0 0
        %1632 = vmatpush1.bf16.msra.mxu0 %v1612
        %1633 = vmatprep.subr.bf16.mxu0 0
        %1634 = vmatpush1.bf16.msra.mxu0 %v1613
        %1635 = vmatprep.subr.bf16.mxu0 0
        %1636 = vmatpush1.bf16.msra.mxu0 %v1614
        %1637 = vmatprep.subr.bf16.mxu0 0
        %1638 = vmatpush1.bf16.msra.mxu0 %v1615
        %1639 = vmatprep.subr.bf16.mxu0 0
        %1640 = vmatpush1.bf16.msra.mxu0 %v1616
        %1641 = vmatprep.subr.bf16.mxu0 0
        %1642 = vmatpush1.bf16.msra.mxu0 0
        %1643 = vmatprep.subr.bf16.mxu0 0
        %1644 = vmatpush1.bf16.msra.mxu0 0
        %1645 = vmatprep.subr.bf16.mxu0 0
        %1646 = vmatpush1.bf16.msra.mxu0 0
        %1647 = vmatprep.subr.bf16.mxu0 0
        %1648 = vmatpush1.bf16.msra.mxu0 0
        %1649 = vmatprep.subr.bf16.mxu0 0
        %1650 = vmatpush1.bf16.msra.mxu0 0
        %1651 = vmatprep.subr.bf16.mxu0 0
        %1652 = vmatpush1.bf16.msra.mxu0 0
        %1653 = vmatprep.subr.bf16.mxu0 0
        %1654 = vmatpush1.bf16.msra.mxu0 0
        %1655 = vmatprep.subr.bf16.mxu0 0
        %1656 = vmatpush1.bf16.msra.mxu0 0
        %1657 = vmatprep.mubr.bf16.mxu0 0
        %1658 = vmatmul.mubr.bf16.gmra.mrb[0].mxu0 %v1392
        %v1659 = vpop.f32.mrb[0].mxu0
        %v1660 = vadd.f32 0.0, %v1659
        %v1661 = vpop.f32.mrb[0].mxu0
        %v1662 = vpop.f32.mrb[0].mxu0
        %v1663 = vadd.f32 0.0, %v1662
        %v1664 = vpop.f32.mrb[0].mxu0
        %1665 = vmatprep.mubr.bf16.mxu0 0
        %1666 = vmatmul.mubr.bf16.gmra.mrb[0].mxu0 %v1393
        %v1667 = vpop.f32.mrb[0].mxu0
        %v1668 = vadd.f32 0.0, %v1667
        %v1669 = vpop.f32.mrb[0].mxu0
        %v1670 = vpop.f32.mrb[0].mxu0
        %v1671 = vadd.f32 0.0, %v1670
        %v1672 = vpop.f32.mrb[0].mxu0
        %1673 = vmatprep.mubr.bf16.mxu0 0
        %1674 = vmatmul.mubr.bf16.gmra.mrb[0].mxu0 %v1394
        %v1675 = vpop.f32.mrb[0].mxu0
        %v1676 = vadd.f32 0.0, %v1675
        %v1677 = vpop.f32.mrb[0].mxu0
        %v1678 = vpop.f32.mrb[0].mxu0
        %v1679 = vadd.f32 0.0, %v1678
        %v1680 = vpop.f32.mrb[0].mxu0
        %1681 = vmatprep.mubr.bf16.mxu0 0
        %1682 = vmatmul.mubr.bf16.gmra.mrb[0].mxu0 %v1395
        %v1683 = vpop.f32.mrb[0].mxu0
        %v1684 = vadd.f32 0.0, %v1683
        %v1685 = vpop.f32.mrb[0].mxu0
        %v1686 = vpop.f32.mrb[0].mxu0
        %v1687 = vadd.f32 0.0, %v1686
        %v1688 = vpop.f32.mrb[0].mxu0
        %1689 = vmatprep.mubr.bf16.mxu0 0
        %1690 = vmatmul.mubr.bf16.gmra.mrb[0].mxu0 %v1396
        %v1691 = vpop.f32.mrb[0].mxu0
        %v1692 = vadd.f32 0.0, %v1691
        %v1693 = vpop.f32.mrb[0].mxu0
        %v1694 = vpop.f32.mrb[0].mxu0
        %v1695 = vadd.f32 0.0, %v1694
        %v1696 = vpop.f32.mrb[0].mxu0
        %1697 = vmatprep.mubr.bf16.mxu0 0
        %1698 = vmatmul.mubr.bf16.gmra.mrb[0].mxu0 %v1397
        %v1699 = vpop.f32.mrb[0].mxu0
        %v1700 = vadd.f32 0.0, %v1699
        %v1701 = vpop.f32.mrb[0].mxu0
        %v1702 = vpop.f32.mrb[0].mxu0
        %v1703 = vadd.f32 0.0, %v1702
        %v1704 = vpop.f32.mrb[0].mxu0
        %1705 = vmatprep.mubr.bf16.mxu0 0
        %1706 = vmatmul.mubr.bf16.gmra.mrb[0].mxu0 %v1398
        %v1707 = vpop.f32.mrb[0].mxu0
        %v1708 = vadd.f32 0.0, %v1707
        %v1709 = vpop.f32.mrb[0].mxu0
        %v1710 = vpop.f32.mrb[0].mxu0
        %v1711 = vadd.f32 0.0, %v1710
        %v1712 = vpop.f32.mrb[0].mxu0
        %1713 = vmatprep.mubr.bf16.mxu0 0
        %1714 = vmatmul.mubr.bf16.gmra.mrb[0].mxu0 %v1399
        %v1715 = vpop.f32.mrb[0].mxu0
        %v1716 = vadd.f32 0.0, %v1715
        %v1717 = vpop.f32.mrb[0].mxu0
        %v1718 = vpop.f32.mrb[0].mxu0
        %v1719 = vadd.f32 0.0, %v1718
        %v1720 = vpop.f32.mrb[0].mxu0
        %1721 = vdwg.mxu0
        %v1722 = vpack.c.bf16 %v1663, %v1660
        %v1723 = vpack.c.bf16 %v1671, %v1668
        %v1724 = vpack.c.bf16 %v1679, %v1676
        %v1725 = vpack.c.bf16 %v1687, %v1684
        %v1726 = vpack.c.bf16 %v1695, %v1692
        %v1727 = vpack.c.bf16 %v1703, %v1700
        %v1728 = vpack.c.bf16 %v1711, %v1708
        %v1729 = vpack.c.bf16 %v1719, %v1716
        %v1730 = vld [vmem:[#allocation2] sm:$0xff]
        %v1731 = vld [vmem:[#allocation2 + $0x8] sm:$0xff]
        %v1732 = vld [vmem:[#allocation2 + $0x10] sm:$0xff]
        %v1733 = vld [vmem:[#allocation2 + $0x18] sm:$0xff]
        %v1734 = vld [vmem:[#allocation2 + $0x20] sm:$0xff]
        %v1735 = vld [vmem:[#allocation2 + $0x28] sm:$0xff]
        %v1736 = vld [vmem:[#allocation2 + $0x30] sm:$0xff]
        %v1737 = vld [vmem:[#allocation2 + $0x38] sm:$0xff]
        %vm1738 = vcmask 261120
        %v1740 = vsel %vm1738, %v1730, 0
        %v1743 = vsel %vm1738, %v1731, 0
        %v1746 = vsel %vm1738, %v1732, 0
        %v1749 = vsel %vm1738, %v1733, 0
        %v1752 = vsel %vm1738, %v1734, 0
        %v1755 = vsel %vm1738, %v1735, 0
        %v1758 = vsel %vm1738, %v1736, 0
        %v1761 = vsel %vm1738, %v1737, 0
        %v1764 = vsel %vm1738, %v1553, 0
        %v1767 = vsel %vm1738, %v1554, 0
        %v1770 = vsel %vm1738, %v1555, 0
        %v1773 = vsel %vm1738, %v1556, 0
        %v1776 = vsel %vm1738, %v1557, 0
        %v1779 = vsel %vm1738, %v1558, 0
        %v1782 = vsel %vm1738, %v1559, 0
        %v1785 = vsel %vm1738, %v1560, 0
        %1787 = vmatprep.subr.bf16.mxu0 0
        %1788 = vmatpush1.bf16.xpose.msra.mxu0 %v1764
        %1789 = vmatprep.subr.bf16.mxu0 0
        %1790 = vmatpush1.bf16.xpose.msra.mxu0 %v1767
        %1791 = vmatprep.subr.bf16.mxu0 0
        %1792 = vmatpush1.bf16.xpose.msra.mxu0 %v1770
        %1793 = vmatprep.subr.bf16.mxu0 0
        %1794 = vmatpush1.bf16.xpose.msra.mxu0 %v1773
        %1795 = vmatprep.subr.bf16.mxu0 0
        %1796 = vmatpush1.bf16.xpose.msra.mxu0 %v1776
        %1797 = vmatprep.subr.bf16.mxu0 0
        %1798 = vmatpush1.bf16.xpose.msra.mxu0 %v1779
        %1799 = vmatprep.subr.bf16.mxu0 0
        %1800 = vmatpush1.bf16.xpose.msra.mxu0 %v1782
        %1801 = vmatprep.subr.bf16.mxu0 0
        %1802 = vmatpush1.bf16.xpose.msra.mxu0 %v1785
        %1803 = vmatprep.subr.bf16.mxu0 0
        %1804 = vmatpush1.bf16.xpose.msra.mxu0 0
        %1805 = vmatprep.subr.bf16.mxu0 0
        %1806 = vmatpush1.bf16.xpose.msra.mxu0 0
        %1807 = vmatprep.subr.bf16.mxu0 0
        %1808 = vmatpush1.bf16.xpose.msra.mxu0 0
        %1809 = vmatprep.subr.bf16.mxu0 0
        %1810 = vmatpush1.bf16.xpose.msra.mxu0 0
        %1811 = vmatprep.subr.bf16.mxu0 0
        %1812 = vmatpush1.bf16.xpose.msra.mxu0 0
        %1813 = vmatprep.subr.bf16.mxu0 0
        %1814 = vmatpush1.bf16.xpose.msra.mxu0 0
        %1815 = vmatprep.subr.bf16.mxu0 0
        %1816 = vmatpush1.bf16.xpose.msra.mxu0 0
        %1817 = vmatprep.subr.bf16.mxu0 0
        %1818 = vmatpush1.bf16.xpose.msra.mxu0 0
        %1819 = vmatprep.mubr.bf16.mxu0 0
        %1820 = vmatmul.mubr.bf16.gmra.mrb[0].mxu0 %v1740
        %v1821 = vpop.f32.mrb[0].mxu0
        %v1822 = vadd.f32 0.0, %v1821
        %v1823 = vpop.f32.mrb[0].mxu0
        %v1824 = vpop.f32.mrb[0].mxu0
        %v1825 = vadd.f32 0.0, %v1824
        %v1826 = vpop.f32.mrb[0].mxu0
        %1827 = vmatprep.mubr.bf16.mxu0 0
        %1828 = vmatmul.mubr.bf16.gmra.mrb[0].mxu0 %v1743
        %v1829 = vpop.f32.mrb[0].mxu0
        %v1830 = vadd.f32 0.0, %v1829
        %v1831 = vpop.f32.mrb[0].mxu0
        %v1832 = vpop.f32.mrb[0].mxu0
        %v1833 = vadd.f32 0.0, %v1832
        %v1834 = vpop.f32.mrb[0].mxu0
        %1835 = vmatprep.mubr.bf16.mxu0 0
        %1836 = vmatmul.mubr.bf16.gmra.mrb[0].mxu0 %v1746
        %v1837 = vpop.f32.mrb[0].mxu0
        %v1838 = vadd.f32 0.0, %v1837
        %v1839 = vpop.f32.mrb[0].mxu0
        %v1840 = vpop.f32.mrb[0].mxu0
        %v1841 = vadd.f32 0.0, %v1840
        %v1842 = vpop.f32.mrb[0].mxu0
        %1843 = vmatprep.mubr.bf16.mxu0 0
        %1844 = vmatmul.mubr.bf16.gmra.mrb[0].mxu0 %v1749
        %v1845 = vpop.f32.mrb[0].mxu0
        %v1846 = vadd.f32 0.0, %v1845
        %v1847 = vpop.f32.mrb[0].mxu0
        %v1848 = vpop.f32.mrb[0].mxu0
        %v1849 = vadd.f32 0.0, %v1848
        %v1850 = vpop.f32.mrb[0].mxu0
        %1851 = vmatprep.mubr.bf16.mxu0 0
        %1852 = vmatmul.mubr.bf16.gmra.mrb[0].mxu0 %v1752
        %v1853 = vpop.f32.mrb[0].mxu0
        %v1854 = vadd.f32 0.0, %v1853
        %v1855 = vpop.f32.mrb[0].mxu0
        %v1856 = vpop.f32.mrb[0].mxu0
        %v1857 = vadd.f32 0.0, %v1856
        %v1858 = vpop.f32.mrb[0].mxu0
        %1859 = vmatprep.mubr.bf16.mxu0 0
        %1860 = vmatmul.mubr.bf16.gmra.mrb[0].mxu0 %v1755
        %v1861 = vpop.f32.mrb[0].mxu0
        %v1862 = vadd.f32 0.0, %v1861
        %v1863 = vpop.f32.mrb[0].mxu0
        %v1864 = vpop.f32.mrb[0].mxu0
        %v1865 = vadd.f32 0.0, %v1864
        %v1866 = vpop.f32.mrb[0].mxu0
        %1867 = vmatprep.mubr.bf16.mxu0 0
        %1868 = vmatmul.mubr.bf16.gmra.mrb[0].mxu0 %v1758
        %v1869 = vpop.f32.mrb[0].mxu0
        %v1870 = vadd.f32 0.0, %v1869
        %v1871 = vpop.f32.mrb[0].mxu0
        %v1872 = vpop.f32.mrb[0].mxu0
        %v1873 = vadd.f32 0.0, %v1872
        %v1874 = vpop.f32.mrb[0].mxu0
        %1875 = vmatprep.mubr.bf16.mxu0 0
        %1876 = vmatmul.mubr.bf16.gmra.mrb[0].mxu0 %v1761
        %v1877 = vpop.f32.mrb[0].mxu0
        %v1878 = vadd.f32 0.0, %v1877
        %v1879 = vpop.f32.mrb[0].mxu0
        %v1880 = vpop.f32.mrb[0].mxu0
        %v1881 = vadd.f32 0.0, %v1880
        %v1882 = vpop.f32.mrb[0].mxu0
        %1883 = vdwg.mxu0
        %v1884 = vld [vmem:[#allocation3] sm:$0xff]
        %v1885 = vld [vmem:[#allocation3 + $0x8] sm:$0xff]
        %v1886 = vld [vmem:[#allocation3 + $0x10] sm:$0xff]
        %v1887 = vld [vmem:[#allocation3 + $0x18] sm:$0xff]
        %v1888 = vld [vmem:[#allocation3 + $0x20] sm:$0xff]
        %v1889 = vld [vmem:[#allocation3 + $0x28] sm:$0xff]
        %v1890 = vld [vmem:[#allocation3 + $0x30] sm:$0xff]
        %v1891 = vld [vmem:[#allocation3 + $0x38] sm:$0xff]
        %v1892 = vld [vmem:[#allocation3 + $0x40] sm:$0xff]
        %v1893 = vld [vmem:[#allocation3 + $0x48] sm:$0xff]
        %v1894 = vld [vmem:[#allocation3 + $0x50] sm:$0xff]
        %v1895 = vld [vmem:[#allocation3 + $0x58] sm:$0xff]
        %v1896 = vld [vmem:[#allocation3 + $0x60] sm:$0xff]
        %v1897 = vld [vmem:[#allocation3 + $0x68] sm:$0xff]
        %v1898 = vld [vmem:[#allocation3 + $0x70] sm:$0xff]
        %v1899 = vld [vmem:[#allocation3 + $0x78] sm:$0xff]
        %1900 = vmax.xlane.f32.xlu0 %v1822
        %v1901 = vpop.xlane.xlu0 %1900
        %1902 = vmax.xlane.f32.xlu0 %v1825
        %v1903 = vpop.xlane.xlu0 %1902
        %1904 = vmax.xlane.f32.xlu0 %v1830
        %v1905 = vpop.xlane.xlu0 %1904
        %1906 = vmax.xlane.f32.xlu0 %v1833
        %v1907 = vpop.xlane.xlu0 %1906
        %1908 = vmax.xlane.f32.xlu0 %v1838
        %v1909 = vpop.xlane.xlu0 %1908
        %1910 = vmax.xlane.f32.xlu0 %v1841
        %v1911 = vpop.xlane.xlu0 %1910
        %1912 = vmax.xlane.f32.xlu0 %v1846
        %v1913 = vpop.xlane.xlu0 %1912
        %1914 = vmax.xlane.f32.xlu0 %v1849
        %v1915 = vpop.xlane.xlu0 %1914
        %1916 = vmax.xlane.f32.xlu0 %v1854
        %v1917 = vpop.xlane.xlu0 %1916
        %1918 = vmax.xlane.f32.xlu0 %v1857
        %v1919 = vpop.xlane.xlu0 %1918
        %1920 = vmax.xlane.f32.xlu0 %v1862
        %v1921 = vpop.xlane.xlu0 %1920
        %1922 = vmax.xlane.f32.xlu0 %v1865
        %v1923 = vpop.xlane.xlu0 %1922
        %1924 = vmax.xlane.f32.xlu0 %v1870
        %v1925 = vpop.xlane.xlu0 %1924
        %1926 = vmax.xlane.f32.xlu0 %v1873
        %v1927 = vpop.xlane.xlu0 %1926
        %1928 = vmax.xlane.f32.xlu0 %v1878
        %v1929 = vpop.xlane.xlu0 %1928
        %1930 = vmax.xlane.f32.xlu0 %v1881
        %v1931 = vpop.xlane.xlu0 %1930
        %v1932 = vmax.f32 %v1884, %v1901
        %v1933 = vmax.f32 %v1885, %v1903
        %v1934 = vmax.f32 %v1886, %v1905
        %v1935 = vmax.f32 %v1887, %v1907
        %v1936 = vmax.f32 %v1888, %v1909
        %v1937 = vmax.f32 %v1889, %v1911
        %v1938 = vmax.f32 %v1890, %v1913
        %v1939 = vmax.f32 %v1891, %v1915
        %v1940 = vmax.f32 %v1892, %v1917
        %v1941 = vmax.f32 %v1893, %v1919
        %v1942 = vmax.f32 %v1894, %v1921
        %v1943 = vmax.f32 %v1895, %v1923
        %v1944 = vmax.f32 %v1896, %v1925
        %v1945 = vmax.f32 %v1897, %v1927
        %v1946 = vmax.f32 %v1898, %v1929
        %v1947 = vmax.f32 %v1899, %v1931
        %v1948 = vsub.f32 %v1884, %v1932
        %v1949 = vsub.f32 %v1885, %v1933
        %v1950 = vsub.f32 %v1886, %v1934
        %v1951 = vsub.f32 %v1887, %v1935
        %v1952 = vsub.f32 %v1888, %v1936
        %v1953 = vsub.f32 %v1889, %v1937
        %v1954 = vsub.f32 %v1890, %v1938
        %v1955 = vsub.f32 %v1891, %v1939
        %v1956 = vsub.f32 %v1892, %v1940
        %v1957 = vsub.f32 %v1893, %v1941
        %v1958 = vsub.f32 %v1894, %v1942
        %v1959 = vsub.f32 %v1895, %v1943
        %v1960 = vsub.f32 %v1896, %v1944
        %v1961 = vsub.f32 %v1897, %v1945
        %v1962 = vsub.f32 %v1898, %v1946
        %v1963 = vsub.f32 %v1899, %v1947
        %v1964 = vmul.f32 %v1948, 1.442695
        %v1965 = vpow.pop %v1964
        %v1966 = vmul.f32 %v1949, 1.442695
        %v1967 = vpow.pop %v1966
        %v1968 = vmul.f32 %v1950, 1.442695
        %v1969 = vpow.pop %v1968
        %v1970 = vmul.f32 %v1951, 1.442695
        %v1971 = vpow.pop %v1970
        %v1972 = vmul.f32 %v1952, 1.442695
        %v1973 = vpow.pop %v1972
        %v1974 = vmul.f32 %v1953, 1.442695
        %v1975 = vpow.pop %v1974
        %v1976 = vmul.f32 %v1954, 1.442695
        %v1977 = vpow.pop %v1976
        %v1978 = vmul.f32 %v1955, 1.442695
        %v1979 = vpow.pop %v1978
        %v1980 = vmul.f32 %v1956, 1.442695
        %v1981 = vpow.pop %v1980
        %v1982 = vmul.f32 %v1957, 1.442695
        %v1983 = vpow.pop %v1982
        %v1984 = vmul.f32 %v1958, 1.442695
        %v1985 = vpow.pop %v1984
        %v1986 = vmul.f32 %v1959, 1.442695
        %v1987 = vpow.pop %v1986
        %v1988 = vmul.f32 %v1960, 1.442695
        %v1989 = vpow.pop %v1988
        %v1990 = vmul.f32 %v1961, 1.442695
        %v1991 = vpow.pop %v1990
        %v1992 = vmul.f32 %v1962, 1.442695
        %v1993 = vpow.pop %v1992
        %v1994 = vmul.f32 %v1963, 1.442695
        %v1995 = vpow.pop %v1994
        %1997 = vset.pattern.permute.xlu0 0
        %1998 = vperm.xlu0 %1997, %v1932
        %v1999 = vpop.permute.xlu0 %1998
        %2002 = vset.pattern.permute.xlu0 0
        %2003 = vperm.xlu0 %2002, %v1933
        %v2004 = vpop.permute.xlu0 %2003
        %2007 = vset.pattern.permute.xlu0 0
        %2008 = vperm.xlu0 %2007, %v1934
        %v2009 = vpop.permute.xlu0 %2008
        %2012 = vset.pattern.permute.xlu0 0
        %2013 = vperm.xlu0 %2012, %v1935
        %v2014 = vpop.permute.xlu0 %2013
        %2017 = vset.pattern.permute.xlu0 0
        %2018 = vperm.xlu0 %2017, %v1936
        %v2019 = vpop.permute.xlu0 %2018
        %2022 = vset.pattern.permute.xlu0 0
        %2023 = vperm.xlu0 %2022, %v1937
        %v2024 = vpop.permute.xlu0 %2023
        %2027 = vset.pattern.permute.xlu0 0
        %2028 = vperm.xlu0 %2027, %v1938
        %v2029 = vpop.permute.xlu0 %2028
        %2032 = vset.pattern.permute.xlu0 0
        %2033 = vperm.xlu0 %2032, %v1939
        %v2034 = vpop.permute.xlu0 %2033
        %2037 = vset.pattern.permute.xlu0 0
        %2038 = vperm.xlu0 %2037, %v1940
        %v2039 = vpop.permute.xlu0 %2038
        %2042 = vset.pattern.permute.xlu0 0
        %2043 = vperm.xlu0 %2042, %v1941
        %v2044 = vpop.permute.xlu0 %2043
        %2047 = vset.pattern.permute.xlu0 0
        %2048 = vperm.xlu0 %2047, %v1942
        %v2049 = vpop.permute.xlu0 %2048
        %2052 = vset.pattern.permute.xlu0 0
        %2053 = vperm.xlu0 %2052, %v1943
        %v2054 = vpop.permute.xlu0 %2053
        %2057 = vset.pattern.permute.xlu0 0
        %2058 = vperm.xlu0 %2057, %v1944
        %v2059 = vpop.permute.xlu0 %2058
        %2062 = vset.pattern.permute.xlu0 0
        %2063 = vperm.xlu0 %2062, %v1945
        %v2064 = vpop.permute.xlu0 %2063
        %2067 = vset.pattern.permute.xlu0 0
        %2068 = vperm.xlu0 %2067, %v1946
        %v2069 = vpop.permute.xlu0 %2068
        %2072 = vset.pattern.permute.xlu0 0
        %2073 = vperm.xlu0 %2072, %v1947
        %v2074 = vpop.permute.xlu0 %2073
        %v2076 = vsub.f32 %v1822, %v1999
        %v2077 = vsub.f32 %v1825, %v2004
        %v2078 = vsub.f32 %v1830, %v2009
        %v2079 = vsub.f32 %v1833, %v2014
        %v2080 = vsub.f32 %v1838, %v2019
        %v2081 = vsub.f32 %v1841, %v2024
        %v2082 = vsub.f32 %v1846, %v2029
        %v2083 = vsub.f32 %v1849, %v2034
        %v2084 = vsub.f32 %v1854, %v2039
        %v2085 = vsub.f32 %v1857, %v2044
        %v2086 = vsub.f32 %v1862, %v2049
        %v2087 = vsub.f32 %v1865, %v2054
        %v2088 = vsub.f32 %v1870, %v2059
        %v2089 = vsub.f32 %v1873, %v2064
        %v2090 = vsub.f32 %v1878, %v2069
        %v2091 = vsub.f32 %v1881, %v2074
        %v2092 = vmul.f32 %v2076, 1.442695
        %v2093 = vpow.pop %v2092
        %v2094 = vmul.f32 %v2077, 1.442695
        %v2095 = vpow.pop %v2094
        %v2096 = vmul.f32 %v2078, 1.442695
        %v2097 = vpow.pop %v2096
        %v2098 = vmul.f32 %v2079, 1.442695
        %v2099 = vpow.pop %v2098
        %v2100 = vmul.f32 %v2080, 1.442695
        %v2101 = vpow.pop %v2100
        %v2102 = vmul.f32 %v2081, 1.442695
        %v2103 = vpow.pop %v2102
        %v2104 = vmul.f32 %v2082, 1.442695
        %v2105 = vpow.pop %v2104
        %v2106 = vmul.f32 %v2083, 1.442695
        %v2107 = vpow.pop %v2106
        %v2108 = vmul.f32 %v2084, 1.442695
        %v2109 = vpow.pop %v2108
        %v2110 = vmul.f32 %v2085, 1.442695
        %v2111 = vpow.pop %v2110
        %v2112 = vmul.f32 %v2086, 1.442695
        %v2113 = vpow.pop %v2112
        %v2114 = vmul.f32 %v2087, 1.442695
        %v2115 = vpow.pop %v2114
        %v2116 = vmul.f32 %v2088, 1.442695
        %v2117 = vpow.pop %v2116
        %v2118 = vmul.f32 %v2089, 1.442695
        %v2119 = vpow.pop %v2118
        %v2120 = vmul.f32 %v2090, 1.442695
        %v2121 = vpow.pop %v2120
        %v2122 = vmul.f32 %v2091, 1.442695
        %v2123 = vpow.pop %v2122
        %v2124 = vld [vmem:[#allocation4] sm:$0xff]
        %v2125 = vld [vmem:[#allocation4 + $0x8] sm:$0xff]
        %v2126 = vld [vmem:[#allocation4 + $0x10] sm:$0xff]
        %v2127 = vld [vmem:[#allocation4 + $0x18] sm:$0xff]
        %v2128 = vld [vmem:[#allocation4 + $0x20] sm:$0xff]
        %v2129 = vld [vmem:[#allocation4 + $0x28] sm:$0xff]
        %v2130 = vld [vmem:[#allocation4 + $0x30] sm:$0xff]
        %v2131 = vld [vmem:[#allocation4 + $0x38] sm:$0xff]
        %v2132 = vld [vmem:[#allocation4 + $0x40] sm:$0xff]
        %v2133 = vld [vmem:[#allocation4 + $0x48] sm:$0xff]
        %v2134 = vld [vmem:[#allocation4 + $0x50] sm:$0xff]
        %v2135 = vld [vmem:[#allocation4 + $0x58] sm:$0xff]
        %v2136 = vld [vmem:[#allocation4 + $0x60] sm:$0xff]
        %v2137 = vld [vmem:[#allocation4 + $0x68] sm:$0xff]
        %v2138 = vld [vmem:[#allocation4 + $0x70] sm:$0xff]
        %v2139 = vld [vmem:[#allocation4 + $0x78] sm:$0xff]
        %v2140 = vmul.f32 %v1965, %v2124
        %v2141 = vmul.f32 %v1967, %v2125
        %v2142 = vmul.f32 %v1969, %v2126
        %v2143 = vmul.f32 %v1971, %v2127
        %v2144 = vmul.f32 %v1973, %v2128
        %v2145 = vmul.f32 %v1975, %v2129
        %v2146 = vmul.f32 %v1977, %v2130
        %v2147 = vmul.f32 %v1979, %v2131
        %v2148 = vmul.f32 %v1981, %v2132
        %v2149 = vmul.f32 %v1983, %v2133
        %v2150 = vmul.f32 %v1985, %v2134
        %v2151 = vmul.f32 %v1987, %v2135
        %v2152 = vmul.f32 %v1989, %v2136
        %v2153 = vmul.f32 %v1991, %v2137
        %v2154 = vmul.f32 %v1993, %v2138
        %v2155 = vmul.f32 %v1995, %v2139
        %2156 = vadd.xlane.f32.xlu0 %v2093
        %v2157 = vpop.xlane.xlu0 %2156
        %2158 = vadd.xlane.f32.xlu0 %v2095
        %v2159 = vpop.xlane.xlu0 %2158
        %2160 = vadd.xlane.f32.xlu0 %v2097
        %v2161 = vpop.xlane.xlu0 %2160
        %2162 = vadd.xlane.f32.xlu0 %v2099
        %v2163 = vpop.xlane.xlu0 %2162
        %2164 = vadd.xlane.f32.xlu0 %v2101
        %v2165 = vpop.xlane.xlu0 %2164
        %2166 = vadd.xlane.f32.xlu0 %v2103
        %v2167 = vpop.xlane.xlu0 %2166
        %2168 = vadd.xlane.f32.xlu0 %v2105
        %v2169 = vpop.xlane.xlu0 %2168
        %2170 = vadd.xlane.f32.xlu0 %v2107
        %v2171 = vpop.xlane.xlu0 %2170
        %2172 = vadd.xlane.f32.xlu0 %v2109
        %v2173 = vpop.xlane.xlu0 %2172
        %2174 = vadd.xlane.f32.xlu0 %v2111
        %v2175 = vpop.xlane.xlu0 %2174
        %2176 = vadd.xlane.f32.xlu0 %v2113
        %v2177 = vpop.xlane.xlu0 %2176
        %2178 = vadd.xlane.f32.xlu0 %v2115
        %v2179 = vpop.xlane.xlu0 %2178
        %2180 = vadd.xlane.f32.xlu0 %v2117
        %v2181 = vpop.xlane.xlu0 %2180
        %2182 = vadd.xlane.f32.xlu0 %v2119
        %v2183 = vpop.xlane.xlu0 %2182
        %2184 = vadd.xlane.f32.xlu0 %v2121
        %v2185 = vpop.xlane.xlu0 %2184
        %2186 = vadd.xlane.f32.xlu0 %v2123
        %v2187 = vpop.xlane.xlu0 %2186
        %v2188 = vadd.f32 %v2140, %v2157
        %v2189 = vadd.f32 %v2141, %v2159
        %v2190 = vadd.f32 %v2142, %v2161
        %v2191 = vadd.f32 %v2143, %v2163
        %v2192 = vadd.f32 %v2144, %v2165
        %v2193 = vadd.f32 %v2145, %v2167
        %v2194 = vadd.f32 %v2146, %v2169
        %v2195 = vadd.f32 %v2147, %v2171
        %v2196 = vadd.f32 %v2148, %v2173
        %v2197 = vadd.f32 %v2149, %v2175
        %v2198 = vadd.f32 %v2150, %v2177
        %v2199 = vadd.f32 %v2151, %v2179
        %v2200 = vadd.f32 %v2152, %v2181
        %v2201 = vadd.f32 %v2153, %v2183
        %v2202 = vadd.f32 %v2154, %v2185
        %v2203 = vadd.f32 %v2155, %v2187
        %vm2204 = vcmask 7168
        %2205 = vst.msk [vmem:[#allocation4] sm:$0xff] %vm2204, %v2188
        %2206 = vst.msk [vmem:[#allocation4 + $0x8] sm:$0xff] %vm2204, %v2189
        %2207 = vst.msk [vmem:[#allocation4 + $0x10] sm:$0xff] %vm2204, %v2190
        %2208 = vst.msk [vmem:[#allocation4 + $0x18] sm:$0xff] %vm2204, %v2191
        %2209 = vst.msk [vmem:[#allocation4 + $0x20] sm:$0xff] %vm2204, %v2192
        %2210 = vst.msk [vmem:[#allocation4 + $0x28] sm:$0xff] %vm2204, %v2193
        %2211 = vst.msk [vmem:[#allocation4 + $0x30] sm:$0xff] %vm2204, %v2194
        %2212 = vst.msk [vmem:[#allocation4 + $0x38] sm:$0xff] %vm2204, %v2195
        %2213 = vst.msk [vmem:[#allocation4 + $0x40] sm:$0xff] %vm2204, %v2196
        %2214 = vst.msk [vmem:[#allocation4 + $0x48] sm:$0xff] %vm2204, %v2197
        %2215 = vst.msk [vmem:[#allocation4 + $0x50] sm:$0xff] %vm2204, %v2198
        %2216 = vst.msk [vmem:[#allocation4 + $0x58] sm:$0xff] %vm2204, %v2199
        %2217 = vst.msk [vmem:[#allocation4 + $0x60] sm:$0xff] %vm2204, %v2200
        %2218 = vst.msk [vmem:[#allocation4 + $0x68] sm:$0xff] %vm2204, %v2201
        %2219 = vst.msk [vmem:[#allocation4 + $0x70] sm:$0xff] %vm2204, %v2202
        %2220 = vst.msk [vmem:[#allocation4 + $0x78] sm:$0xff] %vm2204, %v2203
        %v2221 = vld [vmem:[#allocation5] sm:$0xff]
        %v2222 = vld [vmem:[#allocation5 + $0x8] sm:$0xff]
        %v2223 = vld [vmem:[#allocation5 + $0x10] sm:$0xff]
        %v2224 = vld [vmem:[#allocation5 + $0x18] sm:$0xff]
        %v2225 = vld [vmem:[#allocation5 + $0x20] sm:$0xff]
        %v2226 = vld [vmem:[#allocation5 + $0x28] sm:$0xff]
        %v2227 = vld [vmem:[#allocation5 + $0x30] sm:$0xff]
        %v2228 = vld [vmem:[#allocation5 + $0x38] sm:$0xff]
        %v2229 = vld [vmem:[#allocation5 + $0x40] sm:$0xff]
        %v2230 = vld [vmem:[#allocation5 + $0x48] sm:$0xff]
        %v2231 = vld [vmem:[#allocation5 + $0x50] sm:$0xff]
        %v2232 = vld [vmem:[#allocation5 + $0x58] sm:$0xff]
        %v2233 = vld [vmem:[#allocation5 + $0x60] sm:$0xff]
        %v2234 = vld [vmem:[#allocation5 + $0x68] sm:$0xff]
        %v2235 = vld [vmem:[#allocation5 + $0x70] sm:$0xff]
        %v2236 = vld [vmem:[#allocation5 + $0x78] sm:$0xff]
        %2238 = vset.pattern.permute.xlu0 0
        %2239 = vperm.xlu0 %2238, %v1965
        %v2240 = vpop.permute.xlu0 %2239
        %2243 = vset.pattern.permute.xlu0 0
        %2244 = vperm.xlu0 %2243, %v1967
        %v2245 = vpop.permute.xlu0 %2244
        %2248 = vset.pattern.permute.xlu0 0
        %2249 = vperm.xlu0 %2248, %v1969
        %v2250 = vpop.permute.xlu0 %2249
        %2253 = vset.pattern.permute.xlu0 0
        %2254 = vperm.xlu0 %2253, %v1971
        %v2255 = vpop.permute.xlu0 %2254
        %2258 = vset.pattern.permute.xlu0 0
        %2259 = vperm.xlu0 %2258, %v1973
        %v2260 = vpop.permute.xlu0 %2259
        %2263 = vset.pattern.permute.xlu0 0
        %2264 = vperm.xlu0 %2263, %v1975
        %v2265 = vpop.permute.xlu0 %2264
        %2268 = vset.pattern.permute.xlu0 0
        %2269 = vperm.xlu0 %2268, %v1977
        %v2270 = vpop.permute.xlu0 %2269
        %2273 = vset.pattern.permute.xlu0 0
        %2274 = vperm.xlu0 %2273, %v1979
        %v2275 = vpop.permute.xlu0 %2274
        %2278 = vset.pattern.permute.xlu0 0
        %2279 = vperm.xlu0 %2278, %v1981
        %v2280 = vpop.permute.xlu0 %2279
        %2283 = vset.pattern.permute.xlu0 0
        %2284 = vperm.xlu0 %2283, %v1983
        %v2285 = vpop.permute.xlu0 %2284
        %2288 = vset.pattern.permute.xlu0 0
        %2289 = vperm.xlu0 %2288, %v1985
        %v2290 = vpop.permute.xlu0 %2289
        %2293 = vset.pattern.permute.xlu0 0
        %2294 = vperm.xlu0 %2293, %v1987
        %v2295 = vpop.permute.xlu0 %2294
        %2298 = vset.pattern.permute.xlu0 0
        %2299 = vperm.xlu0 %2298, %v1989
        %v2300 = vpop.permute.xlu0 %2299
        %2303 = vset.pattern.permute.xlu0 0
        %2304 = vperm.xlu0 %2303, %v1991
        %v2305 = vpop.permute.xlu0 %2304
        %2308 = vset.pattern.permute.xlu0 0
        %2309 = vperm.xlu0 %2308, %v1993
        %v2310 = vpop.permute.xlu0 %2309
        %2313 = vset.pattern.permute.xlu0 0
        %2314 = vperm.xlu0 %2313, %v1995
        %v2315 = vpop.permute.xlu0 %2314
        %v2317 = vmul.f32 %v2240, %v2221
        %v2318 = vmul.f32 %v2245, %v2222
        %v2319 = vmul.f32 %v2250, %v2223
        %v2320 = vmul.f32 %v2255, %v2224
        %v2321 = vmul.f32 %v2260, %v2225
        %v2322 = vmul.f32 %v2265, %v2226
        %v2323 = vmul.f32 %v2270, %v2227
        %v2324 = vmul.f32 %v2275, %v2228
        %v2325 = vmul.f32 %v2280, %v2229
        %v2326 = vmul.f32 %v2285, %v2230
        %v2327 = vmul.f32 %v2290, %v2231
        %v2328 = vmul.f32 %v2295, %v2232
        %v2329 = vmul.f32 %v2300, %v2233
        %v2330 = vmul.f32 %v2305, %v2234
        %v2331 = vmul.f32 %v2310, %v2235
        %v2332 = vmul.f32 %v2315, %v2236
        %v2333 = vpack.c.bf16 %v2095, %v2093
        %v2334 = vpack.c.bf16 %v2099, %v2097
        %v2335 = vpack.c.bf16 %v2103, %v2101
        %v2336 = vpack.c.bf16 %v2107, %v2105
        %v2337 = vpack.c.bf16 %v2111, %v2109
        %v2338 = vpack.c.bf16 %v2115, %v2113
        %v2339 = vpack.c.bf16 %v2119, %v2117
        %v2340 = vpack.c.bf16 %v2123, %v2121
        %2341 = vmatprep.subr.bf16.mxu0 0
        %2342 = vmatpush1.bf16.msra.mxu0 %v1722
        %2343 = vmatprep.subr.bf16.mxu0 0
        %2344 = vmatpush1.bf16.msra.mxu0 %v1723
        %2345 = vmatprep.subr.bf16.mxu0 0
        %2346 = vmatpush1.bf16.msra.mxu0 %v1724
        %2347 = vmatprep.subr.bf16.mxu0 0
        %2348 = vmatpush1.bf16.msra.mxu0 %v1725
        %2349 = vmatprep.subr.bf16.mxu0 0
        %2350 = vmatpush1.bf16.msra.mxu0 %v1726
        %2351 = vmatprep.subr.bf16.mxu0 0
        %2352 = vmatpush1.bf16.msra.mxu0 %v1727
        %2353 = vmatprep.subr.bf16.mxu0 0
        %2354 = vmatpush1.bf16.msra.mxu0 %v1728
        %2355 = vmatprep.subr.bf16.mxu0 0
        %2356 = vmatpush1.bf16.msra.mxu0 %v1729
        %2357 = vmatprep.subr.bf16.mxu0 0
        %2358 = vmatpush1.bf16.msra.mxu0 0
        %2359 = vmatprep.subr.bf16.mxu0 0
        %2360 = vmatpush1.bf16.msra.mxu0 0
        %2361 = vmatprep.subr.bf16.mxu0 0
        %2362 = vmatpush1.bf16.msra.mxu0 0
        %2363 = vmatprep.subr.bf16.mxu0 0
        %2364 = vmatpush1.bf16.msra.mxu0 0
        %2365 = vmatprep.subr.bf16.mxu0 0
        %2366 = vmatpush1.bf16.msra.mxu0 0
        %2367 = vmatprep.subr.bf16.mxu0 0
        %2368 = vmatpush1.bf16.msra.mxu0 0
        %2369 = vmatprep.subr.bf16.mxu0 0
        %2370 = vmatpush1.bf16.msra.mxu0 0
        %2371 = vmatprep.subr.bf16.mxu0 0
        %2372 = vmatpush1.bf16.msra.mxu0 0
        %2373 = vmatprep.mubr.bf16.mxu0 0
        %2374 = vmatmul.mubr.bf16.gmra.mrb[0].mxu0 %v2333
        %v2375 = vpop.f32.mrb[0].mxu0
        %v2376 = vadd.f32 0.0, %v2375
        %v2377 = vpop.f32.mrb[0].mxu0
        %v2378 = vpop.f32.mrb[0].mxu0
        %v2379 = vadd.f32 0.0, %v2378
        %v2380 = vpop.f32.mrb[0].mxu0
        %2381 = vmatprep.mubr.bf16.mxu0 0
        %2382 = vmatmul.mubr.bf16.gmra.mrb[0].mxu0 %v2334
        %v2383 = vpop.f32.mrb[0].mxu0
        %v2384 = vadd.f32 0.0, %v2383
        %v2385 = vpop.f32.mrb[0].mxu0
        %v2386 = vpop.f32.mrb[0].mxu0
        %v2387 = vadd.f32 0.0, %v2386
        %v2388 = vpop.f32.mrb[0].mxu0
        %2389 = vmatprep.mubr.bf16.mxu0 0
        %2390 = vmatmul.mubr.bf16.gmra.mrb[0].mxu0 %v2335
        %v2391 = vpop.f32.mrb[0].mxu0
        %v2392 = vadd.f32 0.0, %v2391
        %v2393 = vpop.f32.mrb[0].mxu0
        %v2394 = vpop.f32.mrb[0].mxu0
        %v2395 = vadd.f32 0.0, %v2394
        %v2396 = vpop.f32.mrb[0].mxu0
        %2397 = vmatprep.mubr.bf16.mxu0 0
        %2398 = vmatmul.mubr.bf16.gmra.mrb[0].mxu0 %v2336
        %v2399 = vpop.f32.mrb[0].mxu0
        %v2400 = vadd.f32 0.0, %v2399
        %v2401 = vpop.f32.mrb[0].mxu0
        %v2402 = vpop.f32.mrb[0].mxu0
        %v2403 = vadd.f32 0.0, %v2402
        %v2404 = vpop.f32.mrb[0].mxu0
        %2405 = vmatprep.mubr.bf16.mxu0 0
        %2406 = vmatmul.mubr.bf16.gmra.mrb[0].mxu0 %v2337
        %v2407 = vpop.f32.mrb[0].mxu0
        %v2408 = vadd.f32 0.0, %v2407
        %v2409 = vpop.f32.mrb[0].mxu0
        %v2410 = vpop.f32.mrb[0].mxu0
        %v2411 = vadd.f32 0.0, %v2410
        %v2412 = vpop.f32.mrb[0].mxu0
        %2413 = vmatprep.mubr.bf16.mxu0 0
        %2414 = vmatmul.mubr.bf16.gmra.mrb[0].mxu0 %v2338
        %v2415 = vpop.f32.mrb[0].mxu0
        %v2416 = vadd.f32 0.0, %v2415
        %v2417 = vpop.f32.mrb[0].mxu0
        %v2418 = vpop.f32.mrb[0].mxu0
        %v2419 = vadd.f32 0.0, %v2418
        %v2420 = vpop.f32.mrb[0].mxu0
        %2421 = vmatprep.mubr.bf16.mxu0 0
        %2422 = vmatmul.mubr.bf16.gmra.mrb[0].mxu0 %v2339
        %v2423 = vpop.f32.mrb[0].mxu0
        %v2424 = vadd.f32 0.0, %v2423
        %v2425 = vpop.f32.mrb[0].mxu0
        %v2426 = vpop.f32.mrb[0].mxu0
        %v2427 = vadd.f32 0.0, %v2426
        %v2428 = vpop.f32.mrb[0].mxu0
        %2429 = vmatprep.mubr.bf16.mxu0 0
        %2430 = vmatmul.mubr.bf16.gmra.mrb[0].mxu0 %v2340
        %v2431 = vpop.f32.mrb[0].mxu0
        %v2432 = vadd.f32 0.0, %v2431
        %v2433 = vpop.f32.mrb[0].mxu0
        %v2434 = vpop.f32.mrb[0].mxu0
        %v2435 = vadd.f32 0.0, %v2434
        %v2436 = vpop.f32.mrb[0].mxu0
        %2437 = vdwg.mxu0
        %v2438 = vadd.f32 %v2317, %v2376
        %v2439 = vadd.f32 %v2318, %v2379
        %v2440 = vadd.f32 %v2319, %v2384
        %v2441 = vadd.f32 %v2320, %v2387
        %v2442 = vadd.f32 %v2321, %v2392
        %v2443 = vadd.f32 %v2322, %v2395
        %v2444 = vadd.f32 %v2323, %v2400
        %v2445 = vadd.f32 %v2324, %v2403
        %v2446 = vadd.f32 %v2325, %v2408
        %v2447 = vadd.f32 %v2326, %v2411
        %v2448 = vadd.f32 %v2327, %v2416
        %v2449 = vadd.f32 %v2328, %v2419
        %v2450 = vadd.f32 %v2329, %v2424
        %v2451 = vadd.f32 %v2330, %v2427
        %v2452 = vadd.f32 %v2331, %v2432
        %v2453 = vadd.f32 %v2332, %v2435
        %2454 = vst.msk [vmem:[#allocation5] sm:$0xff] %vm1738, %v2438
        %2455 = vst.msk [vmem:[#allocation5 + $0x8] sm:$0xff] %vm1738, %v2439
        %2456 = vst.msk [vmem:[#allocation5 + $0x10] sm:$0xff] %vm1738, %v2440
        %2457 = vst.msk [vmem:[#allocation5 + $0x18] sm:$0xff] %vm1738, %v2441
        %2458 = vst.msk [vmem:[#allocation5 + $0x20] sm:$0xff] %vm1738, %v2442
        %2459 = vst.msk [vmem:[#allocation5 + $0x28] sm:$0xff] %vm1738, %v2443
        %2460 = vst.msk [vmem:[#allocation5 + $0x30] sm:$0xff] %vm1738, %v2444
        %2461 = vst.msk [vmem:[#allocation5 + $0x38] sm:$0xff] %vm1738, %v2445
        %2462 = vst.msk [vmem:[#allocation5 + $0x40] sm:$0xff] %vm1738, %v2446
        %2463 = vst.msk [vmem:[#allocation5 + $0x48] sm:$0xff] %vm1738, %v2447
        %2464 = vst.msk [vmem:[#allocation5 + $0x50] sm:$0xff] %vm1738, %v2448
        %2465 = vst.msk [vmem:[#allocation5 + $0x58] sm:$0xff] %vm1738, %v2449
        %2466 = vst.msk [vmem:[#allocation5 + $0x60] sm:$0xff] %vm1738, %v2450
        %2467 = vst.msk [vmem:[#allocation5 + $0x68] sm:$0xff] %vm1738, %v2451
        %2468 = vst.msk [vmem:[#allocation5 + $0x70] sm:$0xff] %vm1738, %v2452
        %2469 = vst.msk [vmem:[#allocation5 + $0x78] sm:$0xff] %vm1738, %v2453
        %2470 = vst.msk [vmem:[#allocation3] sm:$0xff] %vm2204, %v1932
        %2471 = vst.msk [vmem:[#allocation3 + $0x8] sm:$0xff] %vm2204, %v1933
        %2472 = vst.msk [vmem:[#allocation3 + $0x10] sm:$0xff] %vm2204, %v1934
        %2473 = vst.msk [vmem:[#allocation3 + $0x18] sm:$0xff] %vm2204, %v1935
        %2474 = vst.msk [vmem:[#allocation3 + $0x20] sm:$0xff] %vm2204, %v1936
        %2475 = vst.msk [vmem:[#allocation3 + $0x28] sm:$0xff] %vm2204, %v1937
        %2476 = vst.msk [vmem:[#allocation3 + $0x30] sm:$0xff] %vm2204, %v1938
        %2477 = vst.msk [vmem:[#allocation3 + $0x38] sm:$0xff] %vm2204, %v1939
        %2478 = vst.msk [vmem:[#allocation3 + $0x40] sm:$0xff] %vm2204, %v1940
        %2479 = vst.msk [vmem:[#allocation3 + $0x48] sm:$0xff] %vm2204, %v1941
        %2480 = vst.msk [vmem:[#allocation3 + $0x50] sm:$0xff] %vm2204, %v1942
        %2481 = vst.msk [vmem:[#allocation3 + $0x58] sm:$0xff] %vm2204, %v1943
        %2482 = vst.msk [vmem:[#allocation3 + $0x60] sm:$0xff] %vm2204, %v1944
        %2483 = vst.msk [vmem:[#allocation3 + $0x68] sm:$0xff] %vm2204, %v1945
        %2484 = vst.msk [vmem:[#allocation3 + $0x70] sm:$0xff] %vm2204, %v1946
        %2485 = vst.msk [vmem:[#allocation3 + $0x78] sm:$0xff] %vm2204, %v1947
        %s2486 = scalar_lea.vmem %s3, 64
        %v2487 = vld [vmem:[%s2486] sm:$0xf]
        %v2488 = vld [vmem:[%s2486 + $0x4] sm:$0xf]
        %v2489 = vld [vmem:[%s2486 + $0x8] sm:$0xf]
        %v2490 = vld [vmem:[%s2486 + $0xc] sm:$0xf]
        %v2491 = vld [vmem:[%s2486 + $0x10] sm:$0xf]
        %v2492 = vld [vmem:[%s2486 + $0x14] sm:$0xf]
        %v2493 = vld [vmem:[%s2486 + $0x18] sm:$0xf]
        %v2494 = vld [vmem:[%s2486 + $0x1c] sm:$0xf]
        %v2495 = vld [vmem:[%s2486 + $0x20] sm:$0xf]
        %v2496 = vld [vmem:[%s2486 + $0x24] sm:$0xf]
        %v2497 = vld [vmem:[%s2486 + $0x28] sm:$0xf]
        %v2498 = vld [vmem:[%s2486 + $0x2c] sm:$0xf]
        %v2499 = vld [vmem:[%s2486 + $0x30] sm:$0xf]
        %v2500 = vld [vmem:[%s2486 + $0x34] sm:$0xf]
        %v2501 = vld [vmem:[%s2486 + $0x38] sm:$0xf]
        %v2502 = vld [vmem:[%s2486 + $0x3c] sm:$0xf]
        %v2519 = vunpack.c.l.b16 %v2487
        %v2520 = vunpack.c.l.b16 %v2488
        %v2521 = vunpack.c.l.b16 %v2489
        %v2522 = vunpack.c.l.b16 %v2490
        %v2523 = vunpack.c.l.b16 %v2491
        %v2524 = vunpack.c.l.b16 %v2492
        %v2525 = vunpack.c.l.b16 %v2493
        %v2526 = vunpack.c.l.b16 %v2494
        %v2527 = vunpack.c.l.b16 %v2495
        %v2528 = vunpack.c.l.b16 %v2496
        %v2529 = vunpack.c.l.b16 %v2497
        %v2530 = vunpack.c.l.b16 %v2498
        %v2531 = vunpack.c.l.b16 %v2499
        %v2532 = vunpack.c.l.b16 %v2500
        %v2533 = vunpack.c.l.b16 %v2501
        %v2534 = vunpack.c.l.b16 %v2502
        %v2535 = vpack.c.b16 %v2520, %v2519
        %v2536 = vpack.c.b16 %v2522, %v2521
        %v2537 = vpack.c.b16 %v2524, %v2523
        %v2538 = vpack.c.b16 %v2526, %v2525
        %v2539 = vpack.c.b16 %v2528, %v2527
        %v2540 = vpack.c.b16 %v2530, %v2529
        %v2541 = vpack.c.b16 %v2532, %v2531
        %v2542 = vpack.c.b16 %v2534, %v2533
        %2551 = vmatprep.subr.bf16.mxu0 0
        %2552 = vmatpush1.bf16.msra.mxu0 %v2535
        %2553 = vmatprep.subr.bf16.mxu0 0
        %2554 = vmatpush1.bf16.msra.mxu0 %v2536
        %2555 = vmatprep.subr.bf16.mxu0 0
        %2556 = vmatpush1.bf16.msra.mxu0 %v2537
        %2557 = vmatprep.subr.bf16.mxu0 0
        %2558 = vmatpush1.bf16.msra.mxu0 %v2538
        %2559 = vmatprep.subr.bf16.mxu0 0
        %2560 = vmatpush1.bf16.msra.mxu0 %v2539
        %2561 = vmatprep.subr.bf16.mxu0 0
        %2562 = vmatpush1.bf16.msra.mxu0 %v2540
        %2563 = vmatprep.subr.bf16.mxu0 0
        %2564 = vmatpush1.bf16.msra.mxu0 %v2541
        %2565 = vmatprep.subr.bf16.mxu0 0
        %2566 = vmatpush1.bf16.msra.mxu0 %v2542
        %2567 = vmatprep.subr.bf16.mxu0 0
        %2568 = vmatpush1.bf16.msra.mxu0 0
        %2569 = vmatprep.subr.bf16.mxu0 0
        %2570 = vmatpush1.bf16.msra.mxu0 0
        %2571 = vmatprep.subr.bf16.mxu0 0
        %2572 = vmatpush1.bf16.msra.mxu0 0
        %2573 = vmatprep.subr.bf16.mxu0 0
        %2574 = vmatpush1.bf16.msra.mxu0 0
        %2575 = vmatprep.subr.bf16.mxu0 0
        %2576 = vmatpush1.bf16.msra.mxu0 0
        %2577 = vmatprep.subr.bf16.mxu0 0
        %2578 = vmatpush1.bf16.msra.mxu0 0
        %2579 = vmatprep.subr.bf16.mxu0 0
        %2580 = vmatpush1.bf16.msra.mxu0 0
        %2581 = vmatprep.subr.bf16.mxu0 0
        %2582 = vmatpush1.bf16.msra.mxu0 0
        %2583 = vmatprep.mubr.bf16.mxu0 0
        %2584 = vmatmul.mubr.bf16.gmra.mrb[0].mxu0 %v1392
        %v2585 = vpop.f32.mrb[0].mxu0
        %v2586 = vadd.f32 0.0, %v2585
        %v2587 = vpop.f32.mrb[0].mxu0
        %v2588 = vpop.f32.mrb[0].mxu0
        %v2589 = vadd.f32 0.0, %v2588
        %v2590 = vpop.f32.mrb[0].mxu0
        %2591 = vmatprep.mubr.bf16.mxu0 0
        %2592 = vmatmul.mubr.bf16.gmra.mrb[0].mxu0 %v1393
        %v2593 = vpop.f32.mrb[0].mxu0
        %v2594 = vadd.f32 0.0, %v2593
        %v2595 = vpop.f32.mrb[0].mxu0
        %v2596 = vpop.f32.mrb[0].mxu0
        %v2597 = vadd.f32 0.0, %v2596
        %v2598 = vpop.f32.mrb[0].mxu0
        %2599 = vmatprep.mubr.bf16.mxu0 0
        %2600 = vmatmul.mubr.bf16.gmra.mrb[0].mxu0 %v1394
        %v2601 = vpop.f32.mrb[0].mxu0
        %v2602 = vadd.f32 0.0, %v2601
        %v2603 = vpop.f32.mrb[0].mxu0
        %v2604 = vpop.f32.mrb[0].mxu0
        %v2605 = vadd.f32 0.0, %v2604
        %v2606 = vpop.f32.mrb[0].mxu0
        %2607 = vmatprep.mubr.bf16.mxu0 0
        %2608 = vmatmul.mubr.bf16.gmra.mrb[0].mxu0 %v1395
        %v2609 = vpop.f32.mrb[0].mxu0
        %v2610 = vadd.f32 0.0, %v2609
        %v2611 = vpop.f32.mrb[0].mxu0
        %v2612 = vpop.f32.mrb[0].mxu0
        %v2613 = vadd.f32 0.0, %v2612
        %v2614 = vpop.f32.mrb[0].mxu0
        %2615 = vmatprep.mubr.bf16.mxu0 0
        %2616 = vmatmul.mubr.bf16.gmra.mrb[0].mxu0 %v1396
        %v2617 = vpop.f32.mrb[0].mxu0
        %v2618 = vadd.f32 0.0, %v2617
        %v2619 = vpop.f32.mrb[0].mxu0
        %v2620 = vpop.f32.mrb[0].mxu0
        %v2621 = vadd.f32 0.0, %v2620
        %v2622 = vpop.f32.mrb[0].mxu0
        %2623 = vmatprep.mubr.bf16.mxu0 0
        %2624 = vmatmul.mubr.bf16.gmra.mrb[0].mxu0 %v1397
        %v2625 = vpop.f32.mrb[0].mxu0
        %v2626 = vadd.f32 0.0, %v2625
        %v2627 = vpop.f32.mrb[0].mxu0
        %v2628 = vpop.f32.mrb[0].mxu0
        %v2629 = vadd.f32 0.0, %v2628
        %v2630 = vpop.f32.mrb[0].mxu0
        %2631 = vmatprep.mubr.bf16.mxu0 0
        %2632 = vmatmul.mubr.bf16.gmra.mrb[0].mxu0 %v1398
        %v2633 = vpop.f32.mrb[0].mxu0
        %v2634 = vadd.f32 0.0, %v2633
        %v2635 = vpop.f32.mrb[0].mxu0
        %v2636 = vpop.f32.mrb[0].mxu0
        %v2637 = vadd.f32 0.0, %v2636
        %v2638 = vpop.f32.mrb[0].mxu0
        %2639 = vmatprep.mubr.bf16.mxu0 0
        %2640 = vmatmul.mubr.bf16.gmra.mrb[0].mxu0 %v1399
        %v2641 = vpop.f32.mrb[0].mxu0
        %v2642 = vadd.f32 0.0, %v2641
        %v2643 = vpop.f32.mrb[0].mxu0
        %v2644 = vpop.f32.mrb[0].mxu0
        %v2645 = vadd.f32 0.0, %v2644
        %v2646 = vpop.f32.mrb[0].mxu0
        %2647 = vdwg.mxu0
        %v2648 = vpack.c.bf16 %v2589, %v2586
        %v2649 = vpack.c.bf16 %v2597, %v2594
        %v2650 = vpack.c.bf16 %v2605, %v2602
        %v2651 = vpack.c.bf16 %v2613, %v2610
        %v2652 = vpack.c.bf16 %v2621, %v2618
        %v2653 = vpack.c.bf16 %v2629, %v2626
        %v2654 = vpack.c.bf16 %v2637, %v2634
        %v2655 = vpack.c.bf16 %v2645, %v2642
        %s2656 = scalar_lea.vmem %s4, 64
        %v2657 = vld [vmem:[%s2656] sm:$0xf]
        %v2658 = vld [vmem:[%s2656 + $0x4] sm:$0xf]
        %v2659 = vld [vmem:[%s2656 + $0x8] sm:$0xf]
        %v2660 = vld [vmem:[%s2656 + $0xc] sm:$0xf]
        %v2661 = vld [vmem:[%s2656 + $0x10] sm:$0xf]
        %v2662 = vld [vmem:[%s2656 + $0x14] sm:$0xf]
        %v2663 = vld [vmem:[%s2656 + $0x18] sm:$0xf]
        %v2664 = vld [vmem:[%s2656 + $0x1c] sm:$0xf]
        %v2665 = vld [vmem:[%s2656 + $0x20] sm:$0xf]
        %v2666 = vld [vmem:[%s2656 + $0x24] sm:$0xf]
        %v2667 = vld [vmem:[%s2656 + $0x28] sm:$0xf]
        %v2668 = vld [vmem:[%s2656 + $0x2c] sm:$0xf]
        %v2669 = vld [vmem:[%s2656 + $0x30] sm:$0xf]
        %v2670 = vld [vmem:[%s2656 + $0x34] sm:$0xf]
        %v2671 = vld [vmem:[%s2656 + $0x38] sm:$0xf]
        %v2672 = vld [vmem:[%s2656 + $0x3c] sm:$0xf]
        %v2689 = vunpack.c.l.b16 %v2657
        %v2690 = vunpack.c.l.b16 %v2658
        %v2691 = vunpack.c.l.b16 %v2659
        %v2692 = vunpack.c.l.b16 %v2660
        %v2693 = vunpack.c.l.b16 %v2661
        %v2694 = vunpack.c.l.b16 %v2662
        %v2695 = vunpack.c.l.b16 %v2663
        %v2696 = vunpack.c.l.b16 %v2664
        %v2697 = vunpack.c.l.b16 %v2665
        %v2698 = vunpack.c.l.b16 %v2666
        %v2699 = vunpack.c.l.b16 %v2667
        %v2700 = vunpack.c.l.b16 %v2668
        %v2701 = vunpack.c.l.b16 %v2669
        %v2702 = vunpack.c.l.b16 %v2670
        %v2703 = vunpack.c.l.b16 %v2671
        %v2704 = vunpack.c.l.b16 %v2672
        %v2705 = vpack.c.b16 %v2690, %v2689
        %v2706 = vpack.c.b16 %v2692, %v2691
        %v2707 = vpack.c.b16 %v2694, %v2693
        %v2708 = vpack.c.b16 %v2696, %v2695
        %v2709 = vpack.c.b16 %v2698, %v2697
        %v2710 = vpack.c.b16 %v2700, %v2699
        %v2711 = vpack.c.b16 %v2702, %v2701
        %v2712 = vpack.c.b16 %v2704, %v2703
        %2721 = vmatprep.subr.bf16.mxu0 0
        %2722 = vmatpush1.bf16.msra.mxu0 %v2705
        %2723 = vmatprep.subr.bf16.mxu0 0
        %2724 = vmatpush1.bf16.msra.mxu0 %v2706
        %2725 = vmatprep.subr.bf16.mxu0 0
        %2726 = vmatpush1.bf16.msra.mxu0 %v2707
        %2727 = vmatprep.subr.bf16.mxu0 0
        %2728 = vmatpush1.bf16.msra.mxu0 %v2708
        %2729 = vmatprep.subr.bf16.mxu0 0
        %2730 = vmatpush1.bf16.msra.mxu0 %v2709
        %2731 = vmatprep.subr.bf16.mxu0 0
        %2732 = vmatpush1.bf16.msra.mxu0 %v2710
        %2733 = vmatprep.subr.bf16.mxu0 0
        %2734 = vmatpush1.bf16.msra.mxu0 %v2711
        %2735 = vmatprep.subr.bf16.mxu0 0
        %2736 = vmatpush1.bf16.msra.mxu0 %v2712
        %2737 = vmatprep.subr.bf16.mxu0 0
        %2738 = vmatpush1.bf16.msra.mxu0 0
        %2739 = vmatprep.subr.bf16.mxu0 0
        %2740 = vmatpush1.bf16.msra.mxu0 0
        %2741 = vmatprep.subr.bf16.mxu0 0
        %2742 = vmatpush1.bf16.msra.mxu0 0
        %2743 = vmatprep.subr.bf16.mxu0 0
        %2744 = vmatpush1.bf16.msra.mxu0 0
        %2745 = vmatprep.subr.bf16.mxu0 0
        %2746 = vmatpush1.bf16.msra.mxu0 0
        %2747 = vmatprep.subr.bf16.mxu0 0
        %2748 = vmatpush1.bf16.msra.mxu0 0
        %2749 = vmatprep.subr.bf16.mxu0 0
        %2750 = vmatpush1.bf16.msra.mxu0 0
        %2751 = vmatprep.subr.bf16.mxu0 0
        %2752 = vmatpush1.bf16.msra.mxu0 0
        %2753 = vmatprep.mubr.bf16.mxu0 0
        %2754 = vmatmul.mubr.bf16.gmra.mrb[0].mxu0 %v1392
        %v2755 = vpop.f32.mrb[0].mxu0
        %v2756 = vadd.f32 0.0, %v2755
        %v2757 = vpop.f32.mrb[0].mxu0
        %v2758 = vpop.f32.mrb[0].mxu0
        %v2759 = vadd.f32 0.0, %v2758
        %v2760 = vpop.f32.mrb[0].mxu0
        %2761 = vmatprep.mubr.bf16.mxu0 0
        %2762 = vmatmul.mubr.bf16.gmra.mrb[0].mxu0 %v1393
        %v2763 = vpop.f32.mrb[0].mxu0
        %v2764 = vadd.f32 0.0, %v2763
        %v2765 = vpop.f32.mrb[0].mxu0
        %v2766 = vpop.f32.mrb[0].mxu0
        %v2767 = vadd.f32 0.0, %v2766
        %v2768 = vpop.f32.mrb[0].mxu0
        %2769 = vmatprep.mubr.bf16.mxu0 0
        %2770 = vmatmul.mubr.bf16.gmra.mrb[0].mxu0 %v1394
        %v2771 = vpop.f32.mrb[0].mxu0
        %v2772 = vadd.f32 0.0, %v2771
        %v2773 = vpop.f32.mrb[0].mxu0
        %v2774 = vpop.f32.mrb[0].mxu0
        %v2775 = vadd.f32 0.0, %v2774
        %v2776 = vpop.f32.mrb[0].mxu0
        %2777 = vmatprep.mubr.bf16.mxu0 0
        %2778 = vmatmul.mubr.bf16.gmra.mrb[0].mxu0 %v1395
        %v2779 = vpop.f32.mrb[0].mxu0
        %v2780 = vadd.f32 0.0, %v2779
        %v2781 = vpop.f32.mrb[0].mxu0
        %v2782 = vpop.f32.mrb[0].mxu0
        %v2783 = vadd.f32 0.0, %v2782
        %v2784 = vpop.f32.mrb[0].mxu0
        %2785 = vmatprep.mubr.bf16.mxu0 0
        %2786 = vmatmul.mubr.bf16.gmra.mrb[0].mxu0 %v1396
        %v2787 = vpop.f32.mrb[0].mxu0
        %v2788 = vadd.f32 0.0, %v2787
        %v2789 = vpop.f32.mrb[0].mxu0
        %v2790 = vpop.f32.mrb[0].mxu0
        %v2791 = vadd.f32 0.0, %v2790
        %v2792 = vpop.f32.mrb[0].mxu0
        %2793 = vmatprep.mubr.bf16.mxu0 0
        %2794 = vmatmul.mubr.bf16.gmra.mrb[0].mxu0 %v1397
        %v2795 = vpop.f32.mrb[0].mxu0
        %v2796 = vadd.f32 0.0, %v2795
        %v2797 = vpop.f32.mrb[0].mxu0
        %v2798 = vpop.f32.mrb[0].mxu0
        %v2799 = vadd.f32 0.0, %v2798
        %v2800 = vpop.f32.mrb[0].mxu0
        %2801 = vmatprep.mubr.bf16.mxu0 0
        %2802 = vmatmul.mubr.bf16.gmra.mrb[0].mxu0 %v1398
        %v2803 = vpop.f32.mrb[0].mxu0
        %v2804 = vadd.f32 0.0, %v2803
        %v2805 = vpop.f32.mrb[0].mxu0
        %v2806 = vpop.f32.mrb[0].mxu0
        %v2807 = vadd.f32 0.0, %v2806
        %v2808 = vpop.f32.mrb[0].mxu0
        %2809 = vmatprep.mubr.bf16.mxu0 0
        %2810 = vmatmul.mubr.bf16.gmra.mrb[0].mxu0 %v1399
        %v2811 = vpop.f32.mrb[0].mxu0
        %v2812 = vadd.f32 0.0, %v2811
        %v2813 = vpop.f32.mrb[0].mxu0
        %v2814 = vpop.f32.mrb[0].mxu0
        %v2815 = vadd.f32 0.0, %v2814
        %v2816 = vpop.f32.mrb[0].mxu0
        %2817 = vdwg.mxu0
        %v2818 = vpack.c.bf16 %v2759, %v2756
        %v2819 = vpack.c.bf16 %v2767, %v2764
        %v2820 = vpack.c.bf16 %v2775, %v2772
        %v2821 = vpack.c.bf16 %v2783, %v2780
        %v2822 = vpack.c.bf16 %v2791, %v2788
        %v2823 = vpack.c.bf16 %v2799, %v2796
        %v2824 = vpack.c.bf16 %v2807, %v2804
        %v2825 = vpack.c.bf16 %v2815, %v2812
        %s2826 = scalar_lea.vmem [#allocation2], 64
        %v2827 = vld [vmem:[%s2826] sm:$0xff]
        %v2828 = vld [vmem:[%s2826 + $0x8] sm:$0xff]
        %v2829 = vld [vmem:[%s2826 + $0x10] sm:$0xff]
        %v2830 = vld [vmem:[%s2826 + $0x18] sm:$0xff]
        %v2831 = vld [vmem:[%s2826 + $0x20] sm:$0xff]
        %v2832 = vld [vmem:[%s2826 + $0x28] sm:$0xff]
        %v2833 = vld [vmem:[%s2826 + $0x30] sm:$0xff]
        %v2834 = vld [vmem:[%s2826 + $0x38] sm:$0xff]
        %v2836 = vsel %vm1738, %v2827, 0
        %v2839 = vsel %vm1738, %v2828, 0
        %v2842 = vsel %vm1738, %v2829, 0
        %v2845 = vsel %vm1738, %v2830, 0
        %v2848 = vsel %vm1738, %v2831, 0
        %v2851 = vsel %vm1738, %v2832, 0
        %v2854 = vsel %vm1738, %v2833, 0
        %v2857 = vsel %vm1738, %v2834, 0
        %v2860 = vsel %vm1738, %v2648, 0
        %v2863 = vsel %vm1738, %v2649, 0
        %v2866 = vsel %vm1738, %v2650, 0
        %v2869 = vsel %vm1738, %v2651, 0
        %v2872 = vsel %vm1738, %v2652, 0
        %v2875 = vsel %vm1738, %v2653, 0
        %v2878 = vsel %vm1738, %v2654, 0
        %v2881 = vsel %vm1738, %v2655, 0
        %2883 = vmatprep.subr.bf16.mxu0 0
        %2884 = vmatpush1.bf16.xpose.msra.mxu0 %v2860
        %2885 = vmatprep.subr.bf16.mxu0 0
        %2886 = vmatpush1.bf16.xpose.msra.mxu0 %v2863
        %2887 = vmatprep.subr.bf16.mxu0 0
        %2888 = vmatpush1.bf16.xpose.msra.mxu0 %v2866
        %2889 = vmatprep.subr.bf16.mxu0 0
        %2890 = vmatpush1.bf16.xpose.msra.mxu0 %v2869
        %2891 = vmatprep.subr.bf16.mxu0 0
        %2892 = vmatpush1.bf16.xpose.msra.mxu0 %v2872
        %2893 = vmatprep.subr.bf16.mxu0 0
        %2894 = vmatpush1.bf16.xpose.msra.mxu0 %v2875
        %2895 = vmatprep.subr.bf16.mxu0 0
        %2896 = vmatpush1.bf16.xpose.msra.mxu0 %v2878
        %2897 = vmatprep.subr.bf16.mxu0 0
        %2898 = vmatpush1.bf16.xpose.msra.mxu0 %v2881
        %2899 = vmatprep.subr.bf16.mxu0 0
        %2900 = vmatpush1.bf16.xpose.msra.mxu0 0
        %2901 = vmatprep.subr.bf16.mxu0 0
        %2902 = vmatpush1.bf16.xpose.msra.mxu0 0
        %2903 = vmatprep.subr.bf16.mxu0 0
        %2904 = vmatpush1.bf16.xpose.msra.mxu0 0
        %2905 = vmatprep.subr.bf16.mxu0 0
        %2906 = vmatpush1.bf16.xpose.msra.mxu0 0
        %2907 = vmatprep.subr.bf16.mxu0 0
        %2908 = vmatpush1.bf16.xpose.msra.mxu0 0
        %2909 = vmatprep.subr.bf16.mxu0 0
        %2910 = vmatpush1.bf16.xpose.msra.mxu0 0
        %2911 = vmatprep.subr.bf16.mxu0 0
        %2912 = vmatpush1.bf16.xpose.msra.mxu0 0
        %2913 = vmatprep.subr.bf16.mxu0 0
        %2914 = vmatpush1.bf16.xpose.msra.mxu0 0
        %2915 = vmatprep.mubr.bf16.mxu0 0
        %2916 = vmatmul.mubr.bf16.gmra.mrb[0].mxu0 %v2836
        %v2917 = vpop.f32.mrb[0].mxu0
        %v2918 = vadd.f32 0.0, %v2917
        %v2919 = vpop.f32.mrb[0].mxu0
        %v2920 = vpop.f32.mrb[0].mxu0
        %v2921 = vadd.f32 0.0, %v2920
        %v2922 = vpop.f32.mrb[0].mxu0
        %2923 = vmatprep.mubr.bf16.mxu0 0
        %2924 = vmatmul.mubr.bf16.gmra.mrb[0].mxu0 %v2839
        %v2925 = vpop.f32.mrb[0].mxu0
        %v2926 = vadd.f32 0.0, %v2925
        %v2927 = vpop.f32.mrb[0].mxu0
        %v2928 = vpop.f32.mrb[0].mxu0
        %v2929 = vadd.f32 0.0, %v2928
        %v2930 = vpop.f32.mrb[0].mxu0
        %2931 = vmatprep.mubr.bf16.mxu0 0
        %2932 = vmatmul.mubr.bf16.gmra.mrb[0].mxu0 %v2842
        %v2933 = vpop.f32.mrb[0].mxu0
        %v2934 = vadd.f32 0.0, %v2933
        %v2935 = vpop.f32.mrb[0].mxu0
        %v2936 = vpop.f32.mrb[0].mxu0
        %v2937 = vadd.f32 0.0, %v2936
        %v2938 = vpop.f32.mrb[0].mxu0
        %2939 = vmatprep.mubr.bf16.mxu0 0
        %2940 = vmatmul.mubr.bf16.gmra.mrb[0].mxu0 %v2845
        %v2941 = vpop.f32.mrb[0].mxu0
        %v2942 = vadd.f32 0.0, %v2941
        %v2943 = vpop.f32.mrb[0].mxu0
        %v2944 = vpop.f32.mrb[0].mxu0
        %v2945 = vadd.f32 0.0, %v2944
        %v2946 = vpop.f32.mrb[0].mxu0
        %2947 = vmatprep.mubr.bf16.mxu0 0
        %2948 = vmatmul.mubr.bf16.gmra.mrb[0].mxu0 %v2848
        %v2949 = vpop.f32.mrb[0].mxu0
        %v2950 = vadd.f32 0.0, %v2949
        %v2951 = vpop.f32.mrb[0].mxu0
        %v2952 = vpop.f32.mrb[0].mxu0
        %v2953 = vadd.f32 0.0, %v2952
        %v2954 = vpop.f32.mrb[0].mxu0
        %2955 = vmatprep.mubr.bf16.mxu0 0
        %2956 = vmatmul.mubr.bf16.gmra.mrb[0].mxu0 %v2851
        %v2957 = vpop.f32.mrb[0].mxu0
        %v2958 = vadd.f32 0.0, %v2957
        %v2959 = vpop.f32.mrb[0].mxu0
        %v2960 = vpop.f32.mrb[0].mxu0
        %v2961 = vadd.f32 0.0, %v2960
        %v2962 = vpop.f32.mrb[0].mxu0
        %2963 = vmatprep.mubr.bf16.mxu0 0
        %2964 = vmatmul.mubr.bf16.gmra.mrb[0].mxu0 %v2854
        %v2965 = vpop.f32.mrb[0].mxu0
        %v2966 = vadd.f32 0.0, %v2965
        %v2967 = vpop.f32.mrb[0].mxu0
        %v2968 = vpop.f32.mrb[0].mxu0
        %v2969 = vadd.f32 0.0, %v2968
        %v2970 = vpop.f32.mrb[0].mxu0
        %2971 = vmatprep.mubr.bf16.mxu0 0
        %2972 = vmatmul.mubr.bf16.gmra.mrb[0].mxu0 %v2857
        %v2973 = vpop.f32.mrb[0].mxu0
        %v2974 = vadd.f32 0.0, %v2973
        %v2975 = vpop.f32.mrb[0].mxu0
        %v2976 = vpop.f32.mrb[0].mxu0
        %v2977 = vadd.f32 0.0, %v2976
        %v2978 = vpop.f32.mrb[0].mxu0
        %2979 = vdwg.mxu0
        %s2980 = scalar_lea.vmem [#allocation3], 128
        %v2981 = vld [vmem:[%s2980] sm:$0xff]
        %v2982 = vld [vmem:[%s2980 + $0x8] sm:$0xff]
        %v2983 = vld [vmem:[%s2980 + $0x10] sm:$0xff]
        %v2984 = vld [vmem:[%s2980 + $0x18] sm:$0xff]
        %v2985 = vld [vmem:[%s2980 + $0x20] sm:$0xff]
        %v2986 = vld [vmem:[%s2980 + $0x28] sm:$0xff]
        %v2987 = vld [vmem:[%s2980 + $0x30] sm:$0xff]
        %v2988 = vld [vmem:[%s2980 + $0x38] sm:$0xff]
        %v2989 = vld [vmem:[%s2980 + $0x40] sm:$0xff]
        %v2990 = vld [vmem:[%s2980 + $0x48] sm:$0xff]
        %v2991 = vld [vmem:[%s2980 + $0x50] sm:$0xff]
        %v2992 = vld [vmem:[%s2980 + $0x58] sm:$0xff]
        %v2993 = vld [vmem:[%s2980 + $0x60] sm:$0xff]
        %v2994 = vld [vmem:[%s2980 + $0x68] sm:$0xff]
        %v2995 = vld [vmem:[%s2980 + $0x70] sm:$0xff]
        %v2996 = vld [vmem:[%s2980 + $0x78] sm:$0xff]
        %2997 = vmax.xlane.f32.xlu0 %v2918
        %v2998 = vpop.xlane.xlu0 %2997
        %2999 = vmax.xlane.f32.xlu0 %v2921
        %v3000 = vpop.xlane.xlu0 %2999
        %3001 = vmax.xlane.f32.xlu0 %v2926
        %v3002 = vpop.xlane.xlu0 %3001
        %3003 = vmax.xlane.f32.xlu0 %v2929
        %v3004 = vpop.xlane.xlu0 %3003
        %3005 = vmax.xlane.f32.xlu0 %v2934
        %v3006 = vpop.xlane.xlu0 %3005
        %3007 = vmax.xlane.f32.xlu0 %v2937
        %v3008 = vpop.xlane.xlu0 %3007
        %3009 = vmax.xlane.f32.xlu0 %v2942
        %v3010 = vpop.xlane.xlu0 %3009
        %3011 = vmax.xlane.f32.xlu0 %v2945
        %v3012 = vpop.xlane.xlu0 %3011
        %3013 = vmax.xlane.f32.xlu0 %v2950
        %v3014 = vpop.xlane.xlu0 %3013
        %3015 = vmax.xlane.f32.xlu0 %v2953
        %v3016 = vpop.xlane.xlu0 %3015
        %3017 = vmax.xlane.f32.xlu0 %v2958
        %v3018 = vpop.xlane.xlu0 %3017
        %3019 = vmax.xlane.f32.xlu0 %v2961
        %v3020 = vpop.xlane.xlu0 %3019
        %3021 = vmax.xlane.f32.xlu0 %v2966
        %v3022 = vpop.xlane.xlu0 %3021
        %3023 = vmax.xlane.f32.xlu0 %v2969
        %v3024 = vpop.xlane.xlu0 %3023
        %3025 = vmax.xlane.f32.xlu0 %v2974
        %v3026 = vpop.xlane.xlu0 %3025
        %3027 = vmax.xlane.f32.xlu0 %v2977
        %v3028 = vpop.xlane.xlu0 %3027
        %v3029 = vmax.f32 %v2981, %v2998
        %v3030 = vmax.f32 %v2982, %v3000
        %v3031 = vmax.f32 %v2983, %v3002
        %v3032 = vmax.f32 %v2984, %v3004
        %v3033 = vmax.f32 %v2985, %v3006
        %v3034 = vmax.f32 %v2986, %v3008
        %v3035 = vmax.f32 %v2987, %v3010
        %v3036 = vmax.f32 %v2988, %v3012
        %v3037 = vmax.f32 %v2989, %v3014
        %v3038 = vmax.f32 %v2990, %v3016
        %v3039 = vmax.f32 %v2991, %v3018
        %v3040 = vmax.f32 %v2992, %v3020
        %v3041 = vmax.f32 %v2993, %v3022
        %v3042 = vmax.f32 %v2994, %v3024
        %v3043 = vmax.f32 %v2995, %v3026
        %v3044 = vmax.f32 %v2996, %v3028
        %v3045 = vsub.f32 %v2981, %v3029
        %v3046 = vsub.f32 %v2982, %v3030
        %v3047 = vsub.f32 %v2983, %v3031
        %v3048 = vsub.f32 %v2984, %v3032
        %v3049 = vsub.f32 %v2985, %v3033
        %v3050 = vsub.f32 %v2986, %v3034
        %v3051 = vsub.f32 %v2987, %v3035
        %v3052 = vsub.f32 %v2988, %v3036
        %v3053 = vsub.f32 %v2989, %v3037
        %v3054 = vsub.f32 %v2990, %v3038
        %v3055 = vsub.f32 %v2991, %v3039
        %v3056 = vsub.f32 %v2992, %v3040
        %v3057 = vsub.f32 %v2993, %v3041
        %v3058 = vsub.f32 %v2994, %v3042
        %v3059 = vsub.f32 %v2995, %v3043
        %v3060 = vsub.f32 %v2996, %v3044
        %v3061 = vmul.f32 %v3045, 1.442695
        %v3062 = vpow.pop %v3061
        %v3063 = vmul.f32 %v3046, 1.442695
        %v3064 = vpow.pop %v3063
        %v3065 = vmul.f32 %v3047, 1.442695
        %v3066 = vpow.pop %v3065
        %v3067 = vmul.f32 %v3048, 1.442695
        %v3068 = vpow.pop %v3067
        %v3069 = vmul.f32 %v3049, 1.442695
        %v3070 = vpow.pop %v3069
        %v3071 = vmul.f32 %v3050, 1.442695
        %v3072 = vpow.pop %v3071
        %v3073 = vmul.f32 %v3051, 1.442695
        %v3074 = vpow.pop %v3073
        %v3075 = vmul.f32 %v3052, 1.442695
        %v3076 = vpow.pop %v3075
        %v3077 = vmul.f32 %v3053, 1.442695
        %v3078 = vpow.pop %v3077
        %v3079 = vmul.f32 %v3054, 1.442695
        %v3080 = vpow.pop %v3079
        %v3081 = vmul.f32 %v3055, 1.442695
        %v3082 = vpow.pop %v3081
        %v3083 = vmul.f32 %v3056, 1.442695
        %v3084 = vpow.pop %v3083
        %v3085 = vmul.f32 %v3057, 1.442695
        %v3086 = vpow.pop %v3085
        %v3087 = vmul.f32 %v3058, 1.442695
        %v3088 = vpow.pop %v3087
        %v3089 = vmul.f32 %v3059, 1.442695
        %v3090 = vpow.pop %v3089
        %v3091 = vmul.f32 %v3060, 1.442695
        %v3092 = vpow.pop %v3091
        %3094 = vset.pattern.permute.xlu0 0
        %3095 = vperm.xlu0 %3094, %v3029
        %v3096 = vpop.permute.xlu0 %3095
        %3099 = vset.pattern.permute.xlu0 0
        %3100 = vperm.xlu0 %3099, %v3030
        %v3101 = vpop.permute.xlu0 %3100
        %3104 = vset.pattern.permute.xlu0 0
        %3105 = vperm.xlu0 %3104, %v3031
        %v3106 = vpop.permute.xlu0 %3105
        %3109 = vset.pattern.permute.xlu0 0
        %3110 = vperm.xlu0 %3109, %v3032
        %v3111 = vpop.permute.xlu0 %3110
        %3114 = vset.pattern.permute.xlu0 0
        %3115 = vperm.xlu0 %3114, %v3033
        %v3116 = vpop.permute.xlu0 %3115
        %3119 = vset.pattern.permute.xlu0 0
        %3120 = vperm.xlu0 %3119, %v3034
        %v3121 = vpop.permute.xlu0 %3120
        %3124 = vset.pattern.permute.xlu0 0
        %3125 = vperm.xlu0 %3124, %v3035
        %v3126 = vpop.permute.xlu0 %3125
        %3129 = vset.pattern.permute.xlu0 0
        %3130 = vperm.xlu0 %3129, %v3036
        %v3131 = vpop.permute.xlu0 %3130
        %3134 = vset.pattern.permute.xlu0 0
        %3135 = vperm.xlu0 %3134, %v3037
        %v3136 = vpop.permute.xlu0 %3135
        %3139 = vset.pattern.permute.xlu0 0
        %3140 = vperm.xlu0 %3139, %v3038
        %v3141 = vpop.permute.xlu0 %3140
        %3144 = vset.pattern.permute.xlu0 0
        %3145 = vperm.xlu0 %3144, %v3039
        %v3146 = vpop.permute.xlu0 %3145
        %3149 = vset.pattern.permute.xlu0 0
        %3150 = vperm.xlu0 %3149, %v3040
        %v3151 = vpop.permute.xlu0 %3150
        %3154 = vset.pattern.permute.xlu0 0
        %3155 = vperm.xlu0 %3154, %v3041
        %v3156 = vpop.permute.xlu0 %3155
        %3159 = vset.pattern.permute.xlu0 0
        %3160 = vperm.xlu0 %3159, %v3042
        %v3161 = vpop.permute.xlu0 %3160
        %3164 = vset.pattern.permute.xlu0 0
        %3165 = vperm.xlu0 %3164, %v3043
        %v3166 = vpop.permute.xlu0 %3165
        %3169 = vset.pattern.permute.xlu0 0
        %3170 = vperm.xlu0 %3169, %v3044
        %v3171 = vpop.permute.xlu0 %3170
        %v3173 = vsub.f32 %v2918, %v3096
        %v3174 = vsub.f32 %v2921, %v3101
        %v3175 = vsub.f32 %v2926, %v3106
        %v3176 = vsub.f32 %v2929, %v3111
        %v3177 = vsub.f32 %v2934, %v3116
        %v3178 = vsub.f32 %v2937, %v3121
        %v3179 = vsub.f32 %v2942, %v3126
        %v3180 = vsub.f32 %v2945, %v3131
        %v3181 = vsub.f32 %v2950, %v3136
        %v3182 = vsub.f32 %v2953, %v3141
        %v3183 = vsub.f32 %v2958, %v3146
        %v3184 = vsub.f32 %v2961, %v3151
        %v3185 = vsub.f32 %v2966, %v3156
        %v3186 = vsub.f32 %v2969, %v3161
        %v3187 = vsub.f32 %v2974, %v3166
        %v3188 = vsub.f32 %v2977, %v3171
        %v3189 = vmul.f32 %v3173, 1.442695
        %v3190 = vpow.pop %v3189
        %v3191 = vmul.f32 %v3174, 1.442695
        %v3192 = vpow.pop %v3191
        %v3193 = vmul.f32 %v3175, 1.442695
        %v3194 = vpow.pop %v3193
        %v3195 = vmul.f32 %v3176, 1.442695
        %v3196 = vpow.pop %v3195
        %v3197 = vmul.f32 %v3177, 1.442695
        %v3198 = vpow.pop %v3197
        %v3199 = vmul.f32 %v3178, 1.442695
        %v3200 = vpow.pop %v3199
        %v3201 = vmul.f32 %v3179, 1.442695
        %v3202 = vpow.pop %v3201
        %v3203 = vmul.f32 %v3180, 1.442695
        %v3204 = vpow.pop %v3203
        %v3205 = vmul.f32 %v3181, 1.442695
        %v3206 = vpow.pop %v3205
        %v3207 = vmul.f32 %v3182, 1.442695
        %v3208 = vpow.pop %v3207
        %v3209 = vmul.f32 %v3183, 1.442695
        %v3210 = vpow.pop %v3209
        %v3211 = vmul.f32 %v3184, 1.442695
        %v3212 = vpow.pop %v3211
        %v3213 = vmul.f32 %v3185, 1.442695
        %v3214 = vpow.pop %v3213
        %v3215 = vmul.f32 %v3186, 1.442695
        %v3216 = vpow.pop %v3215
        %v3217 = vmul.f32 %v3187, 1.442695
        %v3218 = vpow.pop %v3217
        %v3219 = vmul.f32 %v3188, 1.442695
        %v3220 = vpow.pop %v3219
        %s3221 = scalar_lea.vmem [#allocation4], 128
        %v3222 = vld [vmem:[%s3221] sm:$0xff]
        %v3223 = vld [vmem:[%s3221 + $0x8] sm:$0xff]
        %v3224 = vld [vmem:[%s3221 + $0x10] sm:$0xff]
        %v3225 = vld [vmem:[%s3221 + $0x18] sm:$0xff]
        %v3226 = vld [vmem:[%s3221 + $0x20] sm:$0xff]
        %v3227 = vld [vmem:[%s3221 + $0x28] sm:$0xff]
        %v3228 = vld [vmem:[%s3221 + $0x30] sm:$0xff]
        %v3229 = vld [vmem:[%s3221 + $0x38] sm:$0xff]
        %v3230 = vld [vmem:[%s3221 + $0x40] sm:$0xff]
        %v3231 = vld [vmem:[%s3221 + $0x48] sm:$0xff]
        %v3232 = vld [vmem:[%s3221 + $0x50] sm:$0xff]
        %v3233 = vld [vmem:[%s3221 + $0x58] sm:$0xff]
        %v3234 = vld [vmem:[%s3221 + $0x60] sm:$0xff]
        %v3235 = vld [vmem:[%s3221 + $0x68] sm:$0xff]
        %v3236 = vld [vmem:[%s3221 + $0x70] sm:$0xff]
        %v3237 = vld [vmem:[%s3221 + $0x78] sm:$0xff]
        %v3238 = vmul.f32 %v3062, %v3222
        %v3239 = vmul.f32 %v3064, %v3223
        %v3240 = vmul.f32 %v3066, %v3224
        %v3241 = vmul.f32 %v3068, %v3225
        %v3242 = vmul.f32 %v3070, %v3226
        %v3243 = vmul.f32 %v3072, %v3227
        %v3244 = vmul.f32 %v3074, %v3228
        %v3245 = vmul.f32 %v3076, %v3229
        %v3246 = vmul.f32 %v3078, %v3230
        %v3247 = vmul.f32 %v3080, %v3231
        %v3248 = vmul.f32 %v3082, %v3232
        %v3249 = vmul.f32 %v3084, %v3233
        %v3250 = vmul.f32 %v3086, %v3234
        %v3251 = vmul.f32 %v3088, %v3235
        %v3252 = vmul.f32 %v3090, %v3236
        %v3253 = vmul.f32 %v3092, %v3237
        %3254 = vadd.xlane.f32.xlu0 %v3190
        %v3255 = vpop.xlane.xlu0 %3254
        %3256 = vadd.xlane.f32.xlu0 %v3192
        %v3257 = vpop.xlane.xlu0 %3256
        %3258 = vadd.xlane.f32.xlu0 %v3194
        %v3259 = vpop.xlane.xlu0 %3258
        %3260 = vadd.xlane.f32.xlu0 %v3196
        %v3261 = vpop.xlane.xlu0 %3260
        %3262 = vadd.xlane.f32.xlu0 %v3198
        %v3263 = vpop.xlane.xlu0 %3262
        %3264 = vadd.xlane.f32.xlu0 %v3200
        %v3265 = vpop.xlane.xlu0 %3264
        %3266 = vadd.xlane.f32.xlu0 %v3202
        %v3267 = vpop.xlane.xlu0 %3266
        %3268 = vadd.xlane.f32.xlu0 %v3204
        %v3269 = vpop.xlane.xlu0 %3268
        %3270 = vadd.xlane.f32.xlu0 %v3206
        %v3271 = vpop.xlane.xlu0 %3270
        %3272 = vadd.xlane.f32.xlu0 %v3208
        %v3273 = vpop.xlane.xlu0 %3272
        %3274 = vadd.xlane.f32.xlu0 %v3210
        %v3275 = vpop.xlane.xlu0 %3274
        %3276 = vadd.xlane.f32.xlu0 %v3212
        %v3277 = vpop.xlane.xlu0 %3276
        %3278 = vadd.xlane.f32.xlu0 %v3214
        %v3279 = vpop.xlane.xlu0 %3278
        %3280 = vadd.xlane.f32.xlu0 %v3216
        %v3281 = vpop.xlane.xlu0 %3280
        %3282 = vadd.xlane.f32.xlu0 %v3218
        %v3283 = vpop.xlane.xlu0 %3282
        %3284 = vadd.xlane.f32.xlu0 %v3220
        %v3285 = vpop.xlane.xlu0 %3284
        %v3286 = vadd.f32 %v3238, %v3255
        %v3287 = vadd.f32 %v3239, %v3257
        %v3288 = vadd.f32 %v3240, %v3259
        %v3289 = vadd.f32 %v3241, %v3261
        %v3290 = vadd.f32 %v3242, %v3263
        %v3291 = vadd.f32 %v3243, %v3265
        %v3292 = vadd.f32 %v3244, %v3267
        %v3293 = vadd.f32 %v3245, %v3269
        %v3294 = vadd.f32 %v3246, %v3271
        %v3295 = vadd.f32 %v3247, %v3273
        %v3296 = vadd.f32 %v3248, %v3275
        %v3297 = vadd.f32 %v3249, %v3277
        %v3298 = vadd.f32 %v3250, %v3279
        %v3299 = vadd.f32 %v3251, %v3281
        %v3300 = vadd.f32 %v3252, %v3283
        %v3301 = vadd.f32 %v3253, %v3285
        %3302 = vst.msk [vmem:[%s3221] sm:$0xff] %vm2204, %v3286
        %3303 = vst.msk [vmem:[%s3221 + $0x8] sm:$0xff] %vm2204, %v3287
        %3304 = vst.msk [vmem:[%s3221 + $0x10] sm:$0xff] %vm2204, %v3288
        %3305 = vst.msk [vmem:[%s3221 + $0x18] sm:$0xff] %vm2204, %v3289
        %3306 = vst.msk [vmem:[%s3221 + $0x20] sm:$0xff] %vm2204, %v3290
        %3307 = vst.msk [vmem:[%s3221 + $0x28] sm:$0xff] %vm2204, %v3291
        %3308 = vst.msk [vmem:[%s3221 + $0x30] sm:$0xff] %vm2204, %v3292
        %3309 = vst.msk [vmem:[%s3221 + $0x38] sm:$0xff] %vm2204, %v3293
        %3310 = vst.msk [vmem:[%s3221 + $0x40] sm:$0xff] %vm2204, %v3294
        %3311 = vst.msk [vmem:[%s3221 + $0x48] sm:$0xff] %vm2204, %v3295
        %3312 = vst.msk [vmem:[%s3221 + $0x50] sm:$0xff] %vm2204, %v3296
        %3313 = vst.msk [vmem:[%s3221 + $0x58] sm:$0xff] %vm2204, %v3297
        %3314 = vst.msk [vmem:[%s3221 + $0x60] sm:$0xff] %vm2204, %v3298
        %3315 = vst.msk [vmem:[%s3221 + $0x68] sm:$0xff] %vm2204, %v3299
        %3316 = vst.msk [vmem:[%s3221 + $0x70] sm:$0xff] %vm2204, %v3300
        %3317 = vst.msk [vmem:[%s3221 + $0x78] sm:$0xff] %vm2204, %v3301
        %s3318 = scalar_lea.vmem [#allocation5], 128
        %v3319 = vld [vmem:[%s3318] sm:$0xff]
        %v3320 = vld [vmem:[%s3318 + $0x8] sm:$0xff]
        %v3321 = vld [vmem:[%s3318 + $0x10] sm:$0xff]
        %v3322 = vld [vmem:[%s3318 + $0x18] sm:$0xff]
        %v3323 = vld [vmem:[%s3318 + $0x20] sm:$0xff]
        %v3324 = vld [vmem:[%s3318 + $0x28] sm:$0xff]
        %v3325 = vld [vmem:[%s3318 + $0x30] sm:$0xff]
        %v3326 = vld [vmem:[%s3318 + $0x38] sm:$0xff]
        %v3327 = vld [vmem:[%s3318 + $0x40] sm:$0xff]
        %v3328 = vld [vmem:[%s3318 + $0x48] sm:$0xff]
        %v3329 = vld [vmem:[%s3318 + $0x50] sm:$0xff]
        %v3330 = vld [vmem:[%s3318 + $0x58] sm:$0xff]
        %v3331 = vld [vmem:[%s3318 + $0x60] sm:$0xff]
        %v3332 = vld [vmem:[%s3318 + $0x68] sm:$0xff]
        %v3333 = vld [vmem:[%s3318 + $0x70] sm:$0xff]
        %v3334 = vld [vmem:[%s3318 + $0x78] sm:$0xff]
        %3336 = vset.pattern.permute.xlu0 0
        %3337 = vperm.xlu0 %3336, %v3062
        %v3338 = vpop.permute.xlu0 %3337
        %3341 = vset.pattern.permute.xlu0 0
        %3342 = vperm.xlu0 %3341, %v3064
        %v3343 = vpop.permute.xlu0 %3342
        %3346 = vset.pattern.permute.xlu0 0
        %3347 = vperm.xlu0 %3346, %v3066
        %v3348 = vpop.permute.xlu0 %3347
        %3351 = vset.pattern.permute.xlu0 0
        %3352 = vperm.xlu0 %3351, %v3068
        %v3353 = vpop.permute.xlu0 %3352
        %3356 = vset.pattern.permute.xlu0 0
        %3357 = vperm.xlu0 %3356, %v3070
        %v3358 = vpop.permute.xlu0 %3357
        %3361 = vset.pattern.permute.xlu0 0
        %3362 = vperm.xlu0 %3361, %v3072
        %v3363 = vpop.permute.xlu0 %3362
        %3366 = vset.pattern.permute.xlu0 0
        %3367 = vperm.xlu0 %3366, %v3074
        %v3368 = vpop.permute.xlu0 %3367
        %3371 = vset.pattern.permute.xlu0 0
        %3372 = vperm.xlu0 %3371, %v3076
        %v3373 = vpop.permute.xlu0 %3372
        %3376 = vset.pattern.permute.xlu0 0
        %3377 = vperm.xlu0 %3376, %v3078
        %v3378 = vpop.permute.xlu0 %3377
        %3381 = vset.pattern.permute.xlu0 0
        %3382 = vperm.xlu0 %3381, %v3080
        %v3383 = vpop.permute.xlu0 %3382
        %3386 = vset.pattern.permute.xlu0 0
        %3387 = vperm.xlu0 %3386, %v3082
        %v3388 = vpop.permute.xlu0 %3387
        %3391 = vset.pattern.permute.xlu0 0
        %3392 = vperm.xlu0 %3391, %v3084
        %v3393 = vpop.permute.xlu0 %3392
        %3396 = vset.pattern.permute.xlu0 0
        %3397 = vperm.xlu0 %3396, %v3086
        %v3398 = vpop.permute.xlu0 %3397
        %3401 = vset.pattern.permute.xlu0 0
        %3402 = vperm.xlu0 %3401, %v3088
        %v3403 = vpop.permute.xlu0 %3402
        %3406 = vset.pattern.permute.xlu0 0
        %3407 = vperm.xlu0 %3406, %v3090
        %v3408 = vpop.permute.xlu0 %3407
        %3411 = vset.pattern.permute.xlu0 0
        %3412 = vperm.xlu0 %3411, %v3092
        %v3413 = vpop.permute.xlu0 %3412
        %v3415 = vmul.f32 %v3338, %v3319
        %v3416 = vmul.f32 %v3343, %v3320
        %v3417 = vmul.f32 %v3348, %v3321
        %v3418 = vmul.f32 %v3353, %v3322
        %v3419 = vmul.f32 %v3358, %v3323
        %v3420 = vmul.f32 %v3363, %v3324
        %v3421 = vmul.f32 %v3368, %v3325
        %v3422 = vmul.f32 %v3373, %v3326
        %v3423 = vmul.f32 %v3378, %v3327
        %v3424 = vmul.f32 %v3383, %v3328
        %v3425 = vmul.f32 %v3388, %v3329
        %v3426 = vmul.f32 %v3393, %v3330
        %v3427 = vmul.f32 %v3398, %v3331
        %v3428 = vmul.f32 %v3403, %v3332
        %v3429 = vmul.f32 %v3408, %v3333
        %v3430 = vmul.f32 %v3413, %v3334
        %v3431 = vpack.c.bf16 %v3192, %v3190
        %v3432 = vpack.c.bf16 %v3196, %v3194
        %v3433 = vpack.c.bf16 %v3200, %v3198
        %v3434 = vpack.c.bf16 %v3204, %v3202
        %v3435 = vpack.c.bf16 %v3208, %v3206
        %v3436 = vpack.c.bf16 %v3212, %v3210
        %v3437 = vpack.c.bf16 %v3216, %v3214
        %v3438 = vpack.c.bf16 %v3220, %v3218
        %3439 = vmatprep.subr.bf16.mxu0 0
        %3440 = vmatpush1.bf16.msra.mxu0 %v2818
        %3441 = vmatprep.subr.bf16.mxu0 0
        %3442 = vmatpush1.bf16.msra.mxu0 %v2819
        %3443 = vmatprep.subr.bf16.mxu0 0
        %3444 = vmatpush1.bf16.msra.mxu0 %v2820
        %3445 = vmatprep.subr.bf16.mxu0 0
        %3446 = vmatpush1.bf16.msra.mxu0 %v2821
        %3447 = vmatprep.subr.bf16.mxu0 0
        %3448 = vmatpush1.bf16.msra.mxu0 %v2822
        %3449 = vmatprep.subr.bf16.mxu0 0
        %3450 = vmatpush1.bf16.msra.mxu0 %v2823
        %3451 = vmatprep.subr.bf16.mxu0 0
        %3452 = vmatpush1.bf16.msra.mxu0 %v2824
        %3453 = vmatprep.subr.bf16.mxu0 0
        %3454 = vmatpush1.bf16.msra.mxu0 %v2825
        %3455 = vmatprep.subr.bf16.mxu0 0
        %3456 = vmatpush1.bf16.msra.mxu0 0
        %3457 = vmatprep.subr.bf16.mxu0 0
        %3458 = vmatpush1.bf16.msra.mxu0 0
        %3459 = vmatprep.subr.bf16.mxu0 0
        %3460 = vmatpush1.bf16.msra.mxu0 0
        %3461 = vmatprep.subr.bf16.mxu0 0
        %3462 = vmatpush1.bf16.msra.mxu0 0
        %3463 = vmatprep.subr.bf16.mxu0 0
        %3464 = vmatpush1.bf16.msra.mxu0 0
        %3465 = vmatprep.subr.bf16.mxu0 0
        %3466 = vmatpush1.bf16.msra.mxu0 0
        %3467 = vmatprep.subr.bf16.mxu0 0
        %3468 = vmatpush1.bf16.msra.mxu0 0
        %3469 = vmatprep.subr.bf16.mxu0 0
        %3470 = vmatpush1.bf16.msra.mxu0 0
        %3471 = vmatprep.mubr.bf16.mxu0 0
        %3472 = vmatmul.mubr.bf16.gmra.mrb[0].mxu0 %v3431
        %v3473 = vpop.f32.mrb[0].mxu0
        %v3474 = vadd.f32 0.0, %v3473
        %v3475 = vpop.f32.mrb[0].mxu0
        %v3476 = vpop.f32.mrb[0].mxu0
        %v3477 = vadd.f32 0.0, %v3476
        %v3478 = vpop.f32.mrb[0].mxu0
        %3479 = vmatprep.mubr.bf16.mxu0 0
        %3480 = vmatmul.mubr.bf16.gmra.mrb[0].mxu0 %v3432
        %v3481 = vpop.f32.mrb[0].mxu0
        %v3482 = vadd.f32 0.0, %v3481
        %v3483 = vpop.f32.mrb[0].mxu0
        %v3484 = vpop.f32.mrb[0].mxu0
        %v3485 = vadd.f32 0.0, %v3484
        %v3486 = vpop.f32.mrb[0].mxu0
        %3487 = vmatprep.mubr.bf16.mxu0 0
        %3488 = vmatmul.mubr.bf16.gmra.mrb[0].mxu0 %v3433
        %v3489 = vpop.f32.mrb[0].mxu0
        %v3490 = vadd.f32 0.0, %v3489
        %v3491 = vpop.f32.mrb[0].mxu0
        %v3492 = vpop.f32.mrb[0].mxu0
        %v3493 = vadd.f32 0.0, %v3492
        %v3494 = vpop.f32.mrb[0].mxu0
        %3495 = vmatprep.mubr.bf16.mxu0 0
        %3496 = vmatmul.mubr.bf16.gmra.mrb[0].mxu0 %v3434
        %v3497 = vpop.f32.mrb[0].mxu0
        %v3498 = vadd.f32 0.0, %v3497
        %v3499 = vpop.f32.mrb[0].mxu0
        %v3500 = vpop.f32.mrb[0].mxu0
        %v3501 = vadd.f32 0.0, %v3500
        %v3502 = vpop.f32.mrb[0].mxu0
        %3503 = vmatprep.mubr.bf16.mxu0 0
        %3504 = vmatmul.mubr.bf16.gmra.mrb[0].mxu0 %v3435
        %v3505 = vpop.f32.mrb[0].mxu0
        %v3506 = vadd.f32 0.0, %v3505
        %v3507 = vpop.f32.mrb[0].mxu0
        %v3508 = vpop.f32.mrb[0].mxu0
        %v3509 = vadd.f32 0.0, %v3508
        %v3510 = vpop.f32.mrb[0].mxu0
        %3511 = vmatprep.mubr.bf16.mxu0 0
        %3512 = vmatmul.mubr.bf16.gmra.mrb[0].mxu0 %v3436
        %v3513 = vpop.f32.mrb[0].mxu0
        %v3514 = vadd.f32 0.0, %v3513
        %v3515 = vpop.f32.mrb[0].mxu0
        %v3516 = vpop.f32.mrb[0].mxu0
        %v3517 = vadd.f32 0.0, %v3516
        %v3518 = vpop.f32.mrb[0].mxu0
        %3519 = vmatprep.mubr.bf16.mxu0 0
        %3520 = vmatmul.mubr.bf16.gmra.mrb[0].mxu0 %v3437
        %v3521 = vpop.f32.mrb[0].mxu0
        %v3522 = vadd.f32 0.0, %v3521
        %v3523 = vpop.f32.mrb[0].mxu0
        %v3524 = vpop.f32.mrb[0].mxu0
        %v3525 = vadd.f32 0.0, %v3524
        %v3526 = vpop.f32.mrb[0].mxu0
        %3527 = vmatprep.mubr.bf16.mxu0 0
        %3528 = vmatmul.mubr.bf16.gmra.mrb[0].mxu0 %v3438
        %v3529 = vpop.f32.mrb[0].mxu0
        %v3530 = vadd.f32 0.0, %v3529
        %v3531 = vpop.f32.mrb[0].mxu0
        %v3532 = vpop.f32.mrb[0].mxu0
        %v3533 = vadd.f32 0.0, %v3532
        %v3534 = vpop.f32.mrb[0].mxu0
        %3535 = vdwg.mxu0
        %v3536 = vadd.f32 %v3415, %v3474
        %v3537 = vadd.f32 %v3416, %v3477
        %v3538 = vadd.f32 %v3417, %v3482
        %v3539 = vadd.f32 %v3418, %v3485
        %v3540 = vadd.f32 %v3419, %v3490
        %v3541 = vadd.f32 %v3420, %v3493
        %v3542 = vadd.f32 %v3421, %v3498
        %v3543 = vadd.f32 %v3422, %v3501
        %v3544 = vadd.f32 %v3423, %v3506
        %v3545 = vadd.f32 %v3424, %v3509
        %v3546 = vadd.f32 %v3425, %v3514
        %v3547 = vadd.f32 %v3426, %v3517
        %v3548 = vadd.f32 %v3427, %v3522
        %v3549 = vadd.f32 %v3428, %v3525
        %v3550 = vadd.f32 %v3429, %v3530
        %v3551 = vadd.f32 %v3430, %v3533
        %3552 = vst.msk [vmem:[%s3318] sm:$0xff] %vm1738, %v3536
        %3553 = vst.msk [vmem:[%s3318 + $0x8] sm:$0xff] %vm1738, %v3537
        %3554 = vst.msk [vmem:[%s3318 + $0x10] sm:$0xff] %vm1738, %v3538
        %3555 = vst.msk [vmem:[%s3318 + $0x18] sm:$0xff] %vm1738, %v3539
        %3556 = vst.msk [vmem:[%s3318 + $0x20] sm:$0xff] %vm1738, %v3540
        %3557 = vst.msk [vmem:[%s3318 + $0x28] sm:$0xff] %vm1738, %v3541
        %3558 = vst.msk [vmem:[%s3318 + $0x30] sm:$0xff] %vm1738, %v3542
        %3559 = vst.msk [vmem:[%s3318 + $0x38] sm:$0xff] %vm1738, %v3543
        %3560 = vst.msk [vmem:[%s3318 + $0x40] sm:$0xff] %vm1738, %v3544
        %3561 = vst.msk [vmem:[%s3318 + $0x48] sm:$0xff] %vm1738, %v3545
        %3562 = vst.msk [vmem:[%s3318 + $0x50] sm:$0xff] %vm1738, %v3546
        %3563 = vst.msk [vmem:[%s3318 + $0x58] sm:$0xff] %vm1738, %v3547
        %3564 = vst.msk [vmem:[%s3318 + $0x60] sm:$0xff] %vm1738, %v3548
        %3565 = vst.msk [vmem:[%s3318 + $0x68] sm:$0xff] %vm1738, %v3549
        %3566 = vst.msk [vmem:[%s3318 + $0x70] sm:$0xff] %vm1738, %v3550
        %3567 = vst.msk [vmem:[%s3318 + $0x78] sm:$0xff] %vm1738, %v3551
        %3568 = vst.msk [vmem:[%s2980] sm:$0xff] %vm2204, %v3029
        %3569 = vst.msk [vmem:[%s2980 + $0x8] sm:$0xff] %vm2204, %v3030
        %3570 = vst.msk [vmem:[%s2980 + $0x10] sm:$0xff] %vm2204, %v3031
        %3571 = vst.msk [vmem:[%s2980 + $0x18] sm:$0xff] %vm2204, %v3032
        %3572 = vst.msk [vmem:[%s2980 + $0x20] sm:$0xff] %vm2204, %v3033
        %3573 = vst.msk [vmem:[%s2980 + $0x28] sm:$0xff] %vm2204, %v3034
        %3574 = vst.msk [vmem:[%s2980 + $0x30] sm:$0xff] %vm2204, %v3035
        %3575 = vst.msk [vmem:[%s2980 + $0x38] sm:$0xff] %vm2204, %v3036
        %3576 = vst.msk [vmem:[%s2980 + $0x40] sm:$0xff] %vm2204, %v3037
        %3577 = vst.msk [vmem:[%s2980 + $0x48] sm:$0xff] %vm2204, %v3038
        %3578 = vst.msk [vmem:[%s2980 + $0x50] sm:$0xff] %vm2204, %v3039
        %3579 = vst.msk [vmem:[%s2980 + $0x58] sm:$0xff] %vm2204, %v3040
        %3580 = vst.msk [vmem:[%s2980 + $0x60] sm:$0xff] %vm2204, %v3041
        %3581 = vst.msk [vmem:[%s2980 + $0x68] sm:$0xff] %vm2204, %v3042
        %3582 = vst.msk [vmem:[%s2980 + $0x70] sm:$0xff] %vm2204, %v3043
        %3583 = vst.msk [vmem:[%s2980 + $0x78] sm:$0xff] %vm2204, %v3044
        %s3584 = scalar_lea.vmem %s3, 128
        %v3585 = vld [vmem:[%s3584] sm:$0xf]
        %v3586 = vld [vmem:[%s3584 + $0x4] sm:$0xf]
        %v3587 = vld [vmem:[%s3584 + $0x8] sm:$0xf]
        %v3588 = vld [vmem:[%s3584 + $0xc] sm:$0xf]
        %v3589 = vld [vmem:[%s3584 + $0x10] sm:$0xf]
        %v3590 = vld [vmem:[%s3584 + $0x14] sm:$0xf]
        %v3591 = vld [vmem:[%s3584 + $0x18] sm:$0xf]
        %v3592 = vld [vmem:[%s3584 + $0x1c] sm:$0xf]
        %v3593 = vld [vmem:[%s3584 + $0x20] sm:$0xf]
        %v3594 = vld [vmem:[%s3584 + $0x24] sm:$0xf]
        %v3595 = vld [vmem:[%s3584 + $0x28] sm:$0xf]
        %v3596 = vld [vmem:[%s3584 + $0x2c] sm:$0xf]
        %v3597 = vld [vmem:[%s3584 + $0x30] sm:$0xf]
        %v3598 = vld [vmem:[%s3584 + $0x34] sm:$0xf]
        %v3599 = vld [vmem:[%s3584 + $0x38] sm:$0xf]
        %v3600 = vld [vmem:[%s3584 + $0x3c] sm:$0xf]
        %v3617 = vunpack.c.l.b16 %v3585
        %v3618 = vunpack.c.l.b16 %v3586
        %v3619 = vunpack.c.l.b16 %v3587
        %v3620 = vunpack.c.l.b16 %v3588
        %v3621 = vunpack.c.l.b16 %v3589
        %v3622 = vunpack.c.l.b16 %v3590
        %v3623 = vunpack.c.l.b16 %v3591
        %v3624 = vunpack.c.l.b16 %v3592
        %v3625 = vunpack.c.l.b16 %v3593
        %v3626 = vunpack.c.l.b16 %v3594
        %v3627 = vunpack.c.l.b16 %v3595
        %v3628 = vunpack.c.l.b16 %v3596
        %v3629 = vunpack.c.l.b16 %v3597
        %v3630 = vunpack.c.l.b16 %v3598
        %v3631 = vunpack.c.l.b16 %v3599
        %v3632 = vunpack.c.l.b16 %v3600
        %v3633 = vpack.c.b16 %v3618, %v3617
        %v3634 = vpack.c.b16 %v3620, %v3619
        %v3635 = vpack.c.b16 %v3622, %v3621
        %v3636 = vpack.c.b16 %v3624, %v3623
        %v3637 = vpack.c.b16 %v3626, %v3625
        %v3638 = vpack.c.b16 %v3628, %v3627
        %v3639 = vpack.c.b16 %v3630, %v3629
        %v3640 = vpack.c.b16 %v3632, %v3631
        %3649 = vmatprep.subr.bf16.mxu0 0
        %3650 = vmatpush1.bf16.msra.mxu0 %v3633
        %3651 = vmatprep.subr.bf16.mxu0 0
        %3652 = vmatpush1.bf16.msra.mxu0 %v3634
        %3653 = vmatprep.subr.bf16.mxu0 0
        %3654 = vmatpush1.bf16.msra.mxu0 %v3635
        %3655 = vmatprep.subr.bf16.mxu0 0
        %3656 = vmatpush1.bf16.msra.mxu0 %v3636
        %3657 = vmatprep.subr.bf16.mxu0 0
        %3658 = vmatpush1.bf16.msra.mxu0 %v3637
        %3659 = vmatprep.subr.bf16.mxu0 0
        %3660 = vmatpush1.bf16.msra.mxu0 %v3638
        %3661 = vmatprep.subr.bf16.mxu0 0
        %3662 = vmatpush1.bf16.msra.mxu0 %v3639
        %3663 = vmatprep.subr.bf16.mxu0 0
        %3664 = vmatpush1.bf16.msra.mxu0 %v3640
        %3665 = vmatprep.subr.bf16.mxu0 0
        %3666 = vmatpush1.bf16.msra.mxu0 0
        %3667 = vmatprep.subr.bf16.mxu0 0
        %3668 = vmatpush1.bf16.msra.mxu0 0
        %3669 = vmatprep.subr.bf16.mxu0 0
        %3670 = vmatpush1.bf16.msra.mxu0 0
        %3671 = vmatprep.subr.bf16.mxu0 0
        %3672 = vmatpush1.bf16.msra.mxu0 0
        %3673 = vmatprep.subr.bf16.mxu0 0
        %3674 = vmatpush1.bf16.msra.mxu0 0
        %3675 = vmatprep.subr.bf16.mxu0 0
        %3676 = vmatpush1.bf16.msra.mxu0 0
        %3677 = vmatprep.subr.bf16.mxu0 0
        %3678 = vmatpush1.bf16.msra.mxu0 0
        %3679 = vmatprep.subr.bf16.mxu0 0
        %3680 = vmatpush1.bf16.msra.mxu0 0
        %3681 = vmatprep.mubr.bf16.mxu0 0
        %3682 = vmatmul.mubr.bf16.gmra.mrb[0].mxu0 %v1392
        %v3683 = vpop.f32.mrb[0].mxu0
        %v3684 = vadd.f32 0.0, %v3683
        %v3685 = vpop.f32.mrb[0].mxu0
        %v3686 = vpop.f32.mrb[0].mxu0
        %v3687 = vadd.f32 0.0, %v3686
        %v3688 = vpop.f32.mrb[0].mxu0
        %3689 = vmatprep.mubr.bf16.mxu0 0
        %3690 = vmatmul.mubr.bf16.gmra.mrb[0].mxu0 %v1393
        %v3691 = vpop.f32.mrb[0].mxu0
        %v3692 = vadd.f32 0.0, %v3691
        %v3693 = vpop.f32.mrb[0].mxu0
        %v3694 = vpop.f32.mrb[0].mxu0
        %v3695 = vadd.f32 0.0, %v3694
        %v3696 = vpop.f32.mrb[0].mxu0
        %3697 = vmatprep.mubr.bf16.mxu0 0
        %3698 = vmatmul.mubr.bf16.gmra.mrb[0].mxu0 %v1394
        %v3699 = vpop.f32.mrb[0].mxu0
        %v3700 = vadd.f32 0.0, %v3699
        %v3701 = vpop.f32.mrb[0].mxu0
        %v3702 = vpop.f32.mrb[0].mxu0
        %v3703 = vadd.f32 0.0, %v3702
        %v3704 = vpop.f32.mrb[0].mxu0
        %3705 = vmatprep.mubr.bf16.mxu0 0
        %3706 = vmatmul.mubr.bf16.gmra.mrb[0].mxu0 %v1395
        %v3707 = vpop.f32.mrb[0].mxu0
        %v3708 = vadd.f32 0.0, %v3707
        %v3709 = vpop.f32.mrb[0].mxu0
        %v3710 = vpop.f32.mrb[0].mxu0
        %v3711 = vadd.f32 0.0, %v3710
        %v3712 = vpop.f32.mrb[0].mxu0
        %3713 = vmatprep.mubr.bf16.mxu0 0
        %3714 = vmatmul.mubr.bf16.gmra.mrb[0].mxu0 %v1396
        %v3715 = vpop.f32.mrb[0].mxu0
        %v3716 = vadd.f32 0.0, %v3715
        %v3717 = vpop.f32.mrb[0].mxu0
        %v3718 = vpop.f32.mrb[0].mxu0
        %v3719 = vadd.f32 0.0, %v3718
        %v3720 = vpop.f32.mrb[0].mxu0
        %3721 = vmatprep.mubr.bf16.mxu0 0
        %3722 = vmatmul.mubr.bf16.gmra.mrb[0].mxu0 %v1397
        %v3723 = vpop.f32.mrb[0].mxu0
        %v3724 = vadd.f32 0.0, %v3723
        %v3725 = vpop.f32.mrb[0].mxu0
        %v3726 = vpop.f32.mrb[0].mxu0
        %v3727 = vadd.f32 0.0, %v3726
        %v3728 = vpop.f32.mrb[0].mxu0
        %3729 = vmatprep.mubr.bf16.mxu0 0
        %3730 = vmatmul.mubr.bf16.gmra.mrb[0].mxu0 %v1398
        %v3731 = vpop.f32.mrb[0].mxu0
        %v3732 = vadd.f32 0.0, %v3731
        %v3733 = vpop.f32.mrb[0].mxu0
        %v3734 = vpop.f32.mrb[0].mxu0
        %v3735 = vadd.f32 0.0, %v3734
        %v3736 = vpop.f32.mrb[0].mxu0
        %3737 = vmatprep.mubr.bf16.mxu0 0
        %3738 = vmatmul.mubr.bf16.gmra.mrb[0].mxu0 %v1399
        %v3739 = vpop.f32.mrb[0].mxu0
        %v3740 = vadd.f32 0.0, %v3739
        %v3741 = vpop.f32.mrb[0].mxu0
        %v3742 = vpop.f32.mrb[0].mxu0
        %v3743 = vadd.f32 0.0, %v3742
        %v3744 = vpop.f32.mrb[0].mxu0
        %3745 = vdwg.mxu0
        %v3746 = vpack.c.bf16 %v3687, %v3684
        %v3747 = vpack.c.bf16 %v3695, %v3692
        %v3748 = vpack.c.bf16 %v3703, %v3700
        %v3749 = vpack.c.bf16 %v3711, %v3708
        %v3750 = vpack.c.bf16 %v3719, %v3716
        %v3751 = vpack.c.bf16 %v3727, %v3724
        %v3752 = vpack.c.bf16 %v3735, %v3732
        %v3753 = vpack.c.bf16 %v3743, %v3740
        %s3754 = scalar_lea.vmem %s4, 128
        %v3755 = vld [vmem:[%s3754] sm:$0xf]
        %v3756 = vld [vmem:[%s3754 + $0x4] sm:$0xf]
        %v3757 = vld [vmem:[%s3754 + $0x8] sm:$0xf]
        %v3758 = vld [vmem:[%s3754 + $0xc] sm:$0xf]
        %v3759 = vld [vmem:[%s3754 + $0x10] sm:$0xf]
        %v3760 = vld [vmem:[%s3754 + $0x14] sm:$0xf]
        %v3761 = vld [vmem:[%s3754 + $0x18] sm:$0xf]
        %v3762 = vld [vmem:[%s3754 + $0x1c] sm:$0xf]
        %v3763 = vld [vmem:[%s3754 + $0x20] sm:$0xf]
        %v3764 = vld [vmem:[%s3754 + $0x24] sm:$0xf]
        %v3765 = vld [vmem:[%s3754 + $0x28] sm:$0xf]
        %v3766 = vld [vmem:[%s3754 + $0x2c] sm:$0xf]
        %v3767 = vld [vmem:[%s3754 + $0x30] sm:$0xf]
        %v3768 = vld [vmem:[%s3754 + $0x34] sm:$0xf]
        %v3769 = vld [vmem:[%s3754 + $0x38] sm:$0xf]
        %v3770 = vld [vmem:[%s3754 + $0x3c] sm:$0xf]
        %v3787 = vunpack.c.l.b16 %v3755
        %v3788 = vunpack.c.l.b16 %v3756
        %v3789 = vunpack.c.l.b16 %v3757
        %v3790 = vunpack.c.l.b16 %v3758
        %v3791 = vunpack.c.l.b16 %v3759
        %v3792 = vunpack.c.l.b16 %v3760
        %v3793 = vunpack.c.l.b16 %v3761
        %v3794 = vunpack.c.l.b16 %v3762
        %v3795 = vunpack.c.l.b16 %v3763
        %v3796 = vunpack.c.l.b16 %v3764
        %v3797 = vunpack.c.l.b16 %v3765
        %v3798 = vunpack.c.l.b16 %v3766
        %v3799 = vunpack.c.l.b16 %v3767
        %v3800 = vunpack.c.l.b16 %v3768
        %v3801 = vunpack.c.l.b16 %v3769
        %v3802 = vunpack.c.l.b16 %v3770
        %v3803 = vpack.c.b16 %v3788, %v3787
        %v3804 = vpack.c.b16 %v3790, %v3789
        %v3805 = vpack.c.b16 %v3792, %v3791
        %v3806 = vpack.c.b16 %v3794, %v3793
        %v3807 = vpack.c.b16 %v3796, %v3795
        %v3808 = vpack.c.b16 %v3798, %v3797
        %v3809 = vpack.c.b16 %v3800, %v3799
        %v3810 = vpack.c.b16 %v3802, %v3801
        %3819 = vmatprep.subr.bf16.mxu0 0
        %3820 = vmatpush1.bf16.msra.mxu0 %v3803
        %3821 = vmatprep.subr.bf16.mxu0 0
        %3822 = vmatpush1.bf16.msra.mxu0 %v3804
        %3823 = vmatprep.subr.bf16.mxu0 0
        %3824 = vmatpush1.bf16.msra.mxu0 %v3805
        %3825 = vmatprep.subr.bf16.mxu0 0
        %3826 = vmatpush1.bf16.msra.mxu0 %v3806
        %3827 = vmatprep.subr.bf16.mxu0 0
        %3828 = vmatpush1.bf16.msra.mxu0 %v3807
        %3829 = vmatprep.subr.bf16.mxu0 0
        %3830 = vmatpush1.bf16.msra.mxu0 %v3808
        %3831 = vmatprep.subr.bf16.mxu0 0
        %3832 = vmatpush1.bf16.msra.mxu0 %v3809
        %3833 = vmatprep.subr.bf16.mxu0 0
        %3834 = vmatpush1.bf16.msra.mxu0 %v3810
        %3835 = vmatprep.subr.bf16.mxu0 0
        %3836 = vmatpush1.bf16.msra.mxu0 0
        %3837 = vmatprep.subr.bf16.mxu0 0
        %3838 = vmatpush1.bf16.msra.mxu0 0
        %3839 = vmatprep.subr.bf16.mxu0 0
        %3840 = vmatpush1.bf16.msra.mxu0 0
        %3841 = vmatprep.subr.bf16.mxu0 0
        %3842 = vmatpush1.bf16.msra.mxu0 0
        %3843 = vmatprep.subr.bf16.mxu0 0
        %3844 = vmatpush1.bf16.msra.mxu0 0
        %3845 = vmatprep.subr.bf16.mxu0 0
        %3846 = vmatpush1.bf16.msra.mxu0 0
        %3847 = vmatprep.subr.bf16.mxu0 0
        %3848 = vmatpush1.bf16.msra.mxu0 0
        %3849 = vmatprep.subr.bf16.mxu0 0
        %3850 = vmatpush1.bf16.msra.mxu0 0
        %3851 = vmatprep.mubr.bf16.mxu0 0
        %3852 = vmatmul.mubr.bf16.gmra.mrb[0].mxu0 %v1392
        %v3853 = vpop.f32.mrb[0].mxu0
        %v3854 = vadd.f32 0.0, %v3853
        %v3855 = vpop.f32.mrb[0].mxu0
        %v3856 = vpop.f32.mrb[0].mxu0
        %v3857 = vadd.f32 0.0, %v3856
        %v3858 = vpop.f32.mrb[0].mxu0
        %3859 = vmatprep.mubr.bf16.mxu0 0
        %3860 = vmatmul.mubr.bf16.gmra.mrb[0].mxu0 %v1393
        %v3861 = vpop.f32.mrb[0].mxu0
        %v3862 = vadd.f32 0.0, %v3861
        %v3863 = vpop.f32.mrb[0].mxu0
        %v3864 = vpop.f32.mrb[0].mxu0
        %v3865 = vadd.f32 0.0, %v3864
        %v3866 = vpop.f32.mrb[0].mxu0
        %3867 = vmatprep.mubr.bf16.mxu0 0
        %3868 = vmatmul.mubr.bf16.gmra.mrb[0].mxu0 %v1394
        %v3869 = vpop.f32.mrb[0].mxu0
        %v3870 = vadd.f32 0.0, %v3869
        %v3871 = vpop.f32.mrb[0].mxu0
        %v3872 = vpop.f32.mrb[0].mxu0
        %v3873 = vadd.f32 0.0, %v3872
        %v3874 = vpop.f32.mrb[0].mxu0
        %3875 = vmatprep.mubr.bf16.mxu0 0
        %3876 = vmatmul.mubr.bf16.gmra.mrb[0].mxu0 %v1395
        %v3877 = vpop.f32.mrb[0].mxu0
        %v3878 = vadd.f32 0.0, %v3877
        %v3879 = vpop.f32.mrb[0].mxu0
        %v3880 = vpop.f32.mrb[0].mxu0
        %v3881 = vadd.f32 0.0, %v3880
        %v3882 = vpop.f32.mrb[0].mxu0
        %3883 = vmatprep.mubr.bf16.mxu0 0
        %3884 = vmatmul.mubr.bf16.gmra.mrb[0].mxu0 %v1396
        %v3885 = vpop.f32.mrb[0].mxu0
        %v3886 = vadd.f32 0.0, %v3885
        %v3887 = vpop.f32.mrb[0].mxu0
        %v3888 = vpop.f32.mrb[0].mxu0
        %v3889 = vadd.f32 0.0, %v3888
        %v3890 = vpop.f32.mrb[0].mxu0
        %3891 = vmatprep.mubr.bf16.mxu0 0
        %3892 = vmatmul.mubr.bf16.gmra.mrb[0].mxu0 %v1397
        %v3893 = vpop.f32.mrb[0].mxu0
        %v3894 = vadd.f32 0.0, %v3893
        %v3895 = vpop.f32.mrb[0].mxu0
        %v3896 = vpop.f32.mrb[0].mxu0
        %v3897 = vadd.f32 0.0, %v3896
        %v3898 = vpop.f32.mrb[0].mxu0
        %3899 = vmatprep.mubr.bf16.mxu0 0
        %3900 = vmatmul.mubr.bf16.gmra.mrb[0].mxu0 %v1398
        %v3901 = vpop.f32.mrb[0].mxu0
        %v3902 = vadd.f32 0.0, %v3901
        %v3903 = vpop.f32.mrb[0].mxu0
        %v3904 = vpop.f32.mrb[0].mxu0
        %v3905 = vadd.f32 0.0, %v3904
        %v3906 = vpop.f32.mrb[0].mxu0
        %3907 = vmatprep.mubr.bf16.mxu0 0
        %3908 = vmatmul.mubr.bf16.gmra.mrb[0].mxu0 %v1399
        %v3909 = vpop.f32.mrb[0].mxu0
        %v3910 = vadd.f32 0.0, %v3909
        %v3911 = vpop.f32.mrb[0].mxu0
        %v3912 = vpop.f32.mrb[0].mxu0
        %v3913 = vadd.f32 0.0, %v3912
        %v3914 = vpop.f32.mrb[0].mxu0
        %3915 = vdwg.mxu0
        %v3916 = vpack.c.bf16 %v3857, %v3854
        %v3917 = vpack.c.bf16 %v3865, %v3862
        %v3918 = vpack.c.bf16 %v3873, %v3870
        %v3919 = vpack.c.bf16 %v3881, %v3878
        %v3920 = vpack.c.bf16 %v3889, %v3886
        %v3921 = vpack.c.bf16 %v3897, %v3894
        %v3922 = vpack.c.bf16 %v3905, %v3902
        %v3923 = vpack.c.bf16 %v3913, %v3910
        %s3924 = scalar_lea.vmem [#allocation2], 128
        %v3925 = vld [vmem:[%s3924] sm:$0xff]
        %v3926 = vld [vmem:[%s3924 + $0x8] sm:$0xff]
        %v3927 = vld [vmem:[%s3924 + $0x10] sm:$0xff]
        %v3928 = vld [vmem:[%s3924 + $0x18] sm:$0xff]
        %v3929 = vld [vmem:[%s3924 + $0x20] sm:$0xff]
        %v3930 = vld [vmem:[%s3924 + $0x28] sm:$0xff]
        %v3931 = vld [vmem:[%s3924 + $0x30] sm:$0xff]
        %v3932 = vld [vmem:[%s3924 + $0x38] sm:$0xff]
        %v3934 = vsel %vm1738, %v3925, 0
        %v3937 = vsel %vm1738, %v3926, 0
        %v3940 = vsel %vm1738, %v3927, 0
        %v3943 = vsel %vm1738, %v3928, 0
        %v3946 = vsel %vm1738, %v3929, 0
        %v3949 = vsel %vm1738, %v3930, 0
        %v3952 = vsel %vm1738, %v3931, 0
        %v3955 = vsel %vm1738, %v3932, 0
        %v3958 = vsel %vm1738, %v3746, 0
        %v3961 = vsel %vm1738, %v3747, 0
        %v3964 = vsel %vm1738, %v3748, 0
        %v3967 = vsel %vm1738, %v3749, 0
        %v3970 = vsel %vm1738, %v3750, 0
        %v3973 = vsel %vm1738, %v3751, 0
        %v3976 = vsel %vm1738, %v3752, 0
        %v3979 = vsel %vm1738, %v3753, 0
        %3981 = vmatprep.subr.bf16.mxu0 0
        %3982 = vmatpush1.bf16.xpose.msra.mxu0 %v3958
        %3983 = vmatprep.subr.bf16.mxu0 0
        %3984 = vmatpush1.bf16.xpose.msra.mxu0 %v3961
        %3985 = vmatprep.subr.bf16.mxu0 0
        %3986 = vmatpush1.bf16.xpose.msra.mxu0 %v3964
        %3987 = vmatprep.subr.bf16.mxu0 0
        %3988 = vmatpush1.bf16.xpose.msra.mxu0 %v3967
        %3989 = vmatprep.subr.bf16.mxu0 0
        %3990 = vmatpush1.bf16.xpose.msra.mxu0 %v3970
        %3991 = vmatprep.subr.bf16.mxu0 0
        %3992 = vmatpush1.bf16.xpose.msra.mxu0 %v3973
        %3993 = vmatprep.subr.bf16.mxu0 0
        %3994 = vmatpush1.bf16.xpose.msra.mxu0 %v3976
        %3995 = vmatprep.subr.bf16.mxu0 0
        %3996 = vmatpush1.bf16.xpose.msra.mxu0 %v3979
        %3997 = vmatprep.subr.bf16.mxu0 0
        %3998 = vmatpush1.bf16.xpose.msra.mxu0 0
        %3999 = vmatprep.subr.bf16.mxu0 0
        %4000 = vmatpush1.bf16.xpose.msra.mxu0 0
        %4001 = vmatprep.subr.bf16.mxu0 0
        %4002 = vmatpush1.bf16.xpose.msra.mxu0 0
        %4003 = vmatprep.subr.bf16.mxu0 0
        %4004 = vmatpush1.bf16.xpose.msra.mxu0 0
        %4005 = vmatprep.subr.bf16.mxu0 0
        %4006 = vmatpush1.bf16.xpose.msra.mxu0 0
        %4007 = vmatprep.subr.bf16.mxu0 0
        %4008 = vmatpush1.bf16.xpose.msra.mxu0 0
        %4009 = vmatprep.subr.bf16.mxu0 0
        %4010 = vmatpush1.bf16.xpose.msra.mxu0 0
        %4011 = vmatprep.subr.bf16.mxu0 0
        %4012 = vmatpush1.bf16.xpose.msra.mxu0 0
        %4013 = vmatprep.mubr.bf16.mxu0 0
        %4014 = vmatmul.mubr.bf16.gmra.mrb[0].mxu0 %v3934
        %v4015 = vpop.f32.mrb[0].mxu0
        %v4016 = vadd.f32 0.0, %v4015
        %v4017 = vpop.f32.mrb[0].mxu0
        %v4018 = vpop.f32.mrb[0].mxu0
        %v4019 = vadd.f32 0.0, %v4018
        %v4020 = vpop.f32.mrb[0].mxu0
        %4021 = vmatprep.mubr.bf16.mxu0 0
        %4022 = vmatmul.mubr.bf16.gmra.mrb[0].mxu0 %v3937
        %v4023 = vpop.f32.mrb[0].mxu0
        %v4024 = vadd.f32 0.0, %v4023
        %v4025 = vpop.f32.mrb[0].mxu0
        %v4026 = vpop.f32.mrb[0].mxu0
        %v4027 = vadd.f32 0.0, %v4026
        %v4028 = vpop.f32.mrb[0].mxu0
        %4029 = vmatprep.mubr.bf16.mxu0 0
        %4030 = vmatmul.mubr.bf16.gmra.mrb[0].mxu0 %v3940
        %v4031 = vpop.f32.mrb[0].mxu0
        %v4032 = vadd.f32 0.0, %v4031
        %v4033 = vpop.f32.mrb[0].mxu0
        %v4034 = vpop.f32.mrb[0].mxu0
        %v4035 = vadd.f32 0.0, %v4034
        %v4036 = vpop.f32.mrb[0].mxu0
        %4037 = vmatprep.mubr.bf16.mxu0 0
        %4038 = vmatmul.mubr.bf16.gmra.mrb[0].mxu0 %v3943
        %v4039 = vpop.f32.mrb[0].mxu0
        %v4040 = vadd.f32 0.0, %v4039
        %v4041 = vpop.f32.mrb[0].mxu0
        %v4042 = vpop.f32.mrb[0].mxu0
        %v4043 = vadd.f32 0.0, %v4042
        %v4044 = vpop.f32.mrb[0].mxu0
        %4045 = vmatprep.mubr.bf16.mxu0 0
        %4046 = vmatmul.mubr.bf16.gmra.mrb[0].mxu0 %v3946
        %v4047 = vpop.f32.mrb[0].mxu0
        %v4048 = vadd.f32 0.0, %v4047
        %v4049 = vpop.f32.mrb[0].mxu0
        %v4050 = vpop.f32.mrb[0].mxu0
        %v4051 = vadd.f32 0.0, %v4050
        %v4052 = vpop.f32.mrb[0].mxu0
        %4053 = vmatprep.mubr.bf16.mxu0 0
        %4054 = vmatmul.mubr.bf16.gmra.mrb[0].mxu0 %v3949
        %v4055 = vpop.f32.mrb[0].mxu0
        %v4056 = vadd.f32 0.0, %v4055
        %v4057 = vpop.f32.mrb[0].mxu0
        %v4058 = vpop.f32.mrb[0].mxu0
        %v4059 = vadd.f32 0.0, %v4058
        %v4060 = vpop.f32.mrb[0].mxu0
        %4061 = vmatprep.mubr.bf16.mxu0 0
        %4062 = vmatmul.mubr.bf16.gmra.mrb[0].mxu0 %v3952
        %v4063 = vpop.f32.mrb[0].mxu0
        %v4064 = vadd.f32 0.0, %v4063
        %v4065 = vpop.f32.mrb[0].mxu0
        %v4066 = vpop.f32.mrb[0].mxu0
        %v4067 = vadd.f32 0.0, %v4066
        %v4068 = vpop.f32.mrb[0].mxu0
        %4069 = vmatprep.mubr.bf16.mxu0 0
        %4070 = vmatmul.mubr.bf16.gmra.mrb[0].mxu0 %v3955
        %v4071 = vpop.f32.mrb[0].mxu0
        %v4072 = vadd.f32 0.0, %v4071
        %v4073 = vpop.f32.mrb[0].mxu0
        %v4074 = vpop.f32.mrb[0].mxu0
        %v4075 = vadd.f32 0.0, %v4074
        %v4076 = vpop.f32.mrb[0].mxu0
        %4077 = vdwg.mxu0
        %s4078 = scalar_lea.vmem [#allocation3], 256
        %v4079 = vld [vmem:[%s4078] sm:$0xff]
        %v4080 = vld [vmem:[%s4078 + $0x8] sm:$0xff]
        %v4081 = vld [vmem:[%s4078 + $0x10] sm:$0xff]
        %v4082 = vld [vmem:[%s4078 + $0x18] sm:$0xff]
        %v4083 = vld [vmem:[%s4078 + $0x20] sm:$0xff]
        %v4084 = vld [vmem:[%s4078 + $0x28] sm:$0xff]
        %v4085 = vld [vmem:[%s4078 + $0x30] sm:$0xff]
        %v4086 = vld [vmem:[%s4078 + $0x38] sm:$0xff]
        %v4087 = vld [vmem:[%s4078 + $0x40] sm:$0xff]
        %v4088 = vld [vmem:[%s4078 + $0x48] sm:$0xff]
        %v4089 = vld [vmem:[%s4078 + $0x50] sm:$0xff]
        %v4090 = vld [vmem:[%s4078 + $0x58] sm:$0xff]
        %v4091 = vld [vmem:[%s4078 + $0x60] sm:$0xff]
        %v4092 = vld [vmem:[%s4078 + $0x68] sm:$0xff]
        %v4093 = vld [vmem:[%s4078 + $0x70] sm:$0xff]
        %v4094 = vld [vmem:[%s4078 + $0x78] sm:$0xff]
        %4095 = vmax.xlane.f32.xlu0 %v4016
        %v4096 = vpop.xlane.xlu0 %4095
        %4097 = vmax.xlane.f32.xlu0 %v4019
        %v4098 = vpop.xlane.xlu0 %4097
        %4099 = vmax.xlane.f32.xlu0 %v4024
        %v4100 = vpop.xlane.xlu0 %4099
        %4101 = vmax.xlane.f32.xlu0 %v4027
        %v4102 = vpop.xlane.xlu0 %4101
        %4103 = vmax.xlane.f32.xlu0 %v4032
        %v4104 = vpop.xlane.xlu0 %4103
        %4105 = vmax.xlane.f32.xlu0 %v4035
        %v4106 = vpop.xlane.xlu0 %4105
        %4107 = vmax.xlane.f32.xlu0 %v4040
        %v4108 = vpop.xlane.xlu0 %4107
        %4109 = vmax.xlane.f32.xlu0 %v4043
        %v4110 = vpop.xlane.xlu0 %4109
        %4111 = vmax.xlane.f32.xlu0 %v4048
        %v4112 = vpop.xlane.xlu0 %4111
        %4113 = vmax.xlane.f32.xlu0 %v4051
        %v4114 = vpop.xlane.xlu0 %4113
        %4115 = vmax.xlane.f32.xlu0 %v4056
        %v4116 = vpop.xlane.xlu0 %4115
        %4117 = vmax.xlane.f32.xlu0 %v4059
        %v4118 = vpop.xlane.xlu0 %4117
        %4119 = vmax.xlane.f32.xlu0 %v4064
        %v4120 = vpop.xlane.xlu0 %4119
        %4121 = vmax.xlane.f32.xlu0 %v4067
        %v4122 = vpop.xlane.xlu0 %4121
        %4123 = vmax.xlane.f32.xlu0 %v4072
        %v4124 = vpop.xlane.xlu0 %4123
        %4125 = vmax.xlane.f32.xlu0 %v4075
        %v4126 = vpop.xlane.xlu0 %4125
        %v4127 = vmax.f32 %v4079, %v4096
        %v4128 = vmax.f32 %v4080, %v4098
        %v4129 = vmax.f32 %v4081, %v4100
        %v4130 = vmax.f32 %v4082, %v4102
        %v4131 = vmax.f32 %v4083, %v4104
        %v4132 = vmax.f32 %v4084, %v4106
        %v4133 = vmax.f32 %v4085, %v4108
        %v4134 = vmax.f32 %v4086, %v4110
        %v4135 = vmax.f32 %v4087, %v4112
        %v4136 = vmax.f32 %v4088, %v4114
        %v4137 = vmax.f32 %v4089, %v4116
        %v4138 = vmax.f32 %v4090, %v4118
        %v4139 = vmax.f32 %v4091, %v4120
        %v4140 = vmax.f32 %v4092, %v4122
        %v4141 = vmax.f32 %v4093, %v4124
        %v4142 = vmax.f32 %v4094, %v4126
        %v4143 = vsub.f32 %v4079, %v4127
        %v4144 = vsub.f32 %v4080, %v4128
        %v4145 = vsub.f32 %v4081, %v4129
        %v4146 = vsub.f32 %v4082, %v4130
        %v4147 = vsub.f32 %v4083, %v4131
        %v4148 = vsub.f32 %v4084, %v4132
        %v4149 = vsub.f32 %v4085, %v4133
        %v4150 = vsub.f32 %v4086, %v4134
        %v4151 = vsub.f32 %v4087, %v4135
        %v4152 = vsub.f32 %v4088, %v4136
        %v4153 = vsub.f32 %v4089, %v4137
        %v4154 = vsub.f32 %v4090, %v4138
        %v4155 = vsub.f32 %v4091, %v4139
        %v4156 = vsub.f32 %v4092, %v4140
        %v4157 = vsub.f32 %v4093, %v4141
        %v4158 = vsub.f32 %v4094, %v4142
        %v4159 = vmul.f32 %v4143, 1.442695
        %v4160 = vpow.pop %v4159
        %v4161 = vmul.f32 %v4144, 1.442695
        %v4162 = vpow.pop %v4161
        %v4163 = vmul.f32 %v4145, 1.442695
        %v4164 = vpow.pop %v4163
        %v4165 = vmul.f32 %v4146, 1.442695
        %v4166 = vpow.pop %v4165
        %v4167 = vmul.f32 %v4147, 1.442695
        %v4168 = vpow.pop %v4167
        %v4169 = vmul.f32 %v4148, 1.442695
        %v4170 = vpow.pop %v4169
        %v4171 = vmul.f32 %v4149, 1.442695
        %v4172 = vpow.pop %v4171
        %v4173 = vmul.f32 %v4150, 1.442695
        %v4174 = vpow.pop %v4173
        %v4175 = vmul.f32 %v4151, 1.442695
        %v4176 = vpow.pop %v4175
        %v4177 = vmul.f32 %v4152, 1.442695
        %v4178 = vpow.pop %v4177
        %v4179 = vmul.f32 %v4153, 1.442695
        %v4180 = vpow.pop %v4179
        %v4181 = vmul.f32 %v4154, 1.442695
        %v4182 = vpow.pop %v4181
        %v4183 = vmul.f32 %v4155, 1.442695
        %v4184 = vpow.pop %v4183
        %v4185 = vmul.f32 %v4156, 1.442695
        %v4186 = vpow.pop %v4185
        %v4187 = vmul.f32 %v4157, 1.442695
        %v4188 = vpow.pop %v4187
        %v4189 = vmul.f32 %v4158, 1.442695
        %v4190 = vpow.pop %v4189
        %4192 = vset.pattern.permute.xlu0 0
        %4193 = vperm.xlu0 %4192, %v4127
        %v4194 = vpop.permute.xlu0 %4193
        %4197 = vset.pattern.permute.xlu0 0
        %4198 = vperm.xlu0 %4197, %v4128
        %v4199 = vpop.permute.xlu0 %4198
        %4202 = vset.pattern.permute.xlu0 0
        %4203 = vperm.xlu0 %4202, %v4129
        %v4204 = vpop.permute.xlu0 %4203
        %4207 = vset.pattern.permute.xlu0 0
        %4208 = vperm.xlu0 %4207, %v4130
        %v4209 = vpop.permute.xlu0 %4208
        %4212 = vset.pattern.permute.xlu0 0
        %4213 = vperm.xlu0 %4212, %v4131
        %v4214 = vpop.permute.xlu0 %4213
        %4217 = vset.pattern.permute.xlu0 0
        %4218 = vperm.xlu0 %4217, %v4132
        %v4219 = vpop.permute.xlu0 %4218
        %4222 = vset.pattern.permute.xlu0 0
        %4223 = vperm.xlu0 %4222, %v4133
        %v4224 = vpop.permute.xlu0 %4223
        %4227 = vset.pattern.permute.xlu0 0
        %4228 = vperm.xlu0 %4227, %v4134
        %v4229 = vpop.permute.xlu0 %4228
        %4232 = vset.pattern.permute.xlu0 0
        %4233 = vperm.xlu0 %4232, %v4135
        %v4234 = vpop.permute.xlu0 %4233
        %4237 = vset.pattern.permute.xlu0 0
        %4238 = vperm.xlu0 %4237, %v4136
        %v4239 = vpop.permute.xlu0 %4238
        %4242 = vset.pattern.permute.xlu0 0
        %4243 = vperm.xlu0 %4242, %v4137
        %v4244 = vpop.permute.xlu0 %4243
        %4247 = vset.pattern.permute.xlu0 0
        %4248 = vperm.xlu0 %4247, %v4138
        %v4249 = vpop.permute.xlu0 %4248
        %4252 = vset.pattern.permute.xlu0 0
        %4253 = vperm.xlu0 %4252, %v4139
        %v4254 = vpop.permute.xlu0 %4253
        %4257 = vset.pattern.permute.xlu0 0
        %4258 = vperm.xlu0 %4257, %v4140
        %v4259 = vpop.permute.xlu0 %4258
        %4262 = vset.pattern.permute.xlu0 0
        %4263 = vperm.xlu0 %4262, %v4141
        %v4264 = vpop.permute.xlu0 %4263
        %4267 = vset.pattern.permute.xlu0 0
        %4268 = vperm.xlu0 %4267, %v4142
        %v4269 = vpop.permute.xlu0 %4268
        %v4271 = vsub.f32 %v4016, %v4194
        %v4272 = vsub.f32 %v4019, %v4199
        %v4273 = vsub.f32 %v4024, %v4204
        %v4274 = vsub.f32 %v4027, %v4209
        %v4275 = vsub.f32 %v4032, %v4214
        %v4276 = vsub.f32 %v4035, %v4219
        %v4277 = vsub.f32 %v4040, %v4224
        %v4278 = vsub.f32 %v4043, %v4229
        %v4279 = vsub.f32 %v4048, %v4234
        %v4280 = vsub.f32 %v4051, %v4239
        %v4281 = vsub.f32 %v4056, %v4244
        %v4282 = vsub.f32 %v4059, %v4249
        %v4283 = vsub.f32 %v4064, %v4254
        %v4284 = vsub.f32 %v4067, %v4259
        %v4285 = vsub.f32 %v4072, %v4264
        %v4286 = vsub.f32 %v4075, %v4269
        %v4287 = vmul.f32 %v4271, 1.442695
        %v4288 = vpow.pop %v4287
        %v4289 = vmul.f32 %v4272, 1.442695
        %v4290 = vpow.pop %v4289
        %v4291 = vmul.f32 %v4273, 1.442695
        %v4292 = vpow.pop %v4291
        %v4293 = vmul.f32 %v4274, 1.442695
        %v4294 = vpow.pop %v4293
        %v4295 = vmul.f32 %v4275, 1.442695
        %v4296 = vpow.pop %v4295
        %v4297 = vmul.f32 %v4276, 1.442695
        %v4298 = vpow.pop %v4297
        %v4299 = vmul.f32 %v4277, 1.442695
        %v4300 = vpow.pop %v4299
        %v4301 = vmul.f32 %v4278, 1.442695
        %v4302 = vpow.pop %v4301
        %v4303 = vmul.f32 %v4279, 1.442695
        %v4304 = vpow.pop %v4303
        %v4305 = vmul.f32 %v4280, 1.442695
        %v4306 = vpow.pop %v4305
        %v4307 = vmul.f32 %v4281, 1.442695
        %v4308 = vpow.pop %v4307
        %v4309 = vmul.f32 %v4282, 1.442695
        %v4310 = vpow.pop %v4309
        %v4311 = vmul.f32 %v4283, 1.442695
        %v4312 = vpow.pop %v4311
        %v4313 = vmul.f32 %v4284, 1.442695
        %v4314 = vpow.pop %v4313
        %v4315 = vmul.f32 %v4285, 1.442695
        %v4316 = vpow.pop %v4315
        %v4317 = vmul.f32 %v4286, 1.442695
        %v4318 = vpow.pop %v4317
        %s4319 = scalar_lea.vmem [#allocation4], 256
        %v4320 = vld [vmem:[%s4319] sm:$0xff]
        %v4321 = vld [vmem:[%s4319 + $0x8] sm:$0xff]
        %v4322 = vld [vmem:[%s4319 + $0x10] sm:$0xff]
        %v4323 = vld [vmem:[%s4319 + $0x18] sm:$0xff]
        %v4324 = vld [vmem:[%s4319 + $0x20] sm:$0xff]
        %v4325 = vld [vmem:[%s4319 + $0x28] sm:$0xff]
        %v4326 = vld [vmem:[%s4319 + $0x30] sm:$0xff]
        %v4327 = vld [vmem:[%s4319 + $0x38] sm:$0xff]
        %v4328 = vld [vmem:[%s4319 + $0x40] sm:$0xff]
        %v4329 = vld [vmem:[%s4319 + $0x48] sm:$0xff]
        %v4330 = vld [vmem:[%s4319 + $0x50] sm:$0xff]
        %v4331 = vld [vmem:[%s4319 + $0x58] sm:$0xff]
        %v4332 = vld [vmem:[%s4319 + $0x60] sm:$0xff]
        %v4333 = vld [vmem:[%s4319 + $0x68] sm:$0xff]
        %v4334 = vld [vmem:[%s4319 + $0x70] sm:$0xff]
        %v4335 = vld [vmem:[%s4319 + $0x78] sm:$0xff]
        %v4336 = vmul.f32 %v4160, %v4320
        %v4337 = vmul.f32 %v4162, %v4321
        %v4338 = vmul.f32 %v4164, %v4322
        %v4339 = vmul.f32 %v4166, %v4323
        %v4340 = vmul.f32 %v4168, %v4324
        %v4341 = vmul.f32 %v4170, %v4325
        %v4342 = vmul.f32 %v4172, %v4326
        %v4343 = vmul.f32 %v4174, %v4327
        %v4344 = vmul.f32 %v4176, %v4328
        %v4345 = vmul.f32 %v4178, %v4329
        %v4346 = vmul.f32 %v4180, %v4330
        %v4347 = vmul.f32 %v4182, %v4331
        %v4348 = vmul.f32 %v4184, %v4332
        %v4349 = vmul.f32 %v4186, %v4333
        %v4350 = vmul.f32 %v4188, %v4334
        %v4351 = vmul.f32 %v4190, %v4335
        %4352 = vadd.xlane.f32.xlu0 %v4288
        %v4353 = vpop.xlane.xlu0 %4352
        %4354 = vadd.xlane.f32.xlu0 %v4290
        %v4355 = vpop.xlane.xlu0 %4354
        %4356 = vadd.xlane.f32.xlu0 %v4292
        %v4357 = vpop.xlane.xlu0 %4356
        %4358 = vadd.xlane.f32.xlu0 %v4294
        %v4359 = vpop.xlane.xlu0 %4358
        %4360 = vadd.xlane.f32.xlu0 %v4296
        %v4361 = vpop.xlane.xlu0 %4360
        %4362 = vadd.xlane.f32.xlu0 %v4298
        %v4363 = vpop.xlane.xlu0 %4362
        %4364 = vadd.xlane.f32.xlu0 %v4300
        %v4365 = vpop.xlane.xlu0 %4364
        %4366 = vadd.xlane.f32.xlu0 %v4302
        %v4367 = vpop.xlane.xlu0 %4366
        %4368 = vadd.xlane.f32.xlu0 %v4304
        %v4369 = vpop.xlane.xlu0 %4368
        %4370 = vadd.xlane.f32.xlu0 %v4306
        %v4371 = vpop.xlane.xlu0 %4370
        %4372 = vadd.xlane.f32.xlu0 %v4308
        %v4373 = vpop.xlane.xlu0 %4372
        %4374 = vadd.xlane.f32.xlu0 %v4310
        %v4375 = vpop.xlane.xlu0 %4374
        %4376 = vadd.xlane.f32.xlu0 %v4312
        %v4377 = vpop.xlane.xlu0 %4376
        %4378 = vadd.xlane.f32.xlu0 %v4314
        %v4379 = vpop.xlane.xlu0 %4378
        %4380 = vadd.xlane.f32.xlu0 %v4316
        %v4381 = vpop.xlane.xlu0 %4380
        %4382 = vadd.xlane.f32.xlu0 %v4318
        %v4383 = vpop.xlane.xlu0 %4382
        %v4384 = vadd.f32 %v4336, %v4353
        %v4385 = vadd.f32 %v4337, %v4355
        %v4386 = vadd.f32 %v4338, %v4357
        %v4387 = vadd.f32 %v4339, %v4359
        %v4388 = vadd.f32 %v4340, %v4361
        %v4389 = vadd.f32 %v4341, %v4363
        %v4390 = vadd.f32 %v4342, %v4365
        %v4391 = vadd.f32 %v4343, %v4367
        %v4392 = vadd.f32 %v4344, %v4369
        %v4393 = vadd.f32 %v4345, %v4371
        %v4394 = vadd.f32 %v4346, %v4373
        %v4395 = vadd.f32 %v4347, %v4375
        %v4396 = vadd.f32 %v4348, %v4377
        %v4397 = vadd.f32 %v4349, %v4379
        %v4398 = vadd.f32 %v4350, %v4381
        %v4399 = vadd.f32 %v4351, %v4383
        %4400 = vst.msk [vmem:[%s4319] sm:$0xff] %vm2204, %v4384
        %4401 = vst.msk [vmem:[%s4319 + $0x8] sm:$0xff] %vm2204, %v4385
        %4402 = vst.msk [vmem:[%s4319 + $0x10] sm:$0xff] %vm2204, %v4386
        %4403 = vst.msk [vmem:[%s4319 + $0x18] sm:$0xff] %vm2204, %v4387
        %4404 = vst.msk [vmem:[%s4319 + $0x20] sm:$0xff] %vm2204, %v4388
        %4405 = vst.msk [vmem:[%s4319 + $0x28] sm:$0xff] %vm2204, %v4389
        %4406 = vst.msk [vmem:[%s4319 + $0x30] sm:$0xff] %vm2204, %v4390
        %4407 = vst.msk [vmem:[%s4319 + $0x38] sm:$0xff] %vm2204, %v4391
        %4408 = vst.msk [vmem:[%s4319 + $0x40] sm:$0xff] %vm2204, %v4392
        %4409 = vst.msk [vmem:[%s4319 + $0x48] sm:$0xff] %vm2204, %v4393
        %4410 = vst.msk [vmem:[%s4319 + $0x50] sm:$0xff] %vm2204, %v4394
        %4411 = vst.msk [vmem:[%s4319 + $0x58] sm:$0xff] %vm2204, %v4395
        %4412 = vst.msk [vmem:[%s4319 + $0x60] sm:$0xff] %vm2204, %v4396
        %4413 = vst.msk [vmem:[%s4319 + $0x68] sm:$0xff] %vm2204, %v4397
        %4414 = vst.msk [vmem:[%s4319 + $0x70] sm:$0xff] %vm2204, %v4398
        %4415 = vst.msk [vmem:[%s4319 + $0x78] sm:$0xff] %vm2204, %v4399
        %s4416 = scalar_lea.vmem [#allocation5], 256
        %v4417 = vld [vmem:[%s4416] sm:$0xff]
        %v4418 = vld [vmem:[%s4416 + $0x8] sm:$0xff]
        %v4419 = vld [vmem:[%s4416 + $0x10] sm:$0xff]
        %v4420 = vld [vmem:[%s4416 + $0x18] sm:$0xff]
        %v4421 = vld [vmem:[%s4416 + $0x20] sm:$0xff]
        %v4422 = vld [vmem:[%s4416 + $0x28] sm:$0xff]
        %v4423 = vld [vmem:[%s4416 + $0x30] sm:$0xff]
        %v4424 = vld [vmem:[%s4416 + $0x38] sm:$0xff]
        %v4425 = vld [vmem:[%s4416 + $0x40] sm:$0xff]
        %v4426 = vld [vmem:[%s4416 + $0x48] sm:$0xff]
        %v4427 = vld [vmem:[%s4416 + $0x50] sm:$0xff]
        %v4428 = vld [vmem:[%s4416 + $0x58] sm:$0xff]
        %v4429 = vld [vmem:[%s4416 + $0x60] sm:$0xff]
        %v4430 = vld [vmem:[%s4416 + $0x68] sm:$0xff]
        %v4431 = vld [vmem:[%s4416 + $0x70] sm:$0xff]
        %v4432 = vld [vmem:[%s4416 + $0x78] sm:$0xff]
        %4434 = vset.pattern.permute.xlu0 0
        %4435 = vperm.xlu0 %4434, %v4160
        %v4436 = vpop.permute.xlu0 %4435
        %4439 = vset.pattern.permute.xlu0 0
        %4440 = vperm.xlu0 %4439, %v4162
        %v4441 = vpop.permute.xlu0 %4440
        %4444 = vset.pattern.permute.xlu0 0
        %4445 = vperm.xlu0 %4444, %v4164
        %v4446 = vpop.permute.xlu0 %4445
        %4449 = vset.pattern.permute.xlu0 0
        %4450 = vperm.xlu0 %4449, %v4166
        %v4451 = vpop.permute.xlu0 %4450
        %4454 = vset.pattern.permute.xlu0 0
        %4455 = vperm.xlu0 %4454, %v4168
        %v4456 = vpop.permute.xlu0 %4455
        %4459 = vset.pattern.permute.xlu0 0
        %4460 = vperm.xlu0 %4459, %v4170
        %v4461 = vpop.permute.xlu0 %4460
        %4464 = vset.pattern.permute.xlu0 0
        %4465 = vperm.xlu0 %4464, %v4172
        %v4466 = vpop.permute.xlu0 %4465
        %4469 = vset.pattern.permute.xlu0 0
        %4470 = vperm.xlu0 %4469, %v4174
        %v4471 = vpop.permute.xlu0 %4470
        %4474 = vset.pattern.permute.xlu0 0
        %4475 = vperm.xlu0 %4474, %v4176
        %v4476 = vpop.permute.xlu0 %4475
        %4479 = vset.pattern.permute.xlu0 0
        %4480 = vperm.xlu0 %4479, %v4178
        %v4481 = vpop.permute.xlu0 %4480
        %4484 = vset.pattern.permute.xlu0 0
        %4485 = vperm.xlu0 %4484, %v4180
        %v4486 = vpop.permute.xlu0 %4485
        %4489 = vset.pattern.permute.xlu0 0
        %4490 = vperm.xlu0 %4489, %v4182
        %v4491 = vpop.permute.xlu0 %4490
        %4494 = vset.pattern.permute.xlu0 0
        %4495 = vperm.xlu0 %4494, %v4184
        %v4496 = vpop.permute.xlu0 %4495
        %4499 = vset.pattern.permute.xlu0 0
        %4500 = vperm.xlu0 %4499, %v4186
        %v4501 = vpop.permute.xlu0 %4500
        %4504 = vset.pattern.permute.xlu0 0
        %4505 = vperm.xlu0 %4504, %v4188
        %v4506 = vpop.permute.xlu0 %4505
        %4509 = vset.pattern.permute.xlu0 0
        %4510 = vperm.xlu0 %4509, %v4190
        %v4511 = vpop.permute.xlu0 %4510
        %v4513 = vmul.f32 %v4436, %v4417
        %v4514 = vmul.f32 %v4441, %v4418
        %v4515 = vmul.f32 %v4446, %v4419
        %v4516 = vmul.f32 %v4451, %v4420
        %v4517 = vmul.f32 %v4456, %v4421
        %v4518 = vmul.f32 %v4461, %v4422
        %v4519 = vmul.f32 %v4466, %v4423
        %v4520 = vmul.f32 %v4471, %v4424
        %v4521 = vmul.f32 %v4476, %v4425
        %v4522 = vmul.f32 %v4481, %v4426
        %v4523 = vmul.f32 %v4486, %v4427
        %v4524 = vmul.f32 %v4491, %v4428
        %v4525 = vmul.f32 %v4496, %v4429
        %v4526 = vmul.f32 %v4501, %v4430
        %v4527 = vmul.f32 %v4506, %v4431
        %v4528 = vmul.f32 %v4511, %v4432
        %v4529 = vpack.c.bf16 %v4290, %v4288
        %v4530 = vpack.c.bf16 %v4294, %v4292
        %v4531 = vpack.c.bf16 %v4298, %v4296
        %v4532 = vpack.c.bf16 %v4302, %v4300
        %v4533 = vpack.c.bf16 %v4306, %v4304
        %v4534 = vpack.c.bf16 %v4310, %v4308
        %v4535 = vpack.c.bf16 %v4314, %v4312
        %v4536 = vpack.c.bf16 %v4318, %v4316
        %4537 = vmatprep.subr.bf16.mxu0 0
        %4538 = vmatpush1.bf16.msra.mxu0 %v3916
        %4539 = vmatprep.subr.bf16.mxu0 0
        %4540 = vmatpush1.bf16.msra.mxu0 %v3917
        %4541 = vmatprep.subr.bf16.mxu0 0
        %4542 = vmatpush1.bf16.msra.mxu0 %v3918
        %4543 = vmatprep.subr.bf16.mxu0 0
        %4544 = vmatpush1.bf16.msra.mxu0 %v3919
        %4545 = vmatprep.subr.bf16.mxu0 0
        %4546 = vmatpush1.bf16.msra.mxu0 %v3920
        %4547 = vmatprep.subr.bf16.mxu0 0
        %4548 = vmatpush1.bf16.msra.mxu0 %v3921
        %4549 = vmatprep.subr.bf16.mxu0 0
        %4550 = vmatpush1.bf16.msra.mxu0 %v3922
        %4551 = vmatprep.subr.bf16.mxu0 0
        %4552 = vmatpush1.bf16.msra.mxu0 %v3923
        %4553 = vmatprep.subr.bf16.mxu0 0
        %4554 = vmatpush1.bf16.msra.mxu0 0
        %4555 = vmatprep.subr.bf16.mxu0 0
        %4556 = vmatpush1.bf16.msra.mxu0 0
        %4557 = vmatprep.subr.bf16.mxu0 0
        %4558 = vmatpush1.bf16.msra.mxu0 0
        %4559 = vmatprep.subr.bf16.mxu0 0
        %4560 = vmatpush1.bf16.msra.mxu0 0
        %4561 = vmatprep.subr.bf16.mxu0 0
        %4562 = vmatpush1.bf16.msra.mxu0 0
        %4563 = vmatprep.subr.bf16.mxu0 0
        %4564 = vmatpush1.bf16.msra.mxu0 0
        %4565 = vmatprep.subr.bf16.mxu0 0
        %4566 = vmatpush1.bf16.msra.mxu0 0
        %4567 = vmatprep.subr.bf16.mxu0 0
        %4568 = vmatpush1.bf16.msra.mxu0 0
        %4569 = vmatprep.mubr.bf16.mxu0 0
        %4570 = vmatmul.mubr.bf16.gmra.mrb[0].mxu0 %v4529
        %v4571 = vpop.f32.mrb[0].mxu0
        %v4572 = vadd.f32 0.0, %v4571
        %v4573 = vpop.f32.mrb[0].mxu0
        %v4574 = vpop.f32.mrb[0].mxu0
        %v4575 = vadd.f32 0.0, %v4574
        %v4576 = vpop.f32.mrb[0].mxu0
        %4577 = vmatprep.mubr.bf16.mxu0 0
        %4578 = vmatmul.mubr.bf16.gmra.mrb[0].mxu0 %v4530
        %v4579 = vpop.f32.mrb[0].mxu0
        %v4580 = vadd.f32 0.0, %v4579
        %v4581 = vpop.f32.mrb[0].mxu0
        %v4582 = vpop.f32.mrb[0].mxu0
        %v4583 = vadd.f32 0.0, %v4582
        %v4584 = vpop.f32.mrb[0].mxu0
        %4585 = vmatprep.mubr.bf16.mxu0 0
        %4586 = vmatmul.mubr.bf16.gmra.mrb[0].mxu0 %v4531
        %v4587 = vpop.f32.mrb[0].mxu0
        %v4588 = vadd.f32 0.0, %v4587
        %v4589 = vpop.f32.mrb[0].mxu0
        %v4590 = vpop.f32.mrb[0].mxu0
        %v4591 = vadd.f32 0.0, %v4590
        %v4592 = vpop.f32.mrb[0].mxu0
        %4593 = vmatprep.mubr.bf16.mxu0 0
        %4594 = vmatmul.mubr.bf16.gmra.mrb[0].mxu0 %v4532
        %v4595 = vpop.f32.mrb[0].mxu0
        %v4596 = vadd.f32 0.0, %v4595
        %v4597 = vpop.f32.mrb[0].mxu0
        %v4598 = vpop.f32.mrb[0].mxu0
        %v4599 = vadd.f32 0.0, %v4598
        %v4600 = vpop.f32.mrb[0].mxu0
        %4601 = vmatprep.mubr.bf16.mxu0 0
        %4602 = vmatmul.mubr.bf16.gmra.mrb[0].mxu0 %v4533
        %v4603 = vpop.f32.mrb[0].mxu0
        %v4604 = vadd.f32 0.0, %v4603
        %v4605 = vpop.f32.mrb[0].mxu0
        %v4606 = vpop.f32.mrb[0].mxu0
        %v4607 = vadd.f32 0.0, %v4606
        %v4608 = vpop.f32.mrb[0].mxu0
        %4609 = vmatprep.mubr.bf16.mxu0 0
        %4610 = vmatmul.mubr.bf16.gmra.mrb[0].mxu0 %v4534
        %v4611 = vpop.f32.mrb[0].mxu0
        %v4612 = vadd.f32 0.0, %v4611
        %v4613 = vpop.f32.mrb[0].mxu0
        %v4614 = vpop.f32.mrb[0].mxu0
        %v4615 = vadd.f32 0.0, %v4614
        %v4616 = vpop.f32.mrb[0].mxu0
        %4617 = vmatprep.mubr.bf16.mxu0 0
        %4618 = vmatmul.mubr.bf16.gmra.mrb[0].mxu0 %v4535
        %v4619 = vpop.f32.mrb[0].mxu0
        %v4620 = vadd.f32 0.0, %v4619
        %v4621 = vpop.f32.mrb[0].mxu0
        %v4622 = vpop.f32.mrb[0].mxu0
        %v4623 = vadd.f32 0.0, %v4622
        %v4624 = vpop.f32.mrb[0].mxu0
        %4625 = vmatprep.mubr.bf16.mxu0 0
        %4626 = vmatmul.mubr.bf16.gmra.mrb[0].mxu0 %v4536
        %v4627 = vpop.f32.mrb[0].mxu0
        %v4628 = vadd.f32 0.0, %v4627
        %v4629 = vpop.f32.mrb[0].mxu0
        %v4630 = vpop.f32.mrb[0].mxu0
        %v4631 = vadd.f32 0.0, %v4630
        %v4632 = vpop.f32.mrb[0].mxu0
        %4633 = vdwg.mxu0
        %v4634 = vadd.f32 %v4513, %v4572
        %v4635 = vadd.f32 %v4514, %v4575
        %v4636 = vadd.f32 %v4515, %v4580
        %v4637 = vadd.f32 %v4516, %v4583
        %v4638 = vadd.f32 %v4517, %v4588
        %v4639 = vadd.f32 %v4518, %v4591
        %v4640 = vadd.f32 %v4519, %v4596
        %v4641 = vadd.f32 %v4520, %v4599
        %v4642 = vadd.f32 %v4521, %v4604
        %v4643 = vadd.f32 %v4522, %v4607
        %v4644 = vadd.f32 %v4523, %v4612
        %v4645 = vadd.f32 %v4524, %v4615
        %v4646 = vadd.f32 %v4525, %v4620
        %v4647 = vadd.f32 %v4526, %v4623
        %v4648 = vadd.f32 %v4527, %v4628
        %v4649 = vadd.f32 %v4528, %v4631
        %4650 = vst.msk [vmem:[%s4416] sm:$0xff] %vm1738, %v4634
        %4651 = vst.msk [vmem:[%s4416 + $0x8] sm:$0xff] %vm1738, %v4635
        %4652 = vst.msk [vmem:[%s4416 + $0x10] sm:$0xff] %vm1738, %v4636
        %4653 = vst.msk [vmem:[%s4416 + $0x18] sm:$0xff] %vm1738, %v4637
        %4654 = vst.msk [vmem:[%s4416 + $0x20] sm:$0xff] %vm1738, %v4638
        %4655 = vst.msk [vmem:[%s4416 + $0x28] sm:$0xff] %vm1738, %v4639
        %4656 = vst.msk [vmem:[%s4416 + $0x30] sm:$0xff] %vm1738, %v4640
        %4657 = vst.msk [vmem:[%s4416 + $0x38] sm:$0xff] %vm1738, %v4641
        %4658 = vst.msk [vmem:[%s4416 + $0x40] sm:$0xff] %vm1738, %v4642
        %4659 = vst.msk [vmem:[%s4416 + $0x48] sm:$0xff] %vm1738, %v4643
        %4660 = vst.msk [vmem:[%s4416 + $0x50] sm:$0xff] %vm1738, %v4644
        %4661 = vst.msk [vmem:[%s4416 + $0x58] sm:$0xff] %vm1738, %v4645
        %4662 = vst.msk [vmem:[%s4416 + $0x60] sm:$0xff] %vm1738, %v4646
        %4663 = vst.msk [vmem:[%s4416 + $0x68] sm:$0xff] %vm1738, %v4647
        %4664 = vst.msk [vmem:[%s4416 + $0x70] sm:$0xff] %vm1738, %v4648
        %4665 = vst.msk [vmem:[%s4416 + $0x78] sm:$0xff] %vm1738, %v4649
        %4666 = vst.msk [vmem:[%s4078] sm:$0xff] %vm2204, %v4127
        %4667 = vst.msk [vmem:[%s4078 + $0x8] sm:$0xff] %vm2204, %v4128
        %4668 = vst.msk [vmem:[%s4078 + $0x10] sm:$0xff] %vm2204, %v4129
        %4669 = vst.msk [vmem:[%s4078 + $0x18] sm:$0xff] %vm2204, %v4130
        %4670 = vst.msk [vmem:[%s4078 + $0x20] sm:$0xff] %vm2204, %v4131
        %4671 = vst.msk [vmem:[%s4078 + $0x28] sm:$0xff] %vm2204, %v4132
        %4672 = vst.msk [vmem:[%s4078 + $0x30] sm:$0xff] %vm2204, %v4133
        %4673 = vst.msk [vmem:[%s4078 + $0x38] sm:$0xff] %vm2204, %v4134
        %4674 = vst.msk [vmem:[%s4078 + $0x40] sm:$0xff] %vm2204, %v4135
        %4675 = vst.msk [vmem:[%s4078 + $0x48] sm:$0xff] %vm2204, %v4136
        %4676 = vst.msk [vmem:[%s4078 + $0x50] sm:$0xff] %vm2204, %v4137
        %4677 = vst.msk [vmem:[%s4078 + $0x58] sm:$0xff] %vm2204, %v4138
        %4678 = vst.msk [vmem:[%s4078 + $0x60] sm:$0xff] %vm2204, %v4139
        %4679 = vst.msk [vmem:[%s4078 + $0x68] sm:$0xff] %vm2204, %v4140
        %4680 = vst.msk [vmem:[%s4078 + $0x70] sm:$0xff] %vm2204, %v4141
        %4681 = vst.msk [vmem:[%s4078 + $0x78] sm:$0xff] %vm2204, %v4142
        %s4682 = scalar_lea.vmem %s3, 192
        %v4683 = vld [vmem:[%s4682] sm:$0xf]
        %v4684 = vld [vmem:[%s4682 + $0x4] sm:$0xf]
        %v4685 = vld [vmem:[%s4682 + $0x8] sm:$0xf]
        %v4686 = vld [vmem:[%s4682 + $0xc] sm:$0xf]
        %v4687 = vld [vmem:[%s4682 + $0x10] sm:$0xf]
        %v4688 = vld [vmem:[%s4682 + $0x14] sm:$0xf]
        %v4689 = vld [vmem:[%s4682 + $0x18] sm:$0xf]
        %v4690 = vld [vmem:[%s4682 + $0x1c] sm:$0xf]
        %v4691 = vld [vmem:[%s4682 + $0x20] sm:$0xf]
        %v4692 = vld [vmem:[%s4682 + $0x24] sm:$0xf]
        %v4693 = vld [vmem:[%s4682 + $0x28] sm:$0xf]
        %v4694 = vld [vmem:[%s4682 + $0x2c] sm:$0xf]
        %v4695 = vld [vmem:[%s4682 + $0x30] sm:$0xf]
        %v4696 = vld [vmem:[%s4682 + $0x34] sm:$0xf]
        %v4697 = vld [vmem:[%s4682 + $0x38] sm:$0xf]
        %v4698 = vld [vmem:[%s4682 + $0x3c] sm:$0xf]
        %v4715 = vunpack.c.l.b16 %v4683
        %v4716 = vunpack.c.l.b16 %v4684
        %v4717 = vunpack.c.l.b16 %v4685
        %v4718 = vunpack.c.l.b16 %v4686
        %v4719 = vunpack.c.l.b16 %v4687
        %v4720 = vunpack.c.l.b16 %v4688
        %v4721 = vunpack.c.l.b16 %v4689
        %v4722 = vunpack.c.l.b16 %v4690
        %v4723 = vunpack.c.l.b16 %v4691
        %v4724 = vunpack.c.l.b16 %v4692
        %v4725 = vunpack.c.l.b16 %v4693
        %v4726 = vunpack.c.l.b16 %v4694
        %v4727 = vunpack.c.l.b16 %v4695
        %v4728 = vunpack.c.l.b16 %v4696
        %v4729 = vunpack.c.l.b16 %v4697
        %v4730 = vunpack.c.l.b16 %v4698
        %v4731 = vpack.c.b16 %v4716, %v4715
        %v4732 = vpack.c.b16 %v4718, %v4717
        %v4733 = vpack.c.b16 %v4720, %v4719
        %v4734 = vpack.c.b16 %v4722, %v4721
        %v4735 = vpack.c.b16 %v4724, %v4723
        %v4736 = vpack.c.b16 %v4726, %v4725
        %v4737 = vpack.c.b16 %v4728, %v4727
        %v4738 = vpack.c.b16 %v4730, %v4729
        %4747 = vmatprep.subr.bf16.mxu0 0
        %4748 = vmatpush1.bf16.msra.mxu0 %v4731
        %4749 = vmatprep.subr.bf16.mxu0 0
        %4750 = vmatpush1.bf16.msra.mxu0 %v4732
        %4751 = vmatprep.subr.bf16.mxu0 0
        %4752 = vmatpush1.bf16.msra.mxu0 %v4733
        %4753 = vmatprep.subr.bf16.mxu0 0
        %4754 = vmatpush1.bf16.msra.mxu0 %v4734
        %4755 = vmatprep.subr.bf16.mxu0 0
        %4756 = vmatpush1.bf16.msra.mxu0 %v4735
        %4757 = vmatprep.subr.bf16.mxu0 0
        %4758 = vmatpush1.bf16.msra.mxu0 %v4736
        %4759 = vmatprep.subr.bf16.mxu0 0
        %4760 = vmatpush1.bf16.msra.mxu0 %v4737
        %4761 = vmatprep.subr.bf16.mxu0 0
        %4762 = vmatpush1.bf16.msra.mxu0 %v4738
        %4763 = vmatprep.subr.bf16.mxu0 0
        %4764 = vmatpush1.bf16.msra.mxu0 0
        %4765 = vmatprep.subr.bf16.mxu0 0
        %4766 = vmatpush1.bf16.msra.mxu0 0
        %4767 = vmatprep.subr.bf16.mxu0 0
        %4768 = vmatpush1.bf16.msra.mxu0 0
        %4769 = vmatprep.subr.bf16.mxu0 0
        %4770 = vmatpush1.bf16.msra.mxu0 0
        %4771 = vmatprep.subr.bf16.mxu0 0
        %4772 = vmatpush1.bf16.msra.mxu0 0
        %4773 = vmatprep.subr.bf16.mxu0 0
        %4774 = vmatpush1.bf16.msra.mxu0 0
        %4775 = vmatprep.subr.bf16.mxu0 0
        %4776 = vmatpush1.bf16.msra.mxu0 0
        %4777 = vmatprep.subr.bf16.mxu0 0
        %4778 = vmatpush1.bf16.msra.mxu0 0
        %4779 = vmatprep.mubr.bf16.mxu0 0
        %4780 = vmatmul.mubr.bf16.gmra.mrb[0].mxu0 %v1392
        %v4781 = vpop.f32.mrb[0].mxu0
        %v4782 = vadd.f32 0.0, %v4781
        %v4783 = vpop.f32.mrb[0].mxu0
        %v4784 = vpop.f32.mrb[0].mxu0
        %v4785 = vadd.f32 0.0, %v4784
        %v4786 = vpop.f32.mrb[0].mxu0
        %4787 = vmatprep.mubr.bf16.mxu0 0
        %4788 = vmatmul.mubr.bf16.gmra.mrb[0].mxu0 %v1393
        %v4789 = vpop.f32.mrb[0].mxu0
        %v4790 = vadd.f32 0.0, %v4789
        %v4791 = vpop.f32.mrb[0].mxu0
        %v4792 = vpop.f32.mrb[0].mxu0
        %v4793 = vadd.f32 0.0, %v4792
        %v4794 = vpop.f32.mrb[0].mxu0
        %4795 = vmatprep.mubr.bf16.mxu0 0
        %4796 = vmatmul.mubr.bf16.gmra.mrb[0].mxu0 %v1394
        %v4797 = vpop.f32.mrb[0].mxu0
        %v4798 = vadd.f32 0.0, %v4797
        %v4799 = vpop.f32.mrb[0].mxu0
        %v4800 = vpop.f32.mrb[0].mxu0
        %v4801 = vadd.f32 0.0, %v4800
        %v4802 = vpop.f32.mrb[0].mxu0
        %4803 = vmatprep.mubr.bf16.mxu0 0
        %4804 = vmatmul.mubr.bf16.gmra.mrb[0].mxu0 %v1395
        %v4805 = vpop.f32.mrb[0].mxu0
        %v4806 = vadd.f32 0.0, %v4805
        %v4807 = vpop.f32.mrb[0].mxu0
        %v4808 = vpop.f32.mrb[0].mxu0
        %v4809 = vadd.f32 0.0, %v4808
        %v4810 = vpop.f32.mrb[0].mxu0
        %4811 = vmatprep.mubr.bf16.mxu0 0
        %4812 = vmatmul.mubr.bf16.gmra.mrb[0].mxu0 %v1396
        %v4813 = vpop.f32.mrb[0].mxu0
        %v4814 = vadd.f32 0.0, %v4813
        %v4815 = vpop.f32.mrb[0].mxu0
        %v4816 = vpop.f32.mrb[0].mxu0
        %v4817 = vadd.f32 0.0, %v4816
        %v4818 = vpop.f32.mrb[0].mxu0
        %4819 = vmatprep.mubr.bf16.mxu0 0
        %4820 = vmatmul.mubr.bf16.gmra.mrb[0].mxu0 %v1397
        %v4821 = vpop.f32.mrb[0].mxu0
        %v4822 = vadd.f32 0.0, %v4821
        %v4823 = vpop.f32.mrb[0].mxu0
        %v4824 = vpop.f32.mrb[0].mxu0
        %v4825 = vadd.f32 0.0, %v4824
        %v4826 = vpop.f32.mrb[0].mxu0
        %4827 = vmatprep.mubr.bf16.mxu0 0
        %4828 = vmatmul.mubr.bf16.gmra.mrb[0].mxu0 %v1398
        %v4829 = vpop.f32.mrb[0].mxu0
        %v4830 = vadd.f32 0.0, %v4829
        %v4831 = vpop.f32.mrb[0].mxu0
        %v4832 = vpop.f32.mrb[0].mxu0
        %v4833 = vadd.f32 0.0, %v4832
        %v4834 = vpop.f32.mrb[0].mxu0
        %4835 = vmatprep.mubr.bf16.mxu0 0
        %4836 = vmatmul.mubr.bf16.gmra.mrb[0].mxu0 %v1399
        %v4837 = vpop.f32.mrb[0].mxu0
        %v4838 = vadd.f32 0.0, %v4837
        %v4839 = vpop.f32.mrb[0].mxu0
        %v4840 = vpop.f32.mrb[0].mxu0
        %v4841 = vadd.f32 0.0, %v4840
        %v4842 = vpop.f32.mrb[0].mxu0
        %4843 = vdwg.mxu0
        %v4844 = vpack.c.bf16 %v4785, %v4782
        %v4845 = vpack.c.bf16 %v4793, %v4790
        %v4846 = vpack.c.bf16 %v4801, %v4798
        %v4847 = vpack.c.bf16 %v4809, %v4806
        %v4848 = vpack.c.bf16 %v4817, %v4814
        %v4849 = vpack.c.bf16 %v4825, %v4822
        %v4850 = vpack.c.bf16 %v4833, %v4830
        %v4851 = vpack.c.bf16 %v4841, %v4838
        %s4852 = scalar_lea.vmem %s4, 192
        %v4853 = vld [vmem:[%s4852] sm:$0xf]
        %v4854 = vld [vmem:[%s4852 + $0x4] sm:$0xf]
        %v4855 = vld [vmem:[%s4852 + $0x8] sm:$0xf]
        %v4856 = vld [vmem:[%s4852 + $0xc] sm:$0xf]
        %v4857 = vld [vmem:[%s4852 + $0x10] sm:$0xf]
        %v4858 = vld [vmem:[%s4852 + $0x14] sm:$0xf]
        %v4859 = vld [vmem:[%s4852 + $0x18] sm:$0xf]
        %v4860 = vld [vmem:[%s4852 + $0x1c] sm:$0xf]
        %v4861 = vld [vmem:[%s4852 + $0x20] sm:$0xf]
        %v4862 = vld [vmem:[%s4852 + $0x24] sm:$0xf]
        %v4863 = vld [vmem:[%s4852 + $0x28] sm:$0xf]
        %v4864 = vld [vmem:[%s4852 + $0x2c] sm:$0xf]
        %v4865 = vld [vmem:[%s4852 + $0x30] sm:$0xf]
        %v4866 = vld [vmem:[%s4852 + $0x34] sm:$0xf]
        %v4867 = vld [vmem:[%s4852 + $0x38] sm:$0xf]
        %v4868 = vld [vmem:[%s4852 + $0x3c] sm:$0xf]
        %v4885 = vunpack.c.l.b16 %v4853
        %v4886 = vunpack.c.l.b16 %v4854
        %v4887 = vunpack.c.l.b16 %v4855
        %v4888 = vunpack.c.l.b16 %v4856
        %v4889 = vunpack.c.l.b16 %v4857
        %v4890 = vunpack.c.l.b16 %v4858
        %v4891 = vunpack.c.l.b16 %v4859
        %v4892 = vunpack.c.l.b16 %v4860
        %v4893 = vunpack.c.l.b16 %v4861
        %v4894 = vunpack.c.l.b16 %v4862
        %v4895 = vunpack.c.l.b16 %v4863
        %v4896 = vunpack.c.l.b16 %v4864
        %v4897 = vunpack.c.l.b16 %v4865
        %v4898 = vunpack.c.l.b16 %v4866
        %v4899 = vunpack.c.l.b16 %v4867
        %v4900 = vunpack.c.l.b16 %v4868
        %v4901 = vpack.c.b16 %v4886, %v4885
        %v4902 = vpack.c.b16 %v4888, %v4887
        %v4903 = vpack.c.b16 %v4890, %v4889
        %v4904 = vpack.c.b16 %v4892, %v4891
        %v4905 = vpack.c.b16 %v4894, %v4893
        %v4906 = vpack.c.b16 %v4896, %v4895
        %v4907 = vpack.c.b16 %v4898, %v4897
        %v4908 = vpack.c.b16 %v4900, %v4899
        %4917 = vmatprep.subr.bf16.mxu0 0
        %4918 = vmatpush1.bf16.msra.mxu0 %v4901
        %4919 = vmatprep.subr.bf16.mxu0 0
        %4920 = vmatpush1.bf16.msra.mxu0 %v4902
        %4921 = vmatprep.subr.bf16.mxu0 0
        %4922 = vmatpush1.bf16.msra.mxu0 %v4903
        %4923 = vmatprep.subr.bf16.mxu0 0
        %4924 = vmatpush1.bf16.msra.mxu0 %v4904
        %4925 = vmatprep.subr.bf16.mxu0 0
        %4926 = vmatpush1.bf16.msra.mxu0 %v4905
        %4927 = vmatprep.subr.bf16.mxu0 0
        %4928 = vmatpush1.bf16.msra.mxu0 %v4906
        %4929 = vmatprep.subr.bf16.mxu0 0
        %4930 = vmatpush1.bf16.msra.mxu0 %v4907
        %4931 = vmatprep.subr.bf16.mxu0 0
        %4932 = vmatpush1.bf16.msra.mxu0 %v4908
        %4933 = vmatprep.subr.bf16.mxu0 0
        %4934 = vmatpush1.bf16.msra.mxu0 0
        %4935 = vmatprep.subr.bf16.mxu0 0
        %4936 = vmatpush1.bf16.msra.mxu0 0
        %4937 = vmatprep.subr.bf16.mxu0 0
        %4938 = vmatpush1.bf16.msra.mxu0 0
        %4939 = vmatprep.subr.bf16.mxu0 0
        %4940 = vmatpush1.bf16.msra.mxu0 0
        %4941 = vmatprep.subr.bf16.mxu0 0
        %4942 = vmatpush1.bf16.msra.mxu0 0
        %4943 = vmatprep.subr.bf16.mxu0 0
        %4944 = vmatpush1.bf16.msra.mxu0 0
        %4945 = vmatprep.subr.bf16.mxu0 0
        %4946 = vmatpush1.bf16.msra.mxu0 0
        %4947 = vmatprep.subr.bf16.mxu0 0
        %4948 = vmatpush1.bf16.msra.mxu0 0
        %4949 = vmatprep.mubr.bf16.mxu0 0
        %4950 = vmatmul.mubr.bf16.gmra.mrb[0].mxu0 %v1392
        %v4951 = vpop.f32.mrb[0].mxu0
        %v4952 = vadd.f32 0.0, %v4951
        %v4953 = vpop.f32.mrb[0].mxu0
        %v4954 = vpop.f32.mrb[0].mxu0
        %v4955 = vadd.f32 0.0, %v4954
        %v4956 = vpop.f32.mrb[0].mxu0
        %4957 = vmatprep.mubr.bf16.mxu0 0
        %4958 = vmatmul.mubr.bf16.gmra.mrb[0].mxu0 %v1393
        %v4959 = vpop.f32.mrb[0].mxu0
        %v4960 = vadd.f32 0.0, %v4959
        %v4961 = vpop.f32.mrb[0].mxu0
        %v4962 = vpop.f32.mrb[0].mxu0
        %v4963 = vadd.f32 0.0, %v4962
        %v4964 = vpop.f32.mrb[0].mxu0
        %4965 = vmatprep.mubr.bf16.mxu0 0
        %4966 = vmatmul.mubr.bf16.gmra.mrb[0].mxu0 %v1394
        %v4967 = vpop.f32.mrb[0].mxu0
        %v4968 = vadd.f32 0.0, %v4967
        %v4969 = vpop.f32.mrb[0].mxu0
        %v4970 = vpop.f32.mrb[0].mxu0
        %v4971 = vadd.f32 0.0, %v4970
        %v4972 = vpop.f32.mrb[0].mxu0
        %4973 = vmatprep.mubr.bf16.mxu0 0
        %4974 = vmatmul.mubr.bf16.gmra.mrb[0].mxu0 %v1395
        %v4975 = vpop.f32.mrb[0].mxu0
        %v4976 = vadd.f32 0.0, %v4975
        %v4977 = vpop.f32.mrb[0].mxu0
        %v4978 = vpop.f32.mrb[0].mxu0
        %v4979 = vadd.f32 0.0, %v4978
        %v4980 = vpop.f32.mrb[0].mxu0
        %4981 = vmatprep.mubr.bf16.mxu0 0
        %4982 = vmatmul.mubr.bf16.gmra.mrb[0].mxu0 %v1396
        %v4983 = vpop.f32.mrb[0].mxu0
        %v4984 = vadd.f32 0.0, %v4983
        %v4985 = vpop.f32.mrb[0].mxu0
        %v4986 = vpop.f32.mrb[0].mxu0
        %v4987 = vadd.f32 0.0, %v4986
        %v4988 = vpop.f32.mrb[0].mxu0
        %4989 = vmatprep.mubr.bf16.mxu0 0
        %4990 = vmatmul.mubr.bf16.gmra.mrb[0].mxu0 %v1397
        %v4991 = vpop.f32.mrb[0].mxu0
        %v4992 = vadd.f32 0.0, %v4991
        %v4993 = vpop.f32.mrb[0].mxu0
        %v4994 = vpop.f32.mrb[0].mxu0
        %v4995 = vadd.f32 0.0, %v4994
        %v4996 = vpop.f32.mrb[0].mxu0
        %4997 = vmatprep.mubr.bf16.mxu0 0
        %4998 = vmatmul.mubr.bf16.gmra.mrb[0].mxu0 %v1398
        %v4999 = vpop.f32.mrb[0].mxu0
        %v5000 = vadd.f32 0.0, %v4999
        %v5001 = vpop.f32.mrb[0].mxu0
        %v5002 = vpop.f32.mrb[0].mxu0
        %v5003 = vadd.f32 0.0, %v5002
        %v5004 = vpop.f32.mrb[0].mxu0
        %5005 = vmatprep.mubr.bf16.mxu0 0
        %5006 = vmatmul.mubr.bf16.gmra.mrb[0].mxu0 %v1399
        %v5007 = vpop.f32.mrb[0].mxu0
        %v5008 = vadd.f32 0.0, %v5007
        %v5009 = vpop.f32.mrb[0].mxu0
        %v5010 = vpop.f32.mrb[0].mxu0
        %v5011 = vadd.f32 0.0, %v5010
        %v5012 = vpop.f32.mrb[0].mxu0
        %5013 = vdwg.mxu0
        %v5014 = vpack.c.bf16 %v4955, %v4952
        %v5015 = vpack.c.bf16 %v4963, %v4960
        %v5016 = vpack.c.bf16 %v4971, %v4968
        %v5017 = vpack.c.bf16 %v4979, %v4976
        %v5018 = vpack.c.bf16 %v4987, %v4984
        %v5019 = vpack.c.bf16 %v4995, %v4992
        %v5020 = vpack.c.bf16 %v5003, %v5000
        %v5021 = vpack.c.bf16 %v5011, %v5008
        %s5022 = scalar_lea.vmem [#allocation2], 192
        %v5023 = vld [vmem:[%s5022] sm:$0xff]
        %v5024 = vld [vmem:[%s5022 + $0x8] sm:$0xff]
        %v5025 = vld [vmem:[%s5022 + $0x10] sm:$0xff]
        %v5026 = vld [vmem:[%s5022 + $0x18] sm:$0xff]
        %v5027 = vld [vmem:[%s5022 + $0x20] sm:$0xff]
        %v5028 = vld [vmem:[%s5022 + $0x28] sm:$0xff]
        %v5029 = vld [vmem:[%s5022 + $0x30] sm:$0xff]
        %v5030 = vld [vmem:[%s5022 + $0x38] sm:$0xff]
        %v5032 = vsel %vm1738, %v5023, 0
        %v5035 = vsel %vm1738, %v5024, 0
        %v5038 = vsel %vm1738, %v5025, 0
        %v5041 = vsel %vm1738, %v5026, 0
        %v5044 = vsel %vm1738, %v5027, 0
        %v5047 = vsel %vm1738, %v5028, 0
        %v5050 = vsel %vm1738, %v5029, 0
        %v5053 = vsel %vm1738, %v5030, 0
        %v5056 = vsel %vm1738, %v4844, 0
        %v5059 = vsel %vm1738, %v4845, 0
        %v5062 = vsel %vm1738, %v4846, 0
        %v5065 = vsel %vm1738, %v4847, 0
        %v5068 = vsel %vm1738, %v4848, 0
        %v5071 = vsel %vm1738, %v4849, 0
        %v5074 = vsel %vm1738, %v4850, 0
        %v5077 = vsel %vm1738, %v4851, 0
        %5079 = vmatprep.subr.bf16.mxu0 0
        %5080 = vmatpush1.bf16.xpose.msra.mxu0 %v5056
        %5081 = vmatprep.subr.bf16.mxu0 0
        %5082 = vmatpush1.bf16.xpose.msra.mxu0 %v5059
        %5083 = vmatprep.subr.bf16.mxu0 0
        %5084 = vmatpush1.bf16.xpose.msra.mxu0 %v5062
        %5085 = vmatprep.subr.bf16.mxu0 0
        %5086 = vmatpush1.bf16.xpose.msra.mxu0 %v5065
        %5087 = vmatprep.subr.bf16.mxu0 0
        %5088 = vmatpush1.bf16.xpose.msra.mxu0 %v5068
        %5089 = vmatprep.subr.bf16.mxu0 0
        %5090 = vmatpush1.bf16.xpose.msra.mxu0 %v5071
        %5091 = vmatprep.subr.bf16.mxu0 0
        %5092 = vmatpush1.bf16.xpose.msra.mxu0 %v5074
        %5093 = vmatprep.subr.bf16.mxu0 0
        %5094 = vmatpush1.bf16.xpose.msra.mxu0 %v5077
        %5095 = vmatprep.subr.bf16.mxu0 0
        %5096 = vmatpush1.bf16.xpose.msra.mxu0 0
        %5097 = vmatprep.subr.bf16.mxu0 0
        %5098 = vmatpush1.bf16.xpose.msra.mxu0 0
        %5099 = vmatprep.subr.bf16.mxu0 0
        %5100 = vmatpush1.bf16.xpose.msra.mxu0 0
        %5101 = vmatprep.subr.bf16.mxu0 0
        %5102 = vmatpush1.bf16.xpose.msra.mxu0 0
        %5103 = vmatprep.subr.bf16.mxu0 0
        %5104 = vmatpush1.bf16.xpose.msra.mxu0 0
        %5105 = vmatprep.subr.bf16.mxu0 0
        %5106 = vmatpush1.bf16.xpose.msra.mxu0 0
        %5107 = vmatprep.subr.bf16.mxu0 0
        %5108 = vmatpush1.bf16.xpose.msra.mxu0 0
        %5109 = vmatprep.subr.bf16.mxu0 0
        %5110 = vmatpush1.bf16.xpose.msra.mxu0 0
        %5111 = vmatprep.mubr.bf16.mxu0 0
        %5112 = vmatmul.mubr.bf16.gmra.mrb[0].mxu0 %v5032
        %v5113 = vpop.f32.mrb[0].mxu0
        %v5114 = vadd.f32 0.0, %v5113
        %v5115 = vpop.f32.mrb[0].mxu0
        %v5116 = vpop.f32.mrb[0].mxu0
        %v5117 = vadd.f32 0.0, %v5116
        %v5118 = vpop.f32.mrb[0].mxu0
        %5119 = vmatprep.mubr.bf16.mxu0 0
        %5120 = vmatmul.mubr.bf16.gmra.mrb[0].mxu0 %v5035
        %v5121 = vpop.f32.mrb[0].mxu0
        %v5122 = vadd.f32 0.0, %v5121
        %v5123 = vpop.f32.mrb[0].mxu0
        %v5124 = vpop.f32.mrb[0].mxu0
        %v5125 = vadd.f32 0.0, %v5124
        %v5126 = vpop.f32.mrb[0].mxu0
        %5127 = vmatprep.mubr.bf16.mxu0 0
        %5128 = vmatmul.mubr.bf16.gmra.mrb[0].mxu0 %v5038
        %v5129 = vpop.f32.mrb[0].mxu0
        %v5130 = vadd.f32 0.0, %v5129
        %v5131 = vpop.f32.mrb[0].mxu0
        %v5132 = vpop.f32.mrb[0].mxu0
        %v5133 = vadd.f32 0.0, %v5132
        %v5134 = vpop.f32.mrb[0].mxu0
        %5135 = vmatprep.mubr.bf16.mxu0 0
        %5136 = vmatmul.mubr.bf16.gmra.mrb[0].mxu0 %v5041
        %v5137 = vpop.f32.mrb[0].mxu0
        %v5138 = vadd.f32 0.0, %v5137
        %v5139 = vpop.f32.mrb[0].mxu0
        %v5140 = vpop.f32.mrb[0].mxu0
        %v5141 = vadd.f32 0.0, %v5140
        %v5142 = vpop.f32.mrb[0].mxu0
        %5143 = vmatprep.mubr.bf16.mxu0 0
        %5144 = vmatmul.mubr.bf16.gmra.mrb[0].mxu0 %v5044
        %v5145 = vpop.f32.mrb[0].mxu0
        %v5146 = vadd.f32 0.0, %v5145
        %v5147 = vpop.f32.mrb[0].mxu0
        %v5148 = vpop.f32.mrb[0].mxu0
        %v5149 = vadd.f32 0.0, %v5148
        %v5150 = vpop.f32.mrb[0].mxu0
        %5151 = vmatprep.mubr.bf16.mxu0 0
        %5152 = vmatmul.mubr.bf16.gmra.mrb[0].mxu0 %v5047
        %v5153 = vpop.f32.mrb[0].mxu0
        %v5154 = vadd.f32 0.0, %v5153
        %v5155 = vpop.f32.mrb[0].mxu0
        %v5156 = vpop.f32.mrb[0].mxu0
        %v5157 = vadd.f32 0.0, %v5156
        %v5158 = vpop.f32.mrb[0].mxu0
        %5159 = vmatprep.mubr.bf16.mxu0 0
        %5160 = vmatmul.mubr.bf16.gmra.mrb[0].mxu0 %v5050
        %v5161 = vpop.f32.mrb[0].mxu0
        %v5162 = vadd.f32 0.0, %v5161
        %v5163 = vpop.f32.mrb[0].mxu0
        %v5164 = vpop.f32.mrb[0].mxu0
        %v5165 = vadd.f32 0.0, %v5164
        %v5166 = vpop.f32.mrb[0].mxu0
        %5167 = vmatprep.mubr.bf16.mxu0 0
        %5168 = vmatmul.mubr.bf16.gmra.mrb[0].mxu0 %v5053
        %v5169 = vpop.f32.mrb[0].mxu0
        %v5170 = vadd.f32 0.0, %v5169
        %v5171 = vpop.f32.mrb[0].mxu0
        %v5172 = vpop.f32.mrb[0].mxu0
        %v5173 = vadd.f32 0.0, %v5172
        %v5174 = vpop.f32.mrb[0].mxu0
        %5175 = vdwg.mxu0
        %s5176 = scalar_lea.vmem [#allocation3], 384
        %v5177 = vld [vmem:[%s5176] sm:$0xff]
        %v5178 = vld [vmem:[%s5176 + $0x8] sm:$0xff]
        %v5179 = vld [vmem:[%s5176 + $0x10] sm:$0xff]
        %v5180 = vld [vmem:[%s5176 + $0x18] sm:$0xff]
        %v5181 = vld [vmem:[%s5176 + $0x20] sm:$0xff]
        %v5182 = vld [vmem:[%s5176 + $0x28] sm:$0xff]
        %v5183 = vld [vmem:[%s5176 + $0x30] sm:$0xff]
        %v5184 = vld [vmem:[%s5176 + $0x38] sm:$0xff]
        %v5185 = vld [vmem:[%s5176 + $0x40] sm:$0xff]
        %v5186 = vld [vmem:[%s5176 + $0x48] sm:$0xff]
        %v5187 = vld [vmem:[%s5176 + $0x50] sm:$0xff]
        %v5188 = vld [vmem:[%s5176 + $0x58] sm:$0xff]
        %v5189 = vld [vmem:[%s5176 + $0x60] sm:$0xff]
        %v5190 = vld [vmem:[%s5176 + $0x68] sm:$0xff]
        %v5191 = vld [vmem:[%s5176 + $0x70] sm:$0xff]
        %v5192 = vld [vmem:[%s5176 + $0x78] sm:$0xff]
        %5193 = vmax.xlane.f32.xlu0 %v5114
        %v5194 = vpop.xlane.xlu0 %5193
        %5195 = vmax.xlane.f32.xlu0 %v5117
        %v5196 = vpop.xlane.xlu0 %5195
        %5197 = vmax.xlane.f32.xlu0 %v5122
        %v5198 = vpop.xlane.xlu0 %5197
        %5199 = vmax.xlane.f32.xlu0 %v5125
        %v5200 = vpop.xlane.xlu0 %5199
        %5201 = vmax.xlane.f32.xlu0 %v5130
        %v5202 = vpop.xlane.xlu0 %5201
        %5203 = vmax.xlane.f32.xlu0 %v5133
        %v5204 = vpop.xlane.xlu0 %5203
        %5205 = vmax.xlane.f32.xlu0 %v5138
        %v5206 = vpop.xlane.xlu0 %5205
        %5207 = vmax.xlane.f32.xlu0 %v5141
        %v5208 = vpop.xlane.xlu0 %5207
        %5209 = vmax.xlane.f32.xlu0 %v5146
        %v5210 = vpop.xlane.xlu0 %5209
        %5211 = vmax.xlane.f32.xlu0 %v5149
        %v5212 = vpop.xlane.xlu0 %5211
        %5213 = vmax.xlane.f32.xlu0 %v5154
        %v5214 = vpop.xlane.xlu0 %5213
        %5215 = vmax.xlane.f32.xlu0 %v5157
        %v5216 = vpop.xlane.xlu0 %5215
        %5217 = vmax.xlane.f32.xlu0 %v5162
        %v5218 = vpop.xlane.xlu0 %5217
        %5219 = vmax.xlane.f32.xlu0 %v5165
        %v5220 = vpop.xlane.xlu0 %5219
        %5221 = vmax.xlane.f32.xlu0 %v5170
        %v5222 = vpop.xlane.xlu0 %5221
        %5223 = vmax.xlane.f32.xlu0 %v5173
        %v5224 = vpop.xlane.xlu0 %5223
        %v5225 = vmax.f32 %v5177, %v5194
        %v5226 = vmax.f32 %v5178, %v5196
        %v5227 = vmax.f32 %v5179, %v5198
        %v5228 = vmax.f32 %v5180, %v5200
        %v5229 = vmax.f32 %v5181, %v5202
        %v5230 = vmax.f32 %v5182, %v5204
        %v5231 = vmax.f32 %v5183, %v5206
        %v5232 = vmax.f32 %v5184, %v5208
        %v5233 = vmax.f32 %v5185, %v5210
        %v5234 = vmax.f32 %v5186, %v5212
        %v5235 = vmax.f32 %v5187, %v5214
        %v5236 = vmax.f32 %v5188, %v5216
        %v5237 = vmax.f32 %v5189, %v5218
        %v5238 = vmax.f32 %v5190, %v5220
        %v5239 = vmax.f32 %v5191, %v5222
        %v5240 = vmax.f32 %v5192, %v5224
        %v5241 = vsub.f32 %v5177, %v5225
        %v5242 = vsub.f32 %v5178, %v5226
        %v5243 = vsub.f32 %v5179, %v5227
        %v5244 = vsub.f32 %v5180, %v5228
        %v5245 = vsub.f32 %v5181, %v5229
        %v5246 = vsub.f32 %v5182, %v5230
        %v5247 = vsub.f32 %v5183, %v5231
        %v5248 = vsub.f32 %v5184, %v5232
        %v5249 = vsub.f32 %v5185, %v5233
        %v5250 = vsub.f32 %v5186, %v5234
        %v5251 = vsub.f32 %v5187, %v5235
        %v5252 = vsub.f32 %v5188, %v5236
        %v5253 = vsub.f32 %v5189, %v5237
        %v5254 = vsub.f32 %v5190, %v5238
        %v5255 = vsub.f32 %v5191, %v5239
        %v5256 = vsub.f32 %v5192, %v5240
        %v5257 = vmul.f32 %v5241, 1.442695
        %v5258 = vpow.pop %v5257
        %v5259 = vmul.f32 %v5242, 1.442695
        %v5260 = vpow.pop %v5259
        %v5261 = vmul.f32 %v5243, 1.442695
        %v5262 = vpow.pop %v5261
        %v5263 = vmul.f32 %v5244, 1.442695
        %v5264 = vpow.pop %v5263
        %v5265 = vmul.f32 %v5245, 1.442695
        %v5266 = vpow.pop %v5265
        %v5267 = vmul.f32 %v5246, 1.442695
        %v5268 = vpow.pop %v5267
        %v5269 = vmul.f32 %v5247, 1.442695
        %v5270 = vpow.pop %v5269
        %v5271 = vmul.f32 %v5248, 1.442695
        %v5272 = vpow.pop %v5271
        %v5273 = vmul.f32 %v5249, 1.442695
        %v5274 = vpow.pop %v5273
        %v5275 = vmul.f32 %v5250, 1.442695
        %v5276 = vpow.pop %v5275
        %v5277 = vmul.f32 %v5251, 1.442695
        %v5278 = vpow.pop %v5277
        %v5279 = vmul.f32 %v5252, 1.442695
        %v5280 = vpow.pop %v5279
        %v5281 = vmul.f32 %v5253, 1.442695
        %v5282 = vpow.pop %v5281
        %v5283 = vmul.f32 %v5254, 1.442695
        %v5284 = vpow.pop %v5283
        %v5285 = vmul.f32 %v5255, 1.442695
        %v5286 = vpow.pop %v5285
        %v5287 = vmul.f32 %v5256, 1.442695
        %v5288 = vpow.pop %v5287
        %5290 = vset.pattern.permute.xlu0 0
        %5291 = vperm.xlu0 %5290, %v5225
        %v5292 = vpop.permute.xlu0 %5291
        %5295 = vset.pattern.permute.xlu0 0
        %5296 = vperm.xlu0 %5295, %v5226
        %v5297 = vpop.permute.xlu0 %5296
        %5300 = vset.pattern.permute.xlu0 0
        %5301 = vperm.xlu0 %5300, %v5227
        %v5302 = vpop.permute.xlu0 %5301
        %5305 = vset.pattern.permute.xlu0 0
        %5306 = vperm.xlu0 %5305, %v5228
        %v5307 = vpop.permute.xlu0 %5306
        %5310 = vset.pattern.permute.xlu0 0
        %5311 = vperm.xlu0 %5310, %v5229
        %v5312 = vpop.permute.xlu0 %5311
        %5315 = vset.pattern.permute.xlu0 0
        %5316 = vperm.xlu0 %5315, %v5230
        %v5317 = vpop.permute.xlu0 %5316
        %5320 = vset.pattern.permute.xlu0 0
        %5321 = vperm.xlu0 %5320, %v5231
        %v5322 = vpop.permute.xlu0 %5321
        %5325 = vset.pattern.permute.xlu0 0
        %5326 = vperm.xlu0 %5325, %v5232
        %v5327 = vpop.permute.xlu0 %5326
        %5330 = vset.pattern.permute.xlu0 0
        %5331 = vperm.xlu0 %5330, %v5233
        %v5332 = vpop.permute.xlu0 %5331
        %5335 = vset.pattern.permute.xlu0 0
        %5336 = vperm.xlu0 %5335, %v5234
        %v5337 = vpop.permute.xlu0 %5336
        %5340 = vset.pattern.permute.xlu0 0
        %5341 = vperm.xlu0 %5340, %v5235
        %v5342 = vpop.permute.xlu0 %5341
        %5345 = vset.pattern.permute.xlu0 0
        %5346 = vperm.xlu0 %5345, %v5236
        %v5347 = vpop.permute.xlu0 %5346
        %5350 = vset.pattern.permute.xlu0 0
        %5351 = vperm.xlu0 %5350, %v5237
        %v5352 = vpop.permute.xlu0 %5351
        %5355 = vset.pattern.permute.xlu0 0
        %5356 = vperm.xlu0 %5355, %v5238
        %v5357 = vpop.permute.xlu0 %5356
        %5360 = vset.pattern.permute.xlu0 0
        %5361 = vperm.xlu0 %5360, %v5239
        %v5362 = vpop.permute.xlu0 %5361
        %5365 = vset.pattern.permute.xlu0 0
        %5366 = vperm.xlu0 %5365, %v5240
        %v5367 = vpop.permute.xlu0 %5366
        %v5369 = vsub.f32 %v5114, %v5292
        %v5370 = vsub.f32 %v5117, %v5297
        %v5371 = vsub.f32 %v5122, %v5302
        %v5372 = vsub.f32 %v5125, %v5307
        %v5373 = vsub.f32 %v5130, %v5312
        %v5374 = vsub.f32 %v5133, %v5317
        %v5375 = vsub.f32 %v5138, %v5322
        %v5376 = vsub.f32 %v5141, %v5327
        %v5377 = vsub.f32 %v5146, %v5332
        %v5378 = vsub.f32 %v5149, %v5337
        %v5379 = vsub.f32 %v5154, %v5342
        %v5380 = vsub.f32 %v5157, %v5347
        %v5381 = vsub.f32 %v5162, %v5352
        %v5382 = vsub.f32 %v5165, %v5357
        %v5383 = vsub.f32 %v5170, %v5362
        %v5384 = vsub.f32 %v5173, %v5367
        %v5385 = vmul.f32 %v5369, 1.442695
        %v5386 = vpow.pop %v5385
        %v5387 = vmul.f32 %v5370, 1.442695
        %v5388 = vpow.pop %v5387
        %v5389 = vmul.f32 %v5371, 1.442695
        %v5390 = vpow.pop %v5389
        %v5391 = vmul.f32 %v5372, 1.442695
        %v5392 = vpow.pop %v5391
        %v5393 = vmul.f32 %v5373, 1.442695
        %v5394 = vpow.pop %v5393
        %v5395 = vmul.f32 %v5374, 1.442695
        %v5396 = vpow.pop %v5395
        %v5397 = vmul.f32 %v5375, 1.442695
        %v5398 = vpow.pop %v5397
        %v5399 = vmul.f32 %v5376, 1.442695
        %v5400 = vpow.pop %v5399
        %v5401 = vmul.f32 %v5377, 1.442695
        %v5402 = vpow.pop %v5401
        %v5403 = vmul.f32 %v5378, 1.442695
        %v5404 = vpow.pop %v5403
        %v5405 = vmul.f32 %v5379, 1.442695
        %v5406 = vpow.pop %v5405
        %v5407 = vmul.f32 %v5380, 1.442695
        %v5408 = vpow.pop %v5407
        %v5409 = vmul.f32 %v5381, 1.442695
        %v5410 = vpow.pop %v5409
        %v5411 = vmul.f32 %v5382, 1.442695
        %v5412 = vpow.pop %v5411
        %v5413 = vmul.f32 %v5383, 1.442695
        %v5414 = vpow.pop %v5413
        %v5415 = vmul.f32 %v5384, 1.442695
        %v5416 = vpow.pop %v5415
        %s5417 = scalar_lea.vmem [#allocation4], 384
        %v5418 = vld [vmem:[%s5417] sm:$0xff]
        %v5419 = vld [vmem:[%s5417 + $0x8] sm:$0xff]
        %v5420 = vld [vmem:[%s5417 + $0x10] sm:$0xff]
        %v5421 = vld [vmem:[%s5417 + $0x18] sm:$0xff]
        %v5422 = vld [vmem:[%s5417 + $0x20] sm:$0xff]
        %v5423 = vld [vmem:[%s5417 + $0x28] sm:$0xff]
        %v5424 = vld [vmem:[%s5417 + $0x30] sm:$0xff]
        %v5425 = vld [vmem:[%s5417 + $0x38] sm:$0xff]
        %v5426 = vld [vmem:[%s5417 + $0x40] sm:$0xff]
        %v5427 = vld [vmem:[%s5417 + $0x48] sm:$0xff]
        %v5428 = vld [vmem:[%s5417 + $0x50] sm:$0xff]
        %v5429 = vld [vmem:[%s5417 + $0x58] sm:$0xff]
        %v5430 = vld [vmem:[%s5417 + $0x60] sm:$0xff]
        %v5431 = vld [vmem:[%s5417 + $0x68] sm:$0xff]
        %v5432 = vld [vmem:[%s5417 + $0x70] sm:$0xff]
        %v5433 = vld [vmem:[%s5417 + $0x78] sm:$0xff]
        %v5434 = vmul.f32 %v5258, %v5418
        %v5435 = vmul.f32 %v5260, %v5419
        %v5436 = vmul.f32 %v5262, %v5420
        %v5437 = vmul.f32 %v5264, %v5421
        %v5438 = vmul.f32 %v5266, %v5422
        %v5439 = vmul.f32 %v5268, %v5423
        %v5440 = vmul.f32 %v5270, %v5424
        %v5441 = vmul.f32 %v5272, %v5425
        %v5442 = vmul.f32 %v5274, %v5426
        %v5443 = vmul.f32 %v5276, %v5427
        %v5444 = vmul.f32 %v5278, %v5428
        %v5445 = vmul.f32 %v5280, %v5429
        %v5446 = vmul.f32 %v5282, %v5430
        %v5447 = vmul.f32 %v5284, %v5431
        %v5448 = vmul.f32 %v5286, %v5432
        %v5449 = vmul.f32 %v5288, %v5433
        %5450 = vadd.xlane.f32.xlu0 %v5386
        %v5451 = vpop.xlane.xlu0 %5450
        %5452 = vadd.xlane.f32.xlu0 %v5388
        %v5453 = vpop.xlane.xlu0 %5452
        %5454 = vadd.xlane.f32.xlu0 %v5390
        %v5455 = vpop.xlane.xlu0 %5454
        %5456 = vadd.xlane.f32.xlu0 %v5392
        %v5457 = vpop.xlane.xlu0 %5456
        %5458 = vadd.xlane.f32.xlu0 %v5394
        %v5459 = vpop.xlane.xlu0 %5458
        %5460 = vadd.xlane.f32.xlu0 %v5396
        %v5461 = vpop.xlane.xlu0 %5460
        %5462 = vadd.xlane.f32.xlu0 %v5398
        %v5463 = vpop.xlane.xlu0 %5462
        %5464 = vadd.xlane.f32.xlu0 %v5400
        %v5465 = vpop.xlane.xlu0 %5464
        %5466 = vadd.xlane.f32.xlu0 %v5402
        %v5467 = vpop.xlane.xlu0 %5466
        %5468 = vadd.xlane.f32.xlu0 %v5404
        %v5469 = vpop.xlane.xlu0 %5468
        %5470 = vadd.xlane.f32.xlu0 %v5406
        %v5471 = vpop.xlane.xlu0 %5470
        %5472 = vadd.xlane.f32.xlu0 %v5408
        %v5473 = vpop.xlane.xlu0 %5472
        %5474 = vadd.xlane.f32.xlu0 %v5410
        %v5475 = vpop.xlane.xlu0 %5474
        %5476 = vadd.xlane.f32.xlu0 %v5412
        %v5477 = vpop.xlane.xlu0 %5476
        %5478 = vadd.xlane.f32.xlu0 %v5414
        %v5479 = vpop.xlane.xlu0 %5478
        %5480 = vadd.xlane.f32.xlu0 %v5416
        %v5481 = vpop.xlane.xlu0 %5480
        %v5482 = vadd.f32 %v5434, %v5451
        %v5483 = vadd.f32 %v5435, %v5453
        %v5484 = vadd.f32 %v5436, %v5455
        %v5485 = vadd.f32 %v5437, %v5457
        %v5486 = vadd.f32 %v5438, %v5459
        %v5487 = vadd.f32 %v5439, %v5461
        %v5488 = vadd.f32 %v5440, %v5463
        %v5489 = vadd.f32 %v5441, %v5465
        %v5490 = vadd.f32 %v5442, %v5467
        %v5491 = vadd.f32 %v5443, %v5469
        %v5492 = vadd.f32 %v5444, %v5471
        %v5493 = vadd.f32 %v5445, %v5473
        %v5494 = vadd.f32 %v5446, %v5475
        %v5495 = vadd.f32 %v5447, %v5477
        %v5496 = vadd.f32 %v5448, %v5479
        %v5497 = vadd.f32 %v5449, %v5481
        %5498 = vst.msk [vmem:[%s5417] sm:$0xff] %vm2204, %v5482
        %5499 = vst.msk [vmem:[%s5417 + $0x8] sm:$0xff] %vm2204, %v5483
        %5500 = vst.msk [vmem:[%s5417 + $0x10] sm:$0xff] %vm2204, %v5484
        %5501 = vst.msk [vmem:[%s5417 + $0x18] sm:$0xff] %vm2204, %v5485
        %5502 = vst.msk [vmem:[%s5417 + $0x20] sm:$0xff] %vm2204, %v5486
        %5503 = vst.msk [vmem:[%s5417 + $0x28] sm:$0xff] %vm2204, %v5487
        %5504 = vst.msk [vmem:[%s5417 + $0x30] sm:$0xff] %vm2204, %v5488
        %5505 = vst.msk [vmem:[%s5417 + $0x38] sm:$0xff] %vm2204, %v5489
        %5506 = vst.msk [vmem:[%s5417 + $0x40] sm:$0xff] %vm2204, %v5490
        %5507 = vst.msk [vmem:[%s5417 + $0x48] sm:$0xff] %vm2204, %v5491
        %5508 = vst.msk [vmem:[%s5417 + $0x50] sm:$0xff] %vm2204, %v5492
        %5509 = vst.msk [vmem:[%s5417 + $0x58] sm:$0xff] %vm2204, %v5493
        %5510 = vst.msk [vmem:[%s5417 + $0x60] sm:$0xff] %vm2204, %v5494
        %5511 = vst.msk [vmem:[%s5417 + $0x68] sm:$0xff] %vm2204, %v5495
        %5512 = vst.msk [vmem:[%s5417 + $0x70] sm:$0xff] %vm2204, %v5496
        %5513 = vst.msk [vmem:[%s5417 + $0x78] sm:$0xff] %vm2204, %v5497
        %s5514 = scalar_lea.vmem [#allocation5], 384
        %v5515 = vld [vmem:[%s5514] sm:$0xff]
        %v5516 = vld [vmem:[%s5514 + $0x8] sm:$0xff]
        %v5517 = vld [vmem:[%s5514 + $0x10] sm:$0xff]
        %v5518 = vld [vmem:[%s5514 + $0x18] sm:$0xff]
        %v5519 = vld [vmem:[%s5514 + $0x20] sm:$0xff]
        %v5520 = vld [vmem:[%s5514 + $0x28] sm:$0xff]
        %v5521 = vld [vmem:[%s5514 + $0x30] sm:$0xff]
        %v5522 = vld [vmem:[%s5514 + $0x38] sm:$0xff]
        %v5523 = vld [vmem:[%s5514 + $0x40] sm:$0xff]
        %v5524 = vld [vmem:[%s5514 + $0x48] sm:$0xff]
        %v5525 = vld [vmem:[%s5514 + $0x50] sm:$0xff]
        %v5526 = vld [vmem:[%s5514 + $0x58] sm:$0xff]
        %v5527 = vld [vmem:[%s5514 + $0x60] sm:$0xff]
        %v5528 = vld [vmem:[%s5514 + $0x68] sm:$0xff]
        %v5529 = vld [vmem:[%s5514 + $0x70] sm:$0xff]
        %v5530 = vld [vmem:[%s5514 + $0x78] sm:$0xff]
        %5532 = vset.pattern.permute.xlu0 0
        %5533 = vperm.xlu0 %5532, %v5258
        %v5534 = vpop.permute.xlu0 %5533
        %5537 = vset.pattern.permute.xlu0 0
        %5538 = vperm.xlu0 %5537, %v5260
        %v5539 = vpop.permute.xlu0 %5538
        %5542 = vset.pattern.permute.xlu0 0
        %5543 = vperm.xlu0 %5542, %v5262
        %v5544 = vpop.permute.xlu0 %5543
        %5547 = vset.pattern.permute.xlu0 0
        %5548 = vperm.xlu0 %5547, %v5264
        %v5549 = vpop.permute.xlu0 %5548
        %5552 = vset.pattern.permute.xlu0 0
        %5553 = vperm.xlu0 %5552, %v5266
        %v5554 = vpop.permute.xlu0 %5553
        %5557 = vset.pattern.permute.xlu0 0
        %5558 = vperm.xlu0 %5557, %v5268
        %v5559 = vpop.permute.xlu0 %5558
        %5562 = vset.pattern.permute.xlu0 0
        %5563 = vperm.xlu0 %5562, %v5270
        %v5564 = vpop.permute.xlu0 %5563
        %5567 = vset.pattern.permute.xlu0 0
        %5568 = vperm.xlu0 %5567, %v5272
        %v5569 = vpop.permute.xlu0 %5568
        %5572 = vset.pattern.permute.xlu0 0
        %5573 = vperm.xlu0 %5572, %v5274
        %v5574 = vpop.permute.xlu0 %5573
        %5577 = vset.pattern.permute.xlu0 0
        %5578 = vperm.xlu0 %5577, %v5276
        %v5579 = vpop.permute.xlu0 %5578
        %5582 = vset.pattern.permute.xlu0 0
        %5583 = vperm.xlu0 %5582, %v5278
        %v5584 = vpop.permute.xlu0 %5583
        %5587 = vset.pattern.permute.xlu0 0
        %5588 = vperm.xlu0 %5587, %v5280
        %v5589 = vpop.permute.xlu0 %5588
        %5592 = vset.pattern.permute.xlu0 0
        %5593 = vperm.xlu0 %5592, %v5282
        %v5594 = vpop.permute.xlu0 %5593
        %5597 = vset.pattern.permute.xlu0 0
        %5598 = vperm.xlu0 %5597, %v5284
        %v5599 = vpop.permute.xlu0 %5598
        %5602 = vset.pattern.permute.xlu0 0
        %5603 = vperm.xlu0 %5602, %v5286
        %v5604 = vpop.permute.xlu0 %5603
        %5607 = vset.pattern.permute.xlu0 0
        %5608 = vperm.xlu0 %5607, %v5288
        %v5609 = vpop.permute.xlu0 %5608
        %v5611 = vmul.f32 %v5534, %v5515
        %v5612 = vmul.f32 %v5539, %v5516
        %v5613 = vmul.f32 %v5544, %v5517
        %v5614 = vmul.f32 %v5549, %v5518
        %v5615 = vmul.f32 %v5554, %v5519
        %v5616 = vmul.f32 %v5559, %v5520
        %v5617 = vmul.f32 %v5564, %v5521
        %v5618 = vmul.f32 %v5569, %v5522
        %v5619 = vmul.f32 %v5574, %v5523
        %v5620 = vmul.f32 %v5579, %v5524
        %v5621 = vmul.f32 %v5584, %v5525
        %v5622 = vmul.f32 %v5589, %v5526
        %v5623 = vmul.f32 %v5594, %v5527
        %v5624 = vmul.f32 %v5599, %v5528
        %v5625 = vmul.f32 %v5604, %v5529
        %v5626 = vmul.f32 %v5609, %v5530
        %v5627 = vpack.c.bf16 %v5388, %v5386
        %v5628 = vpack.c.bf16 %v5392, %v5390
        %v5629 = vpack.c.bf16 %v5396, %v5394
        %v5630 = vpack.c.bf16 %v5400, %v5398
        %v5631 = vpack.c.bf16 %v5404, %v5402
        %v5632 = vpack.c.bf16 %v5408, %v5406
        %v5633 = vpack.c.bf16 %v5412, %v5410
        %v5634 = vpack.c.bf16 %v5416, %v5414
        %5635 = vmatprep.subr.bf16.mxu0 0
        %5636 = vmatpush1.bf16.msra.mxu0 %v5014
        %5637 = vmatprep.subr.bf16.mxu0 0
        %5638 = vmatpush1.bf16.msra.mxu0 %v5015
        %5639 = vmatprep.subr.bf16.mxu0 0
        %5640 = vmatpush1.bf16.msra.mxu0 %v5016
        %5641 = vmatprep.subr.bf16.mxu0 0
        %5642 = vmatpush1.bf16.msra.mxu0 %v5017
        %5643 = vmatprep.subr.bf16.mxu0 0
        %5644 = vmatpush1.bf16.msra.mxu0 %v5018
        %5645 = vmatprep.subr.bf16.mxu0 0
        %5646 = vmatpush1.bf16.msra.mxu0 %v5019
        %5647 = vmatprep.subr.bf16.mxu0 0
        %5648 = vmatpush1.bf16.msra.mxu0 %v5020
        %5649 = vmatprep.subr.bf16.mxu0 0
        %5650 = vmatpush1.bf16.msra.mxu0 %v5021
        %5651 = vmatprep.subr.bf16.mxu0 0
        %5652 = vmatpush1.bf16.msra.mxu0 0
        %5653 = vmatprep.subr.bf16.mxu0 0
        %5654 = vmatpush1.bf16.msra.mxu0 0
        %5655 = vmatprep.subr.bf16.mxu0 0
        %5656 = vmatpush1.bf16.msra.mxu0 0
        %5657 = vmatprep.subr.bf16.mxu0 0
        %5658 = vmatpush1.bf16.msra.mxu0 0
        %5659 = vmatprep.subr.bf16.mxu0 0
        %5660 = vmatpush1.bf16.msra.mxu0 0
        %5661 = vmatprep.subr.bf16.mxu0 0
        %5662 = vmatpush1.bf16.msra.mxu0 0
        %5663 = vmatprep.subr.bf16.mxu0 0
        %5664 = vmatpush1.bf16.msra.mxu0 0
        %5665 = vmatprep.subr.bf16.mxu0 0
        %5666 = vmatpush1.bf16.msra.mxu0 0
        %5667 = vmatprep.mubr.bf16.mxu0 0
        %5668 = vmatmul.mubr.bf16.gmra.mrb[0].mxu0 %v5627
        %v5669 = vpop.f32.mrb[0].mxu0
        %v5670 = vadd.f32 0.0, %v5669
        %v5671 = vpop.f32.mrb[0].mxu0
        %v5672 = vpop.f32.mrb[0].mxu0
        %v5673 = vadd.f32 0.0, %v5672
        %v5674 = vpop.f32.mrb[0].mxu0
        %5675 = vmatprep.mubr.bf16.mxu0 0
        %5676 = vmatmul.mubr.bf16.gmra.mrb[0].mxu0 %v5628
        %v5677 = vpop.f32.mrb[0].mxu0
        %v5678 = vadd.f32 0.0, %v5677
        %v5679 = vpop.f32.mrb[0].mxu0
        %v5680 = vpop.f32.mrb[0].mxu0
        %v5681 = vadd.f32 0.0, %v5680
        %v5682 = vpop.f32.mrb[0].mxu0
        %5683 = vmatprep.mubr.bf16.mxu0 0
        %5684 = vmatmul.mubr.bf16.gmra.mrb[0].mxu0 %v5629
        %v5685 = vpop.f32.mrb[0].mxu0
        %v5686 = vadd.f32 0.0, %v5685
        %v5687 = vpop.f32.mrb[0].mxu0
        %v5688 = vpop.f32.mrb[0].mxu0
        %v5689 = vadd.f32 0.0, %v5688
        %v5690 = vpop.f32.mrb[0].mxu0
        %5691 = vmatprep.mubr.bf16.mxu0 0
        %5692 = vmatmul.mubr.bf16.gmra.mrb[0].mxu0 %v5630
        %v5693 = vpop.f32.mrb[0].mxu0
        %v5694 = vadd.f32 0.0, %v5693
        %v5695 = vpop.f32.mrb[0].mxu0
        %v5696 = vpop.f32.mrb[0].mxu0
        %v5697 = vadd.f32 0.0, %v5696
        %v5698 = vpop.f32.mrb[0].mxu0
        %5699 = vmatprep.mubr.bf16.mxu0 0
        %5700 = vmatmul.mubr.bf16.gmra.mrb[0].mxu0 %v5631
        %v5701 = vpop.f32.mrb[0].mxu0
        %v5702 = vadd.f32 0.0, %v5701
        %v5703 = vpop.f32.mrb[0].mxu0
        %v5704 = vpop.f32.mrb[0].mxu0
        %v5705 = vadd.f32 0.0, %v5704
        %v5706 = vpop.f32.mrb[0].mxu0
        %5707 = vmatprep.mubr.bf16.mxu0 0
        %5708 = vmatmul.mubr.bf16.gmra.mrb[0].mxu0 %v5632
        %v5709 = vpop.f32.mrb[0].mxu0
        %v5710 = vadd.f32 0.0, %v5709
        %v5711 = vpop.f32.mrb[0].mxu0
        %v5712 = vpop.f32.mrb[0].mxu0
        %v5713 = vadd.f32 0.0, %v5712
        %v5714 = vpop.f32.mrb[0].mxu0
        %5715 = vmatprep.mubr.bf16.mxu0 0
        %5716 = vmatmul.mubr.bf16.gmra.mrb[0].mxu0 %v5633
        %v5717 = vpop.f32.mrb[0].mxu0
        %v5718 = vadd.f32 0.0, %v5717
        %v5719 = vpop.f32.mrb[0].mxu0
        %v5720 = vpop.f32.mrb[0].mxu0
        %v5721 = vadd.f32 0.0, %v5720
        %v5722 = vpop.f32.mrb[0].mxu0
        %5723 = vmatprep.mubr.bf16.mxu0 0
        %5724 = vmatmul.mubr.bf16.gmra.mrb[0].mxu0 %v5634
        %v5725 = vpop.f32.mrb[0].mxu0
        %v5726 = vadd.f32 0.0, %v5725
        %v5727 = vpop.f32.mrb[0].mxu0
        %v5728 = vpop.f32.mrb[0].mxu0
        %v5729 = vadd.f32 0.0, %v5728
        %v5730 = vpop.f32.mrb[0].mxu0
        %5731 = vdwg.mxu0
        %v5732 = vadd.f32 %v5611, %v5670
        %v5733 = vadd.f32 %v5612, %v5673
        %v5734 = vadd.f32 %v5613, %v5678
        %v5735 = vadd.f32 %v5614, %v5681
        %v5736 = vadd.f32 %v5615, %v5686
        %v5737 = vadd.f32 %v5616, %v5689
        %v5738 = vadd.f32 %v5617, %v5694
        %v5739 = vadd.f32 %v5618, %v5697
        %v5740 = vadd.f32 %v5619, %v5702
        %v5741 = vadd.f32 %v5620, %v5705
        %v5742 = vadd.f32 %v5621, %v5710
        %v5743 = vadd.f32 %v5622, %v5713
        %v5744 = vadd.f32 %v5623, %v5718
        %v5745 = vadd.f32 %v5624, %v5721
        %v5746 = vadd.f32 %v5625, %v5726
        %v5747 = vadd.f32 %v5626, %v5729
        %5748 = vst.msk [vmem:[%s5514] sm:$0xff] %vm1738, %v5732
        %5749 = vst.msk [vmem:[%s5514 + $0x8] sm:$0xff] %vm1738, %v5733
        %5750 = vst.msk [vmem:[%s5514 + $0x10] sm:$0xff] %vm1738, %v5734
        %5751 = vst.msk [vmem:[%s5514 + $0x18] sm:$0xff] %vm1738, %v5735
        %5752 = vst.msk [vmem:[%s5514 + $0x20] sm:$0xff] %vm1738, %v5736
        %5753 = vst.msk [vmem:[%s5514 + $0x28] sm:$0xff] %vm1738, %v5737
        %5754 = vst.msk [vmem:[%s5514 + $0x30] sm:$0xff] %vm1738, %v5738
        %5755 = vst.msk [vmem:[%s5514 + $0x38] sm:$0xff] %vm1738, %v5739
        %5756 = vst.msk [vmem:[%s5514 + $0x40] sm:$0xff] %vm1738, %v5740
        %5757 = vst.msk [vmem:[%s5514 + $0x48] sm:$0xff] %vm1738, %v5741
        %5758 = vst.msk [vmem:[%s5514 + $0x50] sm:$0xff] %vm1738, %v5742
        %5759 = vst.msk [vmem:[%s5514 + $0x58] sm:$0xff] %vm1738, %v5743
        %5760 = vst.msk [vmem:[%s5514 + $0x60] sm:$0xff] %vm1738, %v5744
        %5761 = vst.msk [vmem:[%s5514 + $0x68] sm:$0xff] %vm1738, %v5745
        %5762 = vst.msk [vmem:[%s5514 + $0x70] sm:$0xff] %vm1738, %v5746
        %5763 = vst.msk [vmem:[%s5514 + $0x78] sm:$0xff] %vm1738, %v5747
        %5764 = vst.msk [vmem:[%s5176] sm:$0xff] %vm2204, %v5225
        %5765 = vst.msk [vmem:[%s5176 + $0x8] sm:$0xff] %vm2204, %v5226
        %5766 = vst.msk [vmem:[%s5176 + $0x10] sm:$0xff] %vm2204, %v5227
        %5767 = vst.msk [vmem:[%s5176 + $0x18] sm:$0xff] %vm2204, %v5228
        %5768 = vst.msk [vmem:[%s5176 + $0x20] sm:$0xff] %vm2204, %v5229
        %5769 = vst.msk [vmem:[%s5176 + $0x28] sm:$0xff] %vm2204, %v5230
        %5770 = vst.msk [vmem:[%s5176 + $0x30] sm:$0xff] %vm2204, %v5231
        %5771 = vst.msk [vmem:[%s5176 + $0x38] sm:$0xff] %vm2204, %v5232
        %5772 = vst.msk [vmem:[%s5176 + $0x40] sm:$0xff] %vm2204, %v5233
        %5773 = vst.msk [vmem:[%s5176 + $0x48] sm:$0xff] %vm2204, %v5234
        %5774 = vst.msk [vmem:[%s5176 + $0x50] sm:$0xff] %vm2204, %v5235
        %5775 = vst.msk [vmem:[%s5176 + $0x58] sm:$0xff] %vm2204, %v5236
        %5776 = vst.msk [vmem:[%s5176 + $0x60] sm:$0xff] %vm2204, %v5237
        %5777 = vst.msk [vmem:[%s5176 + $0x68] sm:$0xff] %vm2204, %v5238
        %5778 = vst.msk [vmem:[%s5176 + $0x70] sm:$0xff] %vm2204, %v5239
        %5779 = vst.msk [vmem:[%s5176 + $0x78] sm:$0xff] %vm2204, %v5240
        %p5780 = scmp.eq.s32.totalorder %s28, 1
        // Predicated region
        $region53: #{tpu_custom_call.1} parent=47 // pred_check
          %p5781 = pneg %p5780
        $region54: #{tpu_custom_call.1} parent=47 // pred_check_branch
          %5783 = sbr.rel (%p5781) target = $region56
        $region55: #{tpu_custom_call.1} parent=47 // pred_region
          %v5784 = vld [vmem:[#allocation4] sm:$0xff]
          %v5785 = vld [vmem:[#allocation4 + $0x8] sm:$0xff]
          %v5786 = vld [vmem:[#allocation4 + $0x10] sm:$0xff]
          %v5787 = vld [vmem:[#allocation4 + $0x18] sm:$0xff]
          %v5788 = vld [vmem:[#allocation4 + $0x20] sm:$0xff]
          %v5789 = vld [vmem:[#allocation4 + $0x28] sm:$0xff]
          %v5790 = vld [vmem:[#allocation4 + $0x30] sm:$0xff]
          %v5791 = vld [vmem:[#allocation4 + $0x38] sm:$0xff]
          %v5792 = vld [vmem:[#allocation4 + $0x40] sm:$0xff]
          %v5793 = vld [vmem:[#allocation4 + $0x48] sm:$0xff]
          %v5794 = vld [vmem:[#allocation4 + $0x50] sm:$0xff]
          %v5795 = vld [vmem:[#allocation4 + $0x58] sm:$0xff]
          %v5796 = vld [vmem:[#allocation4 + $0x60] sm:$0xff]
          %v5797 = vld [vmem:[#allocation4 + $0x68] sm:$0xff]
          %v5798 = vld [vmem:[#allocation4 + $0x70] sm:$0xff]
          %v5799 = vld [vmem:[#allocation4 + $0x78] sm:$0xff]
          %v5800 = vrcp.pop %v5784
          %v5801 = vrcp.pop %v5785
          %v5802 = vrcp.pop %v5786
          %v5803 = vrcp.pop %v5787
          %v5804 = vrcp.pop %v5788
          %v5805 = vrcp.pop %v5789
          %v5806 = vrcp.pop %v5790
          %v5807 = vrcp.pop %v5791
          %v5808 = vrcp.pop %v5792
          %v5809 = vrcp.pop %v5793
          %v5810 = vrcp.pop %v5794
          %v5811 = vrcp.pop %v5795
          %v5812 = vrcp.pop %v5796
          %v5813 = vrcp.pop %v5797
          %v5814 = vrcp.pop %v5798
          %v5815 = vrcp.pop %v5799
          %v5816 = vld [vmem:[#allocation5] sm:$0xff]
          %v5817 = vld [vmem:[#allocation5 + $0x8] sm:$0xff]
          %v5818 = vld [vmem:[#allocation5 + $0x10] sm:$0xff]
          %v5819 = vld [vmem:[#allocation5 + $0x18] sm:$0xff]
          %v5820 = vld [vmem:[#allocation5 + $0x20] sm:$0xff]
          %v5821 = vld [vmem:[#allocation5 + $0x28] sm:$0xff]
          %v5822 = vld [vmem:[#allocation5 + $0x30] sm:$0xff]
          %v5823 = vld [vmem:[#allocation5 + $0x38] sm:$0xff]
          %v5824 = vld [vmem:[#allocation5 + $0x40] sm:$0xff]
          %v5825 = vld [vmem:[#allocation5 + $0x48] sm:$0xff]
          %v5826 = vld [vmem:[#allocation5 + $0x50] sm:$0xff]
          %v5827 = vld [vmem:[#allocation5 + $0x58] sm:$0xff]
          %v5828 = vld [vmem:[#allocation5 + $0x60] sm:$0xff]
          %v5829 = vld [vmem:[#allocation5 + $0x68] sm:$0xff]
          %v5830 = vld [vmem:[#allocation5 + $0x70] sm:$0xff]
          %v5831 = vld [vmem:[#allocation5 + $0x78] sm:$0xff]
          %5833 = vset.pattern.permute.xlu0 0
          %5834 = vperm.xlu0 %5833, %v5800
          %v5835 = vpop.permute.xlu0 %5834
          %5838 = vset.pattern.permute.xlu0 0
          %5839 = vperm.xlu0 %5838, %v5801
          %v5840 = vpop.permute.xlu0 %5839
          %5843 = vset.pattern.permute.xlu0 0
          %5844 = vperm.xlu0 %5843, %v5802
          %v5845 = vpop.permute.xlu0 %5844
          %5848 = vset.pattern.permute.xlu0 0
          %5849 = vperm.xlu0 %5848, %v5803
          %v5850 = vpop.permute.xlu0 %5849
          %5853 = vset.pattern.permute.xlu0 0
          %5854 = vperm.xlu0 %5853, %v5804
          %v5855 = vpop.permute.xlu0 %5854
          %5858 = vset.pattern.permute.xlu0 0
          %5859 = vperm.xlu0 %5858, %v5805
          %v5860 = vpop.permute.xlu0 %5859
          %5863 = vset.pattern.permute.xlu0 0
          %5864 = vperm.xlu0 %5863, %v5806
          %v5865 = vpop.permute.xlu0 %5864
          %5868 = vset.pattern.permute.xlu0 0
          %5869 = vperm.xlu0 %5868, %v5807
          %v5870 = vpop.permute.xlu0 %5869
          %5873 = vset.pattern.permute.xlu0 0
          %5874 = vperm.xlu0 %5873, %v5808
          %v5875 = vpop.permute.xlu0 %5874
          %5878 = vset.pattern.permute.xlu0 0
          %5879 = vperm.xlu0 %5878, %v5809
          %v5880 = vpop.permute.xlu0 %5879
          %5883 = vset.pattern.permute.xlu0 0
          %5884 = vperm.xlu0 %5883, %v5810
          %v5885 = vpop.permute.xlu0 %5884
          %5888 = vset.pattern.permute.xlu0 0
          %5889 = vperm.xlu0 %5888, %v5811
          %v5890 = vpop.permute.xlu0 %5889
          %5893 = vset.pattern.permute.xlu0 0
          %5894 = vperm.xlu0 %5893, %v5812
          %v5895 = vpop.permute.xlu0 %5894
          %5898 = vset.pattern.permute.xlu0 0
          %5899 = vperm.xlu0 %5898, %v5813
          %v5900 = vpop.permute.xlu0 %5899
          %5903 = vset.pattern.permute.xlu0 0
          %5904 = vperm.xlu0 %5903, %v5814
          %v5905 = vpop.permute.xlu0 %5904
          %5908 = vset.pattern.permute.xlu0 0
          %5909 = vperm.xlu0 %5908, %v5815
          %v5910 = vpop.permute.xlu0 %5909
          %v5912 = vmul.f32 %v5816, %v5835
          %v5913 = vmul.f32 %v5817, %v5840
          %v5914 = vmul.f32 %v5818, %v5845
          %v5915 = vmul.f32 %v5819, %v5850
          %v5916 = vmul.f32 %v5820, %v5855
          %v5917 = vmul.f32 %v5821, %v5860
          %v5918 = vmul.f32 %v5822, %v5865
          %v5919 = vmul.f32 %v5823, %v5870
          %v5920 = vmul.f32 %v5824, %v5875
          %v5921 = vmul.f32 %v5825, %v5880
          %v5922 = vmul.f32 %v5826, %v5885
          %v5923 = vmul.f32 %v5827, %v5890
          %v5924 = vmul.f32 %v5828, %v5895
          %v5925 = vmul.f32 %v5829, %v5900
          %v5926 = vmul.f32 %v5830, %v5905
          %v5927 = vmul.f32 %v5831, %v5910
          %v5928 = vpack.c.bf16 %v5913, %v5912
          %v5929 = vpack.c.bf16 %v5915, %v5914
          %v5930 = vpack.c.bf16 %v5917, %v5916
          %v5931 = vpack.c.bf16 %v5919, %v5918
          %v5932 = vpack.c.bf16 %v5921, %v5920
          %v5933 = vpack.c.bf16 %v5923, %v5922
          %v5934 = vpack.c.bf16 %v5925, %v5924
          %v5935 = vpack.c.bf16 %v5927, %v5926
          %v5936 = vld [vmem:[%s5] sm:$0xf]
          %v5937 = vld [vmem:[%s5 + $0x4] sm:$0xf]
          %v5938 = vld [vmem:[%s5 + $0x8] sm:$0xf]
          %v5939 = vld [vmem:[%s5 + $0xc] sm:$0xf]
          %v5940 = vld [vmem:[%s3221] sm:$0xff]
          %v5941 = vld [vmem:[%s3221 + $0x8] sm:$0xff]
          %v5942 = vld [vmem:[%s3221 + $0x10] sm:$0xff]
          %v5943 = vld [vmem:[%s3221 + $0x18] sm:$0xff]
          %v5944 = vld [vmem:[%s3221 + $0x20] sm:$0xff]
          %v5945 = vld [vmem:[%s3221 + $0x28] sm:$0xff]
          %v5946 = vld [vmem:[%s3221 + $0x30] sm:$0xff]
          %v5947 = vld [vmem:[%s3221 + $0x38] sm:$0xff]
          %v5948 = vld [vmem:[%s3221 + $0x40] sm:$0xff]
          %v5949 = vld [vmem:[%s3221 + $0x48] sm:$0xff]
          %v5950 = vld [vmem:[%s3221 + $0x50] sm:$0xff]
          %v5951 = vld [vmem:[%s3221 + $0x58] sm:$0xff]
          %v5952 = vld [vmem:[%s3221 + $0x60] sm:$0xff]
          %v5953 = vld [vmem:[%s3221 + $0x68] sm:$0xff]
          %v5954 = vld [vmem:[%s3221 + $0x70] sm:$0xff]
          %v5955 = vld [vmem:[%s3221 + $0x78] sm:$0xff]
          %v5956 = vrcp.pop %v5940
          %v5957 = vrcp.pop %v5941
          %v5958 = vrcp.pop %v5942
          %v5959 = vrcp.pop %v5943
          %v5960 = vrcp.pop %v5944
          %v5961 = vrcp.pop %v5945
          %v5962 = vrcp.pop %v5946
          %v5963 = vrcp.pop %v5947
          %v5964 = vrcp.pop %v5948
          %v5965 = vrcp.pop %v5949
          %v5966 = vrcp.pop %v5950
          %v5967 = vrcp.pop %v5951
          %v5968 = vrcp.pop %v5952
          %v5969 = vrcp.pop %v5953
          %v5970 = vrcp.pop %v5954
          %v5971 = vrcp.pop %v5955
          %v5972 = vld [vmem:[%s3318] sm:$0xff]
          %v5973 = vld [vmem:[%s3318 + $0x8] sm:$0xff]
          %v5974 = vld [vmem:[%s3318 + $0x10] sm:$0xff]
          %v5975 = vld [vmem:[%s3318 + $0x18] sm:$0xff]
          %v5976 = vld [vmem:[%s3318 + $0x20] sm:$0xff]
          %v5977 = vld [vmem:[%s3318 + $0x28] sm:$0xff]
          %v5978 = vld [vmem:[%s3318 + $0x30] sm:$0xff]
          %v5979 = vld [vmem:[%s3318 + $0x38] sm:$0xff]
          %v5980 = vld [vmem:[%s3318 + $0x40] sm:$0xff]
          %v5981 = vld [vmem:[%s3318 + $0x48] sm:$0xff]
          %v5982 = vld [vmem:[%s3318 + $0x50] sm:$0xff]
          %v5983 = vld [vmem:[%s3318 + $0x58] sm:$0xff]
          %v5984 = vld [vmem:[%s3318 + $0x60] sm:$0xff]
          %v5985 = vld [vmem:[%s3318 + $0x68] sm:$0xff]
          %v5986 = vld [vmem:[%s3318 + $0x70] sm:$0xff]
          %v5987 = vld [vmem:[%s3318 + $0x78] sm:$0xff]
          %5989 = vset.pattern.permute.xlu0 0
          %5990 = vperm.xlu0 %5989, %v5956
          %v5991 = vpop.permute.xlu0 %5990
          %5994 = vset.pattern.permute.xlu0 0
          %5995 = vperm.xlu0 %5994, %v5957
          %v5996 = vpop.permute.xlu0 %5995
          %5999 = vset.pattern.permute.xlu0 0
          %6000 = vperm.xlu0 %5999, %v5958
          %v6001 = vpop.permute.xlu0 %6000
          %6004 = vset.pattern.permute.xlu0 0
          %6005 = vperm.xlu0 %6004, %v5959
          %v6006 = vpop.permute.xlu0 %6005
          %6009 = vset.pattern.permute.xlu0 0
          %6010 = vperm.xlu0 %6009, %v5960
          %v6011 = vpop.permute.xlu0 %6010
          %6014 = vset.pattern.permute.xlu0 0
          %6015 = vperm.xlu0 %6014, %v5961
          %v6016 = vpop.permute.xlu0 %6015
          %6019 = vset.pattern.permute.xlu0 0
          %6020 = vperm.xlu0 %6019, %v5962
          %v6021 = vpop.permute.xlu0 %6020
          %6024 = vset.pattern.permute.xlu0 0
          %6025 = vperm.xlu0 %6024, %v5963
          %v6026 = vpop.permute.xlu0 %6025
          %6029 = vset.pattern.permute.xlu0 0
          %6030 = vperm.xlu0 %6029, %v5964
          %v6031 = vpop.permute.xlu0 %6030
          %6034 = vset.pattern.permute.xlu0 0
          %6035 = vperm.xlu0 %6034, %v5965
          %v6036 = vpop.permute.xlu0 %6035
          %6039 = vset.pattern.permute.xlu0 0
          %6040 = vperm.xlu0 %6039, %v5966
          %v6041 = vpop.permute.xlu0 %6040
          %6044 = vset.pattern.permute.xlu0 0
          %6045 = vperm.xlu0 %6044, %v5967
          %v6046 = vpop.permute.xlu0 %6045
          %6049 = vset.pattern.permute.xlu0 0
          %6050 = vperm.xlu0 %6049, %v5968
          %v6051 = vpop.permute.xlu0 %6050
          %6054 = vset.pattern.permute.xlu0 0
          %6055 = vperm.xlu0 %6054, %v5969
          %v6056 = vpop.permute.xlu0 %6055
          %6059 = vset.pattern.permute.xlu0 0
          %6060 = vperm.xlu0 %6059, %v5970
          %v6061 = vpop.permute.xlu0 %6060
          %6064 = vset.pattern.permute.xlu0 0
          %6065 = vperm.xlu0 %6064, %v5971
          %v6066 = vpop.permute.xlu0 %6065
          %v6068 = vmul.f32 %v5972, %v5991
          %v6069 = vmul.f32 %v5973, %v5996
          %v6070 = vmul.f32 %v5974, %v6001
          %v6071 = vmul.f32 %v5975, %v6006
          %v6072 = vmul.f32 %v5976, %v6011
          %v6073 = vmul.f32 %v5977, %v6016
          %v6074 = vmul.f32 %v5978, %v6021
          %v6075 = vmul.f32 %v5979, %v6026
          %v6076 = vmul.f32 %v5980, %v6031
          %v6077 = vmul.f32 %v5981, %v6036
          %v6078 = vmul.f32 %v5982, %v6041
          %v6079 = vmul.f32 %v5983, %v6046
          %v6080 = vmul.f32 %v5984, %v6051
          %v6081 = vmul.f32 %v5985, %v6056
          %v6082 = vmul.f32 %v5986, %v6061
          %v6083 = vmul.f32 %v5987, %v6066
          %v6084 = vpack.c.bf16 %v6069, %v6068
          %v6085 = vpack.c.bf16 %v6071, %v6070
          %v6086 = vpack.c.bf16 %v6073, %v6072
          %v6087 = vpack.c.bf16 %v6075, %v6074
          %v6088 = vpack.c.bf16 %v6077, %v6076
          %v6089 = vpack.c.bf16 %v6079, %v6078
          %v6090 = vpack.c.bf16 %v6081, %v6080
          %v6091 = vpack.c.bf16 %v6083, %v6082
          %s6092 = scalar_lea.vmem %s5, 16
          %v6093 = vld [vmem:[%s6092] sm:$0xf]
          %v6094 = vld [vmem:[%s6092 + $0x4] sm:$0xf]
          %v6095 = vld [vmem:[%s6092 + $0x8] sm:$0xf]
          %v6096 = vld [vmem:[%s6092 + $0xc] sm:$0xf]
          %v6101 = vunpack.c.l.b16 %v6093
          %v6102 = vunpack.c.l.b16 %v6094
          %v6103 = vunpack.c.l.b16 %v6095
          %v6104 = vunpack.c.l.b16 %v6096
          %v6105 = vpack.c.b16 %v6102, %v6101
          %v6106 = vpack.c.b16 %v6104, %v6103
          %v6110 = vsel %vm1738, %v6084, 0
          %v6113 = vsel %vm1738, %v6085, 0
          %v6116 = vsel %vm1738, %v6086, 0
          %v6119 = vsel %vm1738, %v6087, 0
          %v6122 = vsel %vm1738, %v6088, 0
          %v6125 = vsel %vm1738, %v6089, 0
          %v6128 = vsel %vm1738, %v6090, 0
          %v6131 = vsel %vm1738, %v6091, 0
          %6133 = vmatprep.subr.bf16.mxu0 0
          %6134 = vmatpush1.bf16.msra.mxu0 %v6105
          %6135 = vmatprep.subr.bf16.mxu0 0
          %6136 = vmatpush1.bf16.msra.mxu0 %v6106
          %6137 = vmatprep.subr.bf16.mxu0 0
          %6138 = vmatpush1.bf16.msra.mxu0 0
          %6139 = vmatprep.subr.bf16.mxu0 0
          %6140 = vmatpush1.bf16.msra.mxu0 0
          %6141 = vmatprep.subr.bf16.mxu0 0
          %6142 = vmatpush1.bf16.msra.mxu0 0
          %6143 = vmatprep.subr.bf16.mxu0 0
          %6144 = vmatpush1.bf16.msra.mxu0 0
          %6145 = vmatprep.subr.bf16.mxu0 0
          %6146 = vmatpush1.bf16.msra.mxu0 0
          %6147 = vmatprep.subr.bf16.mxu0 0
          %6148 = vmatpush1.bf16.msra.mxu0 0
          %6149 = vmatprep.subr.bf16.mxu0 0
          %6150 = vmatpush1.bf16.msra.mxu0 0
          %6151 = vmatprep.subr.bf16.mxu0 0
          %6152 = vmatpush1.bf16.msra.mxu0 0
          %6153 = vmatprep.subr.bf16.mxu0 0
          %6154 = vmatpush1.bf16.msra.mxu0 0
          %6155 = vmatprep.subr.bf16.mxu0 0
          %6156 = vmatpush1.bf16.msra.mxu0 0
          %6157 = vmatprep.subr.bf16.mxu0 0
          %6158 = vmatpush1.bf16.msra.mxu0 0
          %6159 = vmatprep.subr.bf16.mxu0 0
          %6160 = vmatpush1.bf16.msra.mxu0 0
          %6161 = vmatprep.subr.bf16.mxu0 0
          %6162 = vmatpush1.bf16.msra.mxu0 0
          %6163 = vmatprep.subr.bf16.mxu0 0
          %6164 = vmatpush1.bf16.msra.mxu0 0
          %6165 = vmatprep.mubr.bf16.mxu0 0
          %6166 = vmatmul.mubr.bf16.gmra.mrb[0].mxu0 %v6110
          %v6167 = vpop.f32.mrb[0].mxu0
          %v6168 = vadd.f32 0.0, %v6167
          %v6169 = vpop.f32.mrb[0].mxu0
          %v6170 = vpop.f32.mrb[0].mxu0
          %v6171 = vadd.f32 0.0, %v6170
          %v6172 = vpop.f32.mrb[0].mxu0
          %6173 = vmatprep.mubr.bf16.mxu0 0
          %6174 = vmatmul.mubr.bf16.gmra.mrb[0].mxu0 %v6113
          %v6175 = vpop.f32.mrb[0].mxu0
          %v6176 = vadd.f32 0.0, %v6175
          %v6177 = vpop.f32.mrb[0].mxu0
          %v6178 = vpop.f32.mrb[0].mxu0
          %v6179 = vadd.f32 0.0, %v6178
          %v6180 = vpop.f32.mrb[0].mxu0
          %6181 = vmatprep.mubr.bf16.mxu0 0
          %6182 = vmatmul.mubr.bf16.gmra.mrb[0].mxu0 %v6116
          %v6183 = vpop.f32.mrb[0].mxu0
          %v6184 = vadd.f32 0.0, %v6183
          %v6185 = vpop.f32.mrb[0].mxu0
          %v6186 = vpop.f32.mrb[0].mxu0
          %v6187 = vadd.f32 0.0, %v6186
          %v6188 = vpop.f32.mrb[0].mxu0
          %6189 = vmatprep.mubr.bf16.mxu0 0
          %6190 = vmatmul.mubr.bf16.gmra.mrb[0].mxu0 %v6119
          %v6191 = vpop.f32.mrb[0].mxu0
          %v6192 = vadd.f32 0.0, %v6191
          %v6193 = vpop.f32.mrb[0].mxu0
          %v6194 = vpop.f32.mrb[0].mxu0
          %v6195 = vadd.f32 0.0, %v6194
          %v6196 = vpop.f32.mrb[0].mxu0
          %6197 = vmatprep.mubr.bf16.mxu0 0
          %6198 = vmatmul.mubr.bf16.gmra.mrb[0].mxu0 %v6122
          %v6199 = vpop.f32.mrb[0].mxu0
          %v6200 = vadd.f32 0.0, %v6199
          %v6201 = vpop.f32.mrb[0].mxu0
          %v6202 = vpop.f32.mrb[0].mxu0
          %v6203 = vadd.f32 0.0, %v6202
          %v6204 = vpop.f32.mrb[0].mxu0
          %6205 = vmatprep.mubr.bf16.mxu0 0
          %6206 = vmatmul.mubr.bf16.gmra.mrb[0].mxu0 %v6125
          %v6207 = vpop.f32.mrb[0].mxu0
          %v6208 = vadd.f32 0.0, %v6207
          %v6209 = vpop.f32.mrb[0].mxu0
          %v6210 = vpop.f32.mrb[0].mxu0
          %v6211 = vadd.f32 0.0, %v6210
          %v6212 = vpop.f32.mrb[0].mxu0
          %6213 = vmatprep.mubr.bf16.mxu0 0
          %6214 = vmatmul.mubr.bf16.gmra.mrb[0].mxu0 %v6128
          %v6215 = vpop.f32.mrb[0].mxu0
          %v6216 = vadd.f32 0.0, %v6215
          %v6217 = vpop.f32.mrb[0].mxu0
          %v6218 = vpop.f32.mrb[0].mxu0
          %v6219 = vadd.f32 0.0, %v6218
          %v6220 = vpop.f32.mrb[0].mxu0
          %6221 = vmatprep.mubr.bf16.mxu0 0
          %6222 = vmatmul.mubr.bf16.gmra.mrb[0].mxu0 %v6131
          %v6223 = vpop.f32.mrb[0].mxu0
          %v6224 = vadd.f32 0.0, %v6223
          %v6225 = vpop.f32.mrb[0].mxu0
          %v6226 = vpop.f32.mrb[0].mxu0
          %v6227 = vadd.f32 0.0, %v6226
          %v6228 = vpop.f32.mrb[0].mxu0
          %6229 = vdwg.mxu0
          %v6234 = vunpack.c.l.b16 %v5936
          %v6235 = vunpack.c.l.b16 %v5937
          %v6236 = vunpack.c.l.b16 %v5938
          %v6237 = vunpack.c.l.b16 %v5939
          %v6238 = vpack.c.b16 %v6235, %v6234
          %v6239 = vpack.c.b16 %v6237, %v6236
          %v6243 = vsel %vm1738, %v5928, 0
          %v6246 = vsel %vm1738, %v5929, 0
          %v6249 = vsel %vm1738, %v5930, 0
          %v6252 = vsel %vm1738, %v5931, 0
          %v6255 = vsel %vm1738, %v5932, 0
          %v6258 = vsel %vm1738, %v5933, 0
          %v6261 = vsel %vm1738, %v5934, 0
          %v6264 = vsel %vm1738, %v5935, 0
          %6266 = vmatprep.subr.bf16.mxu0 0
          %6267 = vmatpush1.bf16.msra.mxu0 %v6238
          %6268 = vmatprep.subr.bf16.mxu0 0
          %6269 = vmatpush1.bf16.msra.mxu0 %v6239
          %6270 = vmatprep.subr.bf16.mxu0 0
          %6271 = vmatpush1.bf16.msra.mxu0 0
          %6272 = vmatprep.subr.bf16.mxu0 0
          %6273 = vmatpush1.bf16.msra.mxu0 0
          %6274 = vmatprep.subr.bf16.mxu0 0
          %6275 = vmatpush1.bf16.msra.mxu0 0
          %6276 = vmatprep.subr.bf16.mxu0 0
          %6277 = vmatpush1.bf16.msra.mxu0 0
          %6278 = vmatprep.subr.bf16.mxu0 0
          %6279 = vmatpush1.bf16.msra.mxu0 0
          %6280 = vmatprep.subr.bf16.mxu0 0
          %6281 = vmatpush1.bf16.msra.mxu0 0
          %6282 = vmatprep.subr.bf16.mxu0 0
          %6283 = vmatpush1.bf16.msra.mxu0 0
          %6284 = vmatprep.subr.bf16.mxu0 0
          %6285 = vmatpush1.bf16.msra.mxu0 0
          %6286 = vmatprep.subr.bf16.mxu0 0
          %6287 = vmatpush1.bf16.msra.mxu0 0
          %6288 = vmatprep.subr.bf16.mxu0 0
          %6289 = vmatpush1.bf16.msra.mxu0 0
          %6290 = vmatprep.subr.bf16.mxu0 0
          %6291 = vmatpush1.bf16.msra.mxu0 0
          %6292 = vmatprep.subr.bf16.mxu0 0
          %6293 = vmatpush1.bf16.msra.mxu0 0
          %6294 = vmatprep.subr.bf16.mxu0 0
          %6295 = vmatpush1.bf16.msra.mxu0 0
          %6296 = vmatprep.subr.bf16.mxu0 0
          %6297 = vmatpush1.bf16.msra.mxu0 0
          %6298 = vmatprep.mubr.bf16.mxu0 0
          %6299 = vmatmul.mubr.bf16.gmra.mrb[0].mxu0 %v6243
          %v6300 = vpop.f32.mrb[0].mxu0
          %v6301 = vadd.f32 %v6168, %v6300
          %v6302 = vpop.f32.mrb[0].mxu0
          %v6303 = vpop.f32.mrb[0].mxu0
          %v6304 = vadd.f32 %v6171, %v6303
          %v6305 = vpop.f32.mrb[0].mxu0
          %6306 = vmatprep.mubr.bf16.mxu0 0
          %6307 = vmatmul.mubr.bf16.gmra.mrb[0].mxu0 %v6246
          %v6308 = vpop.f32.mrb[0].mxu0
          %v6309 = vadd.f32 %v6176, %v6308
          %v6310 = vpop.f32.mrb[0].mxu0
          %v6311 = vpop.f32.mrb[0].mxu0
          %v6312 = vadd.f32 %v6179, %v6311
          %v6313 = vpop.f32.mrb[0].mxu0
          %6314 = vmatprep.mubr.bf16.mxu0 0
          %6315 = vmatmul.mubr.bf16.gmra.mrb[0].mxu0 %v6249
          %v6316 = vpop.f32.mrb[0].mxu0
          %v6317 = vadd.f32 %v6184, %v6316
          %v6318 = vpop.f32.mrb[0].mxu0
          %v6319 = vpop.f32.mrb[0].mxu0
          %v6320 = vadd.f32 %v6187, %v6319
          %v6321 = vpop.f32.mrb[0].mxu0
          %6322 = vmatprep.mubr.bf16.mxu0 0
          %6323 = vmatmul.mubr.bf16.gmra.mrb[0].mxu0 %v6252
          %v6324 = vpop.f32.mrb[0].mxu0
          %v6325 = vadd.f32 %v6192, %v6324
          %v6326 = vpop.f32.mrb[0].mxu0
          %v6327 = vpop.f32.mrb[0].mxu0
          %v6328 = vadd.f32 %v6195, %v6327
          %v6329 = vpop.f32.mrb[0].mxu0
          %6330 = vmatprep.mubr.bf16.mxu0 0
          %6331 = vmatmul.mubr.bf16.gmra.mrb[0].mxu0 %v6255
          %v6332 = vpop.f32.mrb[0].mxu0
          %v6333 = vadd.f32 %v6200, %v6332
          %v6334 = vpop.f32.mrb[0].mxu0
          %v6335 = vpop.f32.mrb[0].mxu0
          %v6336 = vadd.f32 %v6203, %v6335
          %v6337 = vpop.f32.mrb[0].mxu0
          %6338 = vmatprep.mubr.bf16.mxu0 0
          %6339 = vmatmul.mubr.bf16.gmra.mrb[0].mxu0 %v6258
          %v6340 = vpop.f32.mrb[0].mxu0
          %v6341 = vadd.f32 %v6208, %v6340
          %v6342 = vpop.f32.mrb[0].mxu0
          %v6343 = vpop.f32.mrb[0].mxu0
          %v6344 = vadd.f32 %v6211, %v6343
          %v6345 = vpop.f32.mrb[0].mxu0
          %6346 = vmatprep.mubr.bf16.mxu0 0
          %6347 = vmatmul.mubr.bf16.gmra.mrb[0].mxu0 %v6261
          %v6348 = vpop.f32.mrb[0].mxu0
          %v6349 = vadd.f32 %v6216, %v6348
          %v6350 = vpop.f32.mrb[0].mxu0
          %v6351 = vpop.f32.mrb[0].mxu0
          %v6352 = vadd.f32 %v6219, %v6351
          %v6353 = vpop.f32.mrb[0].mxu0
          %6354 = vmatprep.mubr.bf16.mxu0 0
          %6355 = vmatmul.mubr.bf16.gmra.mrb[0].mxu0 %v6264
          %v6356 = vpop.f32.mrb[0].mxu0
          %v6357 = vadd.f32 %v6224, %v6356
          %v6358 = vpop.f32.mrb[0].mxu0
          %v6359 = vpop.f32.mrb[0].mxu0
          %v6360 = vadd.f32 %v6227, %v6359
          %v6361 = vpop.f32.mrb[0].mxu0
          %6362 = vdwg.mxu0
          %v6363 = vld [vmem:[%s4319] sm:$0xff]
          %v6364 = vld [vmem:[%s4319 + $0x8] sm:$0xff]
          %v6365 = vld [vmem:[%s4319 + $0x10] sm:$0xff]
          %v6366 = vld [vmem:[%s4319 + $0x18] sm:$0xff]
          %v6367 = vld [vmem:[%s4319 + $0x20] sm:$0xff]
          %v6368 = vld [vmem:[%s4319 + $0x28] sm:$0xff]
          %v6369 = vld [vmem:[%s4319 + $0x30] sm:$0xff]
          %v6370 = vld [vmem:[%s4319 + $0x38] sm:$0xff]
          %v6371 = vld [vmem:[%s4319 + $0x40] sm:$0xff]
          %v6372 = vld [vmem:[%s4319 + $0x48] sm:$0xff]
          %v6373 = vld [vmem:[%s4319 + $0x50] sm:$0xff]
          %v6374 = vld [vmem:[%s4319 + $0x58] sm:$0xff]
          %v6375 = vld [vmem:[%s4319 + $0x60] sm:$0xff]
          %v6376 = vld [vmem:[%s4319 + $0x68] sm:$0xff]
          %v6377 = vld [vmem:[%s4319 + $0x70] sm:$0xff]
          %v6378 = vld [vmem:[%s4319 + $0x78] sm:$0xff]
          %v6379 = vrcp.pop %v6363
          %v6380 = vrcp.pop %v6364
          %v6381 = vrcp.pop %v6365
          %v6382 = vrcp.pop %v6366
          %v6383 = vrcp.pop %v6367
          %v6384 = vrcp.pop %v6368
          %v6385 = vrcp.pop %v6369
          %v6386 = vrcp.pop %v6370
          %v6387 = vrcp.pop %v6371
          %v6388 = vrcp.pop %v6372
          %v6389 = vrcp.pop %v6373
          %v6390 = vrcp.pop %v6374
          %v6391 = vrcp.pop %v6375
          %v6392 = vrcp.pop %v6376
          %v6393 = vrcp.pop %v6377
          %v6394 = vrcp.pop %v6378
          %v6395 = vld [vmem:[%s4416] sm:$0xff]
          %v6396 = vld [vmem:[%s4416 + $0x8] sm:$0xff]
          %v6397 = vld [vmem:[%s4416 + $0x10] sm:$0xff]
          %v6398 = vld [vmem:[%s4416 + $0x18] sm:$0xff]
          %v6399 = vld [vmem:[%s4416 + $0x20] sm:$0xff]
          %v6400 = vld [vmem:[%s4416 + $0x28] sm:$0xff]
          %v6401 = vld [vmem:[%s4416 + $0x30] sm:$0xff]
          %v6402 = vld [vmem:[%s4416 + $0x38] sm:$0xff]
          %v6403 = vld [vmem:[%s4416 + $0x40] sm:$0xff]
          %v6404 = vld [vmem:[%s4416 + $0x48] sm:$0xff]
          %v6405 = vld [vmem:[%s4416 + $0x50] sm:$0xff]
          %v6406 = vld [vmem:[%s4416 + $0x58] sm:$0xff]
          %v6407 = vld [vmem:[%s4416 + $0x60] sm:$0xff]
          %v6408 = vld [vmem:[%s4416 + $0x68] sm:$0xff]
          %v6409 = vld [vmem:[%s4416 + $0x70] sm:$0xff]
          %v6410 = vld [vmem:[%s4416 + $0x78] sm:$0xff]
          %6412 = vset.pattern.permute.xlu0 0
          %6413 = vperm.xlu0 %6412, %v6379
          %v6414 = vpop.permute.xlu0 %6413
          %6417 = vset.pattern.permute.xlu0 0
          %6418 = vperm.xlu0 %6417, %v6380
          %v6419 = vpop.permute.xlu0 %6418
          %6422 = vset.pattern.permute.xlu0 0
          %6423 = vperm.xlu0 %6422, %v6381
          %v6424 = vpop.permute.xlu0 %6423
          %6427 = vset.pattern.permute.xlu0 0
          %6428 = vperm.xlu0 %6427, %v6382
          %v6429 = vpop.permute.xlu0 %6428
          %6432 = vset.pattern.permute.xlu0 0
          %6433 = vperm.xlu0 %6432, %v6383
          %v6434 = vpop.permute.xlu0 %6433
          %6437 = vset.pattern.permute.xlu0 0
          %6438 = vperm.xlu0 %6437, %v6384
          %v6439 = vpop.permute.xlu0 %6438
          %6442 = vset.pattern.permute.xlu0 0
          %6443 = vperm.xlu0 %6442, %v6385
          %v6444 = vpop.permute.xlu0 %6443
          %6447 = vset.pattern.permute.xlu0 0
          %6448 = vperm.xlu0 %6447, %v6386
          %v6449 = vpop.permute.xlu0 %6448
          %6452 = vset.pattern.permute.xlu0 0
          %6453 = vperm.xlu0 %6452, %v6387
          %v6454 = vpop.permute.xlu0 %6453
          %6457 = vset.pattern.permute.xlu0 0
          %6458 = vperm.xlu0 %6457, %v6388
          %v6459 = vpop.permute.xlu0 %6458
          %6462 = vset.pattern.permute.xlu0 0
          %6463 = vperm.xlu0 %6462, %v6389
          %v6464 = vpop.permute.xlu0 %6463
          %6467 = vset.pattern.permute.xlu0 0
          %6468 = vperm.xlu0 %6467, %v6390
          %v6469 = vpop.permute.xlu0 %6468
          %6472 = vset.pattern.permute.xlu0 0
          %6473 = vperm.xlu0 %6472, %v6391
          %v6474 = vpop.permute.xlu0 %6473
          %6477 = vset.pattern.permute.xlu0 0
          %6478 = vperm.xlu0 %6477, %v6392
          %v6479 = vpop.permute.xlu0 %6478
          %6482 = vset.pattern.permute.xlu0 0
          %6483 = vperm.xlu0 %6482, %v6393
          %v6484 = vpop.permute.xlu0 %6483
          %6487 = vset.pattern.permute.xlu0 0
          %6488 = vperm.xlu0 %6487, %v6394
          %v6489 = vpop.permute.xlu0 %6488
          %v6491 = vmul.f32 %v6395, %v6414
          %v6492 = vmul.f32 %v6396, %v6419
          %v6493 = vmul.f32 %v6397, %v6424
          %v6494 = vmul.f32 %v6398, %v6429
          %v6495 = vmul.f32 %v6399, %v6434
          %v6496 = vmul.f32 %v6400, %v6439
          %v6497 = vmul.f32 %v6401, %v6444
          %v6498 = vmul.f32 %v6402, %v6449
          %v6499 = vmul.f32 %v6403, %v6454
          %v6500 = vmul.f32 %v6404, %v6459
          %v6501 = vmul.f32 %v6405, %v6464
          %v6502 = vmul.f32 %v6406, %v6469
          %v6503 = vmul.f32 %v6407, %v6474
          %v6504 = vmul.f32 %v6408, %v6479
          %v6505 = vmul.f32 %v6409, %v6484
          %v6506 = vmul.f32 %v6410, %v6489
          %v6507 = vpack.c.bf16 %v6492, %v6491
          %v6508 = vpack.c.bf16 %v6494, %v6493
          %v6509 = vpack.c.bf16 %v6496, %v6495
          %v6510 = vpack.c.bf16 %v6498, %v6497
          %v6511 = vpack.c.bf16 %v6500, %v6499
          %v6512 = vpack.c.bf16 %v6502, %v6501
          %v6513 = vpack.c.bf16 %v6504, %v6503
          %v6514 = vpack.c.bf16 %v6506, %v6505
          %s6515 = scalar_lea.vmem %s5, 32
          %v6516 = vld [vmem:[%s6515] sm:$0xf]
          %v6517 = vld [vmem:[%s6515 + $0x4] sm:$0xf]
          %v6518 = vld [vmem:[%s6515 + $0x8] sm:$0xf]
          %v6519 = vld [vmem:[%s6515 + $0xc] sm:$0xf]
          %v6524 = vunpack.c.l.b16 %v6516
          %v6525 = vunpack.c.l.b16 %v6517
          %v6526 = vunpack.c.l.b16 %v6518
          %v6527 = vunpack.c.l.b16 %v6519
          %v6528 = vpack.c.b16 %v6525, %v6524
          %v6529 = vpack.c.b16 %v6527, %v6526
          %v6533 = vsel %vm1738, %v6507, 0
          %v6536 = vsel %vm1738, %v6508, 0
          %v6539 = vsel %vm1738, %v6509, 0
          %v6542 = vsel %vm1738, %v6510, 0
          %v6545 = vsel %vm1738, %v6511, 0
          %v6548 = vsel %vm1738, %v6512, 0
          %v6551 = vsel %vm1738, %v6513, 0
          %v6554 = vsel %vm1738, %v6514, 0
          %6556 = vmatprep.subr.bf16.mxu0 0
          %6557 = vmatpush1.bf16.msra.mxu0 %v6528
          %6558 = vmatprep.subr.bf16.mxu0 0
          %6559 = vmatpush1.bf16.msra.mxu0 %v6529
          %6560 = vmatprep.subr.bf16.mxu0 0
          %6561 = vmatpush1.bf16.msra.mxu0 0
          %6562 = vmatprep.subr.bf16.mxu0 0
          %6563 = vmatpush1.bf16.msra.mxu0 0
          %6564 = vmatprep.subr.bf16.mxu0 0
          %6565 = vmatpush1.bf16.msra.mxu0 0
          %6566 = vmatprep.subr.bf16.mxu0 0
          %6567 = vmatpush1.bf16.msra.mxu0 0
          %6568 = vmatprep.subr.bf16.mxu0 0
          %6569 = vmatpush1.bf16.msra.mxu0 0
          %6570 = vmatprep.subr.bf16.mxu0 0
          %6571 = vmatpush1.bf16.msra.mxu0 0
          %6572 = vmatprep.subr.bf16.mxu0 0
          %6573 = vmatpush1.bf16.msra.mxu0 0
          %6574 = vmatprep.subr.bf16.mxu0 0
          %6575 = vmatpush1.bf16.msra.mxu0 0
          %6576 = vmatprep.subr.bf16.mxu0 0
          %6577 = vmatpush1.bf16.msra.mxu0 0
          %6578 = vmatprep.subr.bf16.mxu0 0
          %6579 = vmatpush1.bf16.msra.mxu0 0
          %6580 = vmatprep.subr.bf16.mxu0 0
          %6581 = vmatpush1.bf16.msra.mxu0 0
          %6582 = vmatprep.subr.bf16.mxu0 0
          %6583 = vmatpush1.bf16.msra.mxu0 0
          %6584 = vmatprep.subr.bf16.mxu0 0
          %6585 = vmatpush1.bf16.msra.mxu0 0
          %6586 = vmatprep.subr.bf16.mxu0 0
          %6587 = vmatpush1.bf16.msra.mxu0 0
          %6588 = vmatprep.mubr.bf16.mxu0 0
          %6589 = vmatmul.mubr.bf16.gmra.mrb[0].mxu0 %v6533
          %v6590 = vpop.f32.mrb[0].mxu0
          %v6591 = vadd.f32 0.0, %v6590
          %v6592 = vpop.f32.mrb[0].mxu0
          %v6593 = vpop.f32.mrb[0].mxu0
          %v6594 = vadd.f32 0.0, %v6593
          %v6595 = vpop.f32.mrb[0].mxu0
          %6596 = vmatprep.mubr.bf16.mxu0 0
          %6597 = vmatmul.mubr.bf16.gmra.mrb[0].mxu0 %v6536
          %v6598 = vpop.f32.mrb[0].mxu0
          %v6599 = vadd.f32 0.0, %v6598
          %v6600 = vpop.f32.mrb[0].mxu0
          %v6601 = vpop.f32.mrb[0].mxu0
          %v6602 = vadd.f32 0.0, %v6601
          %v6603 = vpop.f32.mrb[0].mxu0
          %6604 = vmatprep.mubr.bf16.mxu0 0
          %6605 = vmatmul.mubr.bf16.gmra.mrb[0].mxu0 %v6539
          %v6606 = vpop.f32.mrb[0].mxu0
          %v6607 = vadd.f32 0.0, %v6606
          %v6608 = vpop.f32.mrb[0].mxu0
          %v6609 = vpop.f32.mrb[0].mxu0
          %v6610 = vadd.f32 0.0, %v6609
          %v6611 = vpop.f32.mrb[0].mxu0
          %6612 = vmatprep.mubr.bf16.mxu0 0
          %6613 = vmatmul.mubr.bf16.gmra.mrb[0].mxu0 %v6542
          %v6614 = vpop.f32.mrb[0].mxu0
          %v6615 = vadd.f32 0.0, %v6614
          %v6616 = vpop.f32.mrb[0].mxu0
          %v6617 = vpop.f32.mrb[0].mxu0
          %v6618 = vadd.f32 0.0, %v6617
          %v6619 = vpop.f32.mrb[0].mxu0
          %6620 = vmatprep.mubr.bf16.mxu0 0
          %6621 = vmatmul.mubr.bf16.gmra.mrb[0].mxu0 %v6545
          %v6622 = vpop.f32.mrb[0].mxu0
          %v6623 = vadd.f32 0.0, %v6622
          %v6624 = vpop.f32.mrb[0].mxu0
          %v6625 = vpop.f32.mrb[0].mxu0
          %v6626 = vadd.f32 0.0, %v6625
          %v6627 = vpop.f32.mrb[0].mxu0
          %6628 = vmatprep.mubr.bf16.mxu0 0
          %6629 = vmatmul.mubr.bf16.gmra.mrb[0].mxu0 %v6548
          %v6630 = vpop.f32.mrb[0].mxu0
          %v6631 = vadd.f32 0.0, %v6630
          %v6632 = vpop.f32.mrb[0].mxu0
          %v6633 = vpop.f32.mrb[0].mxu0
          %v6634 = vadd.f32 0.0, %v6633
          %v6635 = vpop.f32.mrb[0].mxu0
          %6636 = vmatprep.mubr.bf16.mxu0 0
          %6637 = vmatmul.mubr.bf16.gmra.mrb[0].mxu0 %v6551
          %v6638 = vpop.f32.mrb[0].mxu0
          %v6639 = vadd.f32 0.0, %v6638
          %v6640 = vpop.f32.mrb[0].mxu0
          %v6641 = vpop.f32.mrb[0].mxu0
          %v6642 = vadd.f32 0.0, %v6641
          %v6643 = vpop.f32.mrb[0].mxu0
          %6644 = vmatprep.mubr.bf16.mxu0 0
          %6645 = vmatmul.mubr.bf16.gmra.mrb[0].mxu0 %v6554
          %v6646 = vpop.f32.mrb[0].mxu0
          %v6647 = vadd.f32 0.0, %v6646
          %v6648 = vpop.f32.mrb[0].mxu0
          %v6649 = vpop.f32.mrb[0].mxu0
          %v6650 = vadd.f32 0.0, %v6649
          %v6651 = vpop.f32.mrb[0].mxu0
          %6652 = vdwg.mxu0
          %v6653 = vadd.f32 %v6301, %v6591
          %v6654 = vadd.f32 %v6304, %v6594
          %v6655 = vadd.f32 %v6309, %v6599
          %v6656 = vadd.f32 %v6312, %v6602
          %v6657 = vadd.f32 %v6317, %v6607
          %v6658 = vadd.f32 %v6320, %v6610
          %v6659 = vadd.f32 %v6325, %v6615
          %v6660 = vadd.f32 %v6328, %v6618
          %v6661 = vadd.f32 %v6333, %v6623
          %v6662 = vadd.f32 %v6336, %v6626
          %v6663 = vadd.f32 %v6341, %v6631
          %v6664 = vadd.f32 %v6344, %v6634
          %v6665 = vadd.f32 %v6349, %v6639
          %v6666 = vadd.f32 %v6352, %v6642
          %v6667 = vadd.f32 %v6357, %v6647
          %v6668 = vadd.f32 %v6360, %v6650
          %v6669 = vld [vmem:[%s5417] sm:$0xff]
          %v6670 = vld [vmem:[%s5417 + $0x8] sm:$0xff]
          %v6671 = vld [vmem:[%s5417 + $0x10] sm:$0xff]
          %v6672 = vld [vmem:[%s5417 + $0x18] sm:$0xff]
          %v6673 = vld [vmem:[%s5417 + $0x20] sm:$0xff]
          %v6674 = vld [vmem:[%s5417 + $0x28] sm:$0xff]
          %v6675 = vld [vmem:[%s5417 + $0x30] sm:$0xff]
          %v6676 = vld [vmem:[%s5417 + $0x38] sm:$0xff]
          %v6677 = vld [vmem:[%s5417 + $0x40] sm:$0xff]
          %v6678 = vld [vmem:[%s5417 + $0x48] sm:$0xff]
          %v6679 = vld [vmem:[%s5417 + $0x50] sm:$0xff]
          %v6680 = vld [vmem:[%s5417 + $0x58] sm:$0xff]
          %v6681 = vld [vmem:[%s5417 + $0x60] sm:$0xff]
          %v6682 = vld [vmem:[%s5417 + $0x68] sm:$0xff]
          %v6683 = vld [vmem:[%s5417 + $0x70] sm:$0xff]
          %v6684 = vld [vmem:[%s5417 + $0x78] sm:$0xff]
          %v6685 = vrcp.pop %v6669
          %v6686 = vrcp.pop %v6670
          %v6687 = vrcp.pop %v6671
          %v6688 = vrcp.pop %v6672
          %v6689 = vrcp.pop %v6673
          %v6690 = vrcp.pop %v6674
          %v6691 = vrcp.pop %v6675
          %v6692 = vrcp.pop %v6676
          %v6693 = vrcp.pop %v6677
          %v6694 = vrcp.pop %v6678
          %v6695 = vrcp.pop %v6679
          %v6696 = vrcp.pop %v6680
          %v6697 = vrcp.pop %v6681
          %v6698 = vrcp.pop %v6682
          %v6699 = vrcp.pop %v6683
          %v6700 = vrcp.pop %v6684
          %v6701 = vld [vmem:[%s5514] sm:$0xff]
          %v6702 = vld [vmem:[%s5514 + $0x8] sm:$0xff]
          %v6703 = vld [vmem:[%s5514 + $0x10] sm:$0xff]
          %v6704 = vld [vmem:[%s5514 + $0x18] sm:$0xff]
          %v6705 = vld [vmem:[%s5514 + $0x20] sm:$0xff]
          %v6706 = vld [vmem:[%s5514 + $0x28] sm:$0xff]
          %v6707 = vld [vmem:[%s5514 + $0x30] sm:$0xff]
          %v6708 = vld [vmem:[%s5514 + $0x38] sm:$0xff]
          %v6709 = vld [vmem:[%s5514 + $0x40] sm:$0xff]
          %v6710 = vld [vmem:[%s5514 + $0x48] sm:$0xff]
          %v6711 = vld [vmem:[%s5514 + $0x50] sm:$0xff]
          %v6712 = vld [vmem:[%s5514 + $0x58] sm:$0xff]
          %v6713 = vld [vmem:[%s5514 + $0x60] sm:$0xff]
          %v6714 = vld [vmem:[%s5514 + $0x68] sm:$0xff]
          %v6715 = vld [vmem:[%s5514 + $0x70] sm:$0xff]
          %v6716 = vld [vmem:[%s5514 + $0x78] sm:$0xff]
          %6718 = vset.pattern.permute.xlu0 0
          %6719 = vperm.xlu0 %6718, %v6685
          %v6720 = vpop.permute.xlu0 %6719
          %6723 = vset.pattern.permute.xlu0 0
          %6724 = vperm.xlu0 %6723, %v6686
          %v6725 = vpop.permute.xlu0 %6724
          %6728 = vset.pattern.permute.xlu0 0
          %6729 = vperm.xlu0 %6728, %v6687
          %v6730 = vpop.permute.xlu0 %6729
          %6733 = vset.pattern.permute.xlu0 0
          %6734 = vperm.xlu0 %6733, %v6688
          %v6735 = vpop.permute.xlu0 %6734
          %6738 = vset.pattern.permute.xlu0 0
          %6739 = vperm.xlu0 %6738, %v6689
          %v6740 = vpop.permute.xlu0 %6739
          %6743 = vset.pattern.permute.xlu0 0
          %6744 = vperm.xlu0 %6743, %v6690
          %v6745 = vpop.permute.xlu0 %6744
          %6748 = vset.pattern.permute.xlu0 0
          %6749 = vperm.xlu0 %6748, %v6691
          %v6750 = vpop.permute.xlu0 %6749
          %6753 = vset.pattern.permute.xlu0 0
          %6754 = vperm.xlu0 %6753, %v6692
          %v6755 = vpop.permute.xlu0 %6754
          %6758 = vset.pattern.permute.xlu0 0
          %6759 = vperm.xlu0 %6758, %v6693
          %v6760 = vpop.permute.xlu0 %6759
          %6763 = vset.pattern.permute.xlu0 0
          %6764 = vperm.xlu0 %6763, %v6694
          %v6765 = vpop.permute.xlu0 %6764
          %6768 = vset.pattern.permute.xlu0 0
          %6769 = vperm.xlu0 %6768, %v6695
          %v6770 = vpop.permute.xlu0 %6769
          %6773 = vset.pattern.permute.xlu0 0
          %6774 = vperm.xlu0 %6773, %v6696
          %v6775 = vpop.permute.xlu0 %6774
          %6778 = vset.pattern.permute.xlu0 0
          %6779 = vperm.xlu0 %6778, %v6697
          %v6780 = vpop.permute.xlu0 %6779
          %6783 = vset.pattern.permute.xlu0 0
          %6784 = vperm.xlu0 %6783, %v6698
          %v6785 = vpop.permute.xlu0 %6784
          %6788 = vset.pattern.permute.xlu0 0
          %6789 = vperm.xlu0 %6788, %v6699
          %v6790 = vpop.permute.xlu0 %6789
          %6793 = vset.pattern.permute.xlu0 0
          %6794 = vperm.xlu0 %6793, %v6700
          %v6795 = vpop.permute.xlu0 %6794
          %v6797 = vmul.f32 %v6701, %v6720
          %v6798 = vmul.f32 %v6702, %v6725
          %v6799 = vmul.f32 %v6703, %v6730
          %v6800 = vmul.f32 %v6704, %v6735
          %v6801 = vmul.f32 %v6705, %v6740
          %v6802 = vmul.f32 %v6706, %v6745
          %v6803 = vmul.f32 %v6707, %v6750
          %v6804 = vmul.f32 %v6708, %v6755
          %v6805 = vmul.f32 %v6709, %v6760
          %v6806 = vmul.f32 %v6710, %v6765
          %v6807 = vmul.f32 %v6711, %v6770
          %v6808 = vmul.f32 %v6712, %v6775
          %v6809 = vmul.f32 %v6713, %v6780
          %v6810 = vmul.f32 %v6714, %v6785
          %v6811 = vmul.f32 %v6715, %v6790
          %v6812 = vmul.f32 %v6716, %v6795
          %v6813 = vpack.c.bf16 %v6798, %v6797
          %v6814 = vpack.c.bf16 %v6800, %v6799
          %v6815 = vpack.c.bf16 %v6802, %v6801
          %v6816 = vpack.c.bf16 %v6804, %v6803
          %v6817 = vpack.c.bf16 %v6806, %v6805
          %v6818 = vpack.c.bf16 %v6808, %v6807
          %v6819 = vpack.c.bf16 %v6810, %v6809
          %v6820 = vpack.c.bf16 %v6812, %v6811
          %s6821 = scalar_lea.vmem %s5, 48
          %v6822 = vld [vmem:[%s6821] sm:$0xf]
          %v6823 = vld [vmem:[%s6821 + $0x4] sm:$0xf]
          %v6824 = vld [vmem:[%s6821 + $0x8] sm:$0xf]
          %v6825 = vld [vmem:[%s6821 + $0xc] sm:$0xf]
          %v6830 = vunpack.c.l.b16 %v6822
          %v6831 = vunpack.c.l.b16 %v6823
          %v6832 = vunpack.c.l.b16 %v6824
          %v6833 = vunpack.c.l.b16 %v6825
          %v6834 = vpack.c.b16 %v6831, %v6830
          %v6835 = vpack.c.b16 %v6833, %v6832
          %v6839 = vsel %vm1738, %v6813, 0
          %v6842 = vsel %vm1738, %v6814, 0
          %v6845 = vsel %vm1738, %v6815, 0
          %v6848 = vsel %vm1738, %v6816, 0
          %v6851 = vsel %vm1738, %v6817, 0
          %v6854 = vsel %vm1738, %v6818, 0
          %v6857 = vsel %vm1738, %v6819, 0
          %v6860 = vsel %vm1738, %v6820, 0
          %6862 = vmatprep.subr.bf16.mxu0 0
          %6863 = vmatpush1.bf16.msra.mxu0 %v6834
          %6864 = vmatprep.subr.bf16.mxu0 0
          %6865 = vmatpush1.bf16.msra.mxu0 %v6835
          %6866 = vmatprep.subr.bf16.mxu0 0
          %6867 = vmatpush1.bf16.msra.mxu0 0
          %6868 = vmatprep.subr.bf16.mxu0 0
          %6869 = vmatpush1.bf16.msra.mxu0 0
          %6870 = vmatprep.subr.bf16.mxu0 0
          %6871 = vmatpush1.bf16.msra.mxu0 0
          %6872 = vmatprep.subr.bf16.mxu0 0
          %6873 = vmatpush1.bf16.msra.mxu0 0
          %6874 = vmatprep.subr.bf16.mxu0 0
          %6875 = vmatpush1.bf16.msra.mxu0 0
          %6876 = vmatprep.subr.bf16.mxu0 0
          %6877 = vmatpush1.bf16.msra.mxu0 0
          %6878 = vmatprep.subr.bf16.mxu0 0
          %6879 = vmatpush1.bf16.msra.mxu0 0
          %6880 = vmatprep.subr.bf16.mxu0 0
          %6881 = vmatpush1.bf16.msra.mxu0 0
          %6882 = vmatprep.subr.bf16.mxu0 0
          %6883 = vmatpush1.bf16.msra.mxu0 0
          %6884 = vmatprep.subr.bf16.mxu0 0
          %6885 = vmatpush1.bf16.msra.mxu0 0
          %6886 = vmatprep.subr.bf16.mxu0 0
          %6887 = vmatpush1.bf16.msra.mxu0 0
          %6888 = vmatprep.subr.bf16.mxu0 0
          %6889 = vmatpush1.bf16.msra.mxu0 0
          %6890 = vmatprep.subr.bf16.mxu0 0
          %6891 = vmatpush1.bf16.msra.mxu0 0
          %6892 = vmatprep.subr.bf16.mxu0 0
          %6893 = vmatpush1.bf16.msra.mxu0 0
          %6894 = vmatprep.mubr.bf16.mxu0 0
          %6895 = vmatmul.mubr.bf16.gmra.mrb[0].mxu0 %v6839
          %v6896 = vpop.f32.mrb[0].mxu0
          %v6897 = vadd.f32 0.0, %v6896
          %v6898 = vpop.f32.mrb[0].mxu0
          %v6899 = vpop.f32.mrb[0].mxu0
          %v6900 = vadd.f32 0.0, %v6899
          %v6901 = vpop.f32.mrb[0].mxu0
          %6902 = vmatprep.mubr.bf16.mxu0 0
          %6903 = vmatmul.mubr.bf16.gmra.mrb[0].mxu0 %v6842
          %v6904 = vpop.f32.mrb[0].mxu0
          %v6905 = vadd.f32 0.0, %v6904
          %v6906 = vpop.f32.mrb[0].mxu0
          %v6907 = vpop.f32.mrb[0].mxu0
          %v6908 = vadd.f32 0.0, %v6907
          %v6909 = vpop.f32.mrb[0].mxu0
          %6910 = vmatprep.mubr.bf16.mxu0 0
          %6911 = vmatmul.mubr.bf16.gmra.mrb[0].mxu0 %v6845
          %v6912 = vpop.f32.mrb[0].mxu0
          %v6913 = vadd.f32 0.0, %v6912
          %v6914 = vpop.f32.mrb[0].mxu0
          %v6915 = vpop.f32.mrb[0].mxu0
          %v6916 = vadd.f32 0.0, %v6915
          %v6917 = vpop.f32.mrb[0].mxu0
          %6918 = vmatprep.mubr.bf16.mxu0 0
          %6919 = vmatmul.mubr.bf16.gmra.mrb[0].mxu0 %v6848
          %v6920 = vpop.f32.mrb[0].mxu0
          %v6921 = vadd.f32 0.0, %v6920
          %v6922 = vpop.f32.mrb[0].mxu0
          %v6923 = vpop.f32.mrb[0].mxu0
          %v6924 = vadd.f32 0.0, %v6923
          %v6925 = vpop.f32.mrb[0].mxu0
          %6926 = vmatprep.mubr.bf16.mxu0 0
          %6927 = vmatmul.mubr.bf16.gmra.mrb[0].mxu0 %v6851
          %v6928 = vpop.f32.mrb[0].mxu0
          %v6929 = vadd.f32 0.0, %v6928
          %v6930 = vpop.f32.mrb[0].mxu0
          %v6931 = vpop.f32.mrb[0].mxu0
          %v6932 = vadd.f32 0.0, %v6931
          %v6933 = vpop.f32.mrb[0].mxu0
          %6934 = vmatprep.mubr.bf16.mxu0 0
          %6935 = vmatmul.mubr.bf16.gmra.mrb[0].mxu0 %v6854
          %v6936 = vpop.f32.mrb[0].mxu0
          %v6937 = vadd.f32 0.0, %v6936
          %v6938 = vpop.f32.mrb[0].mxu0
          %v6939 = vpop.f32.mrb[0].mxu0
          %v6940 = vadd.f32 0.0, %v6939
          %v6941 = vpop.f32.mrb[0].mxu0
          %6942 = vmatprep.mubr.bf16.mxu0 0
          %6943 = vmatmul.mubr.bf16.gmra.mrb[0].mxu0 %v6857
          %v6944 = vpop.f32.mrb[0].mxu0
          %v6945 = vadd.f32 0.0, %v6944
          %v6946 = vpop.f32.mrb[0].mxu0
          %v6947 = vpop.f32.mrb[0].mxu0
          %v6948 = vadd.f32 0.0, %v6947
          %v6949 = vpop.f32.mrb[0].mxu0
          %6950 = vmatprep.mubr.bf16.mxu0 0
          %6951 = vmatmul.mubr.bf16.gmra.mrb[0].mxu0 %v6860
          %v6952 = vpop.f32.mrb[0].mxu0
          %v6953 = vadd.f32 0.0, %v6952
          %v6954 = vpop.f32.mrb[0].mxu0
          %v6955 = vpop.f32.mrb[0].mxu0
          %v6956 = vadd.f32 0.0, %v6955
          %v6957 = vpop.f32.mrb[0].mxu0
          %6958 = vdwg.mxu0
          %v6959 = vadd.f32 %v6653, %v6897
          %v6960 = vadd.f32 %v6654, %v6900
          %v6961 = vadd.f32 %v6655, %v6905
          %v6962 = vadd.f32 %v6656, %v6908
          %v6963 = vadd.f32 %v6657, %v6913
          %v6964 = vadd.f32 %v6658, %v6916
          %v6965 = vadd.f32 %v6659, %v6921
          %v6966 = vadd.f32 %v6660, %v6924
          %v6967 = vadd.f32 %v6661, %v6929
          %v6968 = vadd.f32 %v6662, %v6932
          %v6969 = vadd.f32 %v6663, %v6937
          %v6970 = vadd.f32 %v6664, %v6940
          %v6971 = vadd.f32 %v6665, %v6945
          %v6972 = vadd.f32 %v6666, %v6948
          %v6973 = vadd.f32 %v6667, %v6953
          %v6974 = vadd.f32 %v6668, %v6956
          %v6975 = vld [vmem:[%s6] sm:$0x1]
          %v6977 = vlaneseq
          %v6978 = vshrl.u32 %v6977, 7
          %v6979 = vsub.s32 0, %v6978
          %v6980 = vrot.slane %v6975, %v6979
          %v6982 = vadd.f32 %v6959, %v6980
          %v6983 = vadd.f32 %v6960, %v6980
          %v6984 = vadd.f32 %v6961, %v6980
          %v6985 = vadd.f32 %v6962, %v6980
          %v6986 = vadd.f32 %v6963, %v6980
          %v6987 = vadd.f32 %v6964, %v6980
          %v6988 = vadd.f32 %v6965, %v6980
          %v6989 = vadd.f32 %v6966, %v6980
          %v6990 = vadd.f32 %v6967, %v6980
          %v6991 = vadd.f32 %v6968, %v6980
          %v6992 = vadd.f32 %v6969, %v6980
          %v6993 = vadd.f32 %v6970, %v6980
          %v6994 = vadd.f32 %v6971, %v6980
          %v6995 = vadd.f32 %v6972, %v6980
          %v6996 = vadd.f32 %v6973, %v6980
          %v6997 = vadd.f32 %v6974, %v6980
          %6998 = vst [vmem:[%s329] sm:$0xff] %v6982
          %6999 = vst [vmem:[%s329 + $0x8] sm:$0xff] %v6983
          %7000 = vst [vmem:[%s329 + $0x10] sm:$0xff] %v6984
          %7001 = vst [vmem:[%s329 + $0x18] sm:$0xff] %v6985
          %7002 = vst [vmem:[%s329 + $0x20] sm:$0xff] %v6986
          %7003 = vst [vmem:[%s329 + $0x28] sm:$0xff] %v6987
          %7004 = vst [vmem:[%s329 + $0x30] sm:$0xff] %v6988
          %7005 = vst [vmem:[%s329 + $0x38] sm:$0xff] %v6989
          %7006 = vst [vmem:[%s329 + $0x40] sm:$0xff] %v6990
          %7007 = vst [vmem:[%s329 + $0x48] sm:$0xff] %v6991
          %7008 = vst [vmem:[%s329 + $0x50] sm:$0xff] %v6992
          %7009 = vst [vmem:[%s329 + $0x58] sm:$0xff] %v6993
          %7010 = vst [vmem:[%s329 + $0x60] sm:$0xff] %v6994
          %7011 = vst [vmem:[%s329 + $0x68] sm:$0xff] %v6995
          %7012 = vst [vmem:[%s329 + $0x70] sm:$0xff] %v6996
          %7013 = vst [vmem:[%s329 + $0x78] sm:$0xff] %v6997
        $region56: #{tpu_custom_call.1} parent=47 // pred_fallthru
          _
        %s7014 = sand.u32 %s211, 1
        %s7015 = scalar_lea.sflag [#allocation7], %s7014
        %s7016 = sand.u32 %s211, 1
        %s7017 = smul.addr %s7016, 128
        %s7018 = scalar_lea.vmem [#allocation6], %s7017
        // Predicated region
        $region57: #{tpu_custom_call.1} parent=47 // pred_check
          %p7019 = pneg %p221
        $region58: #{tpu_custom_call.1} parent=47 // pred_check_branch
          %7021 = sbr.rel (%p7019) target = $region60
        $region59: #{tpu_custom_call.1} parent=47 // pred_region
          %s7022 = smul.u32 16, %s27
          %s7024 = ssub.s32 2048, 2048
          %7025 = vsyncadd %s7015, %s7024
          %s7026 = smul.addr %s26, 32
          %s7027 = sadd.s32 %s7022, %s7026
          %s7028 = smul.addr %s7027, 128
          %s7029 = scalar_lea.hbm %s7, %s7028
          %s7030 = sshll.u32 %s7018, 4
          %s7031 = int_to_ptr.vmem [resolvable:$true] %s7030
          %7036 = dma.vmem_to_hbm [thread:$0]  %s7031, 2048, %s7029, %s7015, 128, 128, 8
        $region60: #{tpu_custom_call.1} parent=47 // pred_fallthru
          _
      $region48: #{tpu_custom_call.1} parent=5 // pred_fallthru
        _
      %p7037 = scmp.le.s32.totalorder 2, %s16
      // Predicated region
      $region61: #{tpu_custom_call.1} parent=5 // pred_check
        %p7038 = pneg %p7037
      $region62: #{tpu_custom_call.1} parent=5 // pred_check_branch
        %7040 = sbr.rel (%p7038) target = $region64
      $region63: #{tpu_custom_call.1} parent=5 // pred_region
        %s7041 = ssub.s32 %s16, 2
        // Predicated region
        $region65: #{tpu_custom_call.1} parent=63 // pred_check
          %p7042 = pneg %p227
        $region66: #{tpu_custom_call.1} parent=63 // pred_check_branch
          %7044 = sbr.rel (%p7042) target = $region68
        $region67: #{tpu_custom_call.1} parent=63 // pred_region
          %s7045 = sand.u32 %s212, 1
          %s7046 = scalar_lea.sflag [#allocation7], %s7045
          %s7047 = sand.u32 %s212, 1
          %s7048 = smul.addr %s7047, 128
          %s7049 = scalar_lea.vmem [#allocation6], %s7048
          %7050 = dma.done %s7046, 2048
        $region68: #{tpu_custom_call.1} parent=63 // pred_fallthru
          _
      $region64: #{tpu_custom_call.1} parent=5 // pred_fallthru
        _
    $region6: #{tpu_custom_call.1} parent=1 // loop_footer
      %s20 = sadd.s32 1, %s16
    $region7: #{tpu_custom_call.1} parent=1 // loop_footer_branch
      %15 = sbr.rel target = $region3
    $region8: #{tpu_custom_call.1} parent=1 // loop_exit
      _
    %7051 = vsyncpa [#allocation7], 1
    %s7052 = scalar_lea.sflag [#allocation7], 1
    %7053 = vsyncpa %s7052, 1

</llo_original>
